<compile_context>
chip_gen: v5e
topology: v5e:2x2
jax: 0.10.0
libtpu: 0.0.40
codegen_flags: <defaults>
</compile_context>

<pallas_src>
import functools
import math

import numpy as np
import jax
import jax.numpy as jnp
from jax import lax
from jax.experimental import pallas as pl
from jax.experimental.pallas import tpu as pltpu

EPS = 1e-5  # torch.nn.GroupNorm default eps


# ---------------------------------------------------------------------------
# Kernel: full PAA head for one image (towers + heads), per FPN level
# ---------------------------------------------------------------------------
def _paa_level_kernel(x_ref, tw_ref, tb_ref, tg_ref, tbt_ref, p_ref,
                      hw_ref, hb_ref, hs_ref, o_ref, act_ref, xcat_ref,
                      *, H, W, Cin, C2, num_convs, inv_count):
    HW = H * W
    HWP = (H + 2) * W                       # flattened (H-padded, W) rows
    f32 = jnp.float32

    # --- per-image init ----------------------------------------------------
    # Zero only the two H-halo row bands (they are the only rows read but never
    # written).  Done every grid step so the kernel stays correct when the batch
    # axis is sharded across TensorCores (megacore) and each core owns a scratch.
    act_ref[pl.ds(0, W), :] = jnp.zeros((W, C2), f32)
    act_ref[pl.ds((H + 1) * W, W), :] = jnp.zeros((W, C2), f32)

    # Single (un-duplicated) Cin-channel input; duplicate across both lane halves
    # in VMEM (cls and bbox towers share the same input), so every lane the MXU
    # touches is well defined while the HBM->VMEM input DMA stays Cin wide.
    x_in = x_ref[0]                                        # (HW, Cin) f32
    act_ref[pl.ds(W, HW), pl.ds(0, Cin)] = x_in
    act_ref[pl.ds(W, HW), pl.ds(Cin, Cin)] = x_in

    # W-axis halo masks for the dx = -1 / +1 shifted slabs: column 0 / W-1 must
    # read the zero pad, not the value wrapped in from the neighbouring row.
    w_idx = lax.broadcasted_iota(jnp.int32, (HWP, 1), 0) % W
    not_first = w_idx != 0
    not_last = w_idx != (W - 1)

    def build_xcat():
        # act (HWP, C2) f32 -> xcat (HWP, 3*C2) bf16 = [ x[w-1] | x[w] | x[w+1] ].
        # dx shift = sublane rotation (XLU) + mask; stores are lane-aligned
        # (channel offsets 0, C2, 2*C2 are multiples of 128).
        x = act_ref[...]
        left = jnp.where(not_first, pltpu.roll(x, shift=1, axis=0), 0.0)
        right = jnp.where(not_last, pltpu.roll(x, shift=HWP - 1, axis=0), 0.0)
        xcat_ref[:, pl.ds(0, C2)] = left.astype(jnp.bfloat16)
        xcat_ref[:, pl.ds(C2, C2)] = x.astype(jnp.bfloat16)
        xcat_ref[:, pl.ds(2 * C2, C2)] = right.astype(jnp.bfloat16)

    def conv3x3(w_of_dy):
        # 3x3 "same" conv = 3 bf16 MXU matmuls with K = 3*C2 (dx folded into K),
        # dy via aligned major-row slices of the flattened slab, f32 accumulate.
        acc = jnp.dot(xcat_ref[pl.ds(0, HW), :], w_of_dy(0),
                      preferred_element_type=f32)
        acc += jnp.dot(xcat_ref[pl.ds(W, HW), :], w_of_dy(1),
                       preferred_element_type=f32)
        acc += jnp.dot(xcat_ref[pl.ds(2 * W, HW), :], w_of_dy(2),
                       preferred_element_type=f32)
        return acc

    # --- fused cls/bbox towers (conv + GroupNorm + ReLU, chained in VMEM) ---
    for layer in range(num_convs):
        build_xcat()
        acc = conv3x3(lambda dy, l=layer: tw_ref[l, dy]) + tb_ref[layer]
        # GroupNorm in f32: per-group sums with ONE tiny matmul (rows = [sum_x;
        # sum_x^2]) against the 0/1 group-membership matrix; one-pass variance.
        s1 = jnp.sum(acc, axis=0, keepdims=True)
        s2 = jnp.sum(acc * acc, axis=0, keepdims=True)
        g = jnp.dot(jnp.concatenate([s1, s2], axis=0), p_ref[...],
                    preferred_element_type=f32)
        mean_c = g[0:1] * inv_count
        var_c = g[1:2] * inv_count - mean_c * mean_c
        y = (acc - mean_c) * lax.rsqrt(var_c + EPS) * tg_ref[layer] + tbt_ref[layer]
        act_ref[pl.ds(W, HW), :] = jnp.maximum(y, 0.0)

    # --- fused prediction heads (lane-dense, zero-padded to 128 channels) ---
    # hs scales only the bbox columns by the per-level Scale (after the bias,
    # exactly like Scale(bbox_pred(x))); cls/iou/pad columns get 1.0.
    build_xcat()
    head = (conv3x3(lambda dy: hw_ref[dy]) + hb_ref[...]) * hs_ref[...]
    o_ref[0] = head


# ---------------------------------------------------------------------------
# pallas_call wrapper (one launch per FPN level)
# ---------------------------------------------------------------------------
def _run_level(x, tw, tb, tg, tbt, P, hw, hb, hs, *, H, W, num_convs, gs):
    N, HW, Cin = x.shape
    C2 = P.shape[0]
    Cpad = hw.shape[-1]
    kernel = functools.partial(
        _paa_level_kernel, H=H, W=W, Cin=Cin, C2=C2, num_convs=num_convs,
        inv_count=1.0 / float(H * W * gs))
    # NOTE: VMEM footprint here is ~1.5 MB; at realistic detection sizes raise
    # vmem_limit_bytes and tile H spatially (especially on 64 MiB/TC v7x).
    return pl.pallas_call(
        kernel,
        out_shape=jax.ShapeDtypeStruct((N, HW, Cpad), jnp.float32),
        grid=(N,),
        in_specs=[
            pl.BlockSpec((1, HW, Cin), lambda n: (n, 0, 0)),
            pl.BlockSpec(tw.shape, lambda n: (0, 0, 0, 0)),     # grid-constant
            pl.BlockSpec(tb.shape, lambda n: (0, 0, 0)),
            pl.BlockSpec(tg.shape, lambda n: (0, 0, 0)),
            pl.BlockSpec(tbt.shape, lambda n: (0, 0, 0)),
            pl.BlockSpec(P.shape, lambda n: (0, 0)),
            pl.BlockSpec(hw.shape, lambda n: (0, 0, 0)),
            pl.BlockSpec(hb.shape, lambda n: (0, 0)),
            pl.BlockSpec(hs.shape, lambda n: (0, 0)),
        ],
        out_specs=pl.BlockSpec((1, HW, Cpad), lambda n: (n, 0, 0)),
        scratch_shapes=[
            pltpu.VMEM(((H + 2) * W, C2), jnp.float32),          # activations (f32)
            pltpu.VMEM(((H + 2) * W, 3 * C2), jnp.bfloat16),     # [left|center|right]
        ],
        compiler_params=pltpu.CompilerParams(dimension_semantics=("parallel",)),
    )(x, tw, tb, tg, tbt, P, hw, hb, hs)


# ---------------------------------------------------------------------------
# Fused-parameter construction (one-time, tiny)
# ---------------------------------------------------------------------------
def build_fused_params(params, in_channels, groups, use_iou_pred, lane_pad=128):
    Cin = in_channels
    C2 = 2 * Cin
    assert Cin % groups == 0, "GroupNorm groups must divide in_channels"
    gs = Cin // groups            # channels per group; groups never cross cls/box

    cls_t, box_t = params["cls_tower"], params["bbox_tower"]
    num_convs = len(cls_t)

    def tower_layer_w(layer):
        cw, bw = cls_t[layer][0], box_t[layer][0]          # (3,3,Cin,Cin) HWIO
        per_dy = []
        for dy in range(3):
            per_dx = []
            for dx in range(3):
                if layer == 0:
                    # Dense first layer: single Cin input feeds both towers; rows
                    # for the (unused) upper lane half are zero.
                    top = jnp.concatenate([cw[dy, dx], bw[dy, dx]], axis=1)
                    blk = jnp.concatenate(
                        [top, jnp.zeros((Cin, C2), jnp.float32)], axis=0)
                else:
                    z = jnp.zeros((Cin, Cin), jnp.float32)
                    blk = jnp.concatenate([
                        jnp.concatenate([cw[dy, dx], z], axis=1),
                        jnp.concatenate([z, bw[dy, dx]], axis=1)], axis=0)
                per_dx.append(blk)                          # (C2, C2)
            per_dy.append(jnp.concatenate(per_dx, axis=0))  # (3*C2, C2), dx in K
        return jnp.stack(per_dy)                            # (3, 3*C2, C2)

    tw = jnp.stack([tower_layer_w(l) for l in range(num_convs)]).astype(jnp.bfloat16)

    def catv(i):
        return jnp.stack([jnp.concatenate([c[i], b[i]]).reshape(1, C2)
                          for c, b in zip(cls_t, box_t)])
    tb, tg, tbt = catv(1), catv(2), catv(3)                 # (L, 1, C2) f32

    cls_w, cls_b = params["cls_logits"]
    box_w, box_b = params["bbox_pred"]
    cls_ch, box_ch = cls_w.shape[-1], box_w.shape[-1]
    heads_w, heads_b, iou_ch = [box_w], [box_b], 0
    if use_iou_pred:
        iw, ib = params["iou_pred"]
        heads_w.append(iw)
        heads_b.append(ib)
        iou_ch = iw.shape[-1]
    bi_w = jnp.concatenate(heads_w, axis=3)                 # (3,3,Cin, box+iou)
    bi_b = jnp.concatenate(heads_b)
    Chead = cls_ch + box_ch + iou_ch
    Cpad = max(lane_pad, Chead)                             # lane-dense output width

    hw_dy = []
    for dy in range(3):
        per_dx = []
        for dx in range(3):
            top = jnp.concatenate(
                [cls_w[dy, dx], jnp.zeros((Cin, Chead - cls_ch), jnp.float32)], axis=1)
            bot = jnp.concatenate(
                [jnp.zeros((Cin, cls_ch), jnp.float32), bi_w[dy, dx]], axis=1)
            blk = jnp.pad(jnp.concatenate([top, bot], axis=0),
                          ((0, 0), (0, Cpad - Chead)))      # (C2, Cpad)
            per_dx.append(blk)
        hw_dy.append(jnp.concatenate(per_dx, axis=0))       # (3*C2, Cpad)
    hw = jnp.stack(hw_dy).astype(jnp.bfloat16)              # (3, 3*C2, Cpad)
    hb = jnp.pad(jnp.concatenate([cls_b, bi_b]),
                 (0, Cpad - Chead)).reshape(1, Cpad)

    group_id = np.arange(C2) // gs                          # cls groups then box groups
    P = jnp.asarray((group_id[:, None] == group_id[None, :]).astype(np.float32))

    return dict(tw=tw, tb=tb, tg=tg, tbt=tbt, P=P, hw=hw, hb=hb, gs=gs,
                cls_ch=cls_ch, box_ch=box_ch, iou_ch=iou_ch, Cpad=Cpad)


# ---------------------------------------------------------------------------
# Parameters (deterministic init, mirroring PAAHead.__init__)
# ---------------------------------------------------------------------------
def init_params(key, in_channels, num_convs, num_anchors, num_classes,
                prior_prob, num_scales=5):
    keys = iter(jax.random.split(key, 4 * num_convs + 3))

    def conv_w(cout):
        # torch.nn.init.normal_(weight, std=0.01); stored HWIO.
        return 0.01 * jax.random.normal(next(keys), (3, 3, in_channels, cout),
                                        jnp.float32)

    cls_tower, bbox_tower = [], []
    for _ in range(num_convs):
        cls_tower.append((conv_w(in_channels),
                          jnp.zeros((in_channels,), jnp.float32),
                          jnp.ones((in_channels,), jnp.float32),
                          jnp.zeros((in_channels,), jnp.float32)))
        bbox_tower.append((conv_w(in_channels),
                           jnp.zeros((in_channels,), jnp.float32),
                           jnp.ones((in_channels,), jnp.float32),
                           jnp.zeros((in_channels,), jnp.float32)))

    bias_value = -math.log((1 - prior_prob) / prior_prob)
    return {
        "cls_tower": cls_tower,
        "bbox_tower": bbox_tower,
        "cls_logits": (conv_w(num_anchors * num_classes),
                       jnp.full((num_anchors * num_classes,), bias_value,
                                jnp.float32)),
        "bbox_pred": (conv_w(num_anchors * 4),
                      jnp.zeros((num_anchors * 4,), jnp.float32)),
        "iou_pred": (conv_w(num_anchors * 1),
                     jnp.zeros((num_anchors,), jnp.float32)),
        "scales": [jnp.float32(1.0) for _ in range(num_scales)],  # Scale(init=1.0)
    }


# ---------------------------------------------------------------------------
# PAAModule forward (inference path: head + locations)
# ---------------------------------------------------------------------------
def compute_locations_per_level(h, w, stride):
    shifts_x = jnp.arange(0, w * stride, stride, dtype=jnp.float32)
    shifts_y = jnp.arange(0, h * stride, stride, dtype=jnp.float32)
    shift_y, shift_x = jnp.meshgrid(shifts_y, shifts_x, indexing="ij")
    locations = jnp.stack((shift_x.reshape(-1), shift_y.reshape(-1)),
                          axis=1) + stride // 2
    return locations


def paa_module_forward(features_nchw, params, fpn_strides, groups=32,
                       use_iou_pred=True):
    in_channels = features_nchw[0].shape[1]
    num_convs = len(params["cls_tower"])
    fused = build_fused_params(params, in_channels, groups, use_iou_pred)
    cls_ch, box_ch, iou_ch = fused["cls_ch"], fused["box_ch"], fused["iou_ch"]
    Cpad = fused["Cpad"]

    logits, bbox_reg, iou_preds = [], [], []
    for level, feat in enumerate(features_nchw):
        N, C, H, W = feat.shape
        # NCHW -> flat (N, HW, C); single copy of the input, no cls/box duplication.
        x = jnp.transpose(feat, (0, 2, 3, 1)).reshape(N, H * W, C)
        scale = params["scales"][level]
        hs = jnp.concatenate([
            jnp.ones((cls_ch,), jnp.float32),
            jnp.full((box_ch,), scale, jnp.float32),
            jnp.ones((Cpad - cls_ch - box_ch,), jnp.float32),   # iou + lane padding
        ]).reshape(1, Cpad)

        out = _run_level(x, fused["tw"], fused["tb"], fused["tg"], fused["tbt"],
                         fused["P"], fused["hw"], fused["hb"], hs,
                         H=H, W=W, num_convs=num_convs, gs=fused["gs"])
        # Lane-dense (N, HW, 128) slab -> per-head NCHW outputs (wrapper-side plumbing).
        out = jnp.transpose(out.reshape(N, H, W, Cpad), (0, 3, 1, 2))
        logits.append(out[:, :cls_ch])
        bbox_reg.append(out[:, cls_ch:cls_ch + box_ch])
        if use_iou_pred:
            iou_preds.append(out[:, cls_ch + box_ch:cls_ch + box_ch + iou_ch])

    locations = [compute_locations_per_level(f.shape[2], f.shape[3], s)
                 for f, s in zip(features_nchw, fpn_strides)]

    # TODO(synk): anchor_generator, loss_evaluator (training) and box_selector_test
    # (per-image NMS post-processing) come from external modules not provided and
    # have no clean Pallas equivalent; the module returns the raw head predictions
    # and locations instead.
    return logits, bbox_reg, iou_preds, locations


# ---------------------------------------------------------------------------
# Main
# ---------------------------------------------------------------------------
if __name__ == "__main__":
    # Small synthetic config:
    #   NUM_CLASSES=3 -> num_classes=2, ASPECT_RATIOS=(1.0,), SCALES_PER_OCTAVE=1
    #   -> num_anchors=1, NUM_CONVS=2, USE_IOU_PRED=True, PRIOR_PROB=0.01,
    #   GroupNorm(32, in_channels) -> in_channels=64, 2 FPN levels, strides (8, 16).
    in_channels = 64
    num_convs = 2
    num_classes = 2
    num_anchors = 1
    prior_prob = 0.01
    fpn_strides = (8, 16)

    key = jax.random.PRNGKey(0)
    k_feat, k_param = jax.random.split(key)

    features = [
        jax.random.normal(jax.random.fold_in(k_feat, 0),
                          (2, in_channels, 16, 16), jnp.float32),
        jax.random.normal(jax.random.fold_in(k_feat, 1),
                          (2, in_channels, 8, 8), jnp.float32),
    ]

    params = init_params(k_param, in_channels, num_convs, num_anchors,
                         num_classes, prior_prob)

    out = paa_module_forward(features, params, fpn_strides, groups=32,
                             use_iou_pred=True)
    jax.block_until_ready(out)

    logits, bbox_reg, iou_pred, locations = out
    assert logits[0].shape == (2, num_anchors * num_classes, 16, 16)
    assert logits[1].shape == (2, num_anchors * num_classes, 8, 8)
    assert bbox_reg[0].shape == (2, num_anchors * 4, 16, 16)
    assert iou_pred[0].shape == (2, num_anchors, 16, 16)
    assert locations[0].shape == (16 * 16, 2)
    for arr in logits + bbox_reg + iou_pred:
        assert bool(jnp.isfinite(arr).all())
    print("KERNEL_OK")
</pallas_src>

<mosaic_0001>
module attributes {stable_mosaic.version = 11 : i64} {
  func.func @_paa_level_kernel(%arg0: i32, %arg1: memref<1x256x64xf32, #tpu.memory_space<vmem>>, %arg2: memref<2x3x384x128xbf16, #tpu.memory_space<vmem>>, %arg3: memref<2x1x128xf32, #tpu.memory_space<vmem>>, %arg4: memref<2x1x128xf32, #tpu.memory_space<vmem>>, %arg5: memref<2x1x128xf32, #tpu.memory_space<vmem>>, %arg6: memref<128x128xf32, #tpu.memory_space<vmem>>, %arg7: memref<3x384x128xbf16, #tpu.memory_space<vmem>>, %arg8: memref<1x128xf32, #tpu.memory_space<vmem>>, %arg9: memref<1x128xf32, #tpu.memory_space<vmem>>, %arg10: memref<1x256x128xf32, #tpu.memory_space<vmem>>, %arg11: memref<288x128xf32, #tpu.memory_space<vmem>>, %arg12: memref<288x384xbf16, #tpu.memory_space<vmem>>) attributes {dimension_semantics = [#tpu.dimension_semantics<parallel>], iteration_bounds = array<i64: 2>, scalar_prefetch = 0 : i64, scratch_operands = 2 : i64, tpu.core_type = #tpu.core_type<tc>, window_params = [{transform_indices = @transform_0, window_bounds = array<i64: 1, 256, 64>}, {pipeline_mode = #tpu.pipeline_mode<synchronous>, transform_indices = @transform_1, window_bounds = array<i64: 2, 3, 384, 128>}, {pipeline_mode = #tpu.pipeline_mode<synchronous>, transform_indices = @transform_2, window_bounds = array<i64: 2, 1, 128>}, {pipeline_mode = #tpu.pipeline_mode<synchronous>, transform_indices = @transform_3, window_bounds = array<i64: 2, 1, 128>}, {pipeline_mode = #tpu.pipeline_mode<synchronous>, transform_indices = @transform_4, window_bounds = array<i64: 2, 1, 128>}, {pipeline_mode = #tpu.pipeline_mode<synchronous>, transform_indices = @transform_5, window_bounds = array<i64: 128, 128>}, {pipeline_mode = #tpu.pipeline_mode<synchronous>, transform_indices = @transform_6, window_bounds = array<i64: 3, 384, 128>}, {pipeline_mode = #tpu.pipeline_mode<synchronous>, transform_indices = @transform_7, window_bounds = array<i64: 1, 128>}, {pipeline_mode = #tpu.pipeline_mode<synchronous>, transform_indices = @transform_8, window_bounds = array<i64: 1, 128>}, {transform_indices = @transform_9, window_bounds = array<i64: 1, 256, 128>}]} {
    %cst = arith.constant 0.000000e+00 : f32
    %0 = vector.broadcast %cst : f32 to vector<16x128xf32>
    %c0 = arith.constant 0 : index
    %c0_0 = arith.constant 0 : index
    %1 = vector.load %arg11[%c0, %c0_0] : memref<288x128xf32, #tpu.memory_space<vmem>>, vector<16x128xf32>
    tpu.vector_store %arg11[%c0, %c0_0], %0 {strides = array<i32>} : memref<288x128xf32, #tpu.memory_space<vmem>>, vector<16x128xf32>,
    %cst_1 = arith.constant 0.000000e+00 : f32
    %2 = vector.broadcast %cst_1 : f32 to vector<16x128xf32>
    %c272 = arith.constant 272 : index
    %c0_2 = arith.constant 0 : index
    %3 = vector.load %arg11[%c272, %c0_2] : memref<288x128xf32, #tpu.memory_space<vmem>>, vector<16x128xf32>
    tpu.vector_store %arg11[%c272, %c0_2], %2 {strides = array<i32>} : memref<288x128xf32, #tpu.memory_space<vmem>>, vector<16x128xf32>,
    %c0_3 = arith.constant 0 : index
    %c0_4 = arith.constant 0 : index
    %c0_5 = arith.constant 0 : index
    %4 = vector.load %arg1[%c0_3, %c0_4, %c0_5] : memref<1x256x64xf32, #tpu.memory_space<vmem>>, vector<1x256x64xf32>
    %5 = vector.shape_cast %4 : vector<1x256x64xf32> to vector<256x64xf32>
    %c16 = arith.constant 16 : index
    %c0_6 = arith.constant 0 : index
    %6 = vector.load %arg11[%c16, %c0_6] : memref<288x128xf32, #tpu.memory_space<vmem>>, vector<256x64xf32>
    tpu.vector_store %arg11[%c16, %c0_6], %5 {strides = array<i32>} : memref<288x128xf32, #tpu.memory_space<vmem>>, vector<256x64xf32>,
    %c16_7 = arith.constant 16 : index
    %c64 = arith.constant 64 : index
    %7 = vector.load %arg11[%c16_7, %c64] : memref<288x128xf32, #tpu.memory_space<vmem>>, vector<256x64xf32>
    tpu.vector_store %arg11[%c16_7, %c64], %5 {strides = array<i32>} : memref<288x128xf32, #tpu.memory_space<vmem>>, vector<256x64xf32>,
    %8 = tpu.iota {dimensions = array<i32: 0>} : vector<288x1xi32>
    %c16_i32 = arith.constant 16 : i32
    %c0_i32 = arith.constant 0 : i32
    %9 = arith.cmpi eq, %c16_i32, %c0_i32 : i32
    %c1_i32 = arith.constant 1 : i32
    %10 = arith.select %9, %c1_i32, %c16_i32 : i32
    %11 = vector.broadcast %10 : i32 to vector<288x1xi32>
    %12 = arith.remsi %8, %11 : vector<288x1xi32>
    %c0_i32_8 = arith.constant 0 : i32
    %13 = vector.broadcast %c0_i32_8 : i32 to vector<288x1xi32>
    %14 = arith.cmpi ne, %12, %13 : vector<288x1xi32>
    %c0_i32_9 = arith.constant 0 : i32
    %15 = vector.broadcast %c0_i32_9 : i32 to vector<288x1xi32>
    %16 = arith.cmpi slt, %12, %15 : vector<288x1xi32>
    %c0_i32_10 = arith.constant 0 : i32
    %17 = arith.cmpi slt, %10, %c0_i32_10 : i32
    %18 = vector.broadcast %17 : i1 to vector<288x1xi1>
    %19 = vector.broadcast %18 : vector<288x1xi1> to vector<288x1xi1>
    %20 = arith.xori %16, %19 : vector<288x1xi1>
    %21 = arith.andi %20, %14 : vector<288x1xi1>
    %22 = vector.broadcast %10 : i32 to vector<288x1xi32>
    %23 = arith.addi %12, %22 : vector<288x1xi32>
    %24 = arith.select %21, %23, %12 : vector<288x1xi1>, vector<288x1xi32>
    %c0_i32_11 = arith.constant 0 : i32
    %25 = vector.broadcast %c0_i32_11 : i32 to vector<288x1xi32>
    %26 = arith.cmpi ne, %24, %25 : vector<288x1xi32>
    %c15_i32 = arith.constant 15 : i32
    %27 = vector.broadcast %c15_i32 : i32 to vector<288x1xi32>
    %28 = arith.cmpi ne, %24, %27 : vector<288x1xi32>
    %c0_12 = arith.constant 0 : index
    %c0_13 = arith.constant 0 : index
    %29 = vector.load %arg11[%c0_12, %c0_13] : memref<288x128xf32, #tpu.memory_space<vmem>>, vector<288x128xf32>
    %c1_i32_14 = arith.constant 1 : i32
    %30 = tpu.dynamic_rotate %29 by %c1_i32_14 dim 0 : vector<288x128xf32>, i32 -> vector<288x128xf32>
    %cst_15 = arith.constant 0.000000e+00 : f32
    %31 = vector.shape_cast %26 : vector<288x1xi1> to vector<288x1xi1>
    %32 = vector.broadcast %31 : vector<288x1xi1> to vector<288x128xi1>
    %33 = vector.broadcast %cst_15 : f32 to vector<288x128xf32>
    %34 = arith.select %32, %30, %33 : vector<288x128xi1>, vector<288x128xf32>
    %c287_i32 = arith.constant 287 : i32
    %35 = tpu.dynamic_rotate %29 by %c287_i32 dim 0 : vector<288x128xf32>, i32 -> vector<288x128xf32>
    %cst_16 = arith.constant 0.000000e+00 : f32
    %36 = vector.shape_cast %28 : vector<288x1xi1> to vector<288x1xi1>
    %37 = vector.broadcast %36 : vector<288x1xi1> to vector<288x128xi1>
    %38 = vector.broadcast %cst_16 : f32 to vector<288x128xf32>
    %39 = arith.select %37, %35, %38 : vector<288x128xi1>, vector<288x128xf32>
    %40 = arith.truncf %34 : vector<288x128xf32> to vector<288x128xbf16>
    %c0_17 = arith.constant 0 : index
    %c0_18 = arith.constant 0 : index
    %41 = vector.load %arg12[%c0_17, %c0_18] : memref<288x384xbf16, #tpu.memory_space<vmem>>, vector<288x128xbf16>
    tpu.vector_store %arg12[%c0_17, %c0_18], %40 {strides = array<i32>} : memref<288x384xbf16, #tpu.memory_space<vmem>>, vector<288x128xbf16>,
    %42 = arith.truncf %29 : vector<288x128xf32> to vector<288x128xbf16>
    %c0_19 = arith.constant 0 : index
    %c128 = arith.constant 128 : index
    %43 = vector.load %arg12[%c0_19, %c128] : memref<288x384xbf16, #tpu.memory_space<vmem>>, vector<288x128xbf16>
    tpu.vector_store %arg12[%c0_19, %c128], %42 {strides = array<i32>} : memref<288x384xbf16, #tpu.memory_space<vmem>>, vector<288x128xbf16>,
    %44 = arith.truncf %39 : vector<288x128xf32> to vector<288x128xbf16>
    %c0_20 = arith.constant 0 : index
    %c256 = arith.constant 256 : index
    %45 = vector.load %arg12[%c0_20, %c256] : memref<288x384xbf16, #tpu.memory_space<vmem>>, vector<288x128xbf16>
    tpu.vector_store %arg12[%c0_20, %c256], %44 {strides = array<i32>} : memref<288x384xbf16, #tpu.memory_space<vmem>>, vector<288x128xbf16>,
    %c0_21 = arith.constant 0 : index
    %c0_22 = arith.constant 0 : index
    %46 = vector.load %arg12[%c0_21, %c0_22] : memref<288x384xbf16, #tpu.memory_space<vmem>>, vector<256x384xbf16>
    %c0_23 = arith.constant 0 : index
    %c0_24 = arith.constant 0 : index
    %c0_25 = arith.constant 0 : index
    %c0_26 = arith.constant 0 : index
    %47 = vector.load %arg2[%c0_23, %c0_24, %c0_25, %c0_26] : memref<2x3x384x128xbf16, #tpu.memory_space<vmem>>, vector<1x1x384x128xbf16>
    %48 = vector.shape_cast %47 : vector<1x1x384x128xbf16> to vector<384x128xbf16>
    %cst_27 = arith.constant dense<0.000000e+00> : vector<256x128xf32>
    %49 = tpu.matmul %46, %48, %cst_27 {dimension_numbers = #tpu.dot_dimension_numbers<[1], [0], [0], [1], [0, 0, 1, 1], [], []>} : vector<256x384xbf16>, vector<384x128xbf16>, vector<256x128xf32> -> vector<256x128xf32>
    %c16_28 = arith.constant 16 : index
    %c0_29 = arith.constant 0 : index
    %50 = vector.load %arg12[%c16_28, %c0_29] : memref<288x384xbf16, #tpu.memory_space<vmem>>, vector<256x384xbf16>
    %c0_30 = arith.constant 0 : index
    %c1 = arith.constant 1 : index
    %c0_31 = arith.constant 0 : index
    %c0_32 = arith.constant 0 : index
    %51 = vector.load %arg2[%c0_30, %c1, %c0_31, %c0_32] : memref<2x3x384x128xbf16, #tpu.memory_space<vmem>>, vector<1x1x384x128xbf16>
    %52 = vector.shape_cast %51 : vector<1x1x384x128xbf16> to vector<384x128xbf16>
    %cst_33 = arith.constant dense<0.000000e+00> : vector<256x128xf32>
    %53 = tpu.matmul %50, %52, %cst_33 {dimension_numbers = #tpu.dot_dimension_numbers<[1], [0], [0], [1], [0, 0, 1, 1], [], []>} : vector<256x384xbf16>, vector<384x128xbf16>, vector<256x128xf32> -> vector<256x128xf32>
    %54 = arith.addf %49, %53 : vector<256x128xf32>
    %c32 = arith.constant 32 : index
    %c0_34 = arith.constant 0 : index
    %55 = vector.load %arg12[%c32, %c0_34] : memref<288x384xbf16, #tpu.memory_space<vmem>>, vector<256x384xbf16>
    %c0_35 = arith.constant 0 : index
    %c2 = arith.constant 2 : index
    %c0_36 = arith.constant 0 : index
    %c0_37 = arith.constant 0 : index
    %56 = vector.load %arg2[%c0_35, %c2, %c0_36, %c0_37] : memref<2x3x384x128xbf16, #tpu.memory_space<vmem>>, vector<1x1x384x128xbf16>
    %57 = vector.shape_cast %56 : vector<1x1x384x128xbf16> to vector<384x128xbf16>
    %cst_38 = arith.constant dense<0.000000e+00> : vector<256x128xf32>
    %58 = tpu.matmul %55, %57, %cst_38 {dimension_numbers = #tpu.dot_dimension_numbers<[1], [0], [0], [1], [0, 0, 1, 1], [], []>} : vector<256x384xbf16>, vector<384x128xbf16>, vector<256x128xf32> -> vector<256x128xf32>
    %59 = arith.addf %54, %58 : vector<256x128xf32>
    %c0_39 = arith.constant 0 : index
    %c0_40 = arith.constant 0 : index
    %c0_41 = arith.constant 0 : index
    %60 = vector.load %arg3[%c0_39, %c0_40, %c0_41] : memref<2x1x128xf32, #tpu.memory_space<vmem>>, vector<1x1x128xf32>
    %61 = vector.shape_cast %60 : vector<1x1x128xf32> to vector<1x128xf32>
    %62 = vector.broadcast %61 : vector<1x128xf32> to vector<256x128xf32>
    %63 = arith.addf %59, %62 : vector<256x128xf32>
    %cst_42 = arith.constant dense<0.000000e+00> : vector<128xf32>
    %64 = vector.multi_reduction <add>, %63, %cst_42 [0] : vector<256x128xf32> to vector<128xf32>
    %65 = vector.shape_cast %64 : vector<128xf32> to vector<1x128xf32>
    %66 = arith.mulf %63, %63 : vector<256x128xf32>
    %cst_43 = arith.constant dense<0.000000e+00> : vector<128xf32>
    %67 = vector.multi_reduction <add>, %66, %cst_43 [0] : vector<256x128xf32> to vector<128xf32>
    %68 = vector.shape_cast %67 : vector<128xf32> to vector<1x128xf32>
    %69 = tpu.concatenate %65, %68 in 0 : vector<1x128xf32>, vector<1x128xf32> -> vector<2x128xf32>
    %c0_44 = arith.constant 0 : index
    %c0_45 = arith.constant 0 : index
    %70 = vector.load %arg6[%c0_44, %c0_45] : memref<128x128xf32, #tpu.memory_space<vmem>>, vector<128x128xf32>
    %cst_46 = arith.constant dense<0.000000e+00> : vector<2x128xf32>
    %71 = tpu.matmul %69, %70, %cst_46 {dimension_numbers = #tpu.dot_dimension_numbers<[1], [0], [0], [1], [0, 0, 1, 1], [], []>} : vector<2x128xf32>, vector<128x128xf32>, vector<2x128xf32> -> vector<2x128xf32>
    %72 = vector.extract_strided_slice %71 {offsets = [0, 0], sizes = [1, 128], strides = [1, 1]} : vector<2x128xf32> to vector<1x128xf32>
    %cst_47 = arith.constant 0.001953125 : f32
    %73 = vector.broadcast %cst_47 : f32 to vector<1x128xf32>
    %74 = arith.mulf %72, %73 : vector<1x128xf32>
    %75 = vector.extract_strided_slice %71 {offsets = [1, 0], sizes = [1, 128], strides = [1, 1]} : vector<2x128xf32> to vector<1x128xf32>
    %cst_48 = arith.constant 0.001953125 : f32
    %76 = vector.broadcast %cst_48 : f32 to vector<1x128xf32>
    %77 = arith.mulf %75, %76 : vector<1x128xf32>
    %78 = arith.mulf %74, %74 : vector<1x128xf32>
    %79 = arith.subf %77, %78 : vector<1x128xf32>
    %80 = vector.broadcast %74 : vector<1x128xf32> to vector<256x128xf32>
    %81 = arith.subf %63, %80 : vector<256x128xf32>
    %cst_49 = arith.constant 9.99999974E-6 : f32
    %82 = vector.broadcast %cst_49 : f32 to vector<1x128xf32>
    %83 = arith.addf %79, %82 : vector<1x128xf32>
    %84 = math.rsqrt %83 : vector<1x128xf32>
    %85 = vector.broadcast %84 : vector<1x128xf32> to vector<256x128xf32>
    %86 = arith.mulf %81, %85 : vector<256x128xf32>
    %c0_50 = arith.constant 0 : index
    %c0_51 = arith.constant 0 : index
    %c0_52 = arith.constant 0 : index
    %87 = vector.load %arg4[%c0_50, %c0_51, %c0_52] : memref<2x1x128xf32, #tpu.memory_space<vmem>>, vector<1x1x128xf32>
    %88 = vector.shape_cast %87 : vector<1x1x128xf32> to vector<1x128xf32>
    %89 = vector.broadcast %88 : vector<1x128xf32> to vector<256x128xf32>
    %90 = arith.mulf %86, %89 : vector<256x128xf32>
    %c0_53 = arith.constant 0 : index
    %c0_54 = arith.constant 0 : index
    %c0_55 = arith.constant 0 : index
    %91 = vector.load %arg5[%c0_53, %c0_54, %c0_55] : memref<2x1x128xf32, #tpu.memory_space<vmem>>, vector<1x1x128xf32>
    %92 = vector.shape_cast %91 : vector<1x1x128xf32> to vector<1x128xf32>
    %93 = vector.broadcast %92 : vector<1x128xf32> to vector<256x128xf32>
    %94 = arith.addf %90, %93 : vector<256x128xf32>
    %cst_56 = arith.constant 0.000000e+00 : f32
    %95 = vector.broadcast %cst_56 : f32 to vector<256x128xf32>
    %96 = arith.maximumf %94, %95 : vector<256x128xf32>
    %c16_57 = arith.constant 16 : index
    %c0_58 = arith.constant 0 : index
    %97 = vector.load %arg11[%c16_57, %c0_58] : memref<288x128xf32, #tpu.memory_space<vmem>>, vector<256x128xf32>
    tpu.vector_store %arg11[%c16_57, %c0_58], %96 {strides = array<i32>} : memref<288x128xf32, #tpu.memory_space<vmem>>, vector<256x128xf32>,
    %c0_59 = arith.constant 0 : index
    %c0_60 = arith.constant 0 : index
    %98 = vector.load %arg11[%c0_59, %c0_60] : memref<288x128xf32, #tpu.memory_space<vmem>>, vector<288x128xf32>
    %c1_i32_61 = arith.constant 1 : i32
    %99 = tpu.dynamic_rotate %98 by %c1_i32_61 dim 0 : vector<288x128xf32>, i32 -> vector<288x128xf32>
    %cst_62 = arith.constant 0.000000e+00 : f32
    %100 = vector.shape_cast %26 : vector<288x1xi1> to vector<288x1xi1>
    %101 = vector.broadcast %100 : vector<288x1xi1> to vector<288x128xi1>
    %102 = vector.broadcast %cst_62 : f32 to vector<288x128xf32>
    %103 = arith.select %101, %99, %102 : vector<288x128xi1>, vector<288x128xf32>
    %c287_i32_63 = arith.constant 287 : i32
    %104 = tpu.dynamic_rotate %98 by %c287_i32_63 dim 0 : vector<288x128xf32>, i32 -> vector<288x128xf32>
    %cst_64 = arith.constant 0.000000e+00 : f32
    %105 = vector.shape_cast %28 : vector<288x1xi1> to vector<288x1xi1>
    %106 = vector.broadcast %105 : vector<288x1xi1> to vector<288x128xi1>
    %107 = vector.broadcast %cst_64 : f32 to vector<288x128xf32>
    %108 = arith.select %106, %104, %107 : vector<288x128xi1>, vector<288x128xf32>
    %109 = arith.truncf %103 : vector<288x128xf32> to vector<288x128xbf16>
    %c0_65 = arith.constant 0 : index
    %c0_66 = arith.constant 0 : index
    %110 = vector.load %arg12[%c0_65, %c0_66] : memref<288x384xbf16, #tpu.memory_space<vmem>>, vector<288x128xbf16>
    tpu.vector_store %arg12[%c0_65, %c0_66], %109 {strides = array<i32>} : memref<288x384xbf16, #tpu.memory_space<vmem>>, vector<288x128xbf16>,
    %111 = arith.truncf %98 : vector<288x128xf32> to vector<288x128xbf16>
    %c0_67 = arith.constant 0 : index
    %c128_68 = arith.constant 128 : index
    %112 = vector.load %arg12[%c0_67, %c128_68] : memref<288x384xbf16, #tpu.memory_space<vmem>>, vector<288x128xbf16>
    tpu.vector_store %arg12[%c0_67, %c128_68], %111 {strides = array<i32>} : memref<288x384xbf16, #tpu.memory_space<vmem>>, vector<288x128xbf16>,
    %113 = arith.truncf %108 : vector<288x128xf32> to vector<288x128xbf16>
    %c0_69 = arith.constant 0 : index
    %c256_70 = arith.constant 256 : index
    %114 = vector.load %arg12[%c0_69, %c256_70] : memref<288x384xbf16, #tpu.memory_space<vmem>>, vector<288x128xbf16>
    tpu.vector_store %arg12[%c0_69, %c256_70], %113 {strides = array<i32>} : memref<288x384xbf16, #tpu.memory_space<vmem>>, vector<288x128xbf16>,
    %c0_71 = arith.constant 0 : index
    %c0_72 = arith.constant 0 : index
    %115 = vector.load %arg12[%c0_71, %c0_72] : memref<288x384xbf16, #tpu.memory_space<vmem>>, vector<256x384xbf16>
    %c1_73 = arith.constant 1 : index
    %c0_74 = arith.constant 0 : index
    %c0_75 = arith.constant 0 : index
    %c0_76 = arith.constant 0 : index
    %116 = vector.load %arg2[%c1_73, %c0_74, %c0_75, %c0_76] : memref<2x3x384x128xbf16, #tpu.memory_space<vmem>>, vector<1x1x384x128xbf16>
    %117 = vector.shape_cast %116 : vector<1x1x384x128xbf16> to vector<384x128xbf16>
    %cst_77 = arith.constant dense<0.000000e+00> : vector<256x128xf32>
    %118 = tpu.matmul %115, %117, %cst_77 {dimension_numbers = #tpu.dot_dimension_numbers<[1], [0], [0], [1], [0, 0, 1, 1], [], []>} : vector<256x384xbf16>, vector<384x128xbf16>, vector<256x128xf32> -> vector<256x128xf32>
    %c16_78 = arith.constant 16 : index
    %c0_79 = arith.constant 0 : index
    %119 = vector.load %arg12[%c16_78, %c0_79] : memref<288x384xbf16, #tpu.memory_space<vmem>>, vector<256x384xbf16>
    %c1_80 = arith.constant 1 : index
    %c1_81 = arith.constant 1 : index
    %c0_82 = arith.constant 0 : index
    %c0_83 = arith.constant 0 : index
    %120 = vector.load %arg2[%c1_80, %c1_81, %c0_82, %c0_83] : memref<2x3x384x128xbf16, #tpu.memory_space<vmem>>, vector<1x1x384x128xbf16>
    %121 = vector.shape_cast %120 : vector<1x1x384x128xbf16> to vector<384x128xbf16>
    %cst_84 = arith.constant dense<0.000000e+00> : vector<256x128xf32>
    %122 = tpu.matmul %119, %121, %cst_84 {dimension_numbers = #tpu.dot_dimension_numbers<[1], [0], [0], [1], [0, 0, 1, 1], [], []>} : vector<256x384xbf16>, vector<384x128xbf16>, vector<256x128xf32> -> vector<256x128xf32>
    %123 = arith.addf %118, %122 : vector<256x128xf32>
    %c32_85 = arith.constant 32 : index
    %c0_86 = arith.constant 0 : index
    %124 = vector.load %arg12[%c32_85, %c0_86] : memref<288x384xbf16, #tpu.memory_space<vmem>>, vector<256x384xbf16>
    %c1_87 = arith.constant 1 : index
    %c2_88 = arith.constant 2 : index
    %c0_89 = arith.constant 0 : index
    %c0_90 = arith.constant 0 : index
    %125 = vector.load %arg2[%c1_87, %c2_88, %c0_89, %c0_90] : memref<2x3x384x128xbf16, #tpu.memory_space<vmem>>, vector<1x1x384x128xbf16>
    %126 = vector.shape_cast %125 : vector<1x1x384x128xbf16> to vector<384x128xbf16>
    %cst_91 = arith.constant dense<0.000000e+00> : vector<256x128xf32>
    %127 = tpu.matmul %124, %126, %cst_91 {dimension_numbers = #tpu.dot_dimension_numbers<[1], [0], [0], [1], [0, 0, 1, 1], [], []>} : vector<256x384xbf16>, vector<384x128xbf16>, vector<256x128xf32> -> vector<256x128xf32>
    %128 = arith.addf %123, %127 : vector<256x128xf32>
    %c1_92 = arith.constant 1 : index
    %c0_93 = arith.constant 0 : index
    %c0_94 = arith.constant 0 : index
    %129 = vector.load %arg3[%c1_92, %c0_93, %c0_94] : memref<2x1x128xf32, #tpu.memory_space<vmem>>, vector<1x1x128xf32>
    %130 = vector.shape_cast %129 : vector<1x1x128xf32> to vector<1x128xf32>
    %131 = vector.broadcast %130 : vector<1x128xf32> to vector<256x128xf32>
    %132 = arith.addf %128, %131 : vector<256x128xf32>
    %cst_95 = arith.constant dense<0.000000e+00> : vector<128xf32>
    %133 = vector.multi_reduction <add>, %132, %cst_95 [0] : vector<256x128xf32> to vector<128xf32>
    %134 = vector.shape_cast %133 : vector<128xf32> to vector<1x128xf32>
    %135 = arith.mulf %132, %132 : vector<256x128xf32>
    %cst_96 = arith.constant dense<0.000000e+00> : vector<128xf32>
    %136 = vector.multi_reduction <add>, %135, %cst_96 [0] : vector<256x128xf32> to vector<128xf32>
    %137 = vector.shape_cast %136 : vector<128xf32> to vector<1x128xf32>
    %138 = tpu.concatenate %134, %137 in 0 : vector<1x128xf32>, vector<1x128xf32> -> vector<2x128xf32>
    %c0_97 = arith.constant 0 : index
    %c0_98 = arith.constant 0 : index
    %139 = vector.load %arg6[%c0_97, %c0_98] : memref<128x128xf32, #tpu.memory_space<vmem>>, vector<128x128xf32>
    %cst_99 = arith.constant dense<0.000000e+00> : vector<2x128xf32>
    %140 = tpu.matmul %138, %139, %cst_99 {dimension_numbers = #tpu.dot_dimension_numbers<[1], [0], [0], [1], [0, 0, 1, 1], [], []>} : vector<2x128xf32>, vector<128x128xf32>, vector<2x128xf32> -> vector<2x128xf32>
    %141 = vector.extract_strided_slice %140 {offsets = [0, 0], sizes = [1, 128], strides = [1, 1]} : vector<2x128xf32> to vector<1x128xf32>
    %cst_100 = arith.constant 0.001953125 : f32
    %142 = vector.broadcast %cst_100 : f32 to vector<1x128xf32>
    %143 = arith.mulf %141, %142 : vector<1x128xf32>
    %144 = vector.extract_strided_slice %140 {offsets = [1, 0], sizes = [1, 128], strides = [1, 1]} : vector<2x128xf32> to vector<1x128xf32>
    %cst_101 = arith.constant 0.001953125 : f32
    %145 = vector.broadcast %cst_101 : f32 to vector<1x128xf32>
    %146 = arith.mulf %144, %145 : vector<1x128xf32>
    %147 = arith.mulf %143, %143 : vector<1x128xf32>
    %148 = arith.subf %146, %147 : vector<1x128xf32>
    %149 = vector.broadcast %143 : vector<1x128xf32> to vector<256x128xf32>
    %150 = arith.subf %132, %149 : vector<256x128xf32>
    %cst_102 = arith.constant 9.99999974E-6 : f32
    %151 = vector.broadcast %cst_102 : f32 to vector<1x128xf32>
    %152 = arith.addf %148, %151 : vector<1x128xf32>
    %153 = math.rsqrt %152 : vector<1x128xf32>
    %154 = vector.broadcast %153 : vector<1x128xf32> to vector<256x128xf32>
    %155 = arith.mulf %150, %154 : vector<256x128xf32>
    %c1_103 = arith.constant 1 : index
    %c0_104 = arith.constant 0 : index
    %c0_105 = arith.constant 0 : index
    %156 = vector.load %arg4[%c1_103, %c0_104, %c0_105] : memref<2x1x128xf32, #tpu.memory_space<vmem>>, vector<1x1x128xf32>
    %157 = vector.shape_cast %156 : vector<1x1x128xf32> to vector<1x128xf32>
    %158 = vector.broadcast %157 : vector<1x128xf32> to vector<256x128xf32>
    %159 = arith.mulf %155, %158 : vector<256x128xf32>
    %c1_106 = arith.constant 1 : index
    %c0_107 = arith.constant 0 : index
    %c0_108 = arith.constant 0 : index
    %160 = vector.load %arg5[%c1_106, %c0_107, %c0_108] : memref<2x1x128xf32, #tpu.memory_space<vmem>>, vector<1x1x128xf32>
    %161 = vector.shape_cast %160 : vector<1x1x128xf32> to vector<1x128xf32>
    %162 = vector.broadcast %161 : vector<1x128xf32> to vector<256x128xf32>
    %163 = arith.addf %159, %162 : vector<256x128xf32>
    %cst_109 = arith.constant 0.000000e+00 : f32
    %164 = vector.broadcast %cst_109 : f32 to vector<256x128xf32>
    %165 = arith.maximumf %163, %164 : vector<256x128xf32>
    %c16_110 = arith.constant 16 : index
    %c0_111 = arith.constant 0 : index
    %166 = vector.load %arg11[%c16_110, %c0_111] : memref<288x128xf32, #tpu.memory_space<vmem>>, vector<256x128xf32>
    tpu.vector_store %arg11[%c16_110, %c0_111], %165 {strides = array<i32>} : memref<288x128xf32, #tpu.memory_space<vmem>>, vector<256x128xf32>,
    %c0_112 = arith.constant 0 : index
    %c0_113 = arith.constant 0 : index
    %167 = vector.load %arg11[%c0_112, %c0_113] : memref<288x128xf32, #tpu.memory_space<vmem>>, vector<288x128xf32>
    %c1_i32_114 = arith.constant 1 : i32
    %168 = tpu.dynamic_rotate %167 by %c1_i32_114 dim 0 : vector<288x128xf32>, i32 -> vector<288x128xf32>
    %cst_115 = arith.constant 0.000000e+00 : f32
    %169 = vector.shape_cast %26 : vector<288x1xi1> to vector<288x1xi1>
    %170 = vector.broadcast %169 : vector<288x1xi1> to vector<288x128xi1>
    %171 = vector.broadcast %cst_115 : f32 to vector<288x128xf32>
    %172 = arith.select %170, %168, %171 : vector<288x128xi1>, vector<288x128xf32>
    %c287_i32_116 = arith.constant 287 : i32
    %173 = tpu.dynamic_rotate %167 by %c287_i32_116 dim 0 : vector<288x128xf32>, i32 -> vector<288x128xf32>
    %cst_117 = arith.constant 0.000000e+00 : f32
    %174 = vector.shape_cast %28 : vector<288x1xi1> to vector<288x1xi1>
    %175 = vector.broadcast %174 : vector<288x1xi1> to vector<288x128xi1>
    %176 = vector.broadcast %cst_117 : f32 to vector<288x128xf32>
    %177 = arith.select %175, %173, %176 : vector<288x128xi1>, vector<288x128xf32>
    %178 = arith.truncf %172 : vector<288x128xf32> to vector<288x128xbf16>
    %c0_118 = arith.constant 0 : index
    %c0_119 = arith.constant 0 : index
    %179 = vector.load %arg12[%c0_118, %c0_119] : memref<288x384xbf16, #tpu.memory_space<vmem>>, vector<288x128xbf16>
    tpu.vector_store %arg12[%c0_118, %c0_119], %178 {strides = array<i32>} : memref<288x384xbf16, #tpu.memory_space<vmem>>, vector<288x128xbf16>,
    %180 = arith.truncf %167 : vector<288x128xf32> to vector<288x128xbf16>
    %c0_120 = arith.constant 0 : index
    %c128_121 = arith.constant 128 : index
    %181 = vector.load %arg12[%c0_120, %c128_121] : memref<288x384xbf16, #tpu.memory_space<vmem>>, vector<288x128xbf16>
    tpu.vector_store %arg12[%c0_120, %c128_121], %180 {strides = array<i32>} : memref<288x384xbf16, #tpu.memory_space<vmem>>, vector<288x128xbf16>,
    %182 = arith.truncf %177 : vector<288x128xf32> to vector<288x128xbf16>
    %c0_122 = arith.constant 0 : index
    %c256_123 = arith.constant 256 : index
    %183 = vector.load %arg12[%c0_122, %c256_123] : memref<288x384xbf16, #tpu.memory_space<vmem>>, vector<288x128xbf16>
    tpu.vector_store %arg12[%c0_122, %c256_123], %182 {strides = array<i32>} : memref<288x384xbf16, #tpu.memory_space<vmem>>, vector<288x128xbf16>,
    %c0_124 = arith.constant 0 : index
    %c0_125 = arith.constant 0 : index
    %184 = vector.load %arg12[%c0_124, %c0_125] : memref<288x384xbf16, #tpu.memory_space<vmem>>, vector<256x384xbf16>
    %c0_126 = arith.constant 0 : index
    %c0_127 = arith.constant 0 : index
    %c0_128 = arith.constant 0 : index
    %185 = vector.load %arg7[%c0_126, %c0_127, %c0_128] : memref<3x384x128xbf16, #tpu.memory_space<vmem>>, vector<1x384x128xbf16>
    %186 = vector.shape_cast %185 : vector<1x384x128xbf16> to vector<384x128xbf16>
    %cst_129 = arith.constant dense<0.000000e+00> : vector<256x128xf32>
    %187 = tpu.matmul %184, %186, %cst_129 {dimension_numbers = #tpu.dot_dimension_numbers<[1], [0], [0], [1], [0, 0, 1, 1], [], []>} : vector<256x384xbf16>, vector<384x128xbf16>, vector<256x128xf32> -> vector<256x128xf32>
    %c16_130 = arith.constant 16 : index
    %c0_131 = arith.constant 0 : index
    %188 = vector.load %arg12[%c16_130, %c0_131] : memref<288x384xbf16, #tpu.memory_space<vmem>>, vector<256x384xbf16>
    %c1_132 = arith.constant 1 : index
    %c0_133 = arith.constant 0 : index
    %c0_134 = arith.constant 0 : index
    %189 = vector.load %arg7[%c1_132, %c0_133, %c0_134] : memref<3x384x128xbf16, #tpu.memory_space<vmem>>, vector<1x384x128xbf16>
    %190 = vector.shape_cast %189 : vector<1x384x128xbf16> to vector<384x128xbf16>
    %cst_135 = arith.constant dense<0.000000e+00> : vector<256x128xf32>
    %191 = tpu.matmul %188, %190, %cst_135 {dimension_numbers = #tpu.dot_dimension_numbers<[1], [0], [0], [1], [0, 0, 1, 1], [], []>} : vector<256x384xbf16>, vector<384x128xbf16>, vector<256x128xf32> -> vector<256x128xf32>
    %192 = arith.addf %187, %191 : vector<256x128xf32>
    %c32_136 = arith.constant 32 : index
    %c0_137 = arith.constant 0 : index
    %193 = vector.load %arg12[%c32_136, %c0_137] : memref<288x384xbf16, #tpu.memory_space<vmem>>, vector<256x384xbf16>
    %c2_138 = arith.constant 2 : index
    %c0_139 = arith.constant 0 : index
    %c0_140 = arith.constant 0 : index
    %194 = vector.load %arg7[%c2_138, %c0_139, %c0_140] : memref<3x384x128xbf16, #tpu.memory_space<vmem>>, vector<1x384x128xbf16>
    %195 = vector.shape_cast %194 : vector<1x384x128xbf16> to vector<384x128xbf16>
    %cst_141 = arith.constant dense<0.000000e+00> : vector<256x128xf32>
    %196 = tpu.matmul %193, %195, %cst_141 {dimension_numbers = #tpu.dot_dimension_numbers<[1], [0], [0], [1], [0, 0, 1, 1], [], []>} : vector<256x384xbf16>, vector<384x128xbf16>, vector<256x128xf32> -> vector<256x128xf32>
    %197 = arith.addf %192, %196 : vector<256x128xf32>
    %c0_142 = arith.constant 0 : index
    %c0_143 = arith.constant 0 : index
    %198 = vector.load %arg8[%c0_142, %c0_143] : memref<1x128xf32, #tpu.memory_space<vmem>>, vector<1x128xf32>
    %199 = vector.broadcast %198 : vector<1x128xf32> to vector<256x128xf32>
    %200 = arith.addf %197, %199 : vector<256x128xf32>
    %c0_144 = arith.constant 0 : index
    %c0_145 = arith.constant 0 : index
    %201 = vector.load %arg9[%c0_144, %c0_145] : memref<1x128xf32, #tpu.memory_space<vmem>>, vector<1x128xf32>
    %202 = vector.broadcast %201 : vector<1x128xf32> to vector<256x128xf32>
    %203 = arith.mulf %200, %202 : vector<256x128xf32>
    %c0_146 = arith.constant 0 : index
    %c0_147 = arith.constant 0 : index
    %c0_148 = arith.constant 0 : index
    %204 = vector.load %arg10[%c0_146, %c0_147, %c0_148] : memref<1x256x128xf32, #tpu.memory_space<vmem>>, vector<1x256x128xf32>
    %205 = vector.shape_cast %204 : vector<1x256x128xf32> to vector<256x128xf32>
    %206 = vector.shape_cast %203 : vector<256x128xf32> to vector<1x256x128xf32>
    tpu.vector_store %arg10[%c0_146, %c0_147, %c0_148], %206 {strides = array<i32>} : memref<1x256x128xf32, #tpu.memory_space<vmem>>, vector<1x256x128xf32>,
    return
  }
  func.func @transform_0(%arg0: i32) -> (i32, i32, i32) {
    %c0_i32 = arith.constant 0 : i32
    %c0_i32_0 = arith.constant 0 : i32
    %c0_i32_1 = arith.constant 0 : i32
    return %arg0, %c0_i32, %c0_i32_0 : i32, i32, i32
  }
  func.func @transform_1(%arg0: i32) -> (i32, i32, i32, i32) {
    %c0_i32 = arith.constant 0 : i32
    %c0_i32_0 = arith.constant 0 : i32
    %c0_i32_1 = arith.constant 0 : i32
    %c0_i32_2 = arith.constant 0 : i32
    %c0_i32_3 = arith.constant 0 : i32
    return %c0_i32, %c0_i32_0, %c0_i32_1, %c0_i32_2 : i32, i32, i32, i32
  }
  func.func @transform_2(%arg0: i32) -> (i32, i32, i32) {
    %c0_i32 = arith.constant 0 : i32
    %c0_i32_0 = arith.constant 0 : i32
    %c0_i32_1 = arith.constant 0 : i32
    %c0_i32_2 = arith.constant 0 : i32
    return %c0_i32, %c0_i32_0, %c0_i32_1 : i32, i32, i32
  }
  func.func @transform_3(%arg0: i32) -> (i32, i32, i32) {
    %c0_i32 = arith.constant 0 : i32
    %c0_i32_0 = arith.constant 0 : i32
    %c0_i32_1 = arith.constant 0 : i32
    %c0_i32_2 = arith.constant 0 : i32
    return %c0_i32, %c0_i32_0, %c0_i32_1 : i32, i32, i32
  }
  func.func @transform_4(%arg0: i32) -> (i32, i32, i32) {
    %c0_i32 = arith.constant 0 : i32
    %c0_i32_0 = arith.constant 0 : i32
    %c0_i32_1 = arith.constant 0 : i32
    %c0_i32_2 = arith.constant 0 : i32
    return %c0_i32, %c0_i32_0, %c0_i32_1 : i32, i32, i32
  }
  func.func @transform_5(%arg0: i32) -> (i32, i32) {
    %c0_i32 = arith.constant 0 : i32
    %c0_i32_0 = arith.constant 0 : i32
    %c0_i32_1 = arith.constant 0 : i32
    return %c0_i32, %c0_i32_0 : i32, i32
  }
  func.func @transform_6(%arg0: i32) -> (i32, i32, i32) {
    %c0_i32 = arith.constant 0 : i32
    %c0_i32_0 = arith.constant 0 : i32
    %c0_i32_1 = arith.constant 0 : i32
    %c0_i32_2 = arith.constant 0 : i32
    return %c0_i32, %c0_i32_0, %c0_i32_1 : i32, i32, i32
  }
  func.func @transform_7(%arg0: i32) -> (i32, i32) {
    %c0_i32 = arith.constant 0 : i32
    %c0_i32_0 = arith.constant 0 : i32
    %c0_i32_1 = arith.constant 0 : i32
    return %c0_i32, %c0_i32_0 : i32, i32
  }
  func.func @transform_8(%arg0: i32) -> (i32, i32) {
    %c0_i32 = arith.constant 0 : i32
    %c0_i32_0 = arith.constant 0 : i32
    %c0_i32_1 = arith.constant 0 : i32
    return %c0_i32, %c0_i32_0 : i32, i32
  }
  func.func @transform_9(%arg0: i32) -> (i32, i32, i32) {
    %c0_i32 = arith.constant 0 : i32
    %c0_i32_0 = arith.constant 0 : i32
    %c0_i32_1 = arith.constant 0 : i32
    return %arg0, %c0_i32, %c0_i32_0 : i32, i32, i32
  }
}

</mosaic_0001>

<llo_original>
// kernel: tpu_custom_call.1
$region0: #{tpu_custom_call.1}
  #allocation0 [shape = 'u32[]', space=smem, size = 0x4, offset = 0x4, fixed_abs, tag = 'smem constant byte address 0x4 - core index']
  #allocation1 [shape = 'u32[72,128]{1,0:T(1,128)}', space=vmem, size = 0x9000, scoped, tag = 'internal scratch']
  #allocation2 [shape = 'f32[288,128]{1,0:T(8,128)}', space=vmem, size = 0x24000, scoped, tag = 'scratch operand']
  #allocation3 [shape = 'bf16[288,384]{1,0:T(8,128)(2,1)}', space=vmem, size = 0x36000, scoped, tag = 'scratch operand']
  %s0 = inlined_call_operand.vmem [shape: f32[2,256,64], index: 0, kind: input, shape index: {}]
  %s1 = inlined_call_operand.hbm [shape: bf16[2,3,384,128], index: 1, kind: input, shape index: {}]
  %s2 = inlined_call_operand.vmem [shape: f32[2,1,128], index: 2, kind: input, shape index: {}]
  %s3 = inlined_call_operand.vmem [shape: f32[2,1,128], index: 3, kind: input, shape index: {}]
  %s4 = inlined_call_operand.vmem [shape: f32[2,1,128], index: 4, kind: input, shape index: {}]
  %s5 = inlined_call_operand.vmem [shape: f32[128,128], index: 5, kind: input, shape index: {}]
  %s6 = inlined_call_operand.vmem [shape: bf16[3,384,128], index: 6, kind: input, shape index: {}]
  %s7 = inlined_call_operand.vmem [shape: f32[1,128], index: 7, kind: input, shape index: {}]
  %s8 = inlined_call_operand.vmem [shape: f32[1,128], index: 8, kind: input, shape index: {}]
  %s9 = inlined_call_operand.hbm [shape: f32[2,256,128], index: 9, kind: output, shape index: {}]
  %s10 = sld [smem:[#allocation0]]
  $region73: #{tpu_custom_call.1} parent=0
    _
  %s12 = ssub.s32 1, %s10
  %s13 = scalar_select 0, %s12, %s10
  $region1: #{tpu_custom_call.1} parent=0
    #allocation4 [shape = 'u8[589824]{0}', space=vmem, size = 0x90000, scoped, tag = 'input window, operand 1, single buffered']
    #allocation5 [shape = 's32[2]{0}', space=sflag, size = 0x8, scoped, tag = 'scoped memory for tpu_custom_call.1']
    #allocation6 [shape = 's32[2]{0}', space=sflag, size = 0x8, scoped, tag = 'scoped memory for tpu_custom_call.1']
    #allocation7 [shape = 'u8[262144]{0}', space=vmem, size = 0x40000, scoped, tag = 'output window, operand 0']
    %14 = vsyncpa [#allocation5], 0
    %15 = vsyncpa [#allocation6], 0
    %s16 = scalar_lea.sflag [#allocation6], 1
    %17 = vsyncpa %s16, 0
    loop: start=0, step=1, limit=4
    $region2: #{tpu_custom_call.1} parent=1 // loop_pre_header
      _
    $region3: #{tpu_custom_call.1} parent=1 // loop_header
      %s19 = sphi 0, %s23
      %p20 = scmp.ge.s32.totalorder %s19, 4
      %s29 = sphi 0, %s31
      %s32 = sphi 0, %s29
      %s33 = sphi 0, %s32
      %s49 = sphi 0, %s33
      %s53 = sphi 0, %s53
      %s55 = sphi 0, %s53
      %s56 = sphi 0, %s55
      %s70 = sphi 0, %s56
      %s74 = sphi 0, %s74
      %s76 = sphi 0, %s74
      %s77 = sphi 0, %s76
      %s91 = sphi 0, %s77
      %s95 = sphi 0, %s95
      %s97 = sphi 0, %s95
      %s98 = sphi 0, %s97
      %s112 = sphi 0, %s98
      %s116 = sphi 0, %s116
      %s118 = sphi 0, %s116
      %s119 = sphi 0, %s118
      %s133 = sphi 0, %s119
      %s137 = sphi 0, %s137
      %s139 = sphi 0, %s137
      %s140 = sphi 0, %s139
      %s154 = sphi 0, %s140
      %s158 = sphi 0, %s158
      %s160 = sphi 0, %s158
      %s161 = sphi 0, %s160
      %s175 = sphi 0, %s161
      %s179 = sphi 0, %s179
      %s181 = sphi 0, %s179
      %s182 = sphi 0, %s181
      %s196 = sphi 0, %s182
      %s200 = sphi 0, %s200
      %s202 = sphi 0, %s200
      %s203 = sphi 0, %s202
      %s217 = sphi 0, %s203
      %s223 = sphi 0, %s225
      %s226 = sphi 0, %s223
      %s227 = sphi 0, %s226
      %s243 = sphi 0, %s227
    $region4: #{tpu_custom_call.1} parent=1 // loop_header_branch
      %22 = sbr.rel (%p20) target = $region8
    $region5: #{tpu_custom_call.1} parent=1 // loop_body
      %s24 = ssub.s32 %s19, 1
      %s25 = ssub.s32 %s19, 2
      %s26 = sadd.s32 %s19, 1
      %s27 = ssub.s32 %s19, %s26
      %p28 = scmp.eq.s32.totalorder %s27, 0
      %s30 = sadd.s32 %s29, 1
      %s31 = scalar_select %p28, %s29, %s30
      %p34 = pneg %p28
      %p35 = scmp.eq.s32.totalorder %s19, 1
      %p36 = por %p34, %p35
      %p37 = scmp.ne.s32.totalorder %s29, %s32
      %p38 = scmp.eq.s32.totalorder %s19, 0
      %p39 = por %p37, %p38
      %p40 = scmp.ne.s32.totalorder %s29, %s32
      %p41 = scmp.eq.s32.totalorder %s24, 1
      %p42 = por %p40, %p41
      %p43 = scmp.ne.s32.totalorder %s32, %s33
      %p44 = scmp.eq.s32.totalorder %s24, 0
      %p45 = por %p43, %p44
      %p46 = scmp.ne.s32.totalorder %s32, %s33
      %p47 = scmp.eq.s32.totalorder %s25, 1
      %p48 = por %p46, %p47
      %p50 = scmp.ne.s32.totalorder %s33, %s49
      %p51 = scmp.eq.s32.totalorder %s25, 0
      %p52 = por %p50, %p51
      %s54 = sadd.s32 %s53, 1
      %p57 = scmp.eq.s32.totalorder %s19, 1
      %p58 = scmp.ne.s32.totalorder %s53, %s55
      %p59 = scmp.eq.s32.totalorder %s19, 0
      %p60 = por %p58, %p59
      %p61 = scmp.ne.s32.totalorder %s53, %s55
      %p62 = scmp.eq.s32.totalorder %s24, 1
      %p63 = por %p61, %p62
      %p64 = scmp.ne.s32.totalorder %s55, %s56
      %p65 = scmp.eq.s32.totalorder %s24, 0
      %p66 = por %p64, %p65
      %p67 = scmp.ne.s32.totalorder %s55, %s56
      %p68 = scmp.eq.s32.totalorder %s25, 1
      %p69 = por %p67, %p68
      %p71 = scmp.ne.s32.totalorder %s56, %s70
      %p72 = scmp.eq.s32.totalorder %s25, 0
      %p73 = por %p71, %p72
      %s75 = sadd.s32 %s74, 1
      %p78 = scmp.eq.s32.totalorder %s19, 1
      %p79 = scmp.ne.s32.totalorder %s74, %s76
      %p80 = scmp.eq.s32.totalorder %s19, 0
      %p81 = por %p79, %p80
      %p82 = scmp.ne.s32.totalorder %s74, %s76
      %p83 = scmp.eq.s32.totalorder %s24, 1
      %p84 = por %p82, %p83
      %p85 = scmp.ne.s32.totalorder %s76, %s77
      %p86 = scmp.eq.s32.totalorder %s24, 0
      %p87 = por %p85, %p86
      %p88 = scmp.ne.s32.totalorder %s76, %s77
      %p89 = scmp.eq.s32.totalorder %s25, 1
      %p90 = por %p88, %p89
      %p92 = scmp.ne.s32.totalorder %s77, %s91
      %p93 = scmp.eq.s32.totalorder %s25, 0
      %p94 = por %p92, %p93
      %s96 = sadd.s32 %s95, 1
      %p99 = scmp.eq.s32.totalorder %s19, 1
      %p100 = scmp.ne.s32.totalorder %s95, %s97
      %p101 = scmp.eq.s32.totalorder %s19, 0
      %p102 = por %p100, %p101
      %p103 = scmp.ne.s32.totalorder %s95, %s97
      %p104 = scmp.eq.s32.totalorder %s24, 1
      %p105 = por %p103, %p104
      %p106 = scmp.ne.s32.totalorder %s97, %s98
      %p107 = scmp.eq.s32.totalorder %s24, 0
      %p108 = por %p106, %p107
      %p109 = scmp.ne.s32.totalorder %s97, %s98
      %p110 = scmp.eq.s32.totalorder %s25, 1
      %p111 = por %p109, %p110
      %p113 = scmp.ne.s32.totalorder %s98, %s112
      %p114 = scmp.eq.s32.totalorder %s25, 0
      %p115 = por %p113, %p114
      %s117 = sadd.s32 %s116, 1
      %p120 = scmp.eq.s32.totalorder %s19, 1
      %p121 = scmp.ne.s32.totalorder %s116, %s118
      %p122 = scmp.eq.s32.totalorder %s19, 0
      %p123 = por %p121, %p122
      %p124 = scmp.ne.s32.totalorder %s116, %s118
      %p125 = scmp.eq.s32.totalorder %s24, 1
      %p126 = por %p124, %p125
      %p127 = scmp.ne.s32.totalorder %s118, %s119
      %p128 = scmp.eq.s32.totalorder %s24, 0
      %p129 = por %p127, %p128
      %p130 = scmp.ne.s32.totalorder %s118, %s119
      %p131 = scmp.eq.s32.totalorder %s25, 1
      %p132 = por %p130, %p131
      %p134 = scmp.ne.s32.totalorder %s119, %s133
      %p135 = scmp.eq.s32.totalorder %s25, 0
      %p136 = por %p134, %p135
      %s138 = sadd.s32 %s137, 1
      %p141 = scmp.eq.s32.totalorder %s19, 1
      %p142 = scmp.ne.s32.totalorder %s137, %s139
      %p143 = scmp.eq.s32.totalorder %s19, 0
      %p144 = por %p142, %p143
      %p145 = scmp.ne.s32.totalorder %s137, %s139
      %p146 = scmp.eq.s32.totalorder %s24, 1
      %p147 = por %p145, %p146
      %p148 = scmp.ne.s32.totalorder %s139, %s140
      %p149 = scmp.eq.s32.totalorder %s24, 0
      %p150 = por %p148, %p149
      %p151 = scmp.ne.s32.totalorder %s139, %s140
      %p152 = scmp.eq.s32.totalorder %s25, 1
      %p153 = por %p151, %p152
      %p155 = scmp.ne.s32.totalorder %s140, %s154
      %p156 = scmp.eq.s32.totalorder %s25, 0
      %p157 = por %p155, %p156
      %s159 = sadd.s32 %s158, 1
      %p162 = scmp.eq.s32.totalorder %s19, 1
      %p163 = scmp.ne.s32.totalorder %s158, %s160
      %p164 = scmp.eq.s32.totalorder %s19, 0
      %p165 = por %p163, %p164
      %p166 = scmp.ne.s32.totalorder %s158, %s160
      %p167 = scmp.eq.s32.totalorder %s24, 1
      %p168 = por %p166, %p167
      %p169 = scmp.ne.s32.totalorder %s160, %s161
      %p170 = scmp.eq.s32.totalorder %s24, 0
      %p171 = por %p169, %p170
      %p172 = scmp.ne.s32.totalorder %s160, %s161
      %p173 = scmp.eq.s32.totalorder %s25, 1
      %p174 = por %p172, %p173
      %p176 = scmp.ne.s32.totalorder %s161, %s175
      %p177 = scmp.eq.s32.totalorder %s25, 0
      %p178 = por %p176, %p177
      %s180 = sadd.s32 %s179, 1
      %p183 = scmp.eq.s32.totalorder %s19, 1
      %p184 = scmp.ne.s32.totalorder %s179, %s181
      %p185 = scmp.eq.s32.totalorder %s19, 0
      %p186 = por %p184, %p185
      %p187 = scmp.ne.s32.totalorder %s179, %s181
      %p188 = scmp.eq.s32.totalorder %s24, 1
      %p189 = por %p187, %p188
      %p190 = scmp.ne.s32.totalorder %s181, %s182
      %p191 = scmp.eq.s32.totalorder %s24, 0
      %p192 = por %p190, %p191
      %p193 = scmp.ne.s32.totalorder %s181, %s182
      %p194 = scmp.eq.s32.totalorder %s25, 1
      %p195 = por %p193, %p194
      %p197 = scmp.ne.s32.totalorder %s182, %s196
      %p198 = scmp.eq.s32.totalorder %s25, 0
      %p199 = por %p197, %p198
      %s201 = sadd.s32 %s200, 1
      %p204 = scmp.eq.s32.totalorder %s19, 1
      %p205 = scmp.ne.s32.totalorder %s200, %s202
      %p206 = scmp.eq.s32.totalorder %s19, 0
      %p207 = por %p205, %p206
      %p208 = scmp.ne.s32.totalorder %s200, %s202
      %p209 = scmp.eq.s32.totalorder %s24, 1
      %p210 = por %p208, %p209
      %p211 = scmp.ne.s32.totalorder %s202, %s203
      %p212 = scmp.eq.s32.totalorder %s24, 0
      %p213 = por %p211, %p212
      %p214 = scmp.ne.s32.totalorder %s202, %s203
      %p215 = scmp.eq.s32.totalorder %s25, 1
      %p216 = por %p214, %p215
      %p218 = scmp.ne.s32.totalorder %s203, %s217
      %p219 = scmp.eq.s32.totalorder %s25, 0
      %p220 = por %p218, %p219
      %s221 = ssub.s32 %s19, %s26
      %p222 = scmp.eq.s32.totalorder %s221, 0
      %s224 = sadd.s32 %s223, 1
      %s225 = scalar_select %p222, %s223, %s224
      %p228 = pneg %p222
      %p229 = scmp.eq.s32.totalorder %s19, 1
      %p230 = por %p228, %p229
      %p231 = scmp.ne.s32.totalorder %s223, %s226
      %p232 = scmp.eq.s32.totalorder %s19, 0
      %p233 = por %p231, %p232
      %p234 = scmp.ne.s32.totalorder %s223, %s226
      %p235 = scmp.eq.s32.totalorder %s24, 1
      %p236 = por %p234, %p235
      %p237 = scmp.ne.s32.totalorder %s226, %s227
      %p238 = scmp.eq.s32.totalorder %s24, 0
      %p239 = por %p237, %p238
      %p240 = scmp.ne.s32.totalorder %s226, %s227
      %p241 = scmp.eq.s32.totalorder %s25, 1
      %p242 = por %p240, %p241
      %p244 = scmp.ne.s32.totalorder %s227, %s243
      %p245 = scmp.eq.s32.totalorder %s25, 0
      %p246 = por %p244, %p245
      %p247 = scmp.le.s32.totalorder 1, %s19
      %p248 = scmp.lt.s32.totalorder %s19, 3
      %p249 = pnand %p247, %p248
      %p250 = pneg %p249
      // Predicated region
      $region9: #{tpu_custom_call.1} parent=5 // pred_check
        _
      $region10: #{tpu_custom_call.1} parent=5 // pred_check_branch
        %252 = sbr.rel (%p249) target = $region12
      $region11: #{tpu_custom_call.1} parent=5 // pred_region
        %s253 = ssub.s32 %s19, 1
        // Predicated region
        $region13: #{tpu_custom_call.1} parent=11 // pred_check
          %p254 = pneg %p66
        $region14: #{tpu_custom_call.1} parent=11 // pred_check_branch
          %256 = sbr.rel (%p254) target = $region16
        $region15: #{tpu_custom_call.1} parent=11 // pred_region
          %258 = vsyncadd [#allocation5], 0
          %s259 = sshll.u32 %s1, 4
          %s260 = int_to_ptr.hbm [resolvable:$true] %s259
          %s261 = sshll.u32 [#allocation4], 4
          %s262 = int_to_ptr.vmem [resolvable:$true] %s261
          %267 = dma.hbm_to_vmem [thread:$0]  %s260, 18432, %s262, [#allocation5], 64, 64, 4
        $region16: #{tpu_custom_call.1} parent=11 // pred_fallthru
          _
        // Predicated region
        $region17: #{tpu_custom_call.1} parent=11 // pred_check
          %p268 = pneg %p87
        $region18: #{tpu_custom_call.1} parent=11 // pred_check_branch
          %270 = sbr.rel (%p268) target = $region20
        $region19: #{tpu_custom_call.1} parent=11 // pred_region
          _
        $region20: #{tpu_custom_call.1} parent=11 // pred_fallthru
          _
        // Predicated region
        $region21: #{tpu_custom_call.1} parent=11 // pred_check
          %p271 = pneg %p108
        $region22: #{tpu_custom_call.1} parent=11 // pred_check_branch
          %273 = sbr.rel (%p271) target = $region24
        $region23: #{tpu_custom_call.1} parent=11 // pred_region
          _
        $region24: #{tpu_custom_call.1} parent=11 // pred_fallthru
          _
        // Predicated region
        $region25: #{tpu_custom_call.1} parent=11 // pred_check
          %p274 = pneg %p129
        $region26: #{tpu_custom_call.1} parent=11 // pred_check_branch
          %276 = sbr.rel (%p274) target = $region28
        $region27: #{tpu_custom_call.1} parent=11 // pred_region
          _
        $region28: #{tpu_custom_call.1} parent=11 // pred_fallthru
          _
        // Predicated region
        $region29: #{tpu_custom_call.1} parent=11 // pred_check
          %p277 = pneg %p150
        $region30: #{tpu_custom_call.1} parent=11 // pred_check_branch
          %279 = sbr.rel (%p277) target = $region32
        $region31: #{tpu_custom_call.1} parent=11 // pred_region
          _
        $region32: #{tpu_custom_call.1} parent=11 // pred_fallthru
          _
        // Predicated region
        $region33: #{tpu_custom_call.1} parent=11 // pred_check
          %p280 = pneg %p171
        $region34: #{tpu_custom_call.1} parent=11 // pred_check_branch
          %282 = sbr.rel (%p280) target = $region36
        $region35: #{tpu_custom_call.1} parent=11 // pred_region
          _
        $region36: #{tpu_custom_call.1} parent=11 // pred_fallthru
          _
        // Predicated region
        $region37: #{tpu_custom_call.1} parent=11 // pred_check
          %p283 = pneg %p192
        $region38: #{tpu_custom_call.1} parent=11 // pred_check_branch
          %285 = sbr.rel (%p283) target = $region40
        $region39: #{tpu_custom_call.1} parent=11 // pred_region
          _
        $region40: #{tpu_custom_call.1} parent=11 // pred_fallthru
          _
        // Predicated region
        $region41: #{tpu_custom_call.1} parent=11 // pred_check
          %p286 = pneg %p213
        $region42: #{tpu_custom_call.1} parent=11 // pred_check_branch
          %288 = sbr.rel (%p286) target = $region44
        $region43: #{tpu_custom_call.1} parent=11 // pred_region
          _
        $region44: #{tpu_custom_call.1} parent=11 // pred_fallthru
          _
      $region12: #{tpu_custom_call.1} parent=5 // pred_fallthru
        _
      %p289 = scmp.lt.s32.totalorder %s19, 2
      // Predicated region
      $region45: #{tpu_custom_call.1} parent=5 // pred_check
        %p290 = pneg %p289
      $region46: #{tpu_custom_call.1} parent=5 // pred_check_branch
        %292 = sbr.rel (%p290) target = $region48
      $region47: #{tpu_custom_call.1} parent=5 // pred_region
        // Predicated region
        $region49: #{tpu_custom_call.1} parent=47 // pred_check
          %p293 = pneg %p39
        $region50: #{tpu_custom_call.1} parent=47 // pred_check_branch
          %295 = sbr.rel (%p293) target = $region52
        $region51: #{tpu_custom_call.1} parent=47 // pred_region
          %p296 = scmp.lt.s32.totalorder %s19, 1
          %s297 = scalar_select %p296, %s19, 1
          %s298 = smul.addr %s297, 32
          %s299 = smul.addr %s298, 8
          %s300 = scalar_lea.vmem %s0, %s299
        $region52: #{tpu_custom_call.1} parent=47 // pred_fallthru
          _
      $region48: #{tpu_custom_call.1} parent=5 // pred_fallthru
        _
      %p301 = scmp.le.s32.totalorder 1, %s19
      %p302 = scmp.lt.s32.totalorder %s19, 3
      %p303 = pnand %p301, %p302
      %p304 = pneg %p303
      // Predicated region
      $region53: #{tpu_custom_call.1} parent=5 // pred_check
        _
      $region54: #{tpu_custom_call.1} parent=5 // pred_check_branch
        %306 = sbr.rel (%p303) target = $region56
      $region55: #{tpu_custom_call.1} parent=5 // pred_region
        %s307 = ssub.s32 %s19, 1
        // Predicated region
        $region57: #{tpu_custom_call.1} parent=55 // pred_check
          %p308 = pneg %p66
        $region58: #{tpu_custom_call.1} parent=55 // pred_check_branch
          %310 = sbr.rel (%p308) target = $region60
        $region59: #{tpu_custom_call.1} parent=55 // pred_region
          %312 = dma.done [#allocation5], 18432
        $region60: #{tpu_custom_call.1} parent=55 // pred_fallthru
          _
        %p313 = scmp.lt.s32.totalorder %s24, 1
        %s314 = scalar_select %p313, %s24, 1
        %s315 = smul.addr %s314, 32
        %s316 = smul.addr %s315, 8
        %s317 = scalar_lea.vmem %s0, %s316
        %p318 = pneg %p45
        %p319 = pneg %p42
        %p320 = pneg %p66
        %p321 = pneg %p63
        %p322 = pneg %p87
        %p323 = pneg %p84
        %p324 = pneg %p108
        %p325 = pneg %p105
        %p326 = pneg %p129
        %p327 = pneg %p126
        %p328 = pneg %p150
        %p329 = pneg %p147
        %p330 = pneg %p171
        %p331 = pneg %p168
        %p332 = pneg %p192
        %p333 = pneg %p189
        %p334 = pneg %p213
        %p335 = pneg %p210
        %p336 = pneg %p239
        %p337 = pneg %p236
        %s338 = sand.u32 %s226, 1
        %s339 = scalar_lea.sflag [#allocation6], %s338
        %s340 = sand.u32 %s226, 1
        %s341 = smul.addr %s340, 256
        %s342 = scalar_lea.vmem [#allocation7], %s341
        %p343 = scmp.lt.s32.totalorder %s24, 1
        %s344 = scalar_select %p343, %s24, 1
        %s345 = smul.addr %s344, 32
        %s346 = smul.addr %s345, 8
        %s347 = scalar_lea.vmem %s0, %s346
        %348 = vst [vmem:[#allocation2] sm:$0xff] 0.0
        %349 = vst [vmem:[#allocation2 + $0x8] sm:$0xff] 0.0
        %350 = vst [vmem:[#allocation2 + $0x110] sm:$0xff] 0.0
        %351 = vst [vmem:[#allocation2 + $0x118] sm:$0xff] 0.0
        %v352 = vld [vmem:[%s347] sm:$0xff]
        %v353 = vld [vmem:[%s347 + $0x8] sm:$0xff]
        %v354 = vld [vmem:[%s347 + $0x10] sm:$0xff]
        %v355 = vld [vmem:[%s347 + $0x18] sm:$0xff]
        %v356 = vld [vmem:[%s347 + $0x20] sm:$0xff]
        %v357 = vld [vmem:[%s347 + $0x28] sm:$0xff]
        %v358 = vld [vmem:[%s347 + $0x30] sm:$0xff]
        %v359 = vld [vmem:[%s347 + $0x38] sm:$0xff]
        %v360 = vld [vmem:[%s347 + $0x40] sm:$0xff]
        %v361 = vld [vmem:[%s347 + $0x48] sm:$0xff]
        %v362 = vld [vmem:[%s347 + $0x50] sm:$0xff]
        %v363 = vld [vmem:[%s347 + $0x58] sm:$0xff]
        %v364 = vld [vmem:[%s347 + $0x60] sm:$0xff]
        %v365 = vld [vmem:[%s347 + $0x68] sm:$0xff]
        %v366 = vld [vmem:[%s347 + $0x70] sm:$0xff]
        %v367 = vld [vmem:[%s347 + $0x78] sm:$0xff]
        %v368 = vld [vmem:[%s347 + $0x80] sm:$0xff]
        %v369 = vld [vmem:[%s347 + $0x88] sm:$0xff]
        %v370 = vld [vmem:[%s347 + $0x90] sm:$0xff]
        %v371 = vld [vmem:[%s347 + $0x98] sm:$0xff]
        %v372 = vld [vmem:[%s347 + $0xa0] sm:$0xff]
        %v373 = vld [vmem:[%s347 + $0xa8] sm:$0xff]
        %v374 = vld [vmem:[%s347 + $0xb0] sm:$0xff]
        %v375 = vld [vmem:[%s347 + $0xb8] sm:$0xff]
        %v376 = vld [vmem:[%s347 + $0xc0] sm:$0xff]
        %v377 = vld [vmem:[%s347 + $0xc8] sm:$0xff]
        %v378 = vld [vmem:[%s347 + $0xd0] sm:$0xff]
        %v379 = vld [vmem:[%s347 + $0xd8] sm:$0xff]
        %v380 = vld [vmem:[%s347 + $0xe0] sm:$0xff]
        %v381 = vld [vmem:[%s347 + $0xe8] sm:$0xff]
        %v382 = vld [vmem:[%s347 + $0xf0] sm:$0xff]
        %v383 = vld [vmem:[%s347 + $0xf8] sm:$0xff]
        %vm384 = vcmask 523264
        %385 = vst.msk [vmem:[#allocation2 + $0x10] sm:$0xff] %vm384, %v352
        %386 = vst.msk [vmem:[#allocation2 + $0x18] sm:$0xff] %vm384, %v353
        %387 = vst.msk [vmem:[#allocation2 + $0x20] sm:$0xff] %vm384, %v354
        %388 = vst.msk [vmem:[#allocation2 + $0x28] sm:$0xff] %vm384, %v355
        %389 = vst.msk [vmem:[#allocation2 + $0x30] sm:$0xff] %vm384, %v356
        %390 = vst.msk [vmem:[#allocation2 + $0x38] sm:$0xff] %vm384, %v357
        %391 = vst.msk [vmem:[#allocation2 + $0x40] sm:$0xff] %vm384, %v358
        %392 = vst.msk [vmem:[#allocation2 + $0x48] sm:$0xff] %vm384, %v359
        %393 = vst.msk [vmem:[#allocation2 + $0x50] sm:$0xff] %vm384, %v360
        %394 = vst.msk [vmem:[#allocation2 + $0x58] sm:$0xff] %vm384, %v361
        %395 = vst.msk [vmem:[#allocation2 + $0x60] sm:$0xff] %vm384, %v362
        %396 = vst.msk [vmem:[#allocation2 + $0x68] sm:$0xff] %vm384, %v363
        %397 = vst.msk [vmem:[#allocation2 + $0x70] sm:$0xff] %vm384, %v364
        %398 = vst.msk [vmem:[#allocation2 + $0x78] sm:$0xff] %vm384, %v365
        %399 = vst.msk [vmem:[#allocation2 + $0x80] sm:$0xff] %vm384, %v366
        %400 = vst.msk [vmem:[#allocation2 + $0x88] sm:$0xff] %vm384, %v367
        %401 = vst.msk [vmem:[#allocation2 + $0x90] sm:$0xff] %vm384, %v368
        %402 = vst.msk [vmem:[#allocation2 + $0x98] sm:$0xff] %vm384, %v369
        %403 = vst.msk [vmem:[#allocation2 + $0xa0] sm:$0xff] %vm384, %v370
        %404 = vst.msk [vmem:[#allocation2 + $0xa8] sm:$0xff] %vm384, %v371
        %405 = vst.msk [vmem:[#allocation2 + $0xb0] sm:$0xff] %vm384, %v372
        %406 = vst.msk [vmem:[#allocation2 + $0xb8] sm:$0xff] %vm384, %v373
        %407 = vst.msk [vmem:[#allocation2 + $0xc0] sm:$0xff] %vm384, %v374
        %408 = vst.msk [vmem:[#allocation2 + $0xc8] sm:$0xff] %vm384, %v375
        %409 = vst.msk [vmem:[#allocation2 + $0xd0] sm:$0xff] %vm384, %v376
        %410 = vst.msk [vmem:[#allocation2 + $0xd8] sm:$0xff] %vm384, %v377
        %411 = vst.msk [vmem:[#allocation2 + $0xe0] sm:$0xff] %vm384, %v378
        %412 = vst.msk [vmem:[#allocation2 + $0xe8] sm:$0xff] %vm384, %v379
        %413 = vst.msk [vmem:[#allocation2 + $0xf0] sm:$0xff] %vm384, %v380
        %414 = vst.msk [vmem:[#allocation2 + $0xf8] sm:$0xff] %vm384, %v381
        %415 = vst.msk [vmem:[#allocation2 + $0x100] sm:$0xff] %vm384, %v382
        %416 = vst.msk [vmem:[#allocation2 + $0x108] sm:$0xff] %vm384, %v383
        %449 = vrot.lane.b32.xlu0 %v352, 64
        %v450 = vpop.permute.xlu0 %449
        %451 = vrot.lane.b32.xlu0 %v353, 64
        %v452 = vpop.permute.xlu0 %451
        %453 = vrot.lane.b32.xlu0 %v354, 64
        %v454 = vpop.permute.xlu0 %453
        %455 = vrot.lane.b32.xlu0 %v355, 64
        %v456 = vpop.permute.xlu0 %455
        %457 = vrot.lane.b32.xlu0 %v356, 64
        %v458 = vpop.permute.xlu0 %457
        %459 = vrot.lane.b32.xlu0 %v357, 64
        %v460 = vpop.permute.xlu0 %459
        %461 = vrot.lane.b32.xlu0 %v358, 64
        %v462 = vpop.permute.xlu0 %461
        %463 = vrot.lane.b32.xlu0 %v359, 64
        %v464 = vpop.permute.xlu0 %463
        %465 = vrot.lane.b32.xlu0 %v360, 64
        %v466 = vpop.permute.xlu0 %465
        %467 = vrot.lane.b32.xlu0 %v361, 64
        %v468 = vpop.permute.xlu0 %467
        %469 = vrot.lane.b32.xlu0 %v362, 64
        %v470 = vpop.permute.xlu0 %469
        %471 = vrot.lane.b32.xlu0 %v363, 64
        %v472 = vpop.permute.xlu0 %471
        %473 = vrot.lane.b32.xlu0 %v364, 64
        %v474 = vpop.permute.xlu0 %473
        %475 = vrot.lane.b32.xlu0 %v365, 64
        %v476 = vpop.permute.xlu0 %475
        %477 = vrot.lane.b32.xlu0 %v366, 64
        %v478 = vpop.permute.xlu0 %477
        %479 = vrot.lane.b32.xlu0 %v367, 64
        %v480 = vpop.permute.xlu0 %479
        %481 = vrot.lane.b32.xlu0 %v368, 64
        %v482 = vpop.permute.xlu0 %481
        %483 = vrot.lane.b32.xlu0 %v369, 64
        %v484 = vpop.permute.xlu0 %483
        %485 = vrot.lane.b32.xlu0 %v370, 64
        %v486 = vpop.permute.xlu0 %485
        %487 = vrot.lane.b32.xlu0 %v371, 64
        %v488 = vpop.permute.xlu0 %487
        %489 = vrot.lane.b32.xlu0 %v372, 64
        %v490 = vpop.permute.xlu0 %489
        %491 = vrot.lane.b32.xlu0 %v373, 64
        %v492 = vpop.permute.xlu0 %491
        %493 = vrot.lane.b32.xlu0 %v374, 64
        %v494 = vpop.permute.xlu0 %493
        %495 = vrot.lane.b32.xlu0 %v375, 64
        %v496 = vpop.permute.xlu0 %495
        %497 = vrot.lane.b32.xlu0 %v376, 64
        %v498 = vpop.permute.xlu0 %497
        %499 = vrot.lane.b32.xlu0 %v377, 64
        %v500 = vpop.permute.xlu0 %499
        %501 = vrot.lane.b32.xlu0 %v378, 64
        %v502 = vpop.permute.xlu0 %501
        %503 = vrot.lane.b32.xlu0 %v379, 64
        %v504 = vpop.permute.xlu0 %503
        %505 = vrot.lane.b32.xlu0 %v380, 64
        %v506 = vpop.permute.xlu0 %505
        %507 = vrot.lane.b32.xlu0 %v381, 64
        %v508 = vpop.permute.xlu0 %507
        %509 = vrot.lane.b32.xlu0 %v382, 64
        %v510 = vpop.permute.xlu0 %509
        %511 = vrot.lane.b32.xlu0 %v383, 64
        %v512 = vpop.permute.xlu0 %511
        %vm545 = vcmask 1048064
        %546 = vst.msk [vmem:[#allocation2 + $0x10] sm:$0xff] %vm545, %v450
        %547 = vst.msk [vmem:[#allocation2 + $0x18] sm:$0xff] %vm545, %v452
        %548 = vst.msk [vmem:[#allocation2 + $0x20] sm:$0xff] %vm545, %v454
        %549 = vst.msk [vmem:[#allocation2 + $0x28] sm:$0xff] %vm545, %v456
        %550 = vst.msk [vmem:[#allocation2 + $0x30] sm:$0xff] %vm545, %v458
        %551 = vst.msk [vmem:[#allocation2 + $0x38] sm:$0xff] %vm545, %v460
        %552 = vst.msk [vmem:[#allocation2 + $0x40] sm:$0xff] %vm545, %v462
        %553 = vst.msk [vmem:[#allocation2 + $0x48] sm:$0xff] %vm545, %v464
        %554 = vst.msk [vmem:[#allocation2 + $0x50] sm:$0xff] %vm545, %v466
        %555 = vst.msk [vmem:[#allocation2 + $0x58] sm:$0xff] %vm545, %v468
        %556 = vst.msk [vmem:[#allocation2 + $0x60] sm:$0xff] %vm545, %v470
        %557 = vst.msk [vmem:[#allocation2 + $0x68] sm:$0xff] %vm545, %v472
        %558 = vst.msk [vmem:[#allocation2 + $0x70] sm:$0xff] %vm545, %v474
        %559 = vst.msk [vmem:[#allocation2 + $0x78] sm:$0xff] %vm545, %v476
        %560 = vst.msk [vmem:[#allocation2 + $0x80] sm:$0xff] %vm545, %v478
        %561 = vst.msk [vmem:[#allocation2 + $0x88] sm:$0xff] %vm545, %v480
        %562 = vst.msk [vmem:[#allocation2 + $0x90] sm:$0xff] %vm545, %v482
        %563 = vst.msk [vmem:[#allocation2 + $0x98] sm:$0xff] %vm545, %v484
        %564 = vst.msk [vmem:[#allocation2 + $0xa0] sm:$0xff] %vm545, %v486
        %565 = vst.msk [vmem:[#allocation2 + $0xa8] sm:$0xff] %vm545, %v488
        %566 = vst.msk [vmem:[#allocation2 + $0xb0] sm:$0xff] %vm545, %v490
        %567 = vst.msk [vmem:[#allocation2 + $0xb8] sm:$0xff] %vm545, %v492
        %568 = vst.msk [vmem:[#allocation2 + $0xc0] sm:$0xff] %vm545, %v494
        %569 = vst.msk [vmem:[#allocation2 + $0xc8] sm:$0xff] %vm545, %v496
        %570 = vst.msk [vmem:[#allocation2 + $0xd0] sm:$0xff] %vm545, %v498
        %571 = vst.msk [vmem:[#allocation2 + $0xd8] sm:$0xff] %vm545, %v500
        %572 = vst.msk [vmem:[#allocation2 + $0xe0] sm:$0xff] %vm545, %v502
        %573 = vst.msk [vmem:[#allocation2 + $0xe8] sm:$0xff] %vm545, %v504
        %574 = vst.msk [vmem:[#allocation2 + $0xf0] sm:$0xff] %vm545, %v506
        %575 = vst.msk [vmem:[#allocation2 + $0xf8] sm:$0xff] %vm545, %v508
        %576 = vst.msk [vmem:[#allocation2 + $0x100] sm:$0xff] %vm545, %v510
        %577 = vst.msk [vmem:[#allocation2 + $0x108] sm:$0xff] %vm545, %v512
        %v578 = vlaneseq
        %v579 = vshrl.u32 %v578, 7
        %v580 = vadd.s32 %v579, 8
        %v581 = vadd.s32 %v579, 16
        %v582 = vadd.s32 %v579, 24
        %v583 = vadd.s32 %v579, 32
        %v584 = vadd.s32 %v579, 40
        %v585 = vadd.s32 %v579, 48
        %v586 = vadd.s32 %v579, 56
        %v587 = vadd.s32 %v579, 64
        %v588 = vadd.s32 %v579, 72
        %v589 = vadd.s32 %v579, 80
        %v590 = vadd.s32 %v579, 88
        %v591 = vadd.s32 %v579, 96
        %v592 = vadd.s32 %v579, 104
        %v593 = vadd.s32 %v579, 112
        %v594 = vadd.s32 %v579, 120
        %v595 = vadd.s32 %v579, 128
        %v596 = vadd.s32 %v579, 136
        %v597 = vadd.s32 %v579, 144
        %v598 = vadd.s32 %v579, 152
        %v599 = vadd.s32 %v579, 160
        %v600 = vadd.s32 %v579, 168
        %v601 = vadd.s32 %v579, 176
        %v602 = vadd.s32 %v579, 184
        %v603 = vadd.s32 %v579, 192
        %v604 = vadd.s32 %v579, 200
        %v605 = vadd.s32 %v579, 208
        %v606 = vadd.s32 %v579, 216
        %v607 = vadd.s32 %v579, 224
        %v608 = vadd.s32 %v579, 232
        %v609 = vadd.s32 %v579, 240
        %v610 = vadd.s32 %v579, 248
        %v611 = vadd.s32 %v579, 256
        %v612 = vadd.s32 %v579, 264
        %v613 = vadd.s32 %v579, 272
        %v614 = vadd.s32 %v579, 280
        %vm615 = vcmp.lt.s32.totalorder %v579, 0
        %v616 = vsub.s32 0, %v579
        %v617 = vsel %vm615, %v616, %v579
        %v618 = vshrl.u32 %v617, 4
        %v619 = vand.u32 %v617, 15
        %v620 = vsub.s32 0, %v619
        %v621 = vsel %vm615, %v620, %v619
        %vm622 = vcmp.lt.s32.totalorder %v580, 0
        %v623 = vsub.s32 0, %v580
        %v624 = vsel %vm622, %v623, %v580
        %v625 = vshrl.u32 %v624, 4
        %v626 = vand.u32 %v624, 15
        %v627 = vsub.s32 0, %v626
        %v628 = vsel %vm622, %v627, %v626
        %vm629 = vcmp.lt.s32.totalorder %v581, 0
        %v630 = vsub.s32 0, %v581
        %v631 = vsel %vm629, %v630, %v581
        %v632 = vshrl.u32 %v631, 4
        %v633 = vand.u32 %v631, 15
        %v634 = vsub.s32 0, %v633
        %v635 = vsel %vm629, %v634, %v633
        %vm636 = vcmp.lt.s32.totalorder %v582, 0
        %v637 = vsub.s32 0, %v582
        %v638 = vsel %vm636, %v637, %v582
        %v639 = vshrl.u32 %v638, 4
        %v640 = vand.u32 %v638, 15
        %v641 = vsub.s32 0, %v640
        %v642 = vsel %vm636, %v641, %v640
        %vm643 = vcmp.lt.s32.totalorder %v583, 0
        %v644 = vsub.s32 0, %v583
        %v645 = vsel %vm643, %v644, %v583
        %v646 = vshrl.u32 %v645, 4
        %v647 = vand.u32 %v645, 15
        %v648 = vsub.s32 0, %v647
        %v649 = vsel %vm643, %v648, %v647
        %vm650 = vcmp.lt.s32.totalorder %v584, 0
        %v651 = vsub.s32 0, %v584
        %v652 = vsel %vm650, %v651, %v584
        %v653 = vshrl.u32 %v652, 4
        %v654 = vand.u32 %v652, 15
        %v655 = vsub.s32 0, %v654
        %v656 = vsel %vm650, %v655, %v654
        %vm657 = vcmp.lt.s32.totalorder %v585, 0
        %v658 = vsub.s32 0, %v585
        %v659 = vsel %vm657, %v658, %v585
        %v660 = vshrl.u32 %v659, 4
        %v661 = vand.u32 %v659, 15
        %v662 = vsub.s32 0, %v661
        %v663 = vsel %vm657, %v662, %v661
        %vm664 = vcmp.lt.s32.totalorder %v586, 0
        %v665 = vsub.s32 0, %v586
        %v666 = vsel %vm664, %v665, %v586
        %v667 = vshrl.u32 %v666, 4
        %v668 = vand.u32 %v666, 15
        %v669 = vsub.s32 0, %v668
        %v670 = vsel %vm664, %v669, %v668
        %vm671 = vcmp.lt.s32.totalorder %v587, 0
        %v672 = vsub.s32 0, %v587
        %v673 = vsel %vm671, %v672, %v587
        %v674 = vshrl.u32 %v673, 4
        %v675 = vand.u32 %v673, 15
        %v676 = vsub.s32 0, %v675
        %v677 = vsel %vm671, %v676, %v675
        %vm678 = vcmp.lt.s32.totalorder %v588, 0
        %v679 = vsub.s32 0, %v588
        %v680 = vsel %vm678, %v679, %v588
        %v681 = vshrl.u32 %v680, 4
        %v682 = vand.u32 %v680, 15
        %v683 = vsub.s32 0, %v682
        %v684 = vsel %vm678, %v683, %v682
        %vm685 = vcmp.lt.s32.totalorder %v589, 0
        %v686 = vsub.s32 0, %v589
        %v687 = vsel %vm685, %v686, %v589
        %v688 = vshrl.u32 %v687, 4
        %v689 = vand.u32 %v687, 15
        %v690 = vsub.s32 0, %v689
        %v691 = vsel %vm685, %v690, %v689
        %vm692 = vcmp.lt.s32.totalorder %v590, 0
        %v693 = vsub.s32 0, %v590
        %v694 = vsel %vm692, %v693, %v590
        %v695 = vshrl.u32 %v694, 4
        %v696 = vand.u32 %v694, 15
        %v697 = vsub.s32 0, %v696
        %v698 = vsel %vm692, %v697, %v696
        %vm699 = vcmp.lt.s32.totalorder %v591, 0
        %v700 = vsub.s32 0, %v591
        %v701 = vsel %vm699, %v700, %v591
        %v702 = vshrl.u32 %v701, 4
        %v703 = vand.u32 %v701, 15
        %v704 = vsub.s32 0, %v703
        %v705 = vsel %vm699, %v704, %v703
        %vm706 = vcmp.lt.s32.totalorder %v592, 0
        %v707 = vsub.s32 0, %v592
        %v708 = vsel %vm706, %v707, %v592
        %v709 = vshrl.u32 %v708, 4
        %v710 = vand.u32 %v708, 15
        %v711 = vsub.s32 0, %v710
        %v712 = vsel %vm706, %v711, %v710
        %vm713 = vcmp.lt.s32.totalorder %v593, 0
        %v714 = vsub.s32 0, %v593
        %v715 = vsel %vm713, %v714, %v593
        %v716 = vshrl.u32 %v715, 4
        %v717 = vand.u32 %v715, 15
        %v718 = vsub.s32 0, %v717
        %v719 = vsel %vm713, %v718, %v717
        %vm720 = vcmp.lt.s32.totalorder %v594, 0
        %v721 = vsub.s32 0, %v594
        %v722 = vsel %vm720, %v721, %v594
        %v723 = vshrl.u32 %v722, 4
        %v724 = vand.u32 %v722, 15
        %v725 = vsub.s32 0, %v724
        %v726 = vsel %vm720, %v725, %v724
        %vm727 = vcmp.lt.s32.totalorder %v595, 0
        %v728 = vsub.s32 0, %v595
        %v729 = vsel %vm727, %v728, %v595
        %v730 = vshrl.u32 %v729, 4
        %v731 = vand.u32 %v729, 15
        %v732 = vsub.s32 0, %v731
        %v733 = vsel %vm727, %v732, %v731
        %vm734 = vcmp.lt.s32.totalorder %v596, 0
        %v735 = vsub.s32 0, %v596
        %v736 = vsel %vm734, %v735, %v596
        %v737 = vshrl.u32 %v736, 4
        %v738 = vand.u32 %v736, 15
        %v739 = vsub.s32 0, %v738
        %v740 = vsel %vm734, %v739, %v738
        %vm741 = vcmp.lt.s32.totalorder %v597, 0
        %v742 = vsub.s32 0, %v597
        %v743 = vsel %vm741, %v742, %v597
        %v744 = vshrl.u32 %v743, 4
        %v745 = vand.u32 %v743, 15
        %v746 = vsub.s32 0, %v745
        %v747 = vsel %vm741, %v746, %v745
        %vm748 = vcmp.lt.s32.totalorder %v598, 0
        %v749 = vsub.s32 0, %v598
        %v750 = vsel %vm748, %v749, %v598
        %v751 = vshrl.u32 %v750, 4
        %v752 = vand.u32 %v750, 15
        %v753 = vsub.s32 0, %v752
        %v754 = vsel %vm748, %v753, %v752
        %vm755 = vcmp.lt.s32.totalorder %v599, 0
        %v756 = vsub.s32 0, %v599
        %v757 = vsel %vm755, %v756, %v599
        %v758 = vshrl.u32 %v757, 4
        %v759 = vand.u32 %v757, 15
        %v760 = vsub.s32 0, %v759
        %v761 = vsel %vm755, %v760, %v759
        %vm762 = vcmp.lt.s32.totalorder %v600, 0
        %v763 = vsub.s32 0, %v600
        %v764 = vsel %vm762, %v763, %v600
        %v765 = vshrl.u32 %v764, 4
        %v766 = vand.u32 %v764, 15
        %v767 = vsub.s32 0, %v766
        %v768 = vsel %vm762, %v767, %v766
        %vm769 = vcmp.lt.s32.totalorder %v601, 0
        %v770 = vsub.s32 0, %v601
        %v771 = vsel %vm769, %v770, %v601
        %v772 = vshrl.u32 %v771, 4
        %v773 = vand.u32 %v771, 15
        %v774 = vsub.s32 0, %v773
        %v775 = vsel %vm769, %v774, %v773
        %vm776 = vcmp.lt.s32.totalorder %v602, 0
        %v777 = vsub.s32 0, %v602
        %v778 = vsel %vm776, %v777, %v602
        %v779 = vshrl.u32 %v778, 4
        %v780 = vand.u32 %v778, 15
        %v781 = vsub.s32 0, %v780
        %v782 = vsel %vm776, %v781, %v780
        %vm783 = vcmp.lt.s32.totalorder %v603, 0
        %v784 = vsub.s32 0, %v603
        %v785 = vsel %vm783, %v784, %v603
        %v786 = vshrl.u32 %v785, 4
        %v787 = vand.u32 %v785, 15
        %v788 = vsub.s32 0, %v787
        %v789 = vsel %vm783, %v788, %v787
        %vm790 = vcmp.lt.s32.totalorder %v604, 0
        %v791 = vsub.s32 0, %v604
        %v792 = vsel %vm790, %v791, %v604
        %v793 = vshrl.u32 %v792, 4
        %v794 = vand.u32 %v792, 15
        %v795 = vsub.s32 0, %v794
        %v796 = vsel %vm790, %v795, %v794
        %vm797 = vcmp.lt.s32.totalorder %v605, 0
        %v798 = vsub.s32 0, %v605
        %v799 = vsel %vm797, %v798, %v605
        %v800 = vshrl.u32 %v799, 4
        %v801 = vand.u32 %v799, 15
        %v802 = vsub.s32 0, %v801
        %v803 = vsel %vm797, %v802, %v801
        %vm804 = vcmp.lt.s32.totalorder %v606, 0
        %v805 = vsub.s32 0, %v606
        %v806 = vsel %vm804, %v805, %v606
        %v807 = vshrl.u32 %v806, 4
        %v808 = vand.u32 %v806, 15
        %v809 = vsub.s32 0, %v808
        %v810 = vsel %vm804, %v809, %v808
        %vm811 = vcmp.lt.s32.totalorder %v607, 0
        %v812 = vsub.s32 0, %v607
        %v813 = vsel %vm811, %v812, %v607
        %v814 = vshrl.u32 %v813, 4
        %v815 = vand.u32 %v813, 15
        %v816 = vsub.s32 0, %v815
        %v817 = vsel %vm811, %v816, %v815
        %vm818 = vcmp.lt.s32.totalorder %v608, 0
        %v819 = vsub.s32 0, %v608
        %v820 = vsel %vm818, %v819, %v608
        %v821 = vshrl.u32 %v820, 4
        %v822 = vand.u32 %v820, 15
        %v823 = vsub.s32 0, %v822
        %v824 = vsel %vm818, %v823, %v822
        %vm825 = vcmp.lt.s32.totalorder %v609, 0
        %v826 = vsub.s32 0, %v609
        %v827 = vsel %vm825, %v826, %v609
        %v828 = vshrl.u32 %v827, 4
        %v829 = vand.u32 %v827, 15
        %v830 = vsub.s32 0, %v829
        %v831 = vsel %vm825, %v830, %v829
        %vm832 = vcmp.lt.s32.totalorder %v610, 0
        %v833 = vsub.s32 0, %v610
        %v834 = vsel %vm832, %v833, %v610
        %v835 = vshrl.u32 %v834, 4
        %v836 = vand.u32 %v834, 15
        %v837 = vsub.s32 0, %v836
        %v838 = vsel %vm832, %v837, %v836
        %vm839 = vcmp.lt.s32.totalorder %v611, 0
        %v840 = vsub.s32 0, %v611
        %v841 = vsel %vm839, %v840, %v611
        %v842 = vshrl.u32 %v841, 4
        %v843 = vand.u32 %v841, 15
        %v844 = vsub.s32 0, %v843
        %v845 = vsel %vm839, %v844, %v843
        %vm846 = vcmp.lt.s32.totalorder %v612, 0
        %v847 = vsub.s32 0, %v612
        %v848 = vsel %vm846, %v847, %v612
        %v849 = vshrl.u32 %v848, 4
        %v850 = vand.u32 %v848, 15
        %v851 = vsub.s32 0, %v850
        %v852 = vsel %vm846, %v851, %v850
        %vm853 = vcmp.lt.s32.totalorder %v613, 0
        %v854 = vsub.s32 0, %v613
        %v855 = vsel %vm853, %v854, %v613
        %v856 = vshrl.u32 %v855, 4
        %v857 = vand.u32 %v855, 15
        %v858 = vsub.s32 0, %v857
        %v859 = vsel %vm853, %v858, %v857
        %vm860 = vcmp.lt.s32.totalorder %v614, 0
        %v861 = vsub.s32 0, %v614
        %v862 = vsel %vm860, %v861, %v614
        %v863 = vshrl.u32 %v862, 4
        %v864 = vand.u32 %v862, 15
        %v865 = vsub.s32 0, %v864
        %v866 = vsel %vm860, %v865, %v864
        %vm867 = vcmp.ne.s32.totalorder %v621, 0
        %vm868 = vcmp.ne.s32.totalorder %v628, 0
        %vm869 = vcmp.ne.s32.totalorder %v635, 0
        %vm870 = vcmp.ne.s32.totalorder %v642, 0
        %vm871 = vcmp.ne.s32.totalorder %v649, 0
        %vm872 = vcmp.ne.s32.totalorder %v656, 0
        %vm873 = vcmp.ne.s32.totalorder %v663, 0
        %vm874 = vcmp.ne.s32.totalorder %v670, 0
        %vm875 = vcmp.ne.s32.totalorder %v677, 0
        %vm876 = vcmp.ne.s32.totalorder %v684, 0
        %vm877 = vcmp.ne.s32.totalorder %v691, 0
        %vm878 = vcmp.ne.s32.totalorder %v698, 0
        %vm879 = vcmp.ne.s32.totalorder %v705, 0
        %vm880 = vcmp.ne.s32.totalorder %v712, 0
        %vm881 = vcmp.ne.s32.totalorder %v719, 0
        %vm882 = vcmp.ne.s32.totalorder %v726, 0
        %vm883 = vcmp.ne.s32.totalorder %v733, 0
        %vm884 = vcmp.ne.s32.totalorder %v740, 0
        %vm885 = vcmp.ne.s32.totalorder %v747, 0
        %vm886 = vcmp.ne.s32.totalorder %v754, 0
        %vm887 = vcmp.ne.s32.totalorder %v761, 0
        %vm888 = vcmp.ne.s32.totalorder %v768, 0
        %vm889 = vcmp.ne.s32.totalorder %v775, 0
        %vm890 = vcmp.ne.s32.totalorder %v782, 0
        %vm891 = vcmp.ne.s32.totalorder %v789, 0
        %vm892 = vcmp.ne.s32.totalorder %v796, 0
        %vm893 = vcmp.ne.s32.totalorder %v803, 0
        %vm894 = vcmp.ne.s32.totalorder %v810, 0
        %vm895 = vcmp.ne.s32.totalorder %v817, 0
        %vm896 = vcmp.ne.s32.totalorder %v824, 0
        %vm897 = vcmp.ne.s32.totalorder %v831, 0
        %vm898 = vcmp.ne.s32.totalorder %v838, 0
        %vm899 = vcmp.ne.s32.totalorder %v845, 0
        %vm900 = vcmp.ne.s32.totalorder %v852, 0
        %vm901 = vcmp.ne.s32.totalorder %v859, 0
        %vm902 = vcmp.ne.s32.totalorder %v866, 0
        %vm903 = vcmp.lt.s32.totalorder %v621, 0
        %vm904 = vcmp.lt.s32.totalorder %v628, 0
        %vm905 = vcmp.lt.s32.totalorder %v635, 0
        %vm906 = vcmp.lt.s32.totalorder %v642, 0
        %vm907 = vcmp.lt.s32.totalorder %v649, 0
        %vm908 = vcmp.lt.s32.totalorder %v656, 0
        %vm909 = vcmp.lt.s32.totalorder %v663, 0
        %vm910 = vcmp.lt.s32.totalorder %v670, 0
        %vm911 = vcmp.lt.s32.totalorder %v677, 0
        %vm912 = vcmp.lt.s32.totalorder %v684, 0
        %vm913 = vcmp.lt.s32.totalorder %v691, 0
        %vm914 = vcmp.lt.s32.totalorder %v698, 0
        %vm915 = vcmp.lt.s32.totalorder %v705, 0
        %vm916 = vcmp.lt.s32.totalorder %v712, 0
        %vm917 = vcmp.lt.s32.totalorder %v719, 0
        %vm918 = vcmp.lt.s32.totalorder %v726, 0
        %vm919 = vcmp.lt.s32.totalorder %v733, 0
        %vm920 = vcmp.lt.s32.totalorder %v740, 0
        %vm921 = vcmp.lt.s32.totalorder %v747, 0
        %vm922 = vcmp.lt.s32.totalorder %v754, 0
        %vm923 = vcmp.lt.s32.totalorder %v761, 0
        %vm924 = vcmp.lt.s32.totalorder %v768, 0
        %vm925 = vcmp.lt.s32.totalorder %v775, 0
        %vm926 = vcmp.lt.s32.totalorder %v782, 0
        %vm927 = vcmp.lt.s32.totalorder %v789, 0
        %vm928 = vcmp.lt.s32.totalorder %v796, 0
        %vm929 = vcmp.lt.s32.totalorder %v803, 0
        %vm930 = vcmp.lt.s32.totalorder %v810, 0
        %vm931 = vcmp.lt.s32.totalorder %v817, 0
        %vm932 = vcmp.lt.s32.totalorder %v824, 0
        %vm933 = vcmp.lt.s32.totalorder %v831, 0
        %vm934 = vcmp.lt.s32.totalorder %v838, 0
        %vm935 = vcmp.lt.s32.totalorder %v845, 0
        %vm936 = vcmp.lt.s32.totalorder %v852, 0
        %vm937 = vcmp.lt.s32.totalorder %v859, 0
        %vm938 = vcmp.lt.s32.totalorder %v866, 0
        %vm939 = vmand %vm903, %vm867
        %vm940 = vmand %vm904, %vm868
        %vm941 = vmand %vm905, %vm869
        %vm942 = vmand %vm906, %vm870
        %vm943 = vmand %vm907, %vm871
        %vm944 = vmand %vm908, %vm872
        %vm945 = vmand %vm909, %vm873
        %vm946 = vmand %vm910, %vm874
        %vm947 = vmand %vm911, %vm875
        %vm948 = vmand %vm912, %vm876
        %vm949 = vmand %vm913, %vm877
        %vm950 = vmand %vm914, %vm878
        %vm951 = vmand %vm915, %vm879
        %vm952 = vmand %vm916, %vm880
        %vm953 = vmand %vm917, %vm881
        %vm954 = vmand %vm918, %vm882
        %vm955 = vmand %vm919, %vm883
        %vm956 = vmand %vm920, %vm884
        %vm957 = vmand %vm921, %vm885
        %vm958 = vmand %vm922, %vm886
        %vm959 = vmand %vm923, %vm887
        %vm960 = vmand %vm924, %vm888
        %vm961 = vmand %vm925, %vm889
        %vm962 = vmand %vm926, %vm890
        %vm963 = vmand %vm927, %vm891
        %vm964 = vmand %vm928, %vm892
        %vm965 = vmand %vm929, %vm893
        %vm966 = vmand %vm930, %vm894
        %vm967 = vmand %vm931, %vm895
        %vm968 = vmand %vm932, %vm896
        %vm969 = vmand %vm933, %vm897
        %vm970 = vmand %vm934, %vm898
        %vm971 = vmand %vm935, %vm899
        %vm972 = vmand %vm936, %vm900
        %vm973 = vmand %vm937, %vm901
        %vm974 = vmand %vm938, %vm902
        %v975 = vadd.s32 %v621, 16
        %v976 = vadd.s32 %v628, 16
        %v977 = vadd.s32 %v635, 16
        %v978 = vadd.s32 %v642, 16
        %v979 = vadd.s32 %v649, 16
        %v980 = vadd.s32 %v656, 16
        %v981 = vadd.s32 %v663, 16
        %v982 = vadd.s32 %v670, 16
        %v983 = vadd.s32 %v677, 16
        %v984 = vadd.s32 %v684, 16
        %v985 = vadd.s32 %v691, 16
        %v986 = vadd.s32 %v698, 16
        %v987 = vadd.s32 %v705, 16
        %v988 = vadd.s32 %v712, 16
        %v989 = vadd.s32 %v719, 16
        %v990 = vadd.s32 %v726, 16
        %v991 = vadd.s32 %v733, 16
        %v992 = vadd.s32 %v740, 16
        %v993 = vadd.s32 %v747, 16
        %v994 = vadd.s32 %v754, 16
        %v995 = vadd.s32 %v761, 16
        %v996 = vadd.s32 %v768, 16
        %v997 = vadd.s32 %v775, 16
        %v998 = vadd.s32 %v782, 16
        %v999 = vadd.s32 %v789, 16
        %v1000 = vadd.s32 %v796, 16
        %v1001 = vadd.s32 %v803, 16
        %v1002 = vadd.s32 %v810, 16
        %v1003 = vadd.s32 %v817, 16
        %v1004 = vadd.s32 %v824, 16
        %v1005 = vadd.s32 %v831, 16
        %v1006 = vadd.s32 %v838, 16
        %v1007 = vadd.s32 %v845, 16
        %v1008 = vadd.s32 %v852, 16
        %v1009 = vadd.s32 %v859, 16
        %v1010 = vadd.s32 %v866, 16
        %v1011 = vsel %vm939, %v975, %v621
        %v1012 = vsel %vm940, %v976, %v628
        %v1013 = vsel %vm941, %v977, %v635
        %v1014 = vsel %vm942, %v978, %v642
        %v1015 = vsel %vm943, %v979, %v649
        %v1016 = vsel %vm944, %v980, %v656
        %v1017 = vsel %vm945, %v981, %v663
        %v1018 = vsel %vm946, %v982, %v670
        %v1019 = vsel %vm947, %v983, %v677
        %v1020 = vsel %vm948, %v984, %v684
        %v1021 = vsel %vm949, %v985, %v691
        %v1022 = vsel %vm950, %v986, %v698
        %v1023 = vsel %vm951, %v987, %v705
        %v1024 = vsel %vm952, %v988, %v712
        %v1025 = vsel %vm953, %v989, %v719
        %v1026 = vsel %vm954, %v990, %v726
        %v1027 = vsel %vm955, %v991, %v733
        %v1028 = vsel %vm956, %v992, %v740
        %v1029 = vsel %vm957, %v993, %v747
        %v1030 = vsel %vm958, %v994, %v754
        %v1031 = vsel %vm959, %v995, %v761
        %v1032 = vsel %vm960, %v996, %v768
        %v1033 = vsel %vm961, %v997, %v775
        %v1034 = vsel %vm962, %v998, %v782
        %v1035 = vsel %vm963, %v999, %v789
        %v1036 = vsel %vm964, %v1000, %v796
        %v1037 = vsel %vm965, %v1001, %v803
        %v1038 = vsel %vm966, %v1002, %v810
        %v1039 = vsel %vm967, %v1003, %v817
        %v1040 = vsel %vm968, %v1004, %v824
        %v1041 = vsel %vm969, %v1005, %v831
        %v1042 = vsel %vm970, %v1006, %v838
        %v1043 = vsel %vm971, %v1007, %v845
        %v1044 = vsel %vm972, %v1008, %v852
        %v1045 = vsel %vm973, %v1009, %v859
        %v1046 = vsel %vm974, %v1010, %v866
        %vm1047 = vcmp.ne.s32.totalorder %v1011, 0
        %vm1048 = vcmp.ne.s32.totalorder %v1012, 0
        %vm1049 = vcmp.ne.s32.totalorder %v1013, 0
        %vm1050 = vcmp.ne.s32.totalorder %v1014, 0
        %vm1051 = vcmp.ne.s32.totalorder %v1015, 0
        %vm1052 = vcmp.ne.s32.totalorder %v1016, 0
        %vm1053 = vcmp.ne.s32.totalorder %v1017, 0
        %vm1054 = vcmp.ne.s32.totalorder %v1018, 0
        %vm1055 = vcmp.ne.s32.totalorder %v1019, 0
        %vm1056 = vcmp.ne.s32.totalorder %v1020, 0
        %vm1057 = vcmp.ne.s32.totalorder %v1021, 0
        %vm1058 = vcmp.ne.s32.totalorder %v1022, 0
        %vm1059 = vcmp.ne.s32.totalorder %v1023, 0
        %vm1060 = vcmp.ne.s32.totalorder %v1024, 0
        %vm1061 = vcmp.ne.s32.totalorder %v1025, 0
        %vm1062 = vcmp.ne.s32.totalorder %v1026, 0
        %vm1063 = vcmp.ne.s32.totalorder %v1027, 0
        %vm1064 = vcmp.ne.s32.totalorder %v1028, 0
        %vm1065 = vcmp.ne.s32.totalorder %v1029, 0
        %vm1066 = vcmp.ne.s32.totalorder %v1030, 0
        %vm1067 = vcmp.ne.s32.totalorder %v1031, 0
        %vm1068 = vcmp.ne.s32.totalorder %v1032, 0
        %vm1069 = vcmp.ne.s32.totalorder %v1033, 0
        %vm1070 = vcmp.ne.s32.totalorder %v1034, 0
        %vm1071 = vcmp.ne.s32.totalorder %v1035, 0
        %vm1072 = vcmp.ne.s32.totalorder %v1036, 0
        %vm1073 = vcmp.ne.s32.totalorder %v1037, 0
        %vm1074 = vcmp.ne.s32.totalorder %v1038, 0
        %vm1075 = vcmp.ne.s32.totalorder %v1039, 0
        %vm1076 = vcmp.ne.s32.totalorder %v1040, 0
        %vm1077 = vcmp.ne.s32.totalorder %v1041, 0
        %vm1078 = vcmp.ne.s32.totalorder %v1042, 0
        %vm1079 = vcmp.ne.s32.totalorder %v1043, 0
        %vm1080 = vcmp.ne.s32.totalorder %v1044, 0
        %vm1081 = vcmp.ne.s32.totalorder %v1045, 0
        %vm1082 = vcmp.ne.s32.totalorder %v1046, 0
        %vm1083 = vcmp.ne.s32.totalorder %v1011, 15
        %vm1084 = vcmp.ne.s32.totalorder %v1012, 15
        %vm1085 = vcmp.ne.s32.totalorder %v1013, 15
        %vm1086 = vcmp.ne.s32.totalorder %v1014, 15
        %vm1087 = vcmp.ne.s32.totalorder %v1015, 15
        %vm1088 = vcmp.ne.s32.totalorder %v1016, 15
        %vm1089 = vcmp.ne.s32.totalorder %v1017, 15
        %vm1090 = vcmp.ne.s32.totalorder %v1018, 15
        %vm1091 = vcmp.ne.s32.totalorder %v1019, 15
        %vm1092 = vcmp.ne.s32.totalorder %v1020, 15
        %vm1093 = vcmp.ne.s32.totalorder %v1021, 15
        %vm1094 = vcmp.ne.s32.totalorder %v1022, 15
        %vm1095 = vcmp.ne.s32.totalorder %v1023, 15
        %vm1096 = vcmp.ne.s32.totalorder %v1024, 15
        %vm1097 = vcmp.ne.s32.totalorder %v1025, 15
        %vm1098 = vcmp.ne.s32.totalorder %v1026, 15
        %vm1099 = vcmp.ne.s32.totalorder %v1027, 15
        %vm1100 = vcmp.ne.s32.totalorder %v1028, 15
        %vm1101 = vcmp.ne.s32.totalorder %v1029, 15
        %vm1102 = vcmp.ne.s32.totalorder %v1030, 15
        %vm1103 = vcmp.ne.s32.totalorder %v1031, 15
        %vm1104 = vcmp.ne.s32.totalorder %v1032, 15
        %vm1105 = vcmp.ne.s32.totalorder %v1033, 15
        %vm1106 = vcmp.ne.s32.totalorder %v1034, 15
        %vm1107 = vcmp.ne.s32.totalorder %v1035, 15
        %vm1108 = vcmp.ne.s32.totalorder %v1036, 15
        %vm1109 = vcmp.ne.s32.totalorder %v1037, 15
        %vm1110 = vcmp.ne.s32.totalorder %v1038, 15
        %vm1111 = vcmp.ne.s32.totalorder %v1039, 15
        %vm1112 = vcmp.ne.s32.totalorder %v1040, 15
        %vm1113 = vcmp.ne.s32.totalorder %v1041, 15
        %vm1114 = vcmp.ne.s32.totalorder %v1042, 15
        %vm1115 = vcmp.ne.s32.totalorder %v1043, 15
        %vm1116 = vcmp.ne.s32.totalorder %v1044, 15
        %vm1117 = vcmp.ne.s32.totalorder %v1045, 15
        %vm1118 = vcmp.ne.s32.totalorder %v1046, 15
        %v1119 = vld [vmem:[#allocation2] sm:$0xff]
        %v1120 = vld [vmem:[#allocation2 + $0x8] sm:$0xff]
        %v1121 = vld [vmem:[#allocation2 + $0x10] sm:$0xff]
        %v1122 = vld [vmem:[#allocation2 + $0x18] sm:$0xff]
        %v1123 = vld [vmem:[#allocation2 + $0x20] sm:$0xff]
        %v1124 = vld [vmem:[#allocation2 + $0x28] sm:$0xff]
        %v1125 = vld [vmem:[#allocation2 + $0x30] sm:$0xff]
        %v1126 = vld [vmem:[#allocation2 + $0x38] sm:$0xff]
        %v1127 = vld [vmem:[#allocation2 + $0x40] sm:$0xff]
        %v1128 = vld [vmem:[#allocation2 + $0x48] sm:$0xff]
        %v1129 = vld [vmem:[#allocation2 + $0x50] sm:$0xff]
        %v1130 = vld [vmem:[#allocation2 + $0x58] sm:$0xff]
        %v1131 = vld [vmem:[#allocation2 + $0x60] sm:$0xff]
        %v1132 = vld [vmem:[#allocation2 + $0x68] sm:$0xff]
        %v1133 = vld [vmem:[#allocation2 + $0x70] sm:$0xff]
        %v1134 = vld [vmem:[#allocation2 + $0x78] sm:$0xff]
        %v1135 = vld [vmem:[#allocation2 + $0x80] sm:$0xff]
        %v1136 = vld [vmem:[#allocation2 + $0x88] sm:$0xff]
        %v1137 = vld [vmem:[#allocation2 + $0x90] sm:$0xff]
        %v1138 = vld [vmem:[#allocation2 + $0x98] sm:$0xff]
        %v1139 = vld [vmem:[#allocation2 + $0xa0] sm:$0xff]
        %v1140 = vld [vmem:[#allocation2 + $0xa8] sm:$0xff]
        %v1141 = vld [vmem:[#allocation2 + $0xb0] sm:$0xff]
        %v1142 = vld [vmem:[#allocation2 + $0xb8] sm:$0xff]
        %v1143 = vld [vmem:[#allocation2 + $0xc0] sm:$0xff]
        %v1144 = vld [vmem:[#allocation2 + $0xc8] sm:$0xff]
        %v1145 = vld [vmem:[#allocation2 + $0xd0] sm:$0xff]
        %v1146 = vld [vmem:[#allocation2 + $0xd8] sm:$0xff]
        %v1147 = vld [vmem:[#allocation2 + $0xe0] sm:$0xff]
        %v1148 = vld [vmem:[#allocation2 + $0xe8] sm:$0xff]
        %v1149 = vld [vmem:[#allocation2 + $0xf0] sm:$0xff]
        %v1150 = vld [vmem:[#allocation2 + $0xf8] sm:$0xff]
        %v1151 = vld [vmem:[#allocation2 + $0x100] sm:$0xff]
        %v1152 = vld [vmem:[#allocation2 + $0x108] sm:$0xff]
        %v1153 = vld [vmem:[#allocation2 + $0x110] sm:$0xff]
        %v1154 = vld [vmem:[#allocation2 + $0x118] sm:$0xff]
        %v1155 = vrot.slane %v1119, 7
        %v1156 = vrot.slane %v1120, 7
        %v1157 = vrot.slane %v1121, 7
        %v1158 = vrot.slane %v1122, 7
        %v1159 = vrot.slane %v1123, 7
        %v1160 = vrot.slane %v1124, 7
        %v1161 = vrot.slane %v1125, 7
        %v1162 = vrot.slane %v1126, 7
        %v1163 = vrot.slane %v1127, 7
        %v1164 = vrot.slane %v1128, 7
        %v1165 = vrot.slane %v1129, 7
        %v1166 = vrot.slane %v1130, 7
        %v1167 = vrot.slane %v1131, 7
        %v1168 = vrot.slane %v1132, 7
        %v1169 = vrot.slane %v1133, 7
        %v1170 = vrot.slane %v1134, 7
        %v1171 = vrot.slane %v1135, 7
        %v1172 = vrot.slane %v1136, 7
        %v1173 = vrot.slane %v1137, 7
        %v1174 = vrot.slane %v1138, 7
        %v1175 = vrot.slane %v1139, 7
        %v1176 = vrot.slane %v1140, 7
        %v1177 = vrot.slane %v1141, 7
        %v1178 = vrot.slane %v1142, 7
        %v1179 = vrot.slane %v1143, 7
        %v1180 = vrot.slane %v1144, 7
        %v1181 = vrot.slane %v1145, 7
        %v1182 = vrot.slane %v1146, 7
        %v1183 = vrot.slane %v1147, 7
        %v1184 = vrot.slane %v1148, 7
        %v1185 = vrot.slane %v1149, 7
        %v1186 = vrot.slane %v1150, 7
        %v1187 = vrot.slane %v1151, 7
        %v1188 = vrot.slane %v1152, 7
        %v1189 = vrot.slane %v1153, 7
        %v1190 = vrot.slane %v1154, 7
        %vm1191 = vcmp.lt.s32.totalorder %v579, 1
        %v1192 = vsel %vm1191, %v1189, %v1190
        %v1193 = vsel %vm1191, %v1188, %v1189
        %v1194 = vsel %vm1191, %v1187, %v1188
        %v1195 = vsel %vm1191, %v1186, %v1187
        %v1196 = vsel %vm1191, %v1185, %v1186
        %v1197 = vsel %vm1191, %v1184, %v1185
        %v1198 = vsel %vm1191, %v1183, %v1184
        %v1199 = vsel %vm1191, %v1182, %v1183
        %v1200 = vsel %vm1191, %v1181, %v1182
        %v1201 = vsel %vm1191, %v1180, %v1181
        %v1202 = vsel %vm1191, %v1179, %v1180
        %v1203 = vsel %vm1191, %v1178, %v1179
        %v1204 = vsel %vm1191, %v1177, %v1178
        %v1205 = vsel %vm1191, %v1176, %v1177
        %v1206 = vsel %vm1191, %v1175, %v1176
        %v1207 = vsel %vm1191, %v1174, %v1175
        %v1208 = vsel %vm1191, %v1173, %v1174
        %v1209 = vsel %vm1191, %v1172, %v1173
        %v1210 = vsel %vm1191, %v1171, %v1172
        %v1211 = vsel %vm1191, %v1170, %v1171
        %v1212 = vsel %vm1191, %v1169, %v1170
        %v1213 = vsel %vm1191, %v1168, %v1169
        %v1214 = vsel %vm1191, %v1167, %v1168
        %v1215 = vsel %vm1191, %v1166, %v1167
        %v1216 = vsel %vm1191, %v1165, %v1166
        %v1217 = vsel %vm1191, %v1164, %v1165
        %v1218 = vsel %vm1191, %v1163, %v1164
        %v1219 = vsel %vm1191, %v1162, %v1163
        %v1220 = vsel %vm1191, %v1161, %v1162
        %v1221 = vsel %vm1191, %v1160, %v1161
        %v1222 = vsel %vm1191, %v1159, %v1160
        %v1223 = vsel %vm1191, %v1158, %v1159
        %v1224 = vsel %vm1191, %v1157, %v1158
        %v1225 = vsel %vm1191, %v1156, %v1157
        %v1226 = vsel %vm1191, %v1155, %v1156
        %v1227 = vsel %vm1191, %v1190, %v1155
        %v1228 = vsel %vm1047, 1, 0
        %v1229 = vsel %vm1048, 1, 0
        %v1230 = vsel %vm1049, 1, 0
        %v1231 = vsel %vm1050, 1, 0
        %v1232 = vsel %vm1051, 1, 0
        %v1233 = vsel %vm1052, 1, 0
        %v1234 = vsel %vm1053, 1, 0
        %v1235 = vsel %vm1054, 1, 0
        %v1236 = vsel %vm1055, 1, 0
        %v1237 = vsel %vm1056, 1, 0
        %v1238 = vsel %vm1057, 1, 0
        %v1239 = vsel %vm1058, 1, 0
        %v1240 = vsel %vm1059, 1, 0
        %v1241 = vsel %vm1060, 1, 0
        %v1242 = vsel %vm1061, 1, 0
        %v1243 = vsel %vm1062, 1, 0
        %v1244 = vsel %vm1063, 1, 0
        %v1245 = vsel %vm1064, 1, 0
        %v1246 = vsel %vm1065, 1, 0
        %v1247 = vsel %vm1066, 1, 0
        %v1248 = vsel %vm1067, 1, 0
        %v1249 = vsel %vm1068, 1, 0
        %v1250 = vsel %vm1069, 1, 0
        %v1251 = vsel %vm1070, 1, 0
        %v1252 = vsel %vm1071, 1, 0
        %v1253 = vsel %vm1072, 1, 0
        %v1254 = vsel %vm1073, 1, 0
        %v1255 = vsel %vm1074, 1, 0
        %v1256 = vsel %vm1075, 1, 0
        %v1257 = vsel %vm1076, 1, 0
        %v1258 = vsel %vm1077, 1, 0
        %v1259 = vsel %vm1078, 1, 0
        %v1260 = vsel %vm1079, 1, 0
        %v1261 = vsel %vm1080, 1, 0
        %v1262 = vsel %vm1081, 1, 0
        %v1263 = vsel %vm1082, 1, 0
        %vm1264 = vcmp.eq.s32.totalorder %v1228, 1
        %vm1265 = vcmp.eq.s32.totalorder %v1229, 1
        %vm1266 = vcmp.eq.s32.totalorder %v1230, 1
        %vm1267 = vcmp.eq.s32.totalorder %v1231, 1
        %vm1268 = vcmp.eq.s32.totalorder %v1232, 1
        %vm1269 = vcmp.eq.s32.totalorder %v1233, 1
        %vm1270 = vcmp.eq.s32.totalorder %v1234, 1
        %vm1271 = vcmp.eq.s32.totalorder %v1235, 1
        %vm1272 = vcmp.eq.s32.totalorder %v1236, 1
        %vm1273 = vcmp.eq.s32.totalorder %v1237, 1
        %vm1274 = vcmp.eq.s32.totalorder %v1238, 1
        %vm1275 = vcmp.eq.s32.totalorder %v1239, 1
        %vm1276 = vcmp.eq.s32.totalorder %v1240, 1
        %vm1277 = vcmp.eq.s32.totalorder %v1241, 1
        %vm1278 = vcmp.eq.s32.totalorder %v1242, 1
        %vm1279 = vcmp.eq.s32.totalorder %v1243, 1
        %vm1280 = vcmp.eq.s32.totalorder %v1244, 1
        %vm1281 = vcmp.eq.s32.totalorder %v1245, 1
        %vm1282 = vcmp.eq.s32.totalorder %v1246, 1
        %vm1283 = vcmp.eq.s32.totalorder %v1247, 1
        %vm1284 = vcmp.eq.s32.totalorder %v1248, 1
        %vm1285 = vcmp.eq.s32.totalorder %v1249, 1
        %vm1286 = vcmp.eq.s32.totalorder %v1250, 1
        %vm1287 = vcmp.eq.s32.totalorder %v1251, 1
        %vm1288 = vcmp.eq.s32.totalorder %v1252, 1
        %vm1289 = vcmp.eq.s32.totalorder %v1253, 1
        %vm1290 = vcmp.eq.s32.totalorder %v1254, 1
        %vm1291 = vcmp.eq.s32.totalorder %v1255, 1
        %vm1292 = vcmp.eq.s32.totalorder %v1256, 1
        %vm1293 = vcmp.eq.s32.totalorder %v1257, 1
        %vm1294 = vcmp.eq.s32.totalorder %v1258, 1
        %vm1295 = vcmp.eq.s32.totalorder %v1259, 1
        %vm1296 = vcmp.eq.s32.totalorder %v1260, 1
        %vm1297 = vcmp.eq.s32.totalorder %v1261, 1
        %vm1298 = vcmp.eq.s32.totalorder %v1262, 1
        %vm1299 = vcmp.eq.s32.totalorder %v1263, 1
        %v1300 = vsel %vm1264, %v1227, 0.0
        %v1301 = vsel %vm1265, %v1226, 0.0
        %v1302 = vsel %vm1266, %v1225, 0.0
        %v1303 = vsel %vm1267, %v1224, 0.0
        %v1304 = vsel %vm1268, %v1223, 0.0
        %v1305 = vsel %vm1269, %v1222, 0.0
        %v1306 = vsel %vm1270, %v1221, 0.0
        %v1307 = vsel %vm1271, %v1220, 0.0
        %v1308 = vsel %vm1272, %v1219, 0.0
        %v1309 = vsel %vm1273, %v1218, 0.0
        %v1310 = vsel %vm1274, %v1217, 0.0
        %v1311 = vsel %vm1275, %v1216, 0.0
        %v1312 = vsel %vm1276, %v1215, 0.0
        %v1313 = vsel %vm1277, %v1214, 0.0
        %v1314 = vsel %vm1278, %v1213, 0.0
        %v1315 = vsel %vm1279, %v1212, 0.0
        %v1316 = vsel %vm1280, %v1211, 0.0
        %v1317 = vsel %vm1281, %v1210, 0.0
        %v1318 = vsel %vm1282, %v1209, 0.0
        %v1319 = vsel %vm1283, %v1208, 0.0
        %v1320 = vsel %vm1284, %v1207, 0.0
        %v1321 = vsel %vm1285, %v1206, 0.0
        %v1322 = vsel %vm1286, %v1205, 0.0
        %v1323 = vsel %vm1287, %v1204, 0.0
        %v1324 = vsel %vm1288, %v1203, 0.0
        %v1325 = vsel %vm1289, %v1202, 0.0
        %v1326 = vsel %vm1290, %v1201, 0.0
        %v1327 = vsel %vm1291, %v1200, 0.0
        %v1328 = vsel %vm1292, %v1199, 0.0
        %v1329 = vsel %vm1293, %v1198, 0.0
        %v1330 = vsel %vm1294, %v1197, 0.0
        %v1331 = vsel %vm1295, %v1196, 0.0
        %v1332 = vsel %vm1296, %v1195, 0.0
        %v1333 = vsel %vm1297, %v1194, 0.0
        %v1334 = vsel %vm1298, %v1193, 0.0
        %v1335 = vsel %vm1299, %v1192, 0.0
        %v1336 = vrot.slane %v1119, 1
        %v1337 = vrot.slane %v1120, 1
        %v1338 = vrot.slane %v1121, 1
        %v1339 = vrot.slane %v1122, 1
        %v1340 = vrot.slane %v1123, 1
        %v1341 = vrot.slane %v1124, 1
        %v1342 = vrot.slane %v1125, 1
        %v1343 = vrot.slane %v1126, 1
        %v1344 = vrot.slane %v1127, 1
        %v1345 = vrot.slane %v1128, 1
        %v1346 = vrot.slane %v1129, 1
        %v1347 = vrot.slane %v1130, 1
        %v1348 = vrot.slane %v1131, 1
        %v1349 = vrot.slane %v1132, 1
        %v1350 = vrot.slane %v1133, 1
        %v1351 = vrot.slane %v1134, 1
        %v1352 = vrot.slane %v1135, 1
        %v1353 = vrot.slane %v1136, 1
        %v1354 = vrot.slane %v1137, 1
        %v1355 = vrot.slane %v1138, 1
        %v1356 = vrot.slane %v1139, 1
        %v1357 = vrot.slane %v1140, 1
        %v1358 = vrot.slane %v1141, 1
        %v1359 = vrot.slane %v1142, 1
        %v1360 = vrot.slane %v1143, 1
        %v1361 = vrot.slane %v1144, 1
        %v1362 = vrot.slane %v1145, 1
        %v1363 = vrot.slane %v1146, 1
        %v1364 = vrot.slane %v1147, 1
        %v1365 = vrot.slane %v1148, 1
        %v1366 = vrot.slane %v1149, 1
        %v1367 = vrot.slane %v1150, 1
        %v1368 = vrot.slane %v1151, 1
        %v1369 = vrot.slane %v1152, 1
        %v1370 = vrot.slane %v1153, 1
        %v1371 = vrot.slane %v1154, 1
        %vm1372 = vcmp.lt.s32.totalorder %v579, 7
        %v1373 = vsel %vm1372, %v1370, %v1371
        %v1374 = vsel %vm1372, %v1369, %v1370
        %v1375 = vsel %vm1372, %v1368, %v1369
        %v1376 = vsel %vm1372, %v1367, %v1368
        %v1377 = vsel %vm1372, %v1366, %v1367
        %v1378 = vsel %vm1372, %v1365, %v1366
        %v1379 = vsel %vm1372, %v1364, %v1365
        %v1380 = vsel %vm1372, %v1363, %v1364
        %v1381 = vsel %vm1372, %v1362, %v1363
        %v1382 = vsel %vm1372, %v1361, %v1362
        %v1383 = vsel %vm1372, %v1360, %v1361
        %v1384 = vsel %vm1372, %v1359, %v1360
        %v1385 = vsel %vm1372, %v1358, %v1359
        %v1386 = vsel %vm1372, %v1357, %v1358
        %v1387 = vsel %vm1372, %v1356, %v1357
        %v1388 = vsel %vm1372, %v1355, %v1356
        %v1389 = vsel %vm1372, %v1354, %v1355
        %v1390 = vsel %vm1372, %v1353, %v1354
        %v1391 = vsel %vm1372, %v1352, %v1353
        %v1392 = vsel %vm1372, %v1351, %v1352
        %v1393 = vsel %vm1372, %v1350, %v1351
        %v1394 = vsel %vm1372, %v1349, %v1350
        %v1395 = vsel %vm1372, %v1348, %v1349
        %v1396 = vsel %vm1372, %v1347, %v1348
        %v1397 = vsel %vm1372, %v1346, %v1347
        %v1398 = vsel %vm1372, %v1345, %v1346
        %v1399 = vsel %vm1372, %v1344, %v1345
        %v1400 = vsel %vm1372, %v1343, %v1344
        %v1401 = vsel %vm1372, %v1342, %v1343
        %v1402 = vsel %vm1372, %v1341, %v1342
        %v1403 = vsel %vm1372, %v1340, %v1341
        %v1404 = vsel %vm1372, %v1339, %v1340
        %v1405 = vsel %vm1372, %v1338, %v1339
        %v1406 = vsel %vm1372, %v1337, %v1338
        %v1407 = vsel %vm1372, %v1336, %v1337
        %v1408 = vsel %vm1372, %v1371, %v1336
        %v1409 = vsel %vm1083, 1, 0
        %v1410 = vsel %vm1084, 1, 0
        %v1411 = vsel %vm1085, 1, 0
        %v1412 = vsel %vm1086, 1, 0
        %v1413 = vsel %vm1087, 1, 0
        %v1414 = vsel %vm1088, 1, 0
        %v1415 = vsel %vm1089, 1, 0
        %v1416 = vsel %vm1090, 1, 0
        %v1417 = vsel %vm1091, 1, 0
        %v1418 = vsel %vm1092, 1, 0
        %v1419 = vsel %vm1093, 1, 0
        %v1420 = vsel %vm1094, 1, 0
        %v1421 = vsel %vm1095, 1, 0
        %v1422 = vsel %vm1096, 1, 0
        %v1423 = vsel %vm1097, 1, 0
        %v1424 = vsel %vm1098, 1, 0
        %v1425 = vsel %vm1099, 1, 0
        %v1426 = vsel %vm1100, 1, 0
        %v1427 = vsel %vm1101, 1, 0
        %v1428 = vsel %vm1102, 1, 0
        %v1429 = vsel %vm1103, 1, 0
        %v1430 = vsel %vm1104, 1, 0
        %v1431 = vsel %vm1105, 1, 0
        %v1432 = vsel %vm1106, 1, 0
        %v1433 = vsel %vm1107, 1, 0
        %v1434 = vsel %vm1108, 1, 0
        %v1435 = vsel %vm1109, 1, 0
        %v1436 = vsel %vm1110, 1, 0
        %v1437 = vsel %vm1111, 1, 0
        %v1438 = vsel %vm1112, 1, 0
        %v1439 = vsel %vm1113, 1, 0
        %v1440 = vsel %vm1114, 1, 0
        %v1441 = vsel %vm1115, 1, 0
        %v1442 = vsel %vm1116, 1, 0
        %v1443 = vsel %vm1117, 1, 0
        %v1444 = vsel %vm1118, 1, 0
        %vm1445 = vcmp.eq.s32.totalorder %v1409, 1
        %vm1446 = vcmp.eq.s32.totalorder %v1410, 1
        %vm1447 = vcmp.eq.s32.totalorder %v1411, 1
        %vm1448 = vcmp.eq.s32.totalorder %v1412, 1
        %vm1449 = vcmp.eq.s32.totalorder %v1413, 1
        %vm1450 = vcmp.eq.s32.totalorder %v1414, 1
        %vm1451 = vcmp.eq.s32.totalorder %v1415, 1
        %vm1452 = vcmp.eq.s32.totalorder %v1416, 1
        %vm1453 = vcmp.eq.s32.totalorder %v1417, 1
        %vm1454 = vcmp.eq.s32.totalorder %v1418, 1
        %vm1455 = vcmp.eq.s32.totalorder %v1419, 1
        %vm1456 = vcmp.eq.s32.totalorder %v1420, 1
        %vm1457 = vcmp.eq.s32.totalorder %v1421, 1
        %vm1458 = vcmp.eq.s32.totalorder %v1422, 1
        %vm1459 = vcmp.eq.s32.totalorder %v1423, 1
        %vm1460 = vcmp.eq.s32.totalorder %v1424, 1
        %vm1461 = vcmp.eq.s32.totalorder %v1425, 1
        %vm1462 = vcmp.eq.s32.totalorder %v1426, 1
        %vm1463 = vcmp.eq.s32.totalorder %v1427, 1
        %vm1464 = vcmp.eq.s32.totalorder %v1428, 1
        %vm1465 = vcmp.eq.s32.totalorder %v1429, 1
        %vm1466 = vcmp.eq.s32.totalorder %v1430, 1
        %vm1467 = vcmp.eq.s32.totalorder %v1431, 1
        %vm1468 = vcmp.eq.s32.totalorder %v1432, 1
        %vm1469 = vcmp.eq.s32.totalorder %v1433, 1
        %vm1470 = vcmp.eq.s32.totalorder %v1434, 1
        %vm1471 = vcmp.eq.s32.totalorder %v1435, 1
        %vm1472 = vcmp.eq.s32.totalorder %v1436, 1
        %vm1473 = vcmp.eq.s32.totalorder %v1437, 1
        %vm1474 = vcmp.eq.s32.totalorder %v1438, 1
        %vm1475 = vcmp.eq.s32.totalorder %v1439, 1
        %vm1476 = vcmp.eq.s32.totalorder %v1440, 1
        %vm1477 = vcmp.eq.s32.totalorder %v1441, 1
        %vm1478 = vcmp.eq.s32.totalorder %v1442, 1
        %vm1479 = vcmp.eq.s32.totalorder %v1443, 1
        %vm1480 = vcmp.eq.s32.totalorder %v1444, 1
        %v1481 = vsel %vm1445, %v1407, 0.0
        %v1482 = vsel %vm1446, %v1406, 0.0
        %v1483 = vsel %vm1447, %v1405, 0.0
        %v1484 = vsel %vm1448, %v1404, 0.0
        %v1485 = vsel %vm1449, %v1403, 0.0
        %v1486 = vsel %vm1450, %v1402, 0.0
        %v1487 = vsel %vm1451, %v1401, 0.0
        %v1488 = vsel %vm1452, %v1400, 0.0
        %v1489 = vsel %vm1453, %v1399, 0.0
        %v1490 = vsel %vm1454, %v1398, 0.0
        %v1491 = vsel %vm1455, %v1397, 0.0
        %v1492 = vsel %vm1456, %v1396, 0.0
        %v1493 = vsel %vm1457, %v1395, 0.0
        %v1494 = vsel %vm1458, %v1394, 0.0
        %v1495 = vsel %vm1459, %v1393, 0.0
        %v1496 = vsel %vm1460, %v1392, 0.0
        %v1497 = vsel %vm1461, %v1391, 0.0
        %v1498 = vsel %vm1462, %v1390, 0.0
        %v1499 = vsel %vm1463, %v1389, 0.0
        %v1500 = vsel %vm1464, %v1388, 0.0
        %v1501 = vsel %vm1465, %v1387, 0.0
        %v1502 = vsel %vm1466, %v1386, 0.0
        %v1503 = vsel %vm1467, %v1385, 0.0
        %v1504 = vsel %vm1468, %v1384, 0.0
        %v1505 = vsel %vm1469, %v1383, 0.0
        %v1506 = vsel %vm1470, %v1382, 0.0
        %v1507 = vsel %vm1471, %v1381, 0.0
        %v1508 = vsel %vm1472, %v1380, 0.0
        %v1509 = vsel %vm1473, %v1379, 0.0
        %v1510 = vsel %vm1474, %v1378, 0.0
        %v1511 = vsel %vm1475, %v1377, 0.0
        %v1512 = vsel %vm1476, %v1376, 0.0
        %v1513 = vsel %vm1477, %v1375, 0.0
        %v1514 = vsel %vm1478, %v1374, 0.0
        %v1515 = vsel %vm1479, %v1373, 0.0
        %v1516 = vsel %vm1480, %v1408, 0.0
        %v1517 = vpack.c.bf16 %v1300, %v1300
        %v1518 = vpack.c.bf16 %v1301, %v1301
        %v1519 = vpack.c.bf16 %v1302, %v1302
        %v1520 = vpack.c.bf16 %v1303, %v1303
        %v1521 = vpack.c.bf16 %v1304, %v1304
        %v1522 = vpack.c.bf16 %v1305, %v1305
        %v1523 = vpack.c.bf16 %v1306, %v1306
        %v1524 = vpack.c.bf16 %v1307, %v1307
        %v1525 = vpack.c.bf16 %v1308, %v1308
        %v1526 = vpack.c.bf16 %v1309, %v1309
        %v1527 = vpack.c.bf16 %v1310, %v1310
        %v1528 = vpack.c.bf16 %v1311, %v1311
        %v1529 = vpack.c.bf16 %v1312, %v1312
        %v1530 = vpack.c.bf16 %v1313, %v1313
        %v1531 = vpack.c.bf16 %v1314, %v1314
        %v1532 = vpack.c.bf16 %v1315, %v1315
        %v1533 = vpack.c.bf16 %v1316, %v1316
        %v1534 = vpack.c.bf16 %v1317, %v1317
        %v1535 = vpack.c.bf16 %v1318, %v1318
        %v1536 = vpack.c.bf16 %v1319, %v1319
        %v1537 = vpack.c.bf16 %v1320, %v1320
        %v1538 = vpack.c.bf16 %v1321, %v1321
        %v1539 = vpack.c.bf16 %v1322, %v1322
        %v1540 = vpack.c.bf16 %v1323, %v1323
        %v1541 = vpack.c.bf16 %v1324, %v1324
        %v1542 = vpack.c.bf16 %v1325, %v1325
        %v1543 = vpack.c.bf16 %v1326, %v1326
        %v1544 = vpack.c.bf16 %v1327, %v1327
        %v1545 = vpack.c.bf16 %v1328, %v1328
        %v1546 = vpack.c.bf16 %v1329, %v1329
        %v1547 = vpack.c.bf16 %v1330, %v1330
        %v1548 = vpack.c.bf16 %v1331, %v1331
        %v1549 = vpack.c.bf16 %v1332, %v1332
        %v1550 = vpack.c.bf16 %v1333, %v1333
        %v1551 = vpack.c.bf16 %v1334, %v1334
        %v1552 = vpack.c.bf16 %v1335, %v1335
        %1553 = vst [vmem:[#allocation3] sm:$0xf] %v1517
        %1554 = vst [vmem:[#allocation3 + $0xc] sm:$0xf] %v1518
        %1555 = vst [vmem:[#allocation3 + $0x18] sm:$0xf] %v1519
        %1556 = vst [vmem:[#allocation3 + $0x24] sm:$0xf] %v1520
        %1557 = vst [vmem:[#allocation3 + $0x30] sm:$0xf] %v1521
        %1558 = vst [vmem:[#allocation3 + $0x3c] sm:$0xf] %v1522
        %1559 = vst [vmem:[#allocation3 + $0x48] sm:$0xf] %v1523
        %1560 = vst [vmem:[#allocation3 + $0x54] sm:$0xf] %v1524
        %1561 = vst [vmem:[#allocation3 + $0x60] sm:$0xf] %v1525
        %1562 = vst [vmem:[#allocation3 + $0x6c] sm:$0xf] %v1526
        %1563 = vst [vmem:[#allocation3 + $0x78] sm:$0xf] %v1527
        %1564 = vst [vmem:[#allocation3 + $0x84] sm:$0xf] %v1528
        %1565 = vst [vmem:[#allocation3 + $0x90] sm:$0xf] %v1529
        %1566 = vst [vmem:[#allocation3 + $0x9c] sm:$0xf] %v1530
        %1567 = vst [vmem:[#allocation3 + $0xa8] sm:$0xf] %v1531
        %1568 = vst [vmem:[#allocation3 + $0xb4] sm:$0xf] %v1532
        %1569 = vst [vmem:[#allocation3 + $0xc0] sm:$0xf] %v1533
        %1570 = vst [vmem:[#allocation3 + $0xcc] sm:$0xf] %v1534
        %1571 = vst [vmem:[#allocation3 + $0xd8] sm:$0xf] %v1535
        %1572 = vst [vmem:[#allocation3 + $0xe4] sm:$0xf] %v1536
        %1573 = vst [vmem:[#allocation3 + $0xf0] sm:$0xf] %v1537
        %1574 = vst [vmem:[#allocation3 + $0xfc] sm:$0xf] %v1538
        %1575 = vst [vmem:[#allocation3 + $0x108] sm:$0xf] %v1539
        %1576 = vst [vmem:[#allocation3 + $0x114] sm:$0xf] %v1540
        %1577 = vst [vmem:[#allocation3 + $0x120] sm:$0xf] %v1541
        %1578 = vst [vmem:[#allocation3 + $0x12c] sm:$0xf] %v1542
        %1579 = vst [vmem:[#allocation3 + $0x138] sm:$0xf] %v1543
        %1580 = vst [vmem:[#allocation3 + $0x144] sm:$0xf] %v1544
        %1581 = vst [vmem:[#allocation3 + $0x150] sm:$0xf] %v1545
        %1582 = vst [vmem:[#allocation3 + $0x15c] sm:$0xf] %v1546
        %1583 = vst [vmem:[#allocation3 + $0x168] sm:$0xf] %v1547
        %1584 = vst [vmem:[#allocation3 + $0x174] sm:$0xf] %v1548
        %1585 = vst [vmem:[#allocation3 + $0x180] sm:$0xf] %v1549
        %1586 = vst [vmem:[#allocation3 + $0x18c] sm:$0xf] %v1550
        %1587 = vst [vmem:[#allocation3 + $0x198] sm:$0xf] %v1551
        %1588 = vst [vmem:[#allocation3 + $0x1a4] sm:$0xf] %v1552
        %v1589 = vpack.c.bf16 %v1119, %v1119
        %v1590 = vpack.c.bf16 %v1120, %v1120
        %v1591 = vpack.c.bf16 %v1121, %v1121
        %v1592 = vpack.c.bf16 %v1122, %v1122
        %v1593 = vpack.c.bf16 %v1123, %v1123
        %v1594 = vpack.c.bf16 %v1124, %v1124
        %v1595 = vpack.c.bf16 %v1125, %v1125
        %v1596 = vpack.c.bf16 %v1126, %v1126
        %v1597 = vpack.c.bf16 %v1127, %v1127
        %v1598 = vpack.c.bf16 %v1128, %v1128
        %v1599 = vpack.c.bf16 %v1129, %v1129
        %v1600 = vpack.c.bf16 %v1130, %v1130
        %v1601 = vpack.c.bf16 %v1131, %v1131
        %v1602 = vpack.c.bf16 %v1132, %v1132
        %v1603 = vpack.c.bf16 %v1133, %v1133
        %v1604 = vpack.c.bf16 %v1134, %v1134
        %v1605 = vpack.c.bf16 %v1135, %v1135
        %v1606 = vpack.c.bf16 %v1136, %v1136
        %v1607 = vpack.c.bf16 %v1137, %v1137
        %v1608 = vpack.c.bf16 %v1138, %v1138
        %v1609 = vpack.c.bf16 %v1139, %v1139
        %v1610 = vpack.c.bf16 %v1140, %v1140
        %v1611 = vpack.c.bf16 %v1141, %v1141
        %v1612 = vpack.c.bf16 %v1142, %v1142
        %v1613 = vpack.c.bf16 %v1143, %v1143
        %v1614 = vpack.c.bf16 %v1144, %v1144
        %v1615 = vpack.c.bf16 %v1145, %v1145
        %v1616 = vpack.c.bf16 %v1146, %v1146
        %v1617 = vpack.c.bf16 %v1147, %v1147
        %v1618 = vpack.c.bf16 %v1148, %v1148
        %v1619 = vpack.c.bf16 %v1149, %v1149
        %v1620 = vpack.c.bf16 %v1150, %v1150
        %v1621 = vpack.c.bf16 %v1151, %v1151
        %v1622 = vpack.c.bf16 %v1152, %v1152
        %v1623 = vpack.c.bf16 %v1153, %v1153
        %v1624 = vpack.c.bf16 %v1154, %v1154
        %1625 = vst [vmem:[#allocation3 + $0x4] sm:$0xf] %v1589
        %1626 = vst [vmem:[#allocation3 + $0x10] sm:$0xf] %v1590
        %1627 = vst [vmem:[#allocation3 + $0x1c] sm:$0xf] %v1591
        %1628 = vst [vmem:[#allocation3 + $0x28] sm:$0xf] %v1592
        %1629 = vst [vmem:[#allocation3 + $0x34] sm:$0xf] %v1593
        %1630 = vst [vmem:[#allocation3 + $0x40] sm:$0xf] %v1594
        %1631 = vst [vmem:[#allocation3 + $0x4c] sm:$0xf] %v1595
        %1632 = vst [vmem:[#allocation3 + $0x58] sm:$0xf] %v1596
        %1633 = vst [vmem:[#allocation3 + $0x64] sm:$0xf] %v1597
        %1634 = vst [vmem:[#allocation3 + $0x70] sm:$0xf] %v1598
        %1635 = vst [vmem:[#allocation3 + $0x7c] sm:$0xf] %v1599
        %1636 = vst [vmem:[#allocation3 + $0x88] sm:$0xf] %v1600
        %1637 = vst [vmem:[#allocation3 + $0x94] sm:$0xf] %v1601
        %1638 = vst [vmem:[#allocation3 + $0xa0] sm:$0xf] %v1602
        %1639 = vst [vmem:[#allocation3 + $0xac] sm:$0xf] %v1603
        %1640 = vst [vmem:[#allocation3 + $0xb8] sm:$0xf] %v1604
        %1641 = vst [vmem:[#allocation3 + $0xc4] sm:$0xf] %v1605
        %1642 = vst [vmem:[#allocation3 + $0xd0] sm:$0xf] %v1606
        %1643 = vst [vmem:[#allocation3 + $0xdc] sm:$0xf] %v1607
        %1644 = vst [vmem:[#allocation3 + $0xe8] sm:$0xf] %v1608
        %1645 = vst [vmem:[#allocation3 + $0xf4] sm:$0xf] %v1609
        %1646 = vst [vmem:[#allocation3 + $0x100] sm:$0xf] %v1610
        %1647 = vst [vmem:[#allocation3 + $0x10c] sm:$0xf] %v1611
        %1648 = vst [vmem:[#allocation3 + $0x118] sm:$0xf] %v1612
        %1649 = vst [vmem:[#allocation3 + $0x124] sm:$0xf] %v1613
        %1650 = vst [vmem:[#allocation3 + $0x130] sm:$0xf] %v1614
        %1651 = vst [vmem:[#allocation3 + $0x13c] sm:$0xf] %v1615
        %1652 = vst [vmem:[#allocation3 + $0x148] sm:$0xf] %v1616
        %1653 = vst [vmem:[#allocation3 + $0x154] sm:$0xf] %v1617
        %1654 = vst [vmem:[#allocation3 + $0x160] sm:$0xf] %v1618
        %1655 = vst [vmem:[#allocation3 + $0x16c] sm:$0xf] %v1619
        %1656 = vst [vmem:[#allocation3 + $0x178] sm:$0xf] %v1620
        %1657 = vst [vmem:[#allocation3 + $0x184] sm:$0xf] %v1621
        %1658 = vst [vmem:[#allocation3 + $0x190] sm:$0xf] %v1622
        %1659 = vst [vmem:[#allocation3 + $0x19c] sm:$0xf] %v1623
        %1660 = vst [vmem:[#allocation3 + $0x1a8] sm:$0xf] %v1624
        %v1661 = vpack.c.bf16 %v1481, %v1481
        %v1662 = vpack.c.bf16 %v1482, %v1482
        %v1663 = vpack.c.bf16 %v1483, %v1483
        %v1664 = vpack.c.bf16 %v1484, %v1484
        %v1665 = vpack.c.bf16 %v1485, %v1485
        %v1666 = vpack.c.bf16 %v1486, %v1486
        %v1667 = vpack.c.bf16 %v1487, %v1487
        %v1668 = vpack.c.bf16 %v1488, %v1488
        %v1669 = vpack.c.bf16 %v1489, %v1489
        %v1670 = vpack.c.bf16 %v1490, %v1490
        %v1671 = vpack.c.bf16 %v1491, %v1491
        %v1672 = vpack.c.bf16 %v1492, %v1492
        %v1673 = vpack.c.bf16 %v1493, %v1493
        %v1674 = vpack.c.bf16 %v1494, %v1494
        %v1675 = vpack.c.bf16 %v1495, %v1495
        %v1676 = vpack.c.bf16 %v1496, %v1496
        %v1677 = vpack.c.bf16 %v1497, %v1497
        %v1678 = vpack.c.bf16 %v1498, %v1498
        %v1679 = vpack.c.bf16 %v1499, %v1499
        %v1680 = vpack.c.bf16 %v1500, %v1500
        %v1681 = vpack.c.bf16 %v1501, %v1501
        %v1682 = vpack.c.bf16 %v1502, %v1502
        %v1683 = vpack.c.bf16 %v1503, %v1503
        %v1684 = vpack.c.bf16 %v1504, %v1504
        %v1685 = vpack.c.bf16 %v1505, %v1505
        %v1686 = vpack.c.bf16 %v1506, %v1506
        %v1687 = vpack.c.bf16 %v1507, %v1507
        %v1688 = vpack.c.bf16 %v1508, %v1508
        %v1689 = vpack.c.bf16 %v1509, %v1509
        %v1690 = vpack.c.bf16 %v1510, %v1510
        %v1691 = vpack.c.bf16 %v1511, %v1511
        %v1692 = vpack.c.bf16 %v1512, %v1512
        %v1693 = vpack.c.bf16 %v1513, %v1513
        %v1694 = vpack.c.bf16 %v1514, %v1514
        %v1695 = vpack.c.bf16 %v1515, %v1515
        %v1696 = vpack.c.bf16 %v1516, %v1516
        %1697 = vst [vmem:[#allocation3 + $0x8] sm:$0xf] %v1661
        %1698 = vst [vmem:[#allocation3 + $0x14] sm:$0xf] %v1662
        %1699 = vst [vmem:[#allocation3 + $0x20] sm:$0xf] %v1663
        %1700 = vst [vmem:[#allocation3 + $0x2c] sm:$0xf] %v1664
        %1701 = vst [vmem:[#allocation3 + $0x38] sm:$0xf] %v1665
        %1702 = vst [vmem:[#allocation3 + $0x44] sm:$0xf] %v1666
        %1703 = vst [vmem:[#allocation3 + $0x50] sm:$0xf] %v1667
        %1704 = vst [vmem:[#allocation3 + $0x5c] sm:$0xf] %v1668
        %1705 = vst [vmem:[#allocation3 + $0x68] sm:$0xf] %v1669
        %1706 = vst [vmem:[#allocation3 + $0x74] sm:$0xf] %v1670
        %1707 = vst [vmem:[#allocation3 + $0x80] sm:$0xf] %v1671
        %1708 = vst [vmem:[#allocation3 + $0x8c] sm:$0xf] %v1672
        %1709 = vst [vmem:[#allocation3 + $0x98] sm:$0xf] %v1673
        %1710 = vst [vmem:[#allocation3 + $0xa4] sm:$0xf] %v1674
        %1711 = vst [vmem:[#allocation3 + $0xb0] sm:$0xf] %v1675
        %1712 = vst [vmem:[#allocation3 + $0xbc] sm:$0xf] %v1676
        %1713 = vst [vmem:[#allocation3 + $0xc8] sm:$0xf] %v1677
        %1714 = vst [vmem:[#allocation3 + $0xd4] sm:$0xf] %v1678
        %1715 = vst [vmem:[#allocation3 + $0xe0] sm:$0xf] %v1679
        %1716 = vst [vmem:[#allocation3 + $0xec] sm:$0xf] %v1680
        %1717 = vst [vmem:[#allocation3 + $0xf8] sm:$0xf] %v1681
        %1718 = vst [vmem:[#allocation3 + $0x104] sm:$0xf] %v1682
        %1719 = vst [vmem:[#allocation3 + $0x110] sm:$0xf] %v1683
        %1720 = vst [vmem:[#allocation3 + $0x11c] sm:$0xf] %v1684
        %1721 = vst [vmem:[#allocation3 + $0x128] sm:$0xf] %v1685
        %1722 = vst [vmem:[#allocation3 + $0x134] sm:$0xf] %v1686
        %1723 = vst [vmem:[#allocation3 + $0x140] sm:$0xf] %v1687
        %1724 = vst [vmem:[#allocation3 + $0x14c] sm:$0xf] %v1688
        %1725 = vst [vmem:[#allocation3 + $0x158] sm:$0xf] %v1689
        %1726 = vst [vmem:[#allocation3 + $0x164] sm:$0xf] %v1690
        %1727 = vst [vmem:[#allocation3 + $0x170] sm:$0xf] %v1691
        %1728 = vst [vmem:[#allocation3 + $0x17c] sm:$0xf] %v1692
        %1729 = vst [vmem:[#allocation3 + $0x188] sm:$0xf] %v1693
        %1730 = vst [vmem:[#allocation3 + $0x194] sm:$0xf] %v1694
        %1731 = vst [vmem:[#allocation3 + $0x1a0] sm:$0xf] %v1695
        %1732 = vst [vmem:[#allocation3 + $0x1ac] sm:$0xf] %v1696
        %v1733 = vld [vmem:[#allocation3] sm:$0xff]
        %v1734 = vld [vmem:[#allocation3 + $0x8] sm:$0xf]
        %v1735 = vld [vmem:[#allocation3 + $0xc] sm:$0xff]
        %v1736 = vld [vmem:[#allocation3 + $0x14] sm:$0xf]
        %v1737 = vld [vmem:[#allocation3 + $0x18] sm:$0xff]
        %v1738 = vld [vmem:[#allocation3 + $0x20] sm:$0xf]
        %v1739 = vld [vmem:[#allocation3 + $0x24] sm:$0xff]
        %v1740 = vld [vmem:[#allocation3 + $0x2c] sm:$0xf]
        %v1741 = vld [vmem:[#allocation3 + $0x30] sm:$0xff]
        %v1742 = vld [vmem:[#allocation3 + $0x38] sm:$0xf]
        %v1743 = vld [vmem:[#allocation3 + $0x3c] sm:$0xff]
        %v1744 = vld [vmem:[#allocation3 + $0x44] sm:$0xf]
        %v1745 = vld [vmem:[#allocation3 + $0x48] sm:$0xff]
        %v1746 = vld [vmem:[#allocation3 + $0x50] sm:$0xf]
        %v1747 = vld [vmem:[#allocation3 + $0x54] sm:$0xff]
        %v1748 = vld [vmem:[#allocation3 + $0x5c] sm:$0xf]
        %v1749 = vld [vmem:[#allocation3 + $0x60] sm:$0xff]
        %v1750 = vld [vmem:[#allocation3 + $0x68] sm:$0xf]
        %v1751 = vld [vmem:[#allocation3 + $0x6c] sm:$0xff]
        %v1752 = vld [vmem:[#allocation3 + $0x74] sm:$0xf]
        %v1753 = vld [vmem:[#allocation3 + $0x78] sm:$0xff]
        %v1754 = vld [vmem:[#allocation3 + $0x80] sm:$0xf]
        %v1755 = vld [vmem:[#allocation3 + $0x84] sm:$0xff]
        %v1756 = vld [vmem:[#allocation3 + $0x8c] sm:$0xf]
        %v1757 = vld [vmem:[#allocation3 + $0x90] sm:$0xff]
        %v1758 = vld [vmem:[#allocation3 + $0x98] sm:$0xf]
        %v1759 = vld [vmem:[#allocation3 + $0x9c] sm:$0xff]
        %v1760 = vld [vmem:[#allocation3 + $0xa4] sm:$0xf]
        %v1761 = vld [vmem:[#allocation3 + $0xa8] sm:$0xff]
        %v1762 = vld [vmem:[#allocation3 + $0xb0] sm:$0xf]
        %v1763 = vld [vmem:[#allocation3 + $0xb4] sm:$0xff]
        %v1764 = vld [vmem:[#allocation3 + $0xbc] sm:$0xf]
        %v1765 = vld [vmem:[#allocation3 + $0xc0] sm:$0xff]
        %v1766 = vld [vmem:[#allocation3 + $0xc8] sm:$0xf]
        %v1767 = vld [vmem:[#allocation3 + $0xcc] sm:$0xff]
        %v1768 = vld [vmem:[#allocation3 + $0xd4] sm:$0xf]
        %v1769 = vld [vmem:[#allocation3 + $0xd8] sm:$0xff]
        %v1770 = vld [vmem:[#allocation3 + $0xe0] sm:$0xf]
        %v1771 = vld [vmem:[#allocation3 + $0xe4] sm:$0xff]
        %v1772 = vld [vmem:[#allocation3 + $0xec] sm:$0xf]
        %v1773 = vld [vmem:[#allocation3 + $0xf0] sm:$0xff]
        %v1774 = vld [vmem:[#allocation3 + $0xf8] sm:$0xf]
        %v1775 = vld [vmem:[#allocation3 + $0xfc] sm:$0xff]
        %v1776 = vld [vmem:[#allocation3 + $0x104] sm:$0xf]
        %v1777 = vld [vmem:[#allocation3 + $0x108] sm:$0xff]
        %v1778 = vld [vmem:[#allocation3 + $0x110] sm:$0xf]
        %v1779 = vld [vmem:[#allocation3 + $0x114] sm:$0xff]
        %v1780 = vld [vmem:[#allocation3 + $0x11c] sm:$0xf]
        %v1781 = vld [vmem:[#allocation3 + $0x120] sm:$0xff]
        %v1782 = vld [vmem:[#allocation3 + $0x128] sm:$0xf]
        %v1783 = vld [vmem:[#allocation3 + $0x12c] sm:$0xff]
        %v1784 = vld [vmem:[#allocation3 + $0x134] sm:$0xf]
        %v1785 = vld [vmem:[#allocation3 + $0x138] sm:$0xff]
        %v1786 = vld [vmem:[#allocation3 + $0x140] sm:$0xf]
        %v1787 = vld [vmem:[#allocation3 + $0x144] sm:$0xff]
        %v1788 = vld [vmem:[#allocation3 + $0x14c] sm:$0xf]
        %v1789 = vld [vmem:[#allocation3 + $0x150] sm:$0xff]
        %v1790 = vld [vmem:[#allocation3 + $0x158] sm:$0xf]
        %v1791 = vld [vmem:[#allocation3 + $0x15c] sm:$0xff]
        %v1792 = vld [vmem:[#allocation3 + $0x164] sm:$0xf]
        %v1793 = vld [vmem:[#allocation3 + $0x168] sm:$0xff]
        %v1794 = vld [vmem:[#allocation3 + $0x170] sm:$0xf]
        %v1795 = vld [vmem:[#allocation3 + $0x174] sm:$0xff]
        %v1796 = vld [vmem:[#allocation3 + $0x17c] sm:$0xf]
        %v1797 = vld [vmem:[#allocation4] sm:$0xf]
        %v1798 = vld [vmem:[#allocation4 + $0x4] sm:$0xf]
        %v1799 = vld [vmem:[#allocation4 + $0x8] sm:$0xf]
        %v1800 = vld [vmem:[#allocation4 + $0xc] sm:$0xf]
        %v1801 = vld [vmem:[#allocation4 + $0x10] sm:$0xf]
        %v1802 = vld [vmem:[#allocation4 + $0x14] sm:$0xf]
        %v1803 = vld [vmem:[#allocation4 + $0x18] sm:$0xf]
        %v1804 = vld [vmem:[#allocation4 + $0x1c] sm:$0xf]
        %v1805 = vld [vmem:[#allocation4 + $0x20] sm:$0xf]
        %v1806 = vld [vmem:[#allocation4 + $0x24] sm:$0xf]
        %v1807 = vld [vmem:[#allocation4 + $0x28] sm:$0xf]
        %v1808 = vld [vmem:[#allocation4 + $0x2c] sm:$0xf]
        %v1809 = vld [vmem:[#allocation4 + $0x30] sm:$0xf]
        %v1810 = vld [vmem:[#allocation4 + $0x34] sm:$0xf]
        %v1811 = vld [vmem:[#allocation4 + $0x38] sm:$0xf]
        %v1812 = vld [vmem:[#allocation4 + $0x3c] sm:$0xf]
        %v1813 = vld [vmem:[#allocation4 + $0x40] sm:$0xf]
        %v1814 = vld [vmem:[#allocation4 + $0x44] sm:$0xf]
        %v1815 = vld [vmem:[#allocation4 + $0x48] sm:$0xf]
        %v1816 = vld [vmem:[#allocation4 + $0x4c] sm:$0xf]
        %v1817 = vld [vmem:[#allocation4 + $0x50] sm:$0xf]
        %v1818 = vld [vmem:[#allocation4 + $0x54] sm:$0xf]
        %v1819 = vld [vmem:[#allocation4 + $0x58] sm:$0xf]
        %v1820 = vld [vmem:[#allocation4 + $0x5c] sm:$0xf]
        %v1821 = vld [vmem:[#allocation4 + $0x60] sm:$0xf]
        %v1822 = vld [vmem:[#allocation4 + $0x64] sm:$0xf]
        %v1823 = vld [vmem:[#allocation4 + $0x68] sm:$0xf]
        %v1824 = vld [vmem:[#allocation4 + $0x6c] sm:$0xf]
        %v1825 = vld [vmem:[#allocation4 + $0x70] sm:$0xf]
        %v1826 = vld [vmem:[#allocation4 + $0x74] sm:$0xf]
        %v1827 = vld [vmem:[#allocation4 + $0x78] sm:$0xf]
        %v1828 = vld [vmem:[#allocation4 + $0x7c] sm:$0xf]
        %v1829 = vld [vmem:[#allocation4 + $0x80] sm:$0xf]
        %v1830 = vld [vmem:[#allocation4 + $0x84] sm:$0xf]
        %v1831 = vld [vmem:[#allocation4 + $0x88] sm:$0xf]
        %v1832 = vld [vmem:[#allocation4 + $0x8c] sm:$0xf]
        %v1833 = vld [vmem:[#allocation4 + $0x90] sm:$0xf]
        %v1834 = vld [vmem:[#allocation4 + $0x94] sm:$0xf]
        %v1835 = vld [vmem:[#allocation4 + $0x98] sm:$0xf]
        %v1836 = vld [vmem:[#allocation4 + $0x9c] sm:$0xf]
        %v1837 = vld [vmem:[#allocation4 + $0xa0] sm:$0xf]
        %v1838 = vld [vmem:[#allocation4 + $0xa4] sm:$0xf]
        %v1839 = vld [vmem:[#allocation4 + $0xa8] sm:$0xf]
        %v1840 = vld [vmem:[#allocation4 + $0xac] sm:$0xf]
        %v1841 = vld [vmem:[#allocation4 + $0xb0] sm:$0xf]
        %v1842 = vld [vmem:[#allocation4 + $0xb4] sm:$0xf]
        %v1843 = vld [vmem:[#allocation4 + $0xb8] sm:$0xf]
        %v1844 = vld [vmem:[#allocation4 + $0xbc] sm:$0xf]
        %v1845 = vld [vmem:[#allocation3 + $0x180] sm:$0xff]
        %v1846 = vld [vmem:[#allocation3 + $0x188] sm:$0xf]
        %v1847 = vld [vmem:[#allocation3 + $0x18c] sm:$0xff]
        %v1848 = vld [vmem:[#allocation3 + $0x194] sm:$0xf]
        %s1849 = scalar_lea.vmem [#allocation4], 192
        %v1850 = vld [vmem:[%s1849] sm:$0xf]
        %v1851 = vld [vmem:[%s1849 + $0x4] sm:$0xf]
        %v1852 = vld [vmem:[%s1849 + $0x8] sm:$0xf]
        %v1853 = vld [vmem:[%s1849 + $0xc] sm:$0xf]
        %v1854 = vld [vmem:[%s1849 + $0x10] sm:$0xf]
        %v1855 = vld [vmem:[%s1849 + $0x14] sm:$0xf]
        %v1856 = vld [vmem:[%s1849 + $0x18] sm:$0xf]
        %v1857 = vld [vmem:[%s1849 + $0x1c] sm:$0xf]
        %v1858 = vld [vmem:[%s1849 + $0x20] sm:$0xf]
        %v1859 = vld [vmem:[%s1849 + $0x24] sm:$0xf]
        %v1860 = vld [vmem:[%s1849 + $0x28] sm:$0xf]
        %v1861 = vld [vmem:[%s1849 + $0x2c] sm:$0xf]
        %v1862 = vld [vmem:[%s1849 + $0x30] sm:$0xf]
        %v1863 = vld [vmem:[%s1849 + $0x34] sm:$0xf]
        %v1864 = vld [vmem:[%s1849 + $0x38] sm:$0xf]
        %v1865 = vld [vmem:[%s1849 + $0x3c] sm:$0xf]
        %v1866 = vld [vmem:[%s1849 + $0x40] sm:$0xf]
        %v1867 = vld [vmem:[%s1849 + $0x44] sm:$0xf]
        %v1868 = vld [vmem:[%s1849 + $0x48] sm:$0xf]
        %v1869 = vld [vmem:[%s1849 + $0x4c] sm:$0xf]
        %v1870 = vld [vmem:[%s1849 + $0x50] sm:$0xf]
        %v1871 = vld [vmem:[%s1849 + $0x54] sm:$0xf]
        %v1872 = vld [vmem:[%s1849 + $0x58] sm:$0xf]
        %v1873 = vld [vmem:[%s1849 + $0x5c] sm:$0xf]
        %v1874 = vld [vmem:[%s1849 + $0x60] sm:$0xf]
        %v1875 = vld [vmem:[%s1849 + $0x64] sm:$0xf]
        %v1876 = vld [vmem:[%s1849 + $0x68] sm:$0xf]
        %v1877 = vld [vmem:[%s1849 + $0x6c] sm:$0xf]
        %v1878 = vld [vmem:[%s1849 + $0x70] sm:$0xf]
        %v1879 = vld [vmem:[%s1849 + $0x74] sm:$0xf]
        %v1880 = vld [vmem:[%s1849 + $0x78] sm:$0xf]
        %v1881 = vld [vmem:[%s1849 + $0x7c] sm:$0xf]
        %v1882 = vld [vmem:[%s1849 + $0x80] sm:$0xf]
        %v1883 = vld [vmem:[%s1849 + $0x84] sm:$0xf]
        %v1884 = vld [vmem:[%s1849 + $0x88] sm:$0xf]
        %v1885 = vld [vmem:[%s1849 + $0x8c] sm:$0xf]
        %v1886 = vld [vmem:[%s1849 + $0x90] sm:$0xf]
        %v1887 = vld [vmem:[%s1849 + $0x94] sm:$0xf]
        %v1888 = vld [vmem:[%s1849 + $0x98] sm:$0xf]
        %v1889 = vld [vmem:[%s1849 + $0x9c] sm:$0xf]
        %v1890 = vld [vmem:[%s1849 + $0xa0] sm:$0xf]
        %v1891 = vld [vmem:[%s1849 + $0xa4] sm:$0xf]
        %v1892 = vld [vmem:[%s1849 + $0xa8] sm:$0xf]
        %v1893 = vld [vmem:[%s1849 + $0xac] sm:$0xf]
        %v1894 = vld [vmem:[%s1849 + $0xb0] sm:$0xf]
        %v1895 = vld [vmem:[%s1849 + $0xb4] sm:$0xf]
        %v1896 = vld [vmem:[%s1849 + $0xb8] sm:$0xf]
        %v1897 = vld [vmem:[%s1849 + $0xbc] sm:$0xf]
        %v1962 = vunpack.c.l.b16 %v1737
        %v1963 = vunpack.c.h.b16 %v1737
        %v1964 = vunpack.c.l.b16 %v1738
        %v1965 = vunpack.c.l.b16 %v1739
        %v1966 = vunpack.c.h.b16 %v1739
        %v1967 = vunpack.c.l.b16 %v1740
        %v1968 = vunpack.c.l.b16 %v1741
        %v1969 = vunpack.c.h.b16 %v1741
        %v1970 = vunpack.c.l.b16 %v1742
        %v1971 = vunpack.c.l.b16 %v1743
        %v1972 = vunpack.c.h.b16 %v1743
        %v1973 = vunpack.c.l.b16 %v1744
        %v1974 = vunpack.c.l.b16 %v1745
        %v1975 = vunpack.c.h.b16 %v1745
        %v1976 = vunpack.c.l.b16 %v1746
        %v1977 = vunpack.c.l.b16 %v1747
        %v1978 = vunpack.c.h.b16 %v1747
        %v1979 = vunpack.c.l.b16 %v1748
        %v1980 = vunpack.c.l.b16 %v1749
        %v1981 = vunpack.c.h.b16 %v1749
        %v1982 = vunpack.c.l.b16 %v1750
        %v1983 = vunpack.c.l.b16 %v1751
        %v1984 = vunpack.c.h.b16 %v1751
        %v1985 = vunpack.c.l.b16 %v1752
        %v1986 = vunpack.c.l.b16 %v1753
        %v1987 = vunpack.c.h.b16 %v1753
        %v1988 = vunpack.c.l.b16 %v1754
        %v1989 = vunpack.c.l.b16 %v1755
        %v1990 = vunpack.c.h.b16 %v1755
        %v1991 = vunpack.c.l.b16 %v1756
        %v1992 = vunpack.c.l.b16 %v1757
        %v1993 = vunpack.c.h.b16 %v1757
        %v1994 = vunpack.c.l.b16 %v1758
        %v1995 = vunpack.c.l.b16 %v1759
        %v1996 = vunpack.c.h.b16 %v1759
        %v1997 = vunpack.c.l.b16 %v1760
        %v1998 = vunpack.c.l.b16 %v1761
        %v1999 = vunpack.c.h.b16 %v1761
        %v2000 = vunpack.c.l.b16 %v1762
        %v2001 = vunpack.c.l.b16 %v1763
        %v2002 = vunpack.c.h.b16 %v1763
        %v2003 = vunpack.c.l.b16 %v1764
        %v2004 = vunpack.c.l.b16 %v1765
        %v2005 = vunpack.c.h.b16 %v1765
        %v2006 = vunpack.c.l.b16 %v1766
        %v2007 = vunpack.c.l.b16 %v1767
        %v2008 = vunpack.c.h.b16 %v1767
        %v2009 = vunpack.c.l.b16 %v1768
        %v2010 = vunpack.c.l.b16 %v1769
        %v2011 = vunpack.c.h.b16 %v1769
        %v2012 = vunpack.c.l.b16 %v1770
        %v2013 = vunpack.c.l.b16 %v1771
        %v2014 = vunpack.c.h.b16 %v1771
        %v2015 = vunpack.c.l.b16 %v1772
        %v2016 = vunpack.c.l.b16 %v1773
        %v2017 = vunpack.c.h.b16 %v1773
        %v2018 = vunpack.c.l.b16 %v1774
        %v2019 = vunpack.c.l.b16 %v1775
        %v2020 = vunpack.c.h.b16 %v1775
        %v2021 = vunpack.c.l.b16 %v1776
        %v2022 = vunpack.c.l.b16 %v1777
        %v2023 = vunpack.c.h.b16 %v1777
        %v2024 = vunpack.c.l.b16 %v1778
        %v2025 = vunpack.c.l.b16 %v1779
        %v2026 = vunpack.c.h.b16 %v1779
        %v2027 = vunpack.c.l.b16 %v1780
        %v2028 = vunpack.c.l.b16 %v1781
        %v2029 = vunpack.c.h.b16 %v1781
        %v2030 = vunpack.c.l.b16 %v1782
        %v2031 = vunpack.c.l.b16 %v1783
        %v2032 = vunpack.c.h.b16 %v1783
        %v2033 = vunpack.c.l.b16 %v1784
        %v2034 = vunpack.c.l.b16 %v1785
        %v2035 = vunpack.c.h.b16 %v1785
        %v2036 = vunpack.c.l.b16 %v1786
        %v2037 = vunpack.c.l.b16 %v1787
        %v2038 = vunpack.c.h.b16 %v1787
        %v2039 = vunpack.c.l.b16 %v1788
        %v2040 = vunpack.c.l.b16 %v1789
        %v2041 = vunpack.c.h.b16 %v1789
        %v2042 = vunpack.c.l.b16 %v1790
        %v2043 = vunpack.c.l.b16 %v1791
        %v2044 = vunpack.c.h.b16 %v1791
        %v2045 = vunpack.c.l.b16 %v1792
        %v2046 = vunpack.c.l.b16 %v1793
        %v2047 = vunpack.c.h.b16 %v1793
        %v2048 = vunpack.c.l.b16 %v1794
        %v2049 = vunpack.c.l.b16 %v1795
        %v2050 = vunpack.c.h.b16 %v1795
        %v2051 = vunpack.c.l.b16 %v1796
        %v2052 = vunpack.c.l.b16 %v1845
        %v2053 = vunpack.c.h.b16 %v1845
        %v2054 = vunpack.c.l.b16 %v1846
        %v2055 = vunpack.c.l.b16 %v1847
        %v2056 = vunpack.c.h.b16 %v1847
        %v2057 = vunpack.c.l.b16 %v1848
        %v2058 = vpack.c.b16 %v1965, %v1962
        %v2059 = vpack.c.b16 %v1966, %v1963
        %v2060 = vpack.c.b16 %v1967, %v1964
        %v2061 = vpack.c.b16 %v1971, %v1968
        %v2062 = vpack.c.b16 %v1972, %v1969
        %v2063 = vpack.c.b16 %v1973, %v1970
        %v2064 = vpack.c.b16 %v1977, %v1974
        %v2065 = vpack.c.b16 %v1978, %v1975
        %v2066 = vpack.c.b16 %v1979, %v1976
        %v2067 = vpack.c.b16 %v1983, %v1980
        %v2068 = vpack.c.b16 %v1984, %v1981
        %v2069 = vpack.c.b16 %v1985, %v1982
        %v2070 = vpack.c.b16 %v1989, %v1986
        %v2071 = vpack.c.b16 %v1990, %v1987
        %v2072 = vpack.c.b16 %v1991, %v1988
        %v2073 = vpack.c.b16 %v1995, %v1992
        %v2074 = vpack.c.b16 %v1996, %v1993
        %v2075 = vpack.c.b16 %v1997, %v1994
        %v2076 = vpack.c.b16 %v2001, %v1998
        %v2077 = vpack.c.b16 %v2002, %v1999
        %v2078 = vpack.c.b16 %v2003, %v2000
        %v2079 = vpack.c.b16 %v2007, %v2004
        %v2080 = vpack.c.b16 %v2008, %v2005
        %v2081 = vpack.c.b16 %v2009, %v2006
        %v2082 = vpack.c.b16 %v2013, %v2010
        %v2083 = vpack.c.b16 %v2014, %v2011
        %v2084 = vpack.c.b16 %v2015, %v2012
        %v2085 = vpack.c.b16 %v2019, %v2016
        %v2086 = vpack.c.b16 %v2020, %v2017
        %v2087 = vpack.c.b16 %v2021, %v2018
        %v2088 = vpack.c.b16 %v2025, %v2022
        %v2089 = vpack.c.b16 %v2026, %v2023
        %v2090 = vpack.c.b16 %v2027, %v2024
        %v2091 = vpack.c.b16 %v2031, %v2028
        %v2092 = vpack.c.b16 %v2032, %v2029
        %v2093 = vpack.c.b16 %v2033, %v2030
        %v2094 = vpack.c.b16 %v2037, %v2034
        %v2095 = vpack.c.b16 %v2038, %v2035
        %v2096 = vpack.c.b16 %v2039, %v2036
        %v2097 = vpack.c.b16 %v2043, %v2040
        %v2098 = vpack.c.b16 %v2044, %v2041
        %v2099 = vpack.c.b16 %v2045, %v2042
        %v2100 = vpack.c.b16 %v2049, %v2046
        %v2101 = vpack.c.b16 %v2050, %v2047
        %v2102 = vpack.c.b16 %v2051, %v2048
        %v2103 = vpack.c.b16 %v2055, %v2052
        %v2104 = vpack.c.b16 %v2056, %v2053
        %v2105 = vpack.c.b16 %v2057, %v2054
        %v2202 = vunpack.c.l.b16 %v1850
        %v2203 = vunpack.c.l.b16 %v1851
        %v2204 = vunpack.c.l.b16 %v1852
        %v2205 = vunpack.c.l.b16 %v1853
        %v2206 = vunpack.c.l.b16 %v1854
        %v2207 = vunpack.c.l.b16 %v1855
        %v2208 = vunpack.c.l.b16 %v1856
        %v2209 = vunpack.c.l.b16 %v1857
        %v2210 = vunpack.c.l.b16 %v1858
        %v2211 = vunpack.c.l.b16 %v1859
        %v2212 = vunpack.c.l.b16 %v1860
        %v2213 = vunpack.c.l.b16 %v1861
        %v2214 = vunpack.c.l.b16 %v1862
        %v2215 = vunpack.c.l.b16 %v1863
        %v2216 = vunpack.c.l.b16 %v1864
        %v2217 = vunpack.c.l.b16 %v1865
        %v2218 = vunpack.c.l.b16 %v1866
        %v2219 = vunpack.c.l.b16 %v1867
        %v2220 = vunpack.c.l.b16 %v1868
        %v2221 = vunpack.c.l.b16 %v1869
        %v2222 = vunpack.c.l.b16 %v1870
        %v2223 = vunpack.c.l.b16 %v1871
        %v2224 = vunpack.c.l.b16 %v1872
        %v2225 = vunpack.c.l.b16 %v1873
        %v2226 = vunpack.c.l.b16 %v1874
        %v2227 = vunpack.c.l.b16 %v1875
        %v2228 = vunpack.c.l.b16 %v1876
        %v2229 = vunpack.c.l.b16 %v1877
        %v2230 = vunpack.c.l.b16 %v1878
        %v2231 = vunpack.c.l.b16 %v1879
        %v2232 = vunpack.c.l.b16 %v1880
        %v2233 = vunpack.c.l.b16 %v1881
        %v2234 = vunpack.c.l.b16 %v1882
        %v2235 = vunpack.c.l.b16 %v1883
        %v2236 = vunpack.c.l.b16 %v1884
        %v2237 = vunpack.c.l.b16 %v1885
        %v2238 = vunpack.c.l.b16 %v1886
        %v2239 = vunpack.c.l.b16 %v1887
        %v2240 = vunpack.c.l.b16 %v1888
        %v2241 = vunpack.c.l.b16 %v1889
        %v2242 = vunpack.c.l.b16 %v1890
        %v2243 = vunpack.c.l.b16 %v1891
        %v2244 = vunpack.c.l.b16 %v1892
        %v2245 = vunpack.c.l.b16 %v1893
        %v2246 = vunpack.c.l.b16 %v1894
        %v2247 = vunpack.c.l.b16 %v1895
        %v2248 = vunpack.c.l.b16 %v1896
        %v2249 = vunpack.c.l.b16 %v1897
        %v2250 = vpack.c.b16 %v2203, %v2202
        %v2251 = vpack.c.b16 %v2205, %v2204
        %v2252 = vpack.c.b16 %v2207, %v2206
        %v2253 = vpack.c.b16 %v2209, %v2208
        %v2254 = vpack.c.b16 %v2211, %v2210
        %v2255 = vpack.c.b16 %v2213, %v2212
        %v2256 = vpack.c.b16 %v2215, %v2214
        %v2257 = vpack.c.b16 %v2217, %v2216
        %v2258 = vpack.c.b16 %v2219, %v2218
        %v2259 = vpack.c.b16 %v2221, %v2220
        %v2260 = vpack.c.b16 %v2223, %v2222
        %v2261 = vpack.c.b16 %v2225, %v2224
        %v2262 = vpack.c.b16 %v2227, %v2226
        %v2263 = vpack.c.b16 %v2229, %v2228
        %v2264 = vpack.c.b16 %v2231, %v2230
        %v2265 = vpack.c.b16 %v2233, %v2232
        %v2266 = vpack.c.b16 %v2235, %v2234
        %v2267 = vpack.c.b16 %v2237, %v2236
        %v2268 = vpack.c.b16 %v2239, %v2238
        %v2269 = vpack.c.b16 %v2241, %v2240
        %v2270 = vpack.c.b16 %v2243, %v2242
        %v2271 = vpack.c.b16 %v2245, %v2244
        %v2272 = vpack.c.b16 %v2247, %v2246
        %v2273 = vpack.c.b16 %v2249, %v2248
        %2298 = vmatpush.bf16.msra.mxu0 %v2257
        %2299 = vmatpush.bf16.msra.mxu0 %v2256
        %2300 = vmatpush.bf16.msra.mxu0 %v2255
        %2301 = vmatpush.bf16.msra.mxu0 %v2254
        %2302 = vmatpush.bf16.msra.mxu0 %v2253
        %2303 = vmatpush.bf16.msra.mxu0 %v2252
        %2304 = vmatpush.bf16.msra.mxu0 %v2251
        %2305 = vmatpush.bf16.msra.mxu0 %v2250
        %2306 = vmatmul.bf16.gmra.mxu0 %v2058
        %v2307 = vpop.f32.mrf.mxu0
        %v2308 = vadd.f32 0.0, %v2307
        %v2309 = vpop.f32.mrf.mxu0
        %v2310 = vadd.f32 0.0, %v2309
        %2311 = vmatmul.bf16.gmra.mxu0 %v2061
        %v2312 = vpop.f32.mrf.mxu0
        %v2313 = vadd.f32 0.0, %v2312
        %v2314 = vpop.f32.mrf.mxu0
        %v2315 = vadd.f32 0.0, %v2314
        %2316 = vmatmul.bf16.gmra.mxu0 %v2064
        %v2317 = vpop.f32.mrf.mxu0
        %v2318 = vadd.f32 0.0, %v2317
        %v2319 = vpop.f32.mrf.mxu0
        %v2320 = vadd.f32 0.0, %v2319
        %2321 = vmatmul.bf16.gmra.mxu0 %v2067
        %v2322 = vpop.f32.mrf.mxu0
        %v2323 = vadd.f32 0.0, %v2322
        %v2324 = vpop.f32.mrf.mxu0
        %v2325 = vadd.f32 0.0, %v2324
        %2326 = vmatmul.bf16.gmra.mxu0 %v2070
        %v2327 = vpop.f32.mrf.mxu0
        %v2328 = vadd.f32 0.0, %v2327
        %v2329 = vpop.f32.mrf.mxu0
        %v2330 = vadd.f32 0.0, %v2329
        %2331 = vmatmul.bf16.gmra.mxu0 %v2073
        %v2332 = vpop.f32.mrf.mxu0
        %v2333 = vadd.f32 0.0, %v2332
        %v2334 = vpop.f32.mrf.mxu0
        %v2335 = vadd.f32 0.0, %v2334
        %2336 = vmatmul.bf16.gmra.mxu0 %v2076
        %v2337 = vpop.f32.mrf.mxu0
        %v2338 = vadd.f32 0.0, %v2337
        %v2339 = vpop.f32.mrf.mxu0
        %v2340 = vadd.f32 0.0, %v2339
        %2341 = vmatmul.bf16.gmra.mxu0 %v2079
        %v2342 = vpop.f32.mrf.mxu0
        %v2343 = vadd.f32 0.0, %v2342
        %v2344 = vpop.f32.mrf.mxu0
        %v2345 = vadd.f32 0.0, %v2344
        %2346 = vmatmul.bf16.gmra.mxu0 %v2082
        %v2347 = vpop.f32.mrf.mxu0
        %v2348 = vadd.f32 0.0, %v2347
        %v2349 = vpop.f32.mrf.mxu0
        %v2350 = vadd.f32 0.0, %v2349
        %2351 = vmatmul.bf16.gmra.mxu0 %v2085
        %v2352 = vpop.f32.mrf.mxu0
        %v2353 = vadd.f32 0.0, %v2352
        %v2354 = vpop.f32.mrf.mxu0
        %v2355 = vadd.f32 0.0, %v2354
        %2356 = vmatmul.bf16.gmra.mxu0 %v2088
        %v2357 = vpop.f32.mrf.mxu0
        %v2358 = vadd.f32 0.0, %v2357
        %v2359 = vpop.f32.mrf.mxu0
        %v2360 = vadd.f32 0.0, %v2359
        %2361 = vmatmul.bf16.gmra.mxu0 %v2091
        %v2362 = vpop.f32.mrf.mxu0
        %v2363 = vadd.f32 0.0, %v2362
        %v2364 = vpop.f32.mrf.mxu0
        %v2365 = vadd.f32 0.0, %v2364
        %2366 = vmatmul.bf16.gmra.mxu0 %v2094
        %v2367 = vpop.f32.mrf.mxu0
        %v2368 = vadd.f32 0.0, %v2367
        %v2369 = vpop.f32.mrf.mxu0
        %v2370 = vadd.f32 0.0, %v2369
        %2371 = vmatmul.bf16.gmra.mxu0 %v2097
        %v2372 = vpop.f32.mrf.mxu0
        %v2373 = vadd.f32 0.0, %v2372
        %v2374 = vpop.f32.mrf.mxu0
        %v2375 = vadd.f32 0.0, %v2374
        %2376 = vmatmul.bf16.gmra.mxu0 %v2100
        %v2377 = vpop.f32.mrf.mxu0
        %v2378 = vadd.f32 0.0, %v2377
        %v2379 = vpop.f32.mrf.mxu0
        %v2380 = vadd.f32 0.0, %v2379
        %2381 = vmatmul.bf16.gmra.mxu0 %v2103
        %v2382 = vpop.f32.mrf.mxu0
        %v2383 = vadd.f32 0.0, %v2382
        %v2384 = vpop.f32.mrf.mxu0
        %v2385 = vadd.f32 0.0, %v2384
        %2386 = vdwg.mxu0
        %2387 = vmatpush.bf16.msra.mxu0 %v2265
        %2388 = vmatpush.bf16.msra.mxu0 %v2264
        %2389 = vmatpush.bf16.msra.mxu0 %v2263
        %2390 = vmatpush.bf16.msra.mxu0 %v2262
        %2391 = vmatpush.bf16.msra.mxu0 %v2261
        %2392 = vmatpush.bf16.msra.mxu0 %v2260
        %2393 = vmatpush.bf16.msra.mxu0 %v2259
        %2394 = vmatpush.bf16.msra.mxu0 %v2258
        %2395 = vmatmul.bf16.gmra.mxu0 %v2059
        %v2396 = vpop.f32.mrf.mxu0
        %v2397 = vadd.f32 %v2308, %v2396
        %v2398 = vpop.f32.mrf.mxu0
        %v2399 = vadd.f32 %v2310, %v2398
        %2400 = vmatmul.bf16.gmra.mxu0 %v2062
        %v2401 = vpop.f32.mrf.mxu0
        %v2402 = vadd.f32 %v2313, %v2401
        %v2403 = vpop.f32.mrf.mxu0
        %v2404 = vadd.f32 %v2315, %v2403
        %2405 = vmatmul.bf16.gmra.mxu0 %v2065
        %v2406 = vpop.f32.mrf.mxu0
        %v2407 = vadd.f32 %v2318, %v2406
        %v2408 = vpop.f32.mrf.mxu0
        %v2409 = vadd.f32 %v2320, %v2408
        %2410 = vmatmul.bf16.gmra.mxu0 %v2068
        %v2411 = vpop.f32.mrf.mxu0
        %v2412 = vadd.f32 %v2323, %v2411
        %v2413 = vpop.f32.mrf.mxu0
        %v2414 = vadd.f32 %v2325, %v2413
        %2415 = vmatmul.bf16.gmra.mxu0 %v2071
        %v2416 = vpop.f32.mrf.mxu0
        %v2417 = vadd.f32 %v2328, %v2416
        %v2418 = vpop.f32.mrf.mxu0
        %v2419 = vadd.f32 %v2330, %v2418
        %2420 = vmatmul.bf16.gmra.mxu0 %v2074
        %v2421 = vpop.f32.mrf.mxu0
        %v2422 = vadd.f32 %v2333, %v2421
        %v2423 = vpop.f32.mrf.mxu0
        %v2424 = vadd.f32 %v2335, %v2423
        %2425 = vmatmul.bf16.gmra.mxu0 %v2077
        %v2426 = vpop.f32.mrf.mxu0
        %v2427 = vadd.f32 %v2338, %v2426
        %v2428 = vpop.f32.mrf.mxu0
        %v2429 = vadd.f32 %v2340, %v2428
        %2430 = vmatmul.bf16.gmra.mxu0 %v2080
        %v2431 = vpop.f32.mrf.mxu0
        %v2432 = vadd.f32 %v2343, %v2431
        %v2433 = vpop.f32.mrf.mxu0
        %v2434 = vadd.f32 %v2345, %v2433
        %2435 = vmatmul.bf16.gmra.mxu0 %v2083
        %v2436 = vpop.f32.mrf.mxu0
        %v2437 = vadd.f32 %v2348, %v2436
        %v2438 = vpop.f32.mrf.mxu0
        %v2439 = vadd.f32 %v2350, %v2438
        %2440 = vmatmul.bf16.gmra.mxu0 %v2086
        %v2441 = vpop.f32.mrf.mxu0
        %v2442 = vadd.f32 %v2353, %v2441
        %v2443 = vpop.f32.mrf.mxu0
        %v2444 = vadd.f32 %v2355, %v2443
        %2445 = vmatmul.bf16.gmra.mxu0 %v2089
        %v2446 = vpop.f32.mrf.mxu0
        %v2447 = vadd.f32 %v2358, %v2446
        %v2448 = vpop.f32.mrf.mxu0
        %v2449 = vadd.f32 %v2360, %v2448
        %2450 = vmatmul.bf16.gmra.mxu0 %v2092
        %v2451 = vpop.f32.mrf.mxu0
        %v2452 = vadd.f32 %v2363, %v2451
        %v2453 = vpop.f32.mrf.mxu0
        %v2454 = vadd.f32 %v2365, %v2453
        %2455 = vmatmul.bf16.gmra.mxu0 %v2095
        %v2456 = vpop.f32.mrf.mxu0
        %v2457 = vadd.f32 %v2368, %v2456
        %v2458 = vpop.f32.mrf.mxu0
        %v2459 = vadd.f32 %v2370, %v2458
        %2460 = vmatmul.bf16.gmra.mxu0 %v2098
        %v2461 = vpop.f32.mrf.mxu0
        %v2462 = vadd.f32 %v2373, %v2461
        %v2463 = vpop.f32.mrf.mxu0
        %v2464 = vadd.f32 %v2375, %v2463
        %2465 = vmatmul.bf16.gmra.mxu0 %v2101
        %v2466 = vpop.f32.mrf.mxu0
        %v2467 = vadd.f32 %v2378, %v2466
        %v2468 = vpop.f32.mrf.mxu0
        %v2469 = vadd.f32 %v2380, %v2468
        %2470 = vmatmul.bf16.gmra.mxu0 %v2104
        %v2471 = vpop.f32.mrf.mxu0
        %v2472 = vadd.f32 %v2383, %v2471
        %v2473 = vpop.f32.mrf.mxu0
        %v2474 = vadd.f32 %v2385, %v2473
        %2475 = vdwg.mxu0
        %2476 = vmatpush.bf16.msra.mxu0 %v2273
        %2477 = vmatpush.bf16.msra.mxu0 %v2272
        %2478 = vmatpush.bf16.msra.mxu0 %v2271
        %2479 = vmatpush.bf16.msra.mxu0 %v2270
        %2480 = vmatpush.bf16.msra.mxu0 %v2269
        %2481 = vmatpush.bf16.msra.mxu0 %v2268
        %2482 = vmatpush.bf16.msra.mxu0 %v2267
        %2483 = vmatpush.bf16.msra.mxu0 %v2266
        %2484 = vmatmul.bf16.gmra.mxu0 %v2060
        %v2485 = vpop.f32.mrf.mxu0
        %v2486 = vadd.f32 %v2397, %v2485
        %v2487 = vpop.f32.mrf.mxu0
        %v2488 = vadd.f32 %v2399, %v2487
        %2489 = vmatmul.bf16.gmra.mxu0 %v2063
        %v2490 = vpop.f32.mrf.mxu0
        %v2491 = vadd.f32 %v2402, %v2490
        %v2492 = vpop.f32.mrf.mxu0
        %v2493 = vadd.f32 %v2404, %v2492
        %2494 = vmatmul.bf16.gmra.mxu0 %v2066
        %v2495 = vpop.f32.mrf.mxu0
        %v2496 = vadd.f32 %v2407, %v2495
        %v2497 = vpop.f32.mrf.mxu0
        %v2498 = vadd.f32 %v2409, %v2497
        %2499 = vmatmul.bf16.gmra.mxu0 %v2069
        %v2500 = vpop.f32.mrf.mxu0
        %v2501 = vadd.f32 %v2412, %v2500
        %v2502 = vpop.f32.mrf.mxu0
        %v2503 = vadd.f32 %v2414, %v2502
        %2504 = vmatmul.bf16.gmra.mxu0 %v2072
        %v2505 = vpop.f32.mrf.mxu0
        %v2506 = vadd.f32 %v2417, %v2505
        %v2507 = vpop.f32.mrf.mxu0
        %v2508 = vadd.f32 %v2419, %v2507
        %2509 = vmatmul.bf16.gmra.mxu0 %v2075
        %v2510 = vpop.f32.mrf.mxu0
        %v2511 = vadd.f32 %v2422, %v2510
        %v2512 = vpop.f32.mrf.mxu0
        %v2513 = vadd.f32 %v2424, %v2512
        %2514 = vmatmul.bf16.gmra.mxu0 %v2078
        %v2515 = vpop.f32.mrf.mxu0
        %v2516 = vadd.f32 %v2427, %v2515
        %v2517 = vpop.f32.mrf.mxu0
        %v2518 = vadd.f32 %v2429, %v2517
        %2519 = vmatmul.bf16.gmra.mxu0 %v2081
        %v2520 = vpop.f32.mrf.mxu0
        %v2521 = vadd.f32 %v2432, %v2520
        %v2522 = vpop.f32.mrf.mxu0
        %v2523 = vadd.f32 %v2434, %v2522
        %2524 = vmatmul.bf16.gmra.mxu0 %v2084
        %v2525 = vpop.f32.mrf.mxu0
        %v2526 = vadd.f32 %v2437, %v2525
        %v2527 = vpop.f32.mrf.mxu0
        %v2528 = vadd.f32 %v2439, %v2527
        %2529 = vmatmul.bf16.gmra.mxu0 %v2087
        %v2530 = vpop.f32.mrf.mxu0
        %v2531 = vadd.f32 %v2442, %v2530
        %v2532 = vpop.f32.mrf.mxu0
        %v2533 = vadd.f32 %v2444, %v2532
        %2534 = vmatmul.bf16.gmra.mxu0 %v2090
        %v2535 = vpop.f32.mrf.mxu0
        %v2536 = vadd.f32 %v2447, %v2535
        %v2537 = vpop.f32.mrf.mxu0
        %v2538 = vadd.f32 %v2449, %v2537
        %2539 = vmatmul.bf16.gmra.mxu0 %v2093
        %v2540 = vpop.f32.mrf.mxu0
        %v2541 = vadd.f32 %v2452, %v2540
        %v2542 = vpop.f32.mrf.mxu0
        %v2543 = vadd.f32 %v2454, %v2542
        %2544 = vmatmul.bf16.gmra.mxu0 %v2096
        %v2545 = vpop.f32.mrf.mxu0
        %v2546 = vadd.f32 %v2457, %v2545
        %v2547 = vpop.f32.mrf.mxu0
        %v2548 = vadd.f32 %v2459, %v2547
        %2549 = vmatmul.bf16.gmra.mxu0 %v2099
        %v2550 = vpop.f32.mrf.mxu0
        %v2551 = vadd.f32 %v2462, %v2550
        %v2552 = vpop.f32.mrf.mxu0
        %v2553 = vadd.f32 %v2464, %v2552
        %2554 = vmatmul.bf16.gmra.mxu0 %v2102
        %v2555 = vpop.f32.mrf.mxu0
        %v2556 = vadd.f32 %v2467, %v2555
        %v2557 = vpop.f32.mrf.mxu0
        %v2558 = vadd.f32 %v2469, %v2557
        %2559 = vmatmul.bf16.gmra.mxu0 %v2105
        %v2560 = vpop.f32.mrf.mxu0
        %v2561 = vadd.f32 %v2472, %v2560
        %v2562 = vpop.f32.mrf.mxu0
        %v2563 = vadd.f32 %v2474, %v2562
        %2564 = vdwg.mxu0
        %v2569 = vunpack.c.l.b16 %v1733
        %v2570 = vunpack.c.h.b16 %v1733
        %v2571 = vunpack.c.l.b16 %v1734
        %v2572 = vunpack.c.l.b16 %v1735
        %v2573 = vunpack.c.h.b16 %v1735
        %v2574 = vunpack.c.l.b16 %v1736
        %v2575 = vpack.c.b16 %v2572, %v2569
        %v2576 = vpack.c.b16 %v2573, %v2570
        %v2577 = vpack.c.b16 %v2574, %v2571
        %v2629 = vunpack.c.l.b16 %v1797
        %v2630 = vunpack.c.l.b16 %v1798
        %v2631 = vunpack.c.l.b16 %v1799
        %v2632 = vunpack.c.l.b16 %v1800
        %v2633 = vunpack.c.l.b16 %v1801
        %v2634 = vunpack.c.l.b16 %v1802
        %v2635 = vunpack.c.l.b16 %v1803
        %v2636 = vunpack.c.l.b16 %v1804
        %v2637 = vunpack.c.l.b16 %v1805
        %v2638 = vunpack.c.l.b16 %v1806
        %v2639 = vunpack.c.l.b16 %v1807
        %v2640 = vunpack.c.l.b16 %v1808
        %v2641 = vunpack.c.l.b16 %v1809
        %v2642 = vunpack.c.l.b16 %v1810
        %v2643 = vunpack.c.l.b16 %v1811
        %v2644 = vunpack.c.l.b16 %v1812
        %v2645 = vunpack.c.l.b16 %v1813
        %v2646 = vunpack.c.l.b16 %v1814
        %v2647 = vunpack.c.l.b16 %v1815
        %v2648 = vunpack.c.l.b16 %v1816
        %v2649 = vunpack.c.l.b16 %v1817
        %v2650 = vunpack.c.l.b16 %v1818
        %v2651 = vunpack.c.l.b16 %v1819
        %v2652 = vunpack.c.l.b16 %v1820
        %v2653 = vunpack.c.l.b16 %v1821
        %v2654 = vunpack.c.l.b16 %v1822
        %v2655 = vunpack.c.l.b16 %v1823
        %v2656 = vunpack.c.l.b16 %v1824
        %v2657 = vunpack.c.l.b16 %v1825
        %v2658 = vunpack.c.l.b16 %v1826
        %v2659 = vunpack.c.l.b16 %v1827
        %v2660 = vunpack.c.l.b16 %v1828
        %v2661 = vunpack.c.l.b16 %v1829
        %v2662 = vunpack.c.l.b16 %v1830
        %v2663 = vunpack.c.l.b16 %v1831
        %v2664 = vunpack.c.l.b16 %v1832
        %v2665 = vunpack.c.l.b16 %v1833
        %v2666 = vunpack.c.l.b16 %v1834
        %v2667 = vunpack.c.l.b16 %v1835
        %v2668 = vunpack.c.l.b16 %v1836
        %v2669 = vunpack.c.l.b16 %v1837
        %v2670 = vunpack.c.l.b16 %v1838
        %v2671 = vunpack.c.l.b16 %v1839
        %v2672 = vunpack.c.l.b16 %v1840
        %v2673 = vunpack.c.l.b16 %v1841
        %v2674 = vunpack.c.l.b16 %v1842
        %v2675 = vunpack.c.l.b16 %v1843
        %v2676 = vunpack.c.l.b16 %v1844
        %v2677 = vpack.c.b16 %v2630, %v2629
        %v2678 = vpack.c.b16 %v2632, %v2631
        %v2679 = vpack.c.b16 %v2634, %v2633
        %v2680 = vpack.c.b16 %v2636, %v2635
        %v2681 = vpack.c.b16 %v2638, %v2637
        %v2682 = vpack.c.b16 %v2640, %v2639
        %v2683 = vpack.c.b16 %v2642, %v2641
        %v2684 = vpack.c.b16 %v2644, %v2643
        %v2685 = vpack.c.b16 %v2646, %v2645
        %v2686 = vpack.c.b16 %v2648, %v2647
        %v2687 = vpack.c.b16 %v2650, %v2649
        %v2688 = vpack.c.b16 %v2652, %v2651
        %v2689 = vpack.c.b16 %v2654, %v2653
        %v2690 = vpack.c.b16 %v2656, %v2655
        %v2691 = vpack.c.b16 %v2658, %v2657
        %v2692 = vpack.c.b16 %v2660, %v2659
        %v2693 = vpack.c.b16 %v2662, %v2661
        %v2694 = vpack.c.b16 %v2664, %v2663
        %v2695 = vpack.c.b16 %v2666, %v2665
        %v2696 = vpack.c.b16 %v2668, %v2667
        %v2697 = vpack.c.b16 %v2670, %v2669
        %v2698 = vpack.c.b16 %v2672, %v2671
        %v2699 = vpack.c.b16 %v2674, %v2673
        %v2700 = vpack.c.b16 %v2676, %v2675
        %2725 = vmatpush.bf16.msra.mxu0 %v2684
        %2726 = vmatpush.bf16.msra.mxu0 %v2683
        %2727 = vmatpush.bf16.msra.mxu0 %v2682
        %2728 = vmatpush.bf16.msra.mxu0 %v2681
        %2729 = vmatpush.bf16.msra.mxu0 %v2680
        %2730 = vmatpush.bf16.msra.mxu0 %v2679
        %2731 = vmatpush.bf16.msra.mxu0 %v2678
        %2732 = vmatpush.bf16.msra.mxu0 %v2677
        %2733 = vmatmul.bf16.gmra.mxu0 %v2575
        %v2734 = vpop.f32.mrf.mxu0
        %v2735 = vadd.f32 %v2486, %v2734
        %v2736 = vpop.f32.mrf.mxu0
        %v2737 = vadd.f32 %v2488, %v2736
        %2738 = vmatmul.bf16.gmra.mxu0 %v2058
        %v2739 = vpop.f32.mrf.mxu0
        %v2740 = vadd.f32 %v2491, %v2739
        %v2741 = vpop.f32.mrf.mxu0
        %v2742 = vadd.f32 %v2493, %v2741
        %2743 = vmatmul.bf16.gmra.mxu0 %v2061
        %v2744 = vpop.f32.mrf.mxu0
        %v2745 = vadd.f32 %v2496, %v2744
        %v2746 = vpop.f32.mrf.mxu0
        %v2747 = vadd.f32 %v2498, %v2746
        %2748 = vmatmul.bf16.gmra.mxu0 %v2064
        %v2749 = vpop.f32.mrf.mxu0
        %v2750 = vadd.f32 %v2501, %v2749
        %v2751 = vpop.f32.mrf.mxu0
        %v2752 = vadd.f32 %v2503, %v2751
        %2753 = vmatmul.bf16.gmra.mxu0 %v2067
        %v2754 = vpop.f32.mrf.mxu0
        %v2755 = vadd.f32 %v2506, %v2754
        %v2756 = vpop.f32.mrf.mxu0
        %v2757 = vadd.f32 %v2508, %v2756
        %2758 = vmatmul.bf16.gmra.mxu0 %v2070
        %v2759 = vpop.f32.mrf.mxu0
        %v2760 = vadd.f32 %v2511, %v2759
        %v2761 = vpop.f32.mrf.mxu0
        %v2762 = vadd.f32 %v2513, %v2761
        %2763 = vmatmul.bf16.gmra.mxu0 %v2073
        %v2764 = vpop.f32.mrf.mxu0
        %v2765 = vadd.f32 %v2516, %v2764
        %v2766 = vpop.f32.mrf.mxu0
        %v2767 = vadd.f32 %v2518, %v2766
        %2768 = vmatmul.bf16.gmra.mxu0 %v2076
        %v2769 = vpop.f32.mrf.mxu0
        %v2770 = vadd.f32 %v2521, %v2769
        %v2771 = vpop.f32.mrf.mxu0
        %v2772 = vadd.f32 %v2523, %v2771
        %2773 = vmatmul.bf16.gmra.mxu0 %v2079
        %v2774 = vpop.f32.mrf.mxu0
        %v2775 = vadd.f32 %v2526, %v2774
        %v2776 = vpop.f32.mrf.mxu0
        %v2777 = vadd.f32 %v2528, %v2776
        %2778 = vmatmul.bf16.gmra.mxu0 %v2082
        %v2779 = vpop.f32.mrf.mxu0
        %v2780 = vadd.f32 %v2531, %v2779
        %v2781 = vpop.f32.mrf.mxu0
        %v2782 = vadd.f32 %v2533, %v2781
        %2783 = vmatmul.bf16.gmra.mxu0 %v2085
        %v2784 = vpop.f32.mrf.mxu0
        %v2785 = vadd.f32 %v2536, %v2784
        %v2786 = vpop.f32.mrf.mxu0
        %v2787 = vadd.f32 %v2538, %v2786
        %2788 = vmatmul.bf16.gmra.mxu0 %v2088
        %v2789 = vpop.f32.mrf.mxu0
        %v2790 = vadd.f32 %v2541, %v2789
        %v2791 = vpop.f32.mrf.mxu0
        %v2792 = vadd.f32 %v2543, %v2791
        %2793 = vmatmul.bf16.gmra.mxu0 %v2091
        %v2794 = vpop.f32.mrf.mxu0
        %v2795 = vadd.f32 %v2546, %v2794
        %v2796 = vpop.f32.mrf.mxu0
        %v2797 = vadd.f32 %v2548, %v2796
        %2798 = vmatmul.bf16.gmra.mxu0 %v2094
        %v2799 = vpop.f32.mrf.mxu0
        %v2800 = vadd.f32 %v2551, %v2799
        %v2801 = vpop.f32.mrf.mxu0
        %v2802 = vadd.f32 %v2553, %v2801
        %2803 = vmatmul.bf16.gmra.mxu0 %v2097
        %v2804 = vpop.f32.mrf.mxu0
        %v2805 = vadd.f32 %v2556, %v2804
        %v2806 = vpop.f32.mrf.mxu0
        %v2807 = vadd.f32 %v2558, %v2806
        %2808 = vmatmul.bf16.gmra.mxu0 %v2100
        %v2809 = vpop.f32.mrf.mxu0
        %v2810 = vadd.f32 %v2561, %v2809
        %v2811 = vpop.f32.mrf.mxu0
        %v2812 = vadd.f32 %v2563, %v2811
        %2813 = vdwg.mxu0
        %2814 = vmatpush.bf16.msra.mxu0 %v2692
        %2815 = vmatpush.bf16.msra.mxu0 %v2691
        %2816 = vmatpush.bf16.msra.mxu0 %v2690
        %2817 = vmatpush.bf16.msra.mxu0 %v2689
        %2818 = vmatpush.bf16.msra.mxu0 %v2688
        %2819 = vmatpush.bf16.msra.mxu0 %v2687
        %2820 = vmatpush.bf16.msra.mxu0 %v2686
        %2821 = vmatpush.bf16.msra.mxu0 %v2685
        %2822 = vmatmul.bf16.gmra.mxu0 %v2576
        %v2823 = vpop.f32.mrf.mxu0
        %v2824 = vadd.f32 %v2735, %v2823
        %v2825 = vpop.f32.mrf.mxu0
        %v2826 = vadd.f32 %v2737, %v2825
        %2827 = vmatmul.bf16.gmra.mxu0 %v2059
        %v2828 = vpop.f32.mrf.mxu0
        %v2829 = vadd.f32 %v2740, %v2828
        %v2830 = vpop.f32.mrf.mxu0
        %v2831 = vadd.f32 %v2742, %v2830
        %2832 = vmatmul.bf16.gmra.mxu0 %v2062
        %v2833 = vpop.f32.mrf.mxu0
        %v2834 = vadd.f32 %v2745, %v2833
        %v2835 = vpop.f32.mrf.mxu0
        %v2836 = vadd.f32 %v2747, %v2835
        %2837 = vmatmul.bf16.gmra.mxu0 %v2065
        %v2838 = vpop.f32.mrf.mxu0
        %v2839 = vadd.f32 %v2750, %v2838
        %v2840 = vpop.f32.mrf.mxu0
        %v2841 = vadd.f32 %v2752, %v2840
        %2842 = vmatmul.bf16.gmra.mxu0 %v2068
        %v2843 = vpop.f32.mrf.mxu0
        %v2844 = vadd.f32 %v2755, %v2843
        %v2845 = vpop.f32.mrf.mxu0
        %v2846 = vadd.f32 %v2757, %v2845
        %2847 = vmatmul.bf16.gmra.mxu0 %v2071
        %v2848 = vpop.f32.mrf.mxu0
        %v2849 = vadd.f32 %v2760, %v2848
        %v2850 = vpop.f32.mrf.mxu0
        %v2851 = vadd.f32 %v2762, %v2850
        %2852 = vmatmul.bf16.gmra.mxu0 %v2074
        %v2853 = vpop.f32.mrf.mxu0
        %v2854 = vadd.f32 %v2765, %v2853
        %v2855 = vpop.f32.mrf.mxu0
        %v2856 = vadd.f32 %v2767, %v2855
        %2857 = vmatmul.bf16.gmra.mxu0 %v2077
        %v2858 = vpop.f32.mrf.mxu0
        %v2859 = vadd.f32 %v2770, %v2858
        %v2860 = vpop.f32.mrf.mxu0
        %v2861 = vadd.f32 %v2772, %v2860
        %2862 = vmatmul.bf16.gmra.mxu0 %v2080
        %v2863 = vpop.f32.mrf.mxu0
        %v2864 = vadd.f32 %v2775, %v2863
        %v2865 = vpop.f32.mrf.mxu0
        %v2866 = vadd.f32 %v2777, %v2865
        %2867 = vmatmul.bf16.gmra.mxu0 %v2083
        %v2868 = vpop.f32.mrf.mxu0
        %v2869 = vadd.f32 %v2780, %v2868
        %v2870 = vpop.f32.mrf.mxu0
        %v2871 = vadd.f32 %v2782, %v2870
        %2872 = vmatmul.bf16.gmra.mxu0 %v2086
        %v2873 = vpop.f32.mrf.mxu0
        %v2874 = vadd.f32 %v2785, %v2873
        %v2875 = vpop.f32.mrf.mxu0
        %v2876 = vadd.f32 %v2787, %v2875
        %2877 = vmatmul.bf16.gmra.mxu0 %v2089
        %v2878 = vpop.f32.mrf.mxu0
        %v2879 = vadd.f32 %v2790, %v2878
        %v2880 = vpop.f32.mrf.mxu0
        %v2881 = vadd.f32 %v2792, %v2880
        %2882 = vmatmul.bf16.gmra.mxu0 %v2092
        %v2883 = vpop.f32.mrf.mxu0
        %v2884 = vadd.f32 %v2795, %v2883
        %v2885 = vpop.f32.mrf.mxu0
        %v2886 = vadd.f32 %v2797, %v2885
        %2887 = vmatmul.bf16.gmra.mxu0 %v2095
        %v2888 = vpop.f32.mrf.mxu0
        %v2889 = vadd.f32 %v2800, %v2888
        %v2890 = vpop.f32.mrf.mxu0
        %v2891 = vadd.f32 %v2802, %v2890
        %2892 = vmatmul.bf16.gmra.mxu0 %v2098
        %v2893 = vpop.f32.mrf.mxu0
        %v2894 = vadd.f32 %v2805, %v2893
        %v2895 = vpop.f32.mrf.mxu0
        %v2896 = vadd.f32 %v2807, %v2895
        %2897 = vmatmul.bf16.gmra.mxu0 %v2101
        %v2898 = vpop.f32.mrf.mxu0
        %v2899 = vadd.f32 %v2810, %v2898
        %v2900 = vpop.f32.mrf.mxu0
        %v2901 = vadd.f32 %v2812, %v2900
        %2902 = vdwg.mxu0
        %2903 = vmatpush.bf16.msra.mxu0 %v2700
        %2904 = vmatpush.bf16.msra.mxu0 %v2699
        %2905 = vmatpush.bf16.msra.mxu0 %v2698
        %2906 = vmatpush.bf16.msra.mxu0 %v2697
        %2907 = vmatpush.bf16.msra.mxu0 %v2696
        %2908 = vmatpush.bf16.msra.mxu0 %v2695
        %2909 = vmatpush.bf16.msra.mxu0 %v2694
        %2910 = vmatpush.bf16.msra.mxu0 %v2693
        %2911 = vmatmul.bf16.gmra.mxu0 %v2577
        %v2912 = vpop.f32.mrf.mxu0
        %v2913 = vadd.f32 %v2824, %v2912
        %v2914 = vpop.f32.mrf.mxu0
        %v2915 = vadd.f32 %v2826, %v2914
        %2916 = vmatmul.bf16.gmra.mxu0 %v2060
        %v2917 = vpop.f32.mrf.mxu0
        %v2918 = vadd.f32 %v2829, %v2917
        %v2919 = vpop.f32.mrf.mxu0
        %v2920 = vadd.f32 %v2831, %v2919
        %2921 = vmatmul.bf16.gmra.mxu0 %v2063
        %v2922 = vpop.f32.mrf.mxu0
        %v2923 = vadd.f32 %v2834, %v2922
        %v2924 = vpop.f32.mrf.mxu0
        %v2925 = vadd.f32 %v2836, %v2924
        %2926 = vmatmul.bf16.gmra.mxu0 %v2066
        %v2927 = vpop.f32.mrf.mxu0
        %v2928 = vadd.f32 %v2839, %v2927
        %v2929 = vpop.f32.mrf.mxu0
        %v2930 = vadd.f32 %v2841, %v2929
        %2931 = vmatmul.bf16.gmra.mxu0 %v2069
        %v2932 = vpop.f32.mrf.mxu0
        %v2933 = vadd.f32 %v2844, %v2932
        %v2934 = vpop.f32.mrf.mxu0
        %v2935 = vadd.f32 %v2846, %v2934
        %2936 = vmatmul.bf16.gmra.mxu0 %v2072
        %v2937 = vpop.f32.mrf.mxu0
        %v2938 = vadd.f32 %v2849, %v2937
        %v2939 = vpop.f32.mrf.mxu0
        %v2940 = vadd.f32 %v2851, %v2939
        %2941 = vmatmul.bf16.gmra.mxu0 %v2075
        %v2942 = vpop.f32.mrf.mxu0
        %v2943 = vadd.f32 %v2854, %v2942
        %v2944 = vpop.f32.mrf.mxu0
        %v2945 = vadd.f32 %v2856, %v2944
        %2946 = vmatmul.bf16.gmra.mxu0 %v2078
        %v2947 = vpop.f32.mrf.mxu0
        %v2948 = vadd.f32 %v2859, %v2947
        %v2949 = vpop.f32.mrf.mxu0
        %v2950 = vadd.f32 %v2861, %v2949
        %2951 = vmatmul.bf16.gmra.mxu0 %v2081
        %v2952 = vpop.f32.mrf.mxu0
        %v2953 = vadd.f32 %v2864, %v2952
        %v2954 = vpop.f32.mrf.mxu0
        %v2955 = vadd.f32 %v2866, %v2954
        %2956 = vmatmul.bf16.gmra.mxu0 %v2084
        %v2957 = vpop.f32.mrf.mxu0
        %v2958 = vadd.f32 %v2869, %v2957
        %v2959 = vpop.f32.mrf.mxu0
        %v2960 = vadd.f32 %v2871, %v2959
        %2961 = vmatmul.bf16.gmra.mxu0 %v2087
        %v2962 = vpop.f32.mrf.mxu0
        %v2963 = vadd.f32 %v2874, %v2962
        %v2964 = vpop.f32.mrf.mxu0
        %v2965 = vadd.f32 %v2876, %v2964
        %2966 = vmatmul.bf16.gmra.mxu0 %v2090
        %v2967 = vpop.f32.mrf.mxu0
        %v2968 = vadd.f32 %v2879, %v2967
        %v2969 = vpop.f32.mrf.mxu0
        %v2970 = vadd.f32 %v2881, %v2969
        %2971 = vmatmul.bf16.gmra.mxu0 %v2093
        %v2972 = vpop.f32.mrf.mxu0
        %v2973 = vadd.f32 %v2884, %v2972
        %v2974 = vpop.f32.mrf.mxu0
        %v2975 = vadd.f32 %v2886, %v2974
        %2976 = vmatmul.bf16.gmra.mxu0 %v2096
        %v2977 = vpop.f32.mrf.mxu0
        %v2978 = vadd.f32 %v2889, %v2977
        %v2979 = vpop.f32.mrf.mxu0
        %v2980 = vadd.f32 %v2891, %v2979
        %2981 = vmatmul.bf16.gmra.mxu0 %v2099
        %v2982 = vpop.f32.mrf.mxu0
        %v2983 = vadd.f32 %v2894, %v2982
        %v2984 = vpop.f32.mrf.mxu0
        %v2985 = vadd.f32 %v2896, %v2984
        %2986 = vmatmul.bf16.gmra.mxu0 %v2102
        %v2987 = vpop.f32.mrf.mxu0
        %v2988 = vadd.f32 %v2899, %v2987
        %v2989 = vpop.f32.mrf.mxu0
        %v2990 = vadd.f32 %v2901, %v2989
        %2991 = vdwg.mxu0
        %v2992 = vld [vmem:[#allocation3 + $0x30] sm:$0xff]
        %v2993 = vld [vmem:[#allocation3 + $0x38] sm:$0xf]
        %v2994 = vld [vmem:[#allocation3 + $0x3c] sm:$0xff]
        %v2995 = vld [vmem:[#allocation3 + $0x44] sm:$0xf]
        %v2996 = vld [vmem:[#allocation3 + $0x48] sm:$0xff]
        %v2997 = vld [vmem:[#allocation3 + $0x50] sm:$0xf]
        %v2998 = vld [vmem:[#allocation3 + $0x54] sm:$0xff]
        %v2999 = vld [vmem:[#allocation3 + $0x5c] sm:$0xf]
        %v3000 = vld [vmem:[#allocation3 + $0x60] sm:$0xff]
        %v3001 = vld [vmem:[#allocation3 + $0x68] sm:$0xf]
        %v3002 = vld [vmem:[#allocation3 + $0x6c] sm:$0xff]
        %v3003 = vld [vmem:[#allocation3 + $0x74] sm:$0xf]
        %v3004 = vld [vmem:[#allocation3 + $0x78] sm:$0xff]
        %v3005 = vld [vmem:[#allocation3 + $0x80] sm:$0xf]
        %v3006 = vld [vmem:[#allocation3 + $0x84] sm:$0xff]
        %v3007 = vld [vmem:[#allocation3 + $0x8c] sm:$0xf]
        %v3008 = vld [vmem:[#allocation3 + $0x90] sm:$0xff]
        %v3009 = vld [vmem:[#allocation3 + $0x98] sm:$0xf]
        %v3010 = vld [vmem:[#allocation3 + $0x9c] sm:$0xff]
        %v3011 = vld [vmem:[#allocation3 + $0xa4] sm:$0xf]
        %v3012 = vld [vmem:[#allocation3 + $0xa8] sm:$0xff]
        %v3013 = vld [vmem:[#allocation3 + $0xb0] sm:$0xf]
        %v3014 = vld [vmem:[#allocation3 + $0xb4] sm:$0xff]
        %v3015 = vld [vmem:[#allocation3 + $0xbc] sm:$0xf]
        %v3016 = vld [vmem:[#allocation3 + $0xc0] sm:$0xff]
        %v3017 = vld [vmem:[#allocation3 + $0xc8] sm:$0xf]
        %v3018 = vld [vmem:[#allocation3 + $0xcc] sm:$0xff]
        %v3019 = vld [vmem:[#allocation3 + $0xd4] sm:$0xf]
        %v3020 = vld [vmem:[#allocation3 + $0xd8] sm:$0xff]
        %v3021 = vld [vmem:[#allocation3 + $0xe0] sm:$0xf]
        %v3022 = vld [vmem:[#allocation3 + $0xe4] sm:$0xff]
        %v3023 = vld [vmem:[#allocation3 + $0xec] sm:$0xf]
        %v3024 = vld [vmem:[#allocation3 + $0xf0] sm:$0xff]
        %v3025 = vld [vmem:[#allocation3 + $0xf8] sm:$0xf]
        %v3026 = vld [vmem:[#allocation3 + $0xfc] sm:$0xff]
        %v3027 = vld [vmem:[#allocation3 + $0x104] sm:$0xf]
        %v3028 = vld [vmem:[#allocation3 + $0x108] sm:$0xff]
        %v3029 = vld [vmem:[#allocation3 + $0x110] sm:$0xf]
        %v3030 = vld [vmem:[#allocation3 + $0x114] sm:$0xff]
        %v3031 = vld [vmem:[#allocation3 + $0x11c] sm:$0xf]
        %v3032 = vld [vmem:[#allocation3 + $0x120] sm:$0xff]
        %v3033 = vld [vmem:[#allocation3 + $0x128] sm:$0xf]
        %v3034 = vld [vmem:[#allocation3 + $0x12c] sm:$0xff]
        %v3035 = vld [vmem:[#allocation3 + $0x134] sm:$0xf]
        %v3036 = vld [vmem:[#allocation3 + $0x138] sm:$0xff]
        %v3037 = vld [vmem:[#allocation3 + $0x140] sm:$0xf]
        %v3038 = vld [vmem:[#allocation3 + $0x144] sm:$0xff]
        %v3039 = vld [vmem:[#allocation3 + $0x14c] sm:$0xf]
        %v3040 = vld [vmem:[#allocation3 + $0x150] sm:$0xff]
        %v3041 = vld [vmem:[#allocation3 + $0x158] sm:$0xf]
        %v3042 = vld [vmem:[#allocation3 + $0x15c] sm:$0xff]
        %v3043 = vld [vmem:[#allocation3 + $0x164] sm:$0xf]
        %v3044 = vld [vmem:[#allocation3 + $0x168] sm:$0xff]
        %v3045 = vld [vmem:[#allocation3 + $0x170] sm:$0xf]
        %v3046 = vld [vmem:[#allocation3 + $0x174] sm:$0xff]
        %v3047 = vld [vmem:[#allocation3 + $0x17c] sm:$0xf]
        %v3048 = vld [vmem:[#allocation3 + $0x180] sm:$0xff]
        %v3049 = vld [vmem:[#allocation3 + $0x188] sm:$0xf]
        %v3050 = vld [vmem:[#allocation3 + $0x18c] sm:$0xff]
        %v3051 = vld [vmem:[#allocation3 + $0x194] sm:$0xf]
        %v3052 = vld [vmem:[#allocation3 + $0x198] sm:$0xff]
        %v3053 = vld [vmem:[#allocation3 + $0x1a0] sm:$0xf]
        %v3054 = vld [vmem:[#allocation3 + $0x1a4] sm:$0xff]
        %v3055 = vld [vmem:[#allocation3 + $0x1ac] sm:$0xf]
        %s3056 = scalar_lea.vmem [#allocation4], 384
        %v3057 = vld [vmem:[%s3056] sm:$0xf]
        %v3058 = vld [vmem:[%s3056 + $0x4] sm:$0xf]
        %v3059 = vld [vmem:[%s3056 + $0x8] sm:$0xf]
        %v3060 = vld [vmem:[%s3056 + $0xc] sm:$0xf]
        %v3061 = vld [vmem:[%s3056 + $0x10] sm:$0xf]
        %v3062 = vld [vmem:[%s3056 + $0x14] sm:$0xf]
        %v3063 = vld [vmem:[%s3056 + $0x18] sm:$0xf]
        %v3064 = vld [vmem:[%s3056 + $0x1c] sm:$0xf]
        %v3065 = vld [vmem:[%s3056 + $0x20] sm:$0xf]
        %v3066 = vld [vmem:[%s3056 + $0x24] sm:$0xf]
        %v3067 = vld [vmem:[%s3056 + $0x28] sm:$0xf]
        %v3068 = vld [vmem:[%s3056 + $0x2c] sm:$0xf]
        %v3069 = vld [vmem:[%s3056 + $0x30] sm:$0xf]
        %v3070 = vld [vmem:[%s3056 + $0x34] sm:$0xf]
        %v3071 = vld [vmem:[%s3056 + $0x38] sm:$0xf]
        %v3072 = vld [vmem:[%s3056 + $0x3c] sm:$0xf]
        %v3073 = vld [vmem:[%s3056 + $0x40] sm:$0xf]
        %v3074 = vld [vmem:[%s3056 + $0x44] sm:$0xf]
        %v3075 = vld [vmem:[%s3056 + $0x48] sm:$0xf]
        %v3076 = vld [vmem:[%s3056 + $0x4c] sm:$0xf]
        %v3077 = vld [vmem:[%s3056 + $0x50] sm:$0xf]
        %v3078 = vld [vmem:[%s3056 + $0x54] sm:$0xf]
        %v3079 = vld [vmem:[%s3056 + $0x58] sm:$0xf]
        %v3080 = vld [vmem:[%s3056 + $0x5c] sm:$0xf]
        %v3081 = vld [vmem:[%s3056 + $0x60] sm:$0xf]
        %v3082 = vld [vmem:[%s3056 + $0x64] sm:$0xf]
        %v3083 = vld [vmem:[%s3056 + $0x68] sm:$0xf]
        %v3084 = vld [vmem:[%s3056 + $0x6c] sm:$0xf]
        %v3085 = vld [vmem:[%s3056 + $0x70] sm:$0xf]
        %v3086 = vld [vmem:[%s3056 + $0x74] sm:$0xf]
        %v3087 = vld [vmem:[%s3056 + $0x78] sm:$0xf]
        %v3088 = vld [vmem:[%s3056 + $0x7c] sm:$0xf]
        %v3089 = vld [vmem:[%s3056 + $0x80] sm:$0xf]
        %v3090 = vld [vmem:[%s3056 + $0x84] sm:$0xf]
        %v3091 = vld [vmem:[%s3056 + $0x88] sm:$0xf]
        %v3092 = vld [vmem:[%s3056 + $0x8c] sm:$0xf]
        %v3093 = vld [vmem:[%s3056 + $0x90] sm:$0xf]
        %v3094 = vld [vmem:[%s3056 + $0x94] sm:$0xf]
        %v3095 = vld [vmem:[%s3056 + $0x98] sm:$0xf]
        %v3096 = vld [vmem:[%s3056 + $0x9c] sm:$0xf]
        %v3097 = vld [vmem:[%s3056 + $0xa0] sm:$0xf]
        %v3098 = vld [vmem:[%s3056 + $0xa4] sm:$0xf]
        %v3099 = vld [vmem:[%s3056 + $0xa8] sm:$0xf]
        %v3100 = vld [vmem:[%s3056 + $0xac] sm:$0xf]
        %v3101 = vld [vmem:[%s3056 + $0xb0] sm:$0xf]
        %v3102 = vld [vmem:[%s3056 + $0xb4] sm:$0xf]
        %v3103 = vld [vmem:[%s3056 + $0xb8] sm:$0xf]
        %v3104 = vld [vmem:[%s3056 + $0xbc] sm:$0xf]
        %v3169 = vunpack.c.l.b16 %v2992
        %v3170 = vunpack.c.h.b16 %v2992
        %v3171 = vunpack.c.l.b16 %v2993
        %v3172 = vunpack.c.l.b16 %v2994
        %v3173 = vunpack.c.h.b16 %v2994
        %v3174 = vunpack.c.l.b16 %v2995
        %v3175 = vunpack.c.l.b16 %v2996
        %v3176 = vunpack.c.h.b16 %v2996
        %v3177 = vunpack.c.l.b16 %v2997
        %v3178 = vunpack.c.l.b16 %v2998
        %v3179 = vunpack.c.h.b16 %v2998
        %v3180 = vunpack.c.l.b16 %v2999
        %v3181 = vunpack.c.l.b16 %v3000
        %v3182 = vunpack.c.h.b16 %v3000
        %v3183 = vunpack.c.l.b16 %v3001
        %v3184 = vunpack.c.l.b16 %v3002
        %v3185 = vunpack.c.h.b16 %v3002
        %v3186 = vunpack.c.l.b16 %v3003
        %v3187 = vunpack.c.l.b16 %v3004
        %v3188 = vunpack.c.h.b16 %v3004
        %v3189 = vunpack.c.l.b16 %v3005
        %v3190 = vunpack.c.l.b16 %v3006
        %v3191 = vunpack.c.h.b16 %v3006
        %v3192 = vunpack.c.l.b16 %v3007
        %v3193 = vunpack.c.l.b16 %v3008
        %v3194 = vunpack.c.h.b16 %v3008
        %v3195 = vunpack.c.l.b16 %v3009
        %v3196 = vunpack.c.l.b16 %v3010
        %v3197 = vunpack.c.h.b16 %v3010
        %v3198 = vunpack.c.l.b16 %v3011
        %v3199 = vunpack.c.l.b16 %v3012
        %v3200 = vunpack.c.h.b16 %v3012
        %v3201 = vunpack.c.l.b16 %v3013
        %v3202 = vunpack.c.l.b16 %v3014
        %v3203 = vunpack.c.h.b16 %v3014
        %v3204 = vunpack.c.l.b16 %v3015
        %v3205 = vunpack.c.l.b16 %v3016
        %v3206 = vunpack.c.h.b16 %v3016
        %v3207 = vunpack.c.l.b16 %v3017
        %v3208 = vunpack.c.l.b16 %v3018
        %v3209 = vunpack.c.h.b16 %v3018
        %v3210 = vunpack.c.l.b16 %v3019
        %v3211 = vunpack.c.l.b16 %v3020
        %v3212 = vunpack.c.h.b16 %v3020
        %v3213 = vunpack.c.l.b16 %v3021
        %v3214 = vunpack.c.l.b16 %v3022
        %v3215 = vunpack.c.h.b16 %v3022
        %v3216 = vunpack.c.l.b16 %v3023
        %v3217 = vunpack.c.l.b16 %v3024
        %v3218 = vunpack.c.h.b16 %v3024
        %v3219 = vunpack.c.l.b16 %v3025
        %v3220 = vunpack.c.l.b16 %v3026
        %v3221 = vunpack.c.h.b16 %v3026
        %v3222 = vunpack.c.l.b16 %v3027
        %v3223 = vunpack.c.l.b16 %v3028
        %v3224 = vunpack.c.h.b16 %v3028
        %v3225 = vunpack.c.l.b16 %v3029
        %v3226 = vunpack.c.l.b16 %v3030
        %v3227 = vunpack.c.h.b16 %v3030
        %v3228 = vunpack.c.l.b16 %v3031
        %v3229 = vunpack.c.l.b16 %v3032
        %v3230 = vunpack.c.h.b16 %v3032
        %v3231 = vunpack.c.l.b16 %v3033
        %v3232 = vunpack.c.l.b16 %v3034
        %v3233 = vunpack.c.h.b16 %v3034
        %v3234 = vunpack.c.l.b16 %v3035
        %v3235 = vunpack.c.l.b16 %v3036
        %v3236 = vunpack.c.h.b16 %v3036
        %v3237 = vunpack.c.l.b16 %v3037
        %v3238 = vunpack.c.l.b16 %v3038
        %v3239 = vunpack.c.h.b16 %v3038
        %v3240 = vunpack.c.l.b16 %v3039
        %v3241 = vunpack.c.l.b16 %v3040
        %v3242 = vunpack.c.h.b16 %v3040
        %v3243 = vunpack.c.l.b16 %v3041
        %v3244 = vunpack.c.l.b16 %v3042
        %v3245 = vunpack.c.h.b16 %v3042
        %v3246 = vunpack.c.l.b16 %v3043
        %v3247 = vunpack.c.l.b16 %v3044
        %v3248 = vunpack.c.h.b16 %v3044
        %v3249 = vunpack.c.l.b16 %v3045
        %v3250 = vunpack.c.l.b16 %v3046
        %v3251 = vunpack.c.h.b16 %v3046
        %v3252 = vunpack.c.l.b16 %v3047
        %v3253 = vunpack.c.l.b16 %v3048
        %v3254 = vunpack.c.h.b16 %v3048
        %v3255 = vunpack.c.l.b16 %v3049
        %v3256 = vunpack.c.l.b16 %v3050
        %v3257 = vunpack.c.h.b16 %v3050
        %v3258 = vunpack.c.l.b16 %v3051
        %v3259 = vunpack.c.l.b16 %v3052
        %v3260 = vunpack.c.h.b16 %v3052
        %v3261 = vunpack.c.l.b16 %v3053
        %v3262 = vunpack.c.l.b16 %v3054
        %v3263 = vunpack.c.h.b16 %v3054
        %v3264 = vunpack.c.l.b16 %v3055
        %v3265 = vpack.c.b16 %v3172, %v3169
        %v3266 = vpack.c.b16 %v3173, %v3170
        %v3267 = vpack.c.b16 %v3174, %v3171
        %v3268 = vpack.c.b16 %v3178, %v3175
        %v3269 = vpack.c.b16 %v3179, %v3176
        %v3270 = vpack.c.b16 %v3180, %v3177
        %v3271 = vpack.c.b16 %v3184, %v3181
        %v3272 = vpack.c.b16 %v3185, %v3182
        %v3273 = vpack.c.b16 %v3186, %v3183
        %v3274 = vpack.c.b16 %v3190, %v3187
        %v3275 = vpack.c.b16 %v3191, %v3188
        %v3276 = vpack.c.b16 %v3192, %v3189
        %v3277 = vpack.c.b16 %v3196, %v3193
        %v3278 = vpack.c.b16 %v3197, %v3194
        %v3279 = vpack.c.b16 %v3198, %v3195
        %v3280 = vpack.c.b16 %v3202, %v3199
        %v3281 = vpack.c.b16 %v3203, %v3200
        %v3282 = vpack.c.b16 %v3204, %v3201
        %v3283 = vpack.c.b16 %v3208, %v3205
        %v3284 = vpack.c.b16 %v3209, %v3206
        %v3285 = vpack.c.b16 %v3210, %v3207
        %v3286 = vpack.c.b16 %v3214, %v3211
        %v3287 = vpack.c.b16 %v3215, %v3212
        %v3288 = vpack.c.b16 %v3216, %v3213
        %v3289 = vpack.c.b16 %v3220, %v3217
        %v3290 = vpack.c.b16 %v3221, %v3218
        %v3291 = vpack.c.b16 %v3222, %v3219
        %v3292 = vpack.c.b16 %v3226, %v3223
        %v3293 = vpack.c.b16 %v3227, %v3224
        %v3294 = vpack.c.b16 %v3228, %v3225
        %v3295 = vpack.c.b16 %v3232, %v3229
        %v3296 = vpack.c.b16 %v3233, %v3230
        %v3297 = vpack.c.b16 %v3234, %v3231
        %v3298 = vpack.c.b16 %v3238, %v3235
        %v3299 = vpack.c.b16 %v3239, %v3236
        %v3300 = vpack.c.b16 %v3240, %v3237
        %v3301 = vpack.c.b16 %v3244, %v3241
        %v3302 = vpack.c.b16 %v3245, %v3242
        %v3303 = vpack.c.b16 %v3246, %v3243
        %v3304 = vpack.c.b16 %v3250, %v3247
        %v3305 = vpack.c.b16 %v3251, %v3248
        %v3306 = vpack.c.b16 %v3252, %v3249
        %v3307 = vpack.c.b16 %v3256, %v3253
        %v3308 = vpack.c.b16 %v3257, %v3254
        %v3309 = vpack.c.b16 %v3258, %v3255
        %v3310 = vpack.c.b16 %v3262, %v3259
        %v3311 = vpack.c.b16 %v3263, %v3260
        %v3312 = vpack.c.b16 %v3264, %v3261
        %v3409 = vunpack.c.l.b16 %v3057
        %v3410 = vunpack.c.l.b16 %v3058
        %v3411 = vunpack.c.l.b16 %v3059
        %v3412 = vunpack.c.l.b16 %v3060
        %v3413 = vunpack.c.l.b16 %v3061
        %v3414 = vunpack.c.l.b16 %v3062
        %v3415 = vunpack.c.l.b16 %v3063
        %v3416 = vunpack.c.l.b16 %v3064
        %v3417 = vunpack.c.l.b16 %v3065
        %v3418 = vunpack.c.l.b16 %v3066
        %v3419 = vunpack.c.l.b16 %v3067
        %v3420 = vunpack.c.l.b16 %v3068
        %v3421 = vunpack.c.l.b16 %v3069
        %v3422 = vunpack.c.l.b16 %v3070
        %v3423 = vunpack.c.l.b16 %v3071
        %v3424 = vunpack.c.l.b16 %v3072
        %v3425 = vunpack.c.l.b16 %v3073
        %v3426 = vunpack.c.l.b16 %v3074
        %v3427 = vunpack.c.l.b16 %v3075
        %v3428 = vunpack.c.l.b16 %v3076
        %v3429 = vunpack.c.l.b16 %v3077
        %v3430 = vunpack.c.l.b16 %v3078
        %v3431 = vunpack.c.l.b16 %v3079
        %v3432 = vunpack.c.l.b16 %v3080
        %v3433 = vunpack.c.l.b16 %v3081
        %v3434 = vunpack.c.l.b16 %v3082
        %v3435 = vunpack.c.l.b16 %v3083
        %v3436 = vunpack.c.l.b16 %v3084
        %v3437 = vunpack.c.l.b16 %v3085
        %v3438 = vunpack.c.l.b16 %v3086
        %v3439 = vunpack.c.l.b16 %v3087
        %v3440 = vunpack.c.l.b16 %v3088
        %v3441 = vunpack.c.l.b16 %v3089
        %v3442 = vunpack.c.l.b16 %v3090
        %v3443 = vunpack.c.l.b16 %v3091
        %v3444 = vunpack.c.l.b16 %v3092
        %v3445 = vunpack.c.l.b16 %v3093
        %v3446 = vunpack.c.l.b16 %v3094
        %v3447 = vunpack.c.l.b16 %v3095
        %v3448 = vunpack.c.l.b16 %v3096
        %v3449 = vunpack.c.l.b16 %v3097
        %v3450 = vunpack.c.l.b16 %v3098
        %v3451 = vunpack.c.l.b16 %v3099
        %v3452 = vunpack.c.l.b16 %v3100
        %v3453 = vunpack.c.l.b16 %v3101
        %v3454 = vunpack.c.l.b16 %v3102
        %v3455 = vunpack.c.l.b16 %v3103
        %v3456 = vunpack.c.l.b16 %v3104
        %v3457 = vpack.c.b16 %v3410, %v3409
        %v3458 = vpack.c.b16 %v3412, %v3411
        %v3459 = vpack.c.b16 %v3414, %v3413
        %v3460 = vpack.c.b16 %v3416, %v3415
        %v3461 = vpack.c.b16 %v3418, %v3417
        %v3462 = vpack.c.b16 %v3420, %v3419
        %v3463 = vpack.c.b16 %v3422, %v3421
        %v3464 = vpack.c.b16 %v3424, %v3423
        %v3465 = vpack.c.b16 %v3426, %v3425
        %v3466 = vpack.c.b16 %v3428, %v3427
        %v3467 = vpack.c.b16 %v3430, %v3429
        %v3468 = vpack.c.b16 %v3432, %v3431
        %v3469 = vpack.c.b16 %v3434, %v3433
        %v3470 = vpack.c.b16 %v3436, %v3435
        %v3471 = vpack.c.b16 %v3438, %v3437
        %v3472 = vpack.c.b16 %v3440, %v3439
        %v3473 = vpack.c.b16 %v3442, %v3441
        %v3474 = vpack.c.b16 %v3444, %v3443
        %v3475 = vpack.c.b16 %v3446, %v3445
        %v3476 = vpack.c.b16 %v3448, %v3447
        %v3477 = vpack.c.b16 %v3450, %v3449
        %v3478 = vpack.c.b16 %v3452, %v3451
        %v3479 = vpack.c.b16 %v3454, %v3453
        %v3480 = vpack.c.b16 %v3456, %v3455
        %3505 = vmatpush.bf16.msra.mxu0 %v3464
        %3506 = vmatpush.bf16.msra.mxu0 %v3463
        %3507 = vmatpush.bf16.msra.mxu0 %v3462
        %3508 = vmatpush.bf16.msra.mxu0 %v3461
        %3509 = vmatpush.bf16.msra.mxu0 %v3460
        %3510 = vmatpush.bf16.msra.mxu0 %v3459
        %3511 = vmatpush.bf16.msra.mxu0 %v3458
        %3512 = vmatpush.bf16.msra.mxu0 %v3457
        %3513 = vmatmul.bf16.gmra.mxu0 %v3265
        %v3514 = vpop.f32.mrf.mxu0
        %v3515 = vadd.f32 0.0, %v3514
        %v3516 = vpop.f32.mrf.mxu0
        %v3517 = vadd.f32 0.0, %v3516
        %3518 = vmatmul.bf16.gmra.mxu0 %v3268
        %v3519 = vpop.f32.mrf.mxu0
        %v3520 = vadd.f32 0.0, %v3519
        %v3521 = vpop.f32.mrf.mxu0
        %v3522 = vadd.f32 0.0, %v3521
        %3523 = vmatmul.bf16.gmra.mxu0 %v3271
        %v3524 = vpop.f32.mrf.mxu0
        %v3525 = vadd.f32 0.0, %v3524
        %v3526 = vpop.f32.mrf.mxu0
        %v3527 = vadd.f32 0.0, %v3526
        %3528 = vmatmul.bf16.gmra.mxu0 %v3274
        %v3529 = vpop.f32.mrf.mxu0
        %v3530 = vadd.f32 0.0, %v3529
        %v3531 = vpop.f32.mrf.mxu0
        %v3532 = vadd.f32 0.0, %v3531
        %3533 = vmatmul.bf16.gmra.mxu0 %v3277
        %v3534 = vpop.f32.mrf.mxu0
        %v3535 = vadd.f32 0.0, %v3534
        %v3536 = vpop.f32.mrf.mxu0
        %v3537 = vadd.f32 0.0, %v3536
        %3538 = vmatmul.bf16.gmra.mxu0 %v3280
        %v3539 = vpop.f32.mrf.mxu0
        %v3540 = vadd.f32 0.0, %v3539
        %v3541 = vpop.f32.mrf.mxu0
        %v3542 = vadd.f32 0.0, %v3541
        %3543 = vmatmul.bf16.gmra.mxu0 %v3283
        %v3544 = vpop.f32.mrf.mxu0
        %v3545 = vadd.f32 0.0, %v3544
        %v3546 = vpop.f32.mrf.mxu0
        %v3547 = vadd.f32 0.0, %v3546
        %3548 = vmatmul.bf16.gmra.mxu0 %v3286
        %v3549 = vpop.f32.mrf.mxu0
        %v3550 = vadd.f32 0.0, %v3549
        %v3551 = vpop.f32.mrf.mxu0
        %v3552 = vadd.f32 0.0, %v3551
        %3553 = vmatmul.bf16.gmra.mxu0 %v3289
        %v3554 = vpop.f32.mrf.mxu0
        %v3555 = vadd.f32 0.0, %v3554
        %v3556 = vpop.f32.mrf.mxu0
        %v3557 = vadd.f32 0.0, %v3556
        %3558 = vmatmul.bf16.gmra.mxu0 %v3292
        %v3559 = vpop.f32.mrf.mxu0
        %v3560 = vadd.f32 0.0, %v3559
        %v3561 = vpop.f32.mrf.mxu0
        %v3562 = vadd.f32 0.0, %v3561
        %3563 = vmatmul.bf16.gmra.mxu0 %v3295
        %v3564 = vpop.f32.mrf.mxu0
        %v3565 = vadd.f32 0.0, %v3564
        %v3566 = vpop.f32.mrf.mxu0
        %v3567 = vadd.f32 0.0, %v3566
        %3568 = vmatmul.bf16.gmra.mxu0 %v3298
        %v3569 = vpop.f32.mrf.mxu0
        %v3570 = vadd.f32 0.0, %v3569
        %v3571 = vpop.f32.mrf.mxu0
        %v3572 = vadd.f32 0.0, %v3571
        %3573 = vmatmul.bf16.gmra.mxu0 %v3301
        %v3574 = vpop.f32.mrf.mxu0
        %v3575 = vadd.f32 0.0, %v3574
        %v3576 = vpop.f32.mrf.mxu0
        %v3577 = vadd.f32 0.0, %v3576
        %3578 = vmatmul.bf16.gmra.mxu0 %v3304
        %v3579 = vpop.f32.mrf.mxu0
        %v3580 = vadd.f32 0.0, %v3579
        %v3581 = vpop.f32.mrf.mxu0
        %v3582 = vadd.f32 0.0, %v3581
        %3583 = vmatmul.bf16.gmra.mxu0 %v3307
        %v3584 = vpop.f32.mrf.mxu0
        %v3585 = vadd.f32 0.0, %v3584
        %v3586 = vpop.f32.mrf.mxu0
        %v3587 = vadd.f32 0.0, %v3586
        %3588 = vmatmul.bf16.gmra.mxu0 %v3310
        %v3589 = vpop.f32.mrf.mxu0
        %v3590 = vadd.f32 0.0, %v3589
        %v3591 = vpop.f32.mrf.mxu0
        %v3592 = vadd.f32 0.0, %v3591
        %3593 = vdwg.mxu0
        %3594 = vmatpush.bf16.msra.mxu0 %v3472
        %3595 = vmatpush.bf16.msra.mxu0 %v3471
        %3596 = vmatpush.bf16.msra.mxu0 %v3470
        %3597 = vmatpush.bf16.msra.mxu0 %v3469
        %3598 = vmatpush.bf16.msra.mxu0 %v3468
        %3599 = vmatpush.bf16.msra.mxu0 %v3467
        %3600 = vmatpush.bf16.msra.mxu0 %v3466
        %3601 = vmatpush.bf16.msra.mxu0 %v3465
        %3602 = vmatmul.bf16.gmra.mxu0 %v3266
        %v3603 = vpop.f32.mrf.mxu0
        %v3604 = vadd.f32 %v3515, %v3603
        %v3605 = vpop.f32.mrf.mxu0
        %v3606 = vadd.f32 %v3517, %v3605
        %3607 = vmatmul.bf16.gmra.mxu0 %v3269
        %v3608 = vpop.f32.mrf.mxu0
        %v3609 = vadd.f32 %v3520, %v3608
        %v3610 = vpop.f32.mrf.mxu0
        %v3611 = vadd.f32 %v3522, %v3610
        %3612 = vmatmul.bf16.gmra.mxu0 %v3272
        %v3613 = vpop.f32.mrf.mxu0
        %v3614 = vadd.f32 %v3525, %v3613
        %v3615 = vpop.f32.mrf.mxu0
        %v3616 = vadd.f32 %v3527, %v3615
        %3617 = vmatmul.bf16.gmra.mxu0 %v3275
        %v3618 = vpop.f32.mrf.mxu0
        %v3619 = vadd.f32 %v3530, %v3618
        %v3620 = vpop.f32.mrf.mxu0
        %v3621 = vadd.f32 %v3532, %v3620
        %3622 = vmatmul.bf16.gmra.mxu0 %v3278
        %v3623 = vpop.f32.mrf.mxu0
        %v3624 = vadd.f32 %v3535, %v3623
        %v3625 = vpop.f32.mrf.mxu0
        %v3626 = vadd.f32 %v3537, %v3625
        %3627 = vmatmul.bf16.gmra.mxu0 %v3281
        %v3628 = vpop.f32.mrf.mxu0
        %v3629 = vadd.f32 %v3540, %v3628
        %v3630 = vpop.f32.mrf.mxu0
        %v3631 = vadd.f32 %v3542, %v3630
        %3632 = vmatmul.bf16.gmra.mxu0 %v3284
        %v3633 = vpop.f32.mrf.mxu0
        %v3634 = vadd.f32 %v3545, %v3633
        %v3635 = vpop.f32.mrf.mxu0
        %v3636 = vadd.f32 %v3547, %v3635
        %3637 = vmatmul.bf16.gmra.mxu0 %v3287
        %v3638 = vpop.f32.mrf.mxu0
        %v3639 = vadd.f32 %v3550, %v3638
        %v3640 = vpop.f32.mrf.mxu0
        %v3641 = vadd.f32 %v3552, %v3640
        %3642 = vmatmul.bf16.gmra.mxu0 %v3290
        %v3643 = vpop.f32.mrf.mxu0
        %v3644 = vadd.f32 %v3555, %v3643
        %v3645 = vpop.f32.mrf.mxu0
        %v3646 = vadd.f32 %v3557, %v3645
        %3647 = vmatmul.bf16.gmra.mxu0 %v3293
        %v3648 = vpop.f32.mrf.mxu0
        %v3649 = vadd.f32 %v3560, %v3648
        %v3650 = vpop.f32.mrf.mxu0
        %v3651 = vadd.f32 %v3562, %v3650
        %3652 = vmatmul.bf16.gmra.mxu0 %v3296
        %v3653 = vpop.f32.mrf.mxu0
        %v3654 = vadd.f32 %v3565, %v3653
        %v3655 = vpop.f32.mrf.mxu0
        %v3656 = vadd.f32 %v3567, %v3655
        %3657 = vmatmul.bf16.gmra.mxu0 %v3299
        %v3658 = vpop.f32.mrf.mxu0
        %v3659 = vadd.f32 %v3570, %v3658
        %v3660 = vpop.f32.mrf.mxu0
        %v3661 = vadd.f32 %v3572, %v3660
        %3662 = vmatmul.bf16.gmra.mxu0 %v3302
        %v3663 = vpop.f32.mrf.mxu0
        %v3664 = vadd.f32 %v3575, %v3663
        %v3665 = vpop.f32.mrf.mxu0
        %v3666 = vadd.f32 %v3577, %v3665
        %3667 = vmatmul.bf16.gmra.mxu0 %v3305
        %v3668 = vpop.f32.mrf.mxu0
        %v3669 = vadd.f32 %v3580, %v3668
        %v3670 = vpop.f32.mrf.mxu0
        %v3671 = vadd.f32 %v3582, %v3670
        %3672 = vmatmul.bf16.gmra.mxu0 %v3308
        %v3673 = vpop.f32.mrf.mxu0
        %v3674 = vadd.f32 %v3585, %v3673
        %v3675 = vpop.f32.mrf.mxu0
        %v3676 = vadd.f32 %v3587, %v3675
        %3677 = vmatmul.bf16.gmra.mxu0 %v3311
        %v3678 = vpop.f32.mrf.mxu0
        %v3679 = vadd.f32 %v3590, %v3678
        %v3680 = vpop.f32.mrf.mxu0
        %v3681 = vadd.f32 %v3592, %v3680
        %3682 = vdwg.mxu0
        %3683 = vmatpush.bf16.msra.mxu0 %v3480
        %3684 = vmatpush.bf16.msra.mxu0 %v3479
        %3685 = vmatpush.bf16.msra.mxu0 %v3478
        %3686 = vmatpush.bf16.msra.mxu0 %v3477
        %3687 = vmatpush.bf16.msra.mxu0 %v3476
        %3688 = vmatpush.bf16.msra.mxu0 %v3475
        %3689 = vmatpush.bf16.msra.mxu0 %v3474
        %3690 = vmatpush.bf16.msra.mxu0 %v3473
        %3691 = vmatmul.bf16.gmra.mxu0 %v3267
        %v3692 = vpop.f32.mrf.mxu0
        %v3693 = vadd.f32 %v3604, %v3692
        %v3694 = vpop.f32.mrf.mxu0
        %v3695 = vadd.f32 %v3606, %v3694
        %3696 = vmatmul.bf16.gmra.mxu0 %v3270
        %v3697 = vpop.f32.mrf.mxu0
        %v3698 = vadd.f32 %v3609, %v3697
        %v3699 = vpop.f32.mrf.mxu0
        %v3700 = vadd.f32 %v3611, %v3699
        %3701 = vmatmul.bf16.gmra.mxu0 %v3273
        %v3702 = vpop.f32.mrf.mxu0
        %v3703 = vadd.f32 %v3614, %v3702
        %v3704 = vpop.f32.mrf.mxu0
        %v3705 = vadd.f32 %v3616, %v3704
        %3706 = vmatmul.bf16.gmra.mxu0 %v3276
        %v3707 = vpop.f32.mrf.mxu0
        %v3708 = vadd.f32 %v3619, %v3707
        %v3709 = vpop.f32.mrf.mxu0
        %v3710 = vadd.f32 %v3621, %v3709
        %3711 = vmatmul.bf16.gmra.mxu0 %v3279
        %v3712 = vpop.f32.mrf.mxu0
        %v3713 = vadd.f32 %v3624, %v3712
        %v3714 = vpop.f32.mrf.mxu0
        %v3715 = vadd.f32 %v3626, %v3714
        %3716 = vmatmul.bf16.gmra.mxu0 %v3282
        %v3717 = vpop.f32.mrf.mxu0
        %v3718 = vadd.f32 %v3629, %v3717
        %v3719 = vpop.f32.mrf.mxu0
        %v3720 = vadd.f32 %v3631, %v3719
        %3721 = vmatmul.bf16.gmra.mxu0 %v3285
        %v3722 = vpop.f32.mrf.mxu0
        %v3723 = vadd.f32 %v3634, %v3722
        %v3724 = vpop.f32.mrf.mxu0
        %v3725 = vadd.f32 %v3636, %v3724
        %3726 = vmatmul.bf16.gmra.mxu0 %v3288
        %v3727 = vpop.f32.mrf.mxu0
        %v3728 = vadd.f32 %v3639, %v3727
        %v3729 = vpop.f32.mrf.mxu0
        %v3730 = vadd.f32 %v3641, %v3729
        %3731 = vmatmul.bf16.gmra.mxu0 %v3291
        %v3732 = vpop.f32.mrf.mxu0
        %v3733 = vadd.f32 %v3644, %v3732
        %v3734 = vpop.f32.mrf.mxu0
        %v3735 = vadd.f32 %v3646, %v3734
        %3736 = vmatmul.bf16.gmra.mxu0 %v3294
        %v3737 = vpop.f32.mrf.mxu0
        %v3738 = vadd.f32 %v3649, %v3737
        %v3739 = vpop.f32.mrf.mxu0
        %v3740 = vadd.f32 %v3651, %v3739
        %3741 = vmatmul.bf16.gmra.mxu0 %v3297
        %v3742 = vpop.f32.mrf.mxu0
        %v3743 = vadd.f32 %v3654, %v3742
        %v3744 = vpop.f32.mrf.mxu0
        %v3745 = vadd.f32 %v3656, %v3744
        %3746 = vmatmul.bf16.gmra.mxu0 %v3300
        %v3747 = vpop.f32.mrf.mxu0
        %v3748 = vadd.f32 %v3659, %v3747
        %v3749 = vpop.f32.mrf.mxu0
        %v3750 = vadd.f32 %v3661, %v3749
        %3751 = vmatmul.bf16.gmra.mxu0 %v3303
        %v3752 = vpop.f32.mrf.mxu0
        %v3753 = vadd.f32 %v3664, %v3752
        %v3754 = vpop.f32.mrf.mxu0
        %v3755 = vadd.f32 %v3666, %v3754
        %3756 = vmatmul.bf16.gmra.mxu0 %v3306
        %v3757 = vpop.f32.mrf.mxu0
        %v3758 = vadd.f32 %v3669, %v3757
        %v3759 = vpop.f32.mrf.mxu0
        %v3760 = vadd.f32 %v3671, %v3759
        %3761 = vmatmul.bf16.gmra.mxu0 %v3309
        %v3762 = vpop.f32.mrf.mxu0
        %v3763 = vadd.f32 %v3674, %v3762
        %v3764 = vpop.f32.mrf.mxu0
        %v3765 = vadd.f32 %v3676, %v3764
        %3766 = vmatmul.bf16.gmra.mxu0 %v3312
        %v3767 = vpop.f32.mrf.mxu0
        %v3768 = vadd.f32 %v3679, %v3767
        %v3769 = vpop.f32.mrf.mxu0
        %v3770 = vadd.f32 %v3681, %v3769
        %3771 = vdwg.mxu0
        %v3772 = vadd.f32 %v2913, %v3693
        %v3773 = vadd.f32 %v2915, %v3695
        %v3774 = vadd.f32 %v2918, %v3698
        %v3775 = vadd.f32 %v2920, %v3700
        %v3776 = vadd.f32 %v2923, %v3703
        %v3777 = vadd.f32 %v2925, %v3705
        %v3778 = vadd.f32 %v2928, %v3708
        %v3779 = vadd.f32 %v2930, %v3710
        %v3780 = vadd.f32 %v2933, %v3713
        %v3781 = vadd.f32 %v2935, %v3715
        %v3782 = vadd.f32 %v2938, %v3718
        %v3783 = vadd.f32 %v2940, %v3720
        %v3784 = vadd.f32 %v2943, %v3723
        %v3785 = vadd.f32 %v2945, %v3725
        %v3786 = vadd.f32 %v2948, %v3728
        %v3787 = vadd.f32 %v2950, %v3730
        %v3788 = vadd.f32 %v2953, %v3733
        %v3789 = vadd.f32 %v2955, %v3735
        %v3790 = vadd.f32 %v2958, %v3738
        %v3791 = vadd.f32 %v2960, %v3740
        %v3792 = vadd.f32 %v2963, %v3743
        %v3793 = vadd.f32 %v2965, %v3745
        %v3794 = vadd.f32 %v2968, %v3748
        %v3795 = vadd.f32 %v2970, %v3750
        %v3796 = vadd.f32 %v2973, %v3753
        %v3797 = vadd.f32 %v2975, %v3755
        %v3798 = vadd.f32 %v2978, %v3758
        %v3799 = vadd.f32 %v2980, %v3760
        %v3800 = vadd.f32 %v2983, %v3763
        %v3801 = vadd.f32 %v2985, %v3765
        %v3802 = vadd.f32 %v2988, %v3768
        %v3803 = vadd.f32 %v2990, %v3770
        %v3804 = vld [vmem:[%s2] sm:$0x1]
        %v3806 = vperm.slane %v3804, 0
        %v3808 = vadd.f32 %v3772, %v3806
        %v3809 = vadd.f32 %v3773, %v3806
        %v3810 = vadd.f32 %v3774, %v3806
        %v3811 = vadd.f32 %v3775, %v3806
        %v3812 = vadd.f32 %v3776, %v3806
        %v3813 = vadd.f32 %v3777, %v3806
        %v3814 = vadd.f32 %v3778, %v3806
        %v3815 = vadd.f32 %v3779, %v3806
        %v3816 = vadd.f32 %v3780, %v3806
        %v3817 = vadd.f32 %v3781, %v3806
        %v3818 = vadd.f32 %v3782, %v3806
        %v3819 = vadd.f32 %v3783, %v3806
        %v3820 = vadd.f32 %v3784, %v3806
        %v3821 = vadd.f32 %v3785, %v3806
        %v3822 = vadd.f32 %v3786, %v3806
        %v3823 = vadd.f32 %v3787, %v3806
        %v3824 = vadd.f32 %v3788, %v3806
        %v3825 = vadd.f32 %v3789, %v3806
        %v3826 = vadd.f32 %v3790, %v3806
        %v3827 = vadd.f32 %v3791, %v3806
        %v3828 = vadd.f32 %v3792, %v3806
        %v3829 = vadd.f32 %v3793, %v3806
        %v3830 = vadd.f32 %v3794, %v3806
        %v3831 = vadd.f32 %v3795, %v3806
        %v3832 = vadd.f32 %v3796, %v3806
        %v3833 = vadd.f32 %v3797, %v3806
        %v3834 = vadd.f32 %v3798, %v3806
        %v3835 = vadd.f32 %v3799, %v3806
        %v3836 = vadd.f32 %v3800, %v3806
        %v3837 = vadd.f32 %v3801, %v3806
        %v3838 = vadd.f32 %v3802, %v3806
        %v3839 = vadd.f32 %v3803, %v3806
        %v3840 = vadd.f32 %v3808, %v3809
        %v3841 = vadd.f32 %v3840, %v3810
        %v3842 = vadd.f32 %v3841, %v3811
        %v3843 = vadd.f32 %v3842, %v3812
        %v3844 = vadd.f32 %v3843, %v3813
        %v3845 = vadd.f32 %v3844, %v3814
        %v3846 = vadd.f32 %v3845, %v3815
        %v3847 = vadd.f32 %v3846, %v3816
        %v3848 = vadd.f32 %v3847, %v3817
        %v3849 = vadd.f32 %v3848, %v3818
        %v3850 = vadd.f32 %v3849, %v3819
        %v3851 = vadd.f32 %v3850, %v3820
        %v3852 = vadd.f32 %v3851, %v3821
        %v3853 = vadd.f32 %v3852, %v3822
        %v3854 = vadd.f32 %v3853, %v3823
        %v3855 = vadd.f32 %v3854, %v3824
        %v3856 = vadd.f32 %v3855, %v3825
        %v3857 = vadd.f32 %v3856, %v3826
        %v3858 = vadd.f32 %v3857, %v3827
        %v3859 = vadd.f32 %v3858, %v3828
        %v3860 = vadd.f32 %v3859, %v3829
        %v3861 = vadd.f32 %v3860, %v3830
        %v3862 = vadd.f32 %v3861, %v3831
        %v3863 = vadd.f32 %v3862, %v3832
        %v3864 = vadd.f32 %v3863, %v3833
        %v3865 = vadd.f32 %v3864, %v3834
        %v3866 = vadd.f32 %v3865, %v3835
        %v3867 = vadd.f32 %v3866, %v3836
        %v3868 = vadd.f32 %v3867, %v3837
        %v3869 = vadd.f32 %v3868, %v3838
        %v3870 = vadd.f32 %v3869, %v3839
        %v3871 = vrot.slane %v3870, 4
        %v3872 = vadd.f32 %v3870, %v3871
        %v3873 = vrot.slane %v3872, 2
        %v3874 = vadd.f32 %v3872, %v3873
        %v3875 = vrot.slane %v3874, 1
        %v3876 = vadd.f32 %v3874, %v3875
        %v3877 = vmul.f32 %v3808, %v3808
        %v3878 = vmul.f32 %v3809, %v3809
        %v3879 = vmul.f32 %v3810, %v3810
        %v3880 = vmul.f32 %v3811, %v3811
        %v3881 = vmul.f32 %v3812, %v3812
        %v3882 = vmul.f32 %v3813, %v3813
        %v3883 = vmul.f32 %v3814, %v3814
        %v3884 = vmul.f32 %v3815, %v3815
        %v3885 = vmul.f32 %v3816, %v3816
        %v3886 = vmul.f32 %v3817, %v3817
        %v3887 = vmul.f32 %v3818, %v3818
        %v3888 = vmul.f32 %v3819, %v3819
        %v3889 = vmul.f32 %v3820, %v3820
        %v3890 = vmul.f32 %v3821, %v3821
        %v3891 = vmul.f32 %v3822, %v3822
        %v3892 = vmul.f32 %v3823, %v3823
        %v3893 = vmul.f32 %v3824, %v3824
        %v3894 = vmul.f32 %v3825, %v3825
        %v3895 = vmul.f32 %v3826, %v3826
        %v3896 = vmul.f32 %v3827, %v3827
        %v3897 = vmul.f32 %v3828, %v3828
        %v3898 = vmul.f32 %v3829, %v3829
        %v3899 = vmul.f32 %v3830, %v3830
        %v3900 = vmul.f32 %v3831, %v3831
        %v3901 = vmul.f32 %v3832, %v3832
        %v3902 = vmul.f32 %v3833, %v3833
        %v3903 = vmul.f32 %v3834, %v3834
        %v3904 = vmul.f32 %v3835, %v3835
        %v3905 = vmul.f32 %v3836, %v3836
        %v3906 = vmul.f32 %v3837, %v3837
        %v3907 = vmul.f32 %v3838, %v3838
        %v3908 = vmul.f32 %v3839, %v3839
        %v3909 = vadd.f32 %v3877, %v3878
        %v3910 = vadd.f32 %v3909, %v3879
        %v3911 = vadd.f32 %v3910, %v3880
        %v3912 = vadd.f32 %v3911, %v3881
        %v3913 = vadd.f32 %v3912, %v3882
        %v3914 = vadd.f32 %v3913, %v3883
        %v3915 = vadd.f32 %v3914, %v3884
        %v3916 = vadd.f32 %v3915, %v3885
        %v3917 = vadd.f32 %v3916, %v3886
        %v3918 = vadd.f32 %v3917, %v3887
        %v3919 = vadd.f32 %v3918, %v3888
        %v3920 = vadd.f32 %v3919, %v3889
        %v3921 = vadd.f32 %v3920, %v3890
        %v3922 = vadd.f32 %v3921, %v3891
        %v3923 = vadd.f32 %v3922, %v3892
        %v3924 = vadd.f32 %v3923, %v3893
        %v3925 = vadd.f32 %v3924, %v3894
        %v3926 = vadd.f32 %v3925, %v3895
        %v3927 = vadd.f32 %v3926, %v3896
        %v3928 = vadd.f32 %v3927, %v3897
        %v3929 = vadd.f32 %v3928, %v3898
        %v3930 = vadd.f32 %v3929, %v3899
        %v3931 = vadd.f32 %v3930, %v3900
        %v3932 = vadd.f32 %v3931, %v3901
        %v3933 = vadd.f32 %v3932, %v3902
        %v3934 = vadd.f32 %v3933, %v3903
        %v3935 = vadd.f32 %v3934, %v3904
        %v3936 = vadd.f32 %v3935, %v3905
        %v3937 = vadd.f32 %v3936, %v3906
        %v3938 = vadd.f32 %v3937, %v3907
        %v3939 = vadd.f32 %v3938, %v3908
        %v3940 = vrot.slane %v3939, 4
        %v3941 = vadd.f32 %v3939, %v3940
        %v3942 = vrot.slane %v3941, 2
        %v3943 = vadd.f32 %v3941, %v3942
        %v3944 = vrot.slane %v3943, 1
        %v3945 = vadd.f32 %v3943, %v3944
        %vm3946 = vcmask 1040384
        %v3947 = vsel %vm3946, %v3876, %v3945
        %v3948 = vld [vmem:[%s5] sm:$0xff]
        %v3949 = vld [vmem:[%s5 + $0x8] sm:$0xff]
        %v3950 = vld [vmem:[%s5 + $0x10] sm:$0xff]
        %v3951 = vld [vmem:[%s5 + $0x18] sm:$0xff]
        %v3952 = vld [vmem:[%s5 + $0x20] sm:$0xff]
        %v3953 = vld [vmem:[%s5 + $0x28] sm:$0xff]
        %v3954 = vld [vmem:[%s5 + $0x30] sm:$0xff]
        %v3955 = vld [vmem:[%s5 + $0x38] sm:$0xff]
        %v3956 = vld [vmem:[%s5 + $0x40] sm:$0xff]
        %v3957 = vld [vmem:[%s5 + $0x48] sm:$0xff]
        %v3958 = vld [vmem:[%s5 + $0x50] sm:$0xff]
        %v3959 = vld [vmem:[%s5 + $0x58] sm:$0xff]
        %v3960 = vld [vmem:[%s5 + $0x60] sm:$0xff]
        %v3961 = vld [vmem:[%s5 + $0x68] sm:$0xff]
        %v3962 = vld [vmem:[%s5 + $0x70] sm:$0xff]
        %v3963 = vld [vmem:[%s5 + $0x78] sm:$0xff]
        %3964 = vmatpush.msra.mxu0 %v3963
        %3965 = vmatpush.msra.mxu0 %v3962
        %3966 = vmatpush.msra.mxu0 %v3961
        %3967 = vmatpush.msra.mxu0 %v3960
        %3968 = vmatpush.msra.mxu0 %v3959
        %3969 = vmatpush.msra.mxu0 %v3958
        %3970 = vmatpush.msra.mxu0 %v3957
        %3971 = vmatpush.msra.mxu0 %v3956
        %3972 = vmatpush.msra.mxu0 %v3955
        %3973 = vmatpush.msra.mxu0 %v3954
        %3974 = vmatpush.msra.mxu0 %v3953
        %3975 = vmatpush.msra.mxu0 %v3952
        %3976 = vmatpush.msra.mxu0 %v3951
        %3977 = vmatpush.msra.mxu0 %v3950
        %3978 = vmatpush.msra.mxu0 %v3949
        %3979 = vmatpush.msra.mxu0 %v3948
        %3980 = vmatmul.f32.gmra.mxu0 %v3947
        %v3981 = vpop.f32.mrf.mxu0
        %v3982 = vadd.f32 0.0, %v3981
        %3983 = vdwg.mxu0
        %v3984 = vmul.f32 %v3982, 0.001953125
        %v3985 = vmul.f32 %v3984, %v3984
        %v3987 = vrot.slane %v3985, 7
        %v3989 = vsub.f32 %v3984, %v3987
        %v3990 = vperm.slane %v3984, 0
        %v3991 = vsub.f32 %v3808, %v3990
        %v3992 = vsub.f32 %v3809, %v3990
        %v3993 = vsub.f32 %v3810, %v3990
        %v3994 = vsub.f32 %v3811, %v3990
        %v3995 = vsub.f32 %v3812, %v3990
        %v3996 = vsub.f32 %v3813, %v3990
        %v3997 = vsub.f32 %v3814, %v3990
        %v3998 = vsub.f32 %v3815, %v3990
        %v3999 = vsub.f32 %v3816, %v3990
        %v4000 = vsub.f32 %v3817, %v3990
        %v4001 = vsub.f32 %v3818, %v3990
        %v4002 = vsub.f32 %v3819, %v3990
        %v4003 = vsub.f32 %v3820, %v3990
        %v4004 = vsub.f32 %v3821, %v3990
        %v4005 = vsub.f32 %v3822, %v3990
        %v4006 = vsub.f32 %v3823, %v3990
        %v4007 = vsub.f32 %v3824, %v3990
        %v4008 = vsub.f32 %v3825, %v3990
        %v4009 = vsub.f32 %v3826, %v3990
        %v4010 = vsub.f32 %v3827, %v3990
        %v4011 = vsub.f32 %v3828, %v3990
        %v4012 = vsub.f32 %v3829, %v3990
        %v4013 = vsub.f32 %v3830, %v3990
        %v4014 = vsub.f32 %v3831, %v3990
        %v4015 = vsub.f32 %v3832, %v3990
        %v4016 = vsub.f32 %v3833, %v3990
        %v4017 = vsub.f32 %v3834, %v3990
        %v4018 = vsub.f32 %v3835, %v3990
        %v4019 = vsub.f32 %v3836, %v3990
        %v4020 = vsub.f32 %v3837, %v3990
        %v4021 = vsub.f32 %v3838, %v3990
        %v4022 = vsub.f32 %v3839, %v3990
        %v4023 = vadd.f32 %v3989, 1e-05
        %v4024 = vrsqrt.pop %v4023
        %v4025 = vmul.f32 %v4024, %v4023
        %v4026 = vmul.f32 %v4025, %v4024
        %v4027 = vmul.f32 0.5, %v4026
        %v4028 = vsub.f32 1.5, %v4027
        %v4029 = vmul.f32 %v4024, %v4028
        %vm4030 = vweird.f32 %v4023
        %vm4031 = vweird.f32 %v4024
        %vm4032 = vmor %vm4030, %vm4031
        %v4033 = vsel %vm4032, %v4024, %v4029
        %v4034 = vperm.slane %v4033, 1
        %v4035 = vmul.f32 %v3991, %v4034
        %v4036 = vmul.f32 %v3992, %v4034
        %v4037 = vmul.f32 %v3993, %v4034
        %v4038 = vmul.f32 %v3994, %v4034
        %v4039 = vmul.f32 %v3995, %v4034
        %v4040 = vmul.f32 %v3996, %v4034
        %v4041 = vmul.f32 %v3997, %v4034
        %v4042 = vmul.f32 %v3998, %v4034
        %v4043 = vmul.f32 %v3999, %v4034
        %v4044 = vmul.f32 %v4000, %v4034
        %v4045 = vmul.f32 %v4001, %v4034
        %v4046 = vmul.f32 %v4002, %v4034
        %v4047 = vmul.f32 %v4003, %v4034
        %v4048 = vmul.f32 %v4004, %v4034
        %v4049 = vmul.f32 %v4005, %v4034
        %v4050 = vmul.f32 %v4006, %v4034
        %v4051 = vmul.f32 %v4007, %v4034
        %v4052 = vmul.f32 %v4008, %v4034
        %v4053 = vmul.f32 %v4009, %v4034
        %v4054 = vmul.f32 %v4010, %v4034
        %v4055 = vmul.f32 %v4011, %v4034
        %v4056 = vmul.f32 %v4012, %v4034
        %v4057 = vmul.f32 %v4013, %v4034
        %v4058 = vmul.f32 %v4014, %v4034
        %v4059 = vmul.f32 %v4015, %v4034
        %v4060 = vmul.f32 %v4016, %v4034
        %v4061 = vmul.f32 %v4017, %v4034
        %v4062 = vmul.f32 %v4018, %v4034
        %v4063 = vmul.f32 %v4019, %v4034
        %v4064 = vmul.f32 %v4020, %v4034
        %v4065 = vmul.f32 %v4021, %v4034
        %v4066 = vmul.f32 %v4022, %v4034
        %v4067 = vld [vmem:[%s3] sm:$0x1]
        %v4069 = vperm.slane %v4067, 0
        %v4071 = vmul.f32 %v4035, %v4069
        %v4072 = vmul.f32 %v4036, %v4069
        %v4073 = vmul.f32 %v4037, %v4069
        %v4074 = vmul.f32 %v4038, %v4069
        %v4075 = vmul.f32 %v4039, %v4069
        %v4076 = vmul.f32 %v4040, %v4069
        %v4077 = vmul.f32 %v4041, %v4069
        %v4078 = vmul.f32 %v4042, %v4069
        %v4079 = vmul.f32 %v4043, %v4069
        %v4080 = vmul.f32 %v4044, %v4069
        %v4081 = vmul.f32 %v4045, %v4069
        %v4082 = vmul.f32 %v4046, %v4069
        %v4083 = vmul.f32 %v4047, %v4069
        %v4084 = vmul.f32 %v4048, %v4069
        %v4085 = vmul.f32 %v4049, %v4069
        %v4086 = vmul.f32 %v4050, %v4069
        %v4087 = vmul.f32 %v4051, %v4069
        %v4088 = vmul.f32 %v4052, %v4069
        %v4089 = vmul.f32 %v4053, %v4069
        %v4090 = vmul.f32 %v4054, %v4069
        %v4091 = vmul.f32 %v4055, %v4069
        %v4092 = vmul.f32 %v4056, %v4069
        %v4093 = vmul.f32 %v4057, %v4069
        %v4094 = vmul.f32 %v4058, %v4069
        %v4095 = vmul.f32 %v4059, %v4069
        %v4096 = vmul.f32 %v4060, %v4069
        %v4097 = vmul.f32 %v4061, %v4069
        %v4098 = vmul.f32 %v4062, %v4069
        %v4099 = vmul.f32 %v4063, %v4069
        %v4100 = vmul.f32 %v4064, %v4069
        %v4101 = vmul.f32 %v4065, %v4069
        %v4102 = vmul.f32 %v4066, %v4069
        %v4103 = vld [vmem:[%s4] sm:$0x1]
        %v4105 = vperm.slane %v4103, 0
        %v4107 = vadd.f32 %v4071, %v4105
        %v4108 = vadd.f32 %v4072, %v4105
        %v4109 = vadd.f32 %v4073, %v4105
        %v4110 = vadd.f32 %v4074, %v4105
        %v4111 = vadd.f32 %v4075, %v4105
        %v4112 = vadd.f32 %v4076, %v4105
        %v4113 = vadd.f32 %v4077, %v4105
        %v4114 = vadd.f32 %v4078, %v4105
        %v4115 = vadd.f32 %v4079, %v4105
        %v4116 = vadd.f32 %v4080, %v4105
        %v4117 = vadd.f32 %v4081, %v4105
        %v4118 = vadd.f32 %v4082, %v4105
        %v4119 = vadd.f32 %v4083, %v4105
        %v4120 = vadd.f32 %v4084, %v4105
        %v4121 = vadd.f32 %v4085, %v4105
        %v4122 = vadd.f32 %v4086, %v4105
        %v4123 = vadd.f32 %v4087, %v4105
        %v4124 = vadd.f32 %v4088, %v4105
        %v4125 = vadd.f32 %v4089, %v4105
        %v4126 = vadd.f32 %v4090, %v4105
        %v4127 = vadd.f32 %v4091, %v4105
        %v4128 = vadd.f32 %v4092, %v4105
        %v4129 = vadd.f32 %v4093, %v4105
        %v4130 = vadd.f32 %v4094, %v4105
        %v4131 = vadd.f32 %v4095, %v4105
        %v4132 = vadd.f32 %v4096, %v4105
        %v4133 = vadd.f32 %v4097, %v4105
        %v4134 = vadd.f32 %v4098, %v4105
        %v4135 = vadd.f32 %v4099, %v4105
        %v4136 = vadd.f32 %v4100, %v4105
        %v4137 = vadd.f32 %v4101, %v4105
        %v4138 = vadd.f32 %v4102, %v4105
        %v4139 = vmax.f32 %v4107, 0.0
        %v4140 = vmax.f32 %v4108, 0.0
        %v4141 = vmax.f32 %v4109, 0.0
        %v4142 = vmax.f32 %v4110, 0.0
        %v4143 = vmax.f32 %v4111, 0.0
        %v4144 = vmax.f32 %v4112, 0.0
        %v4145 = vmax.f32 %v4113, 0.0
        %v4146 = vmax.f32 %v4114, 0.0
        %v4147 = vmax.f32 %v4115, 0.0
        %v4148 = vmax.f32 %v4116, 0.0
        %v4149 = vmax.f32 %v4117, 0.0
        %v4150 = vmax.f32 %v4118, 0.0
        %v4151 = vmax.f32 %v4119, 0.0
        %v4152 = vmax.f32 %v4120, 0.0
        %v4153 = vmax.f32 %v4121, 0.0
        %v4154 = vmax.f32 %v4122, 0.0
        %v4155 = vmax.f32 %v4123, 0.0
        %v4156 = vmax.f32 %v4124, 0.0
        %v4157 = vmax.f32 %v4125, 0.0
        %v4158 = vmax.f32 %v4126, 0.0
        %v4159 = vmax.f32 %v4127, 0.0
        %v4160 = vmax.f32 %v4128, 0.0
        %v4161 = vmax.f32 %v4129, 0.0
        %v4162 = vmax.f32 %v4130, 0.0
        %v4163 = vmax.f32 %v4131, 0.0
        %v4164 = vmax.f32 %v4132, 0.0
        %v4165 = vmax.f32 %v4133, 0.0
        %v4166 = vmax.f32 %v4134, 0.0
        %v4167 = vmax.f32 %v4135, 0.0
        %v4168 = vmax.f32 %v4136, 0.0
        %v4169 = vmax.f32 %v4137, 0.0
        %v4170 = vmax.f32 %v4138, 0.0
        %4171 = vst [vmem:[#allocation2 + $0x10] sm:$0xff] %v4139
        %4172 = vst [vmem:[#allocation2 + $0x18] sm:$0xff] %v4140
        %4173 = vst [vmem:[#allocation2 + $0x20] sm:$0xff] %v4141
        %4174 = vst [vmem:[#allocation2 + $0x28] sm:$0xff] %v4142
        %4175 = vst [vmem:[#allocation2 + $0x30] sm:$0xff] %v4143
        %4176 = vst [vmem:[#allocation2 + $0x38] sm:$0xff] %v4144
        %4177 = vst [vmem:[#allocation2 + $0x40] sm:$0xff] %v4145
        %4178 = vst [vmem:[#allocation2 + $0x48] sm:$0xff] %v4146
        %4179 = vst [vmem:[#allocation2 + $0x50] sm:$0xff] %v4147
        %4180 = vst [vmem:[#allocation2 + $0x58] sm:$0xff] %v4148
        %4181 = vst [vmem:[#allocation2 + $0x60] sm:$0xff] %v4149
        %4182 = vst [vmem:[#allocation2 + $0x68] sm:$0xff] %v4150
        %4183 = vst [vmem:[#allocation2 + $0x70] sm:$0xff] %v4151
        %4184 = vst [vmem:[#allocation2 + $0x78] sm:$0xff] %v4152
        %4185 = vst [vmem:[#allocation2 + $0x80] sm:$0xff] %v4153
        %4186 = vst [vmem:[#allocation2 + $0x88] sm:$0xff] %v4154
        %4187 = vst [vmem:[#allocation2 + $0x90] sm:$0xff] %v4155
        %4188 = vst [vmem:[#allocation2 + $0x98] sm:$0xff] %v4156
        %4189 = vst [vmem:[#allocation2 + $0xa0] sm:$0xff] %v4157
        %4190 = vst [vmem:[#allocation2 + $0xa8] sm:$0xff] %v4158
        %4191 = vst [vmem:[#allocation2 + $0xb0] sm:$0xff] %v4159
        %4192 = vst [vmem:[#allocation2 + $0xb8] sm:$0xff] %v4160
        %4193 = vst [vmem:[#allocation2 + $0xc0] sm:$0xff] %v4161
        %4194 = vst [vmem:[#allocation2 + $0xc8] sm:$0xff] %v4162
        %4195 = vst [vmem:[#allocation2 + $0xd0] sm:$0xff] %v4163
        %4196 = vst [vmem:[#allocation2 + $0xd8] sm:$0xff] %v4164
        %4197 = vst [vmem:[#allocation2 + $0xe0] sm:$0xff] %v4165
        %4198 = vst [vmem:[#allocation2 + $0xe8] sm:$0xff] %v4166
        %4199 = vst [vmem:[#allocation2 + $0xf0] sm:$0xff] %v4167
        %4200 = vst [vmem:[#allocation2 + $0xf8] sm:$0xff] %v4168
        %4201 = vst [vmem:[#allocation2 + $0x100] sm:$0xff] %v4169
        %4202 = vst [vmem:[#allocation2 + $0x108] sm:$0xff] %v4170
        %v4203 = vld [vmem:[#allocation2] sm:$0xff]
        %v4204 = vld [vmem:[#allocation2 + $0x8] sm:$0xff]
        %v4205 = vld [vmem:[#allocation2 + $0x10] sm:$0xff]
        %v4206 = vld [vmem:[#allocation2 + $0x18] sm:$0xff]
        %v4207 = vld [vmem:[#allocation2 + $0x20] sm:$0xff]
        %v4208 = vld [vmem:[#allocation2 + $0x28] sm:$0xff]
        %v4209 = vld [vmem:[#allocation2 + $0x30] sm:$0xff]
        %v4210 = vld [vmem:[#allocation2 + $0x38] sm:$0xff]
        %v4211 = vld [vmem:[#allocation2 + $0x40] sm:$0xff]
        %v4212 = vld [vmem:[#allocation2 + $0x48] sm:$0xff]
        %v4213 = vld [vmem:[#allocation2 + $0x50] sm:$0xff]
        %v4214 = vld [vmem:[#allocation2 + $0x58] sm:$0xff]
        %v4215 = vld [vmem:[#allocation2 + $0x60] sm:$0xff]
        %v4216 = vld [vmem:[#allocation2 + $0x68] sm:$0xff]
        %v4217 = vld [vmem:[#allocation2 + $0x70] sm:$0xff]
        %v4218 = vld [vmem:[#allocation2 + $0x78] sm:$0xff]
        %v4219 = vld [vmem:[#allocation2 + $0x80] sm:$0xff]
        %v4220 = vld [vmem:[#allocation2 + $0x88] sm:$0xff]
        %v4221 = vld [vmem:[#allocation2 + $0x90] sm:$0xff]
        %v4222 = vld [vmem:[#allocation2 + $0x98] sm:$0xff]
        %v4223 = vld [vmem:[#allocation2 + $0xa0] sm:$0xff]
        %v4224 = vld [vmem:[#allocation2 + $0xa8] sm:$0xff]
        %v4225 = vld [vmem:[#allocation2 + $0xb0] sm:$0xff]
        %v4226 = vld [vmem:[#allocation2 + $0xb8] sm:$0xff]
        %v4227 = vld [vmem:[#allocation2 + $0xc0] sm:$0xff]
        %v4228 = vld [vmem:[#allocation2 + $0xc8] sm:$0xff]
        %v4229 = vld [vmem:[#allocation2 + $0xd0] sm:$0xff]
        %v4230 = vld [vmem:[#allocation2 + $0xd8] sm:$0xff]
        %v4231 = vld [vmem:[#allocation2 + $0xe0] sm:$0xff]
        %v4232 = vld [vmem:[#allocation2 + $0xe8] sm:$0xff]
        %v4233 = vld [vmem:[#allocation2 + $0xf0] sm:$0xff]
        %v4234 = vld [vmem:[#allocation2 + $0xf8] sm:$0xff]
        %v4235 = vld [vmem:[#allocation2 + $0x100] sm:$0xff]
        %v4236 = vld [vmem:[#allocation2 + $0x108] sm:$0xff]
        %v4237 = vld [vmem:[#allocation2 + $0x110] sm:$0xff]
        %v4238 = vld [vmem:[#allocation2 + $0x118] sm:$0xff]
        %v4239 = vrot.slane %v4203, 7
        %v4240 = vrot.slane %v4204, 7
        %v4241 = vrot.slane %v4205, 7
        %v4242 = vrot.slane %v4206, 7
        %v4243 = vrot.slane %v4207, 7
        %v4244 = vrot.slane %v4208, 7
        %v4245 = vrot.slane %v4209, 7
        %v4246 = vrot.slane %v4210, 7
        %v4247 = vrot.slane %v4211, 7
        %v4248 = vrot.slane %v4212, 7
        %v4249 = vrot.slane %v4213, 7
        %v4250 = vrot.slane %v4214, 7
        %v4251 = vrot.slane %v4215, 7
        %v4252 = vrot.slane %v4216, 7
        %v4253 = vrot.slane %v4217, 7
        %v4254 = vrot.slane %v4218, 7
        %v4255 = vrot.slane %v4219, 7
        %v4256 = vrot.slane %v4220, 7
        %v4257 = vrot.slane %v4221, 7
        %v4258 = vrot.slane %v4222, 7
        %v4259 = vrot.slane %v4223, 7
        %v4260 = vrot.slane %v4224, 7
        %v4261 = vrot.slane %v4225, 7
        %v4262 = vrot.slane %v4226, 7
        %v4263 = vrot.slane %v4227, 7
        %v4264 = vrot.slane %v4228, 7
        %v4265 = vrot.slane %v4229, 7
        %v4266 = vrot.slane %v4230, 7
        %v4267 = vrot.slane %v4231, 7
        %v4268 = vrot.slane %v4232, 7
        %v4269 = vrot.slane %v4233, 7
        %v4270 = vrot.slane %v4234, 7
        %v4271 = vrot.slane %v4235, 7
        %v4272 = vrot.slane %v4236, 7
        %v4273 = vrot.slane %v4237, 7
        %v4274 = vrot.slane %v4238, 7
        %v4275 = vsel %vm1191, %v4273, %v4274
        %v4276 = vsel %vm1191, %v4272, %v4273
        %v4277 = vsel %vm1191, %v4271, %v4272
        %v4278 = vsel %vm1191, %v4270, %v4271
        %v4279 = vsel %vm1191, %v4269, %v4270
        %v4280 = vsel %vm1191, %v4268, %v4269
        %v4281 = vsel %vm1191, %v4267, %v4268
        %v4282 = vsel %vm1191, %v4266, %v4267
        %v4283 = vsel %vm1191, %v4265, %v4266
        %v4284 = vsel %vm1191, %v4264, %v4265
        %v4285 = vsel %vm1191, %v4263, %v4264
        %v4286 = vsel %vm1191, %v4262, %v4263
        %v4287 = vsel %vm1191, %v4261, %v4262
        %v4288 = vsel %vm1191, %v4260, %v4261
        %v4289 = vsel %vm1191, %v4259, %v4260
        %v4290 = vsel %vm1191, %v4258, %v4259
        %v4291 = vsel %vm1191, %v4257, %v4258
        %v4292 = vsel %vm1191, %v4256, %v4257
        %v4293 = vsel %vm1191, %v4255, %v4256
        %v4294 = vsel %vm1191, %v4254, %v4255
        %v4295 = vsel %vm1191, %v4253, %v4254
        %v4296 = vsel %vm1191, %v4252, %v4253
        %v4297 = vsel %vm1191, %v4251, %v4252
        %v4298 = vsel %vm1191, %v4250, %v4251
        %v4299 = vsel %vm1191, %v4249, %v4250
        %v4300 = vsel %vm1191, %v4248, %v4249
        %v4301 = vsel %vm1191, %v4247, %v4248
        %v4302 = vsel %vm1191, %v4246, %v4247
        %v4303 = vsel %vm1191, %v4245, %v4246
        %v4304 = vsel %vm1191, %v4244, %v4245
        %v4305 = vsel %vm1191, %v4243, %v4244
        %v4306 = vsel %vm1191, %v4242, %v4243
        %v4307 = vsel %vm1191, %v4241, %v4242
        %v4308 = vsel %vm1191, %v4240, %v4241
        %v4309 = vsel %vm1191, %v4239, %v4240
        %v4310 = vsel %vm1191, %v4274, %v4239
        %v4311 = vsel %vm1264, %v4310, 0.0
        %v4312 = vsel %vm1265, %v4309, 0.0
        %v4313 = vsel %vm1266, %v4308, 0.0
        %v4314 = vsel %vm1267, %v4307, 0.0
        %v4315 = vsel %vm1268, %v4306, 0.0
        %v4316 = vsel %vm1269, %v4305, 0.0
        %v4317 = vsel %vm1270, %v4304, 0.0
        %v4318 = vsel %vm1271, %v4303, 0.0
        %v4319 = vsel %vm1272, %v4302, 0.0
        %v4320 = vsel %vm1273, %v4301, 0.0
        %v4321 = vsel %vm1274, %v4300, 0.0
        %v4322 = vsel %vm1275, %v4299, 0.0
        %v4323 = vsel %vm1276, %v4298, 0.0
        %v4324 = vsel %vm1277, %v4297, 0.0
        %v4325 = vsel %vm1278, %v4296, 0.0
        %v4326 = vsel %vm1279, %v4295, 0.0
        %v4327 = vsel %vm1280, %v4294, 0.0
        %v4328 = vsel %vm1281, %v4293, 0.0
        %v4329 = vsel %vm1282, %v4292, 0.0
        %v4330 = vsel %vm1283, %v4291, 0.0
        %v4331 = vsel %vm1284, %v4290, 0.0
        %v4332 = vsel %vm1285, %v4289, 0.0
        %v4333 = vsel %vm1286, %v4288, 0.0
        %v4334 = vsel %vm1287, %v4287, 0.0
        %v4335 = vsel %vm1288, %v4286, 0.0
        %v4336 = vsel %vm1289, %v4285, 0.0
        %v4337 = vsel %vm1290, %v4284, 0.0
        %v4338 = vsel %vm1291, %v4283, 0.0
        %v4339 = vsel %vm1292, %v4282, 0.0
        %v4340 = vsel %vm1293, %v4281, 0.0
        %v4341 = vsel %vm1294, %v4280, 0.0
        %v4342 = vsel %vm1295, %v4279, 0.0
        %v4343 = vsel %vm1296, %v4278, 0.0
        %v4344 = vsel %vm1297, %v4277, 0.0
        %v4345 = vsel %vm1298, %v4276, 0.0
        %v4346 = vsel %vm1299, %v4275, 0.0
        %v4347 = vrot.slane %v4203, 1
        %v4348 = vrot.slane %v4204, 1
        %v4349 = vrot.slane %v4205, 1
        %v4350 = vrot.slane %v4206, 1
        %v4351 = vrot.slane %v4207, 1
        %v4352 = vrot.slane %v4208, 1
        %v4353 = vrot.slane %v4209, 1
        %v4354 = vrot.slane %v4210, 1
        %v4355 = vrot.slane %v4211, 1
        %v4356 = vrot.slane %v4212, 1
        %v4357 = vrot.slane %v4213, 1
        %v4358 = vrot.slane %v4214, 1
        %v4359 = vrot.slane %v4215, 1
        %v4360 = vrot.slane %v4216, 1
        %v4361 = vrot.slane %v4217, 1
        %v4362 = vrot.slane %v4218, 1
        %v4363 = vrot.slane %v4219, 1
        %v4364 = vrot.slane %v4220, 1
        %v4365 = vrot.slane %v4221, 1
        %v4366 = vrot.slane %v4222, 1
        %v4367 = vrot.slane %v4223, 1
        %v4368 = vrot.slane %v4224, 1
        %v4369 = vrot.slane %v4225, 1
        %v4370 = vrot.slane %v4226, 1
        %v4371 = vrot.slane %v4227, 1
        %v4372 = vrot.slane %v4228, 1
        %v4373 = vrot.slane %v4229, 1
        %v4374 = vrot.slane %v4230, 1
        %v4375 = vrot.slane %v4231, 1
        %v4376 = vrot.slane %v4232, 1
        %v4377 = vrot.slane %v4233, 1
        %v4378 = vrot.slane %v4234, 1
        %v4379 = vrot.slane %v4235, 1
        %v4380 = vrot.slane %v4236, 1
        %v4381 = vrot.slane %v4237, 1
        %v4382 = vrot.slane %v4238, 1
        %v4383 = vsel %vm1372, %v4381, %v4382
        %v4384 = vsel %vm1372, %v4380, %v4381
        %v4385 = vsel %vm1372, %v4379, %v4380
        %v4386 = vsel %vm1372, %v4378, %v4379
        %v4387 = vsel %vm1372, %v4377, %v4378
        %v4388 = vsel %vm1372, %v4376, %v4377
        %v4389 = vsel %vm1372, %v4375, %v4376
        %v4390 = vsel %vm1372, %v4374, %v4375
        %v4391 = vsel %vm1372, %v4373, %v4374
        %v4392 = vsel %vm1372, %v4372, %v4373
        %v4393 = vsel %vm1372, %v4371, %v4372
        %v4394 = vsel %vm1372, %v4370, %v4371
        %v4395 = vsel %vm1372, %v4369, %v4370
        %v4396 = vsel %vm1372, %v4368, %v4369
        %v4397 = vsel %vm1372, %v4367, %v4368
        %v4398 = vsel %vm1372, %v4366, %v4367
        %v4399 = vsel %vm1372, %v4365, %v4366
        %v4400 = vsel %vm1372, %v4364, %v4365
        %v4401 = vsel %vm1372, %v4363, %v4364
        %v4402 = vsel %vm1372, %v4362, %v4363
        %v4403 = vsel %vm1372, %v4361, %v4362
        %v4404 = vsel %vm1372, %v4360, %v4361
        %v4405 = vsel %vm1372, %v4359, %v4360
        %v4406 = vsel %vm1372, %v4358, %v4359
        %v4407 = vsel %vm1372, %v4357, %v4358
        %v4408 = vsel %vm1372, %v4356, %v4357
        %v4409 = vsel %vm1372, %v4355, %v4356
        %v4410 = vsel %vm1372, %v4354, %v4355
        %v4411 = vsel %vm1372, %v4353, %v4354
        %v4412 = vsel %vm1372, %v4352, %v4353
        %v4413 = vsel %vm1372, %v4351, %v4352
        %v4414 = vsel %vm1372, %v4350, %v4351
        %v4415 = vsel %vm1372, %v4349, %v4350
        %v4416 = vsel %vm1372, %v4348, %v4349
        %v4417 = vsel %vm1372, %v4347, %v4348
        %v4418 = vsel %vm1372, %v4382, %v4347
        %v4419 = vsel %vm1445, %v4417, 0.0
        %v4420 = vsel %vm1446, %v4416, 0.0
        %v4421 = vsel %vm1447, %v4415, 0.0
        %v4422 = vsel %vm1448, %v4414, 0.0
        %v4423 = vsel %vm1449, %v4413, 0.0
        %v4424 = vsel %vm1450, %v4412, 0.0
        %v4425 = vsel %vm1451, %v4411, 0.0
        %v4426 = vsel %vm1452, %v4410, 0.0
        %v4427 = vsel %vm1453, %v4409, 0.0
        %v4428 = vsel %vm1454, %v4408, 0.0
        %v4429 = vsel %vm1455, %v4407, 0.0
        %v4430 = vsel %vm1456, %v4406, 0.0
        %v4431 = vsel %vm1457, %v4405, 0.0
        %v4432 = vsel %vm1458, %v4404, 0.0
        %v4433 = vsel %vm1459, %v4403, 0.0
        %v4434 = vsel %vm1460, %v4402, 0.0
        %v4435 = vsel %vm1461, %v4401, 0.0
        %v4436 = vsel %vm1462, %v4400, 0.0
        %v4437 = vsel %vm1463, %v4399, 0.0
        %v4438 = vsel %vm1464, %v4398, 0.0
        %v4439 = vsel %vm1465, %v4397, 0.0
        %v4440 = vsel %vm1466, %v4396, 0.0
        %v4441 = vsel %vm1467, %v4395, 0.0
        %v4442 = vsel %vm1468, %v4394, 0.0
        %v4443 = vsel %vm1469, %v4393, 0.0
        %v4444 = vsel %vm1470, %v4392, 0.0
        %v4445 = vsel %vm1471, %v4391, 0.0
        %v4446 = vsel %vm1472, %v4390, 0.0
        %v4447 = vsel %vm1473, %v4389, 0.0
        %v4448 = vsel %vm1474, %v4388, 0.0
        %v4449 = vsel %vm1475, %v4387, 0.0
        %v4450 = vsel %vm1476, %v4386, 0.0
        %v4451 = vsel %vm1477, %v4385, 0.0
        %v4452 = vsel %vm1478, %v4384, 0.0
        %v4453 = vsel %vm1479, %v4383, 0.0
        %v4454 = vsel %vm1480, %v4418, 0.0
        %v4455 = vpack.c.bf16 %v4311, %v4311
        %v4456 = vpack.c.bf16 %v4312, %v4312
        %v4457 = vpack.c.bf16 %v4313, %v4313
        %v4458 = vpack.c.bf16 %v4314, %v4314
        %v4459 = vpack.c.bf16 %v4315, %v4315
        %v4460 = vpack.c.bf16 %v4316, %v4316
        %v4461 = vpack.c.bf16 %v4317, %v4317
        %v4462 = vpack.c.bf16 %v4318, %v4318
        %v4463 = vpack.c.bf16 %v4319, %v4319
        %v4464 = vpack.c.bf16 %v4320, %v4320
        %v4465 = vpack.c.bf16 %v4321, %v4321
        %v4466 = vpack.c.bf16 %v4322, %v4322
        %v4467 = vpack.c.bf16 %v4323, %v4323
        %v4468 = vpack.c.bf16 %v4324, %v4324
        %v4469 = vpack.c.bf16 %v4325, %v4325
        %v4470 = vpack.c.bf16 %v4326, %v4326
        %v4471 = vpack.c.bf16 %v4327, %v4327
        %v4472 = vpack.c.bf16 %v4328, %v4328
        %v4473 = vpack.c.bf16 %v4329, %v4329
        %v4474 = vpack.c.bf16 %v4330, %v4330
        %v4475 = vpack.c.bf16 %v4331, %v4331
        %v4476 = vpack.c.bf16 %v4332, %v4332
        %v4477 = vpack.c.bf16 %v4333, %v4333
        %v4478 = vpack.c.bf16 %v4334, %v4334
        %v4479 = vpack.c.bf16 %v4335, %v4335
        %v4480 = vpack.c.bf16 %v4336, %v4336
        %v4481 = vpack.c.bf16 %v4337, %v4337
        %v4482 = vpack.c.bf16 %v4338, %v4338
        %v4483 = vpack.c.bf16 %v4339, %v4339
        %v4484 = vpack.c.bf16 %v4340, %v4340
        %v4485 = vpack.c.bf16 %v4341, %v4341
        %v4486 = vpack.c.bf16 %v4342, %v4342
        %v4487 = vpack.c.bf16 %v4343, %v4343
        %v4488 = vpack.c.bf16 %v4344, %v4344
        %v4489 = vpack.c.bf16 %v4345, %v4345
        %v4490 = vpack.c.bf16 %v4346, %v4346
        %4491 = vst [vmem:[#allocation3] sm:$0xf] %v4455
        %4492 = vst [vmem:[#allocation3 + $0xc] sm:$0xf] %v4456
        %4493 = vst [vmem:[#allocation3 + $0x18] sm:$0xf] %v4457
        %4494 = vst [vmem:[#allocation3 + $0x24] sm:$0xf] %v4458
        %4495 = vst [vmem:[#allocation3 + $0x30] sm:$0xf] %v4459
        %4496 = vst [vmem:[#allocation3 + $0x3c] sm:$0xf] %v4460
        %4497 = vst [vmem:[#allocation3 + $0x48] sm:$0xf] %v4461
        %4498 = vst [vmem:[#allocation3 + $0x54] sm:$0xf] %v4462
        %4499 = vst [vmem:[#allocation3 + $0x60] sm:$0xf] %v4463
        %4500 = vst [vmem:[#allocation3 + $0x6c] sm:$0xf] %v4464
        %4501 = vst [vmem:[#allocation3 + $0x78] sm:$0xf] %v4465
        %4502 = vst [vmem:[#allocation3 + $0x84] sm:$0xf] %v4466
        %4503 = vst [vmem:[#allocation3 + $0x90] sm:$0xf] %v4467
        %4504 = vst [vmem:[#allocation3 + $0x9c] sm:$0xf] %v4468
        %4505 = vst [vmem:[#allocation3 + $0xa8] sm:$0xf] %v4469
        %4506 = vst [vmem:[#allocation3 + $0xb4] sm:$0xf] %v4470
        %4507 = vst [vmem:[#allocation3 + $0xc0] sm:$0xf] %v4471
        %4508 = vst [vmem:[#allocation3 + $0xcc] sm:$0xf] %v4472
        %4509 = vst [vmem:[#allocation3 + $0xd8] sm:$0xf] %v4473
        %4510 = vst [vmem:[#allocation3 + $0xe4] sm:$0xf] %v4474
        %4511 = vst [vmem:[#allocation3 + $0xf0] sm:$0xf] %v4475
        %4512 = vst [vmem:[#allocation3 + $0xfc] sm:$0xf] %v4476
        %4513 = vst [vmem:[#allocation3 + $0x108] sm:$0xf] %v4477
        %4514 = vst [vmem:[#allocation3 + $0x114] sm:$0xf] %v4478
        %4515 = vst [vmem:[#allocation3 + $0x120] sm:$0xf] %v4479
        %4516 = vst [vmem:[#allocation3 + $0x12c] sm:$0xf] %v4480
        %4517 = vst [vmem:[#allocation3 + $0x138] sm:$0xf] %v4481
        %4518 = vst [vmem:[#allocation3 + $0x144] sm:$0xf] %v4482
        %4519 = vst [vmem:[#allocation3 + $0x150] sm:$0xf] %v4483
        %4520 = vst [vmem:[#allocation3 + $0x15c] sm:$0xf] %v4484
        %4521 = vst [vmem:[#allocation3 + $0x168] sm:$0xf] %v4485
        %4522 = vst [vmem:[#allocation3 + $0x174] sm:$0xf] %v4486
        %4523 = vst [vmem:[#allocation3 + $0x180] sm:$0xf] %v4487
        %4524 = vst [vmem:[#allocation3 + $0x18c] sm:$0xf] %v4488
        %4525 = vst [vmem:[#allocation3 + $0x198] sm:$0xf] %v4489
        %4526 = vst [vmem:[#allocation3 + $0x1a4] sm:$0xf] %v4490
        %v4527 = vpack.c.bf16 %v4203, %v4203
        %v4528 = vpack.c.bf16 %v4204, %v4204
        %v4529 = vpack.c.bf16 %v4205, %v4205
        %v4530 = vpack.c.bf16 %v4206, %v4206
        %v4531 = vpack.c.bf16 %v4207, %v4207
        %v4532 = vpack.c.bf16 %v4208, %v4208
        %v4533 = vpack.c.bf16 %v4209, %v4209
        %v4534 = vpack.c.bf16 %v4210, %v4210
        %v4535 = vpack.c.bf16 %v4211, %v4211
        %v4536 = vpack.c.bf16 %v4212, %v4212
        %v4537 = vpack.c.bf16 %v4213, %v4213
        %v4538 = vpack.c.bf16 %v4214, %v4214
        %v4539 = vpack.c.bf16 %v4215, %v4215
        %v4540 = vpack.c.bf16 %v4216, %v4216
        %v4541 = vpack.c.bf16 %v4217, %v4217
        %v4542 = vpack.c.bf16 %v4218, %v4218
        %v4543 = vpack.c.bf16 %v4219, %v4219
        %v4544 = vpack.c.bf16 %v4220, %v4220
        %v4545 = vpack.c.bf16 %v4221, %v4221
        %v4546 = vpack.c.bf16 %v4222, %v4222
        %v4547 = vpack.c.bf16 %v4223, %v4223
        %v4548 = vpack.c.bf16 %v4224, %v4224
        %v4549 = vpack.c.bf16 %v4225, %v4225
        %v4550 = vpack.c.bf16 %v4226, %v4226
        %v4551 = vpack.c.bf16 %v4227, %v4227
        %v4552 = vpack.c.bf16 %v4228, %v4228
        %v4553 = vpack.c.bf16 %v4229, %v4229
        %v4554 = vpack.c.bf16 %v4230, %v4230
        %v4555 = vpack.c.bf16 %v4231, %v4231
        %v4556 = vpack.c.bf16 %v4232, %v4232
        %v4557 = vpack.c.bf16 %v4233, %v4233
        %v4558 = vpack.c.bf16 %v4234, %v4234
        %v4559 = vpack.c.bf16 %v4235, %v4235
        %v4560 = vpack.c.bf16 %v4236, %v4236
        %v4561 = vpack.c.bf16 %v4237, %v4237
        %v4562 = vpack.c.bf16 %v4238, %v4238
        %4563 = vst [vmem:[#allocation3 + $0x4] sm:$0xf] %v4527
        %4564 = vst [vmem:[#allocation3 + $0x10] sm:$0xf] %v4528
        %4565 = vst [vmem:[#allocation3 + $0x1c] sm:$0xf] %v4529
        %4566 = vst [vmem:[#allocation3 + $0x28] sm:$0xf] %v4530
        %4567 = vst [vmem:[#allocation3 + $0x34] sm:$0xf] %v4531
        %4568 = vst [vmem:[#allocation3 + $0x40] sm:$0xf] %v4532
        %4569 = vst [vmem:[#allocation3 + $0x4c] sm:$0xf] %v4533
        %4570 = vst [vmem:[#allocation3 + $0x58] sm:$0xf] %v4534
        %4571 = vst [vmem:[#allocation3 + $0x64] sm:$0xf] %v4535
        %4572 = vst [vmem:[#allocation3 + $0x70] sm:$0xf] %v4536
        %4573 = vst [vmem:[#allocation3 + $0x7c] sm:$0xf] %v4537
        %4574 = vst [vmem:[#allocation3 + $0x88] sm:$0xf] %v4538
        %4575 = vst [vmem:[#allocation3 + $0x94] sm:$0xf] %v4539
        %4576 = vst [vmem:[#allocation3 + $0xa0] sm:$0xf] %v4540
        %4577 = vst [vmem:[#allocation3 + $0xac] sm:$0xf] %v4541
        %4578 = vst [vmem:[#allocation3 + $0xb8] sm:$0xf] %v4542
        %4579 = vst [vmem:[#allocation3 + $0xc4] sm:$0xf] %v4543
        %4580 = vst [vmem:[#allocation3 + $0xd0] sm:$0xf] %v4544
        %4581 = vst [vmem:[#allocation3 + $0xdc] sm:$0xf] %v4545
        %4582 = vst [vmem:[#allocation3 + $0xe8] sm:$0xf] %v4546
        %4583 = vst [vmem:[#allocation3 + $0xf4] sm:$0xf] %v4547
        %4584 = vst [vmem:[#allocation3 + $0x100] sm:$0xf] %v4548
        %4585 = vst [vmem:[#allocation3 + $0x10c] sm:$0xf] %v4549
        %4586 = vst [vmem:[#allocation3 + $0x118] sm:$0xf] %v4550
        %4587 = vst [vmem:[#allocation3 + $0x124] sm:$0xf] %v4551
        %4588 = vst [vmem:[#allocation3 + $0x130] sm:$0xf] %v4552
        %4589 = vst [vmem:[#allocation3 + $0x13c] sm:$0xf] %v4553
        %4590 = vst [vmem:[#allocation3 + $0x148] sm:$0xf] %v4554
        %4591 = vst [vmem:[#allocation3 + $0x154] sm:$0xf] %v4555
        %4592 = vst [vmem:[#allocation3 + $0x160] sm:$0xf] %v4556
        %4593 = vst [vmem:[#allocation3 + $0x16c] sm:$0xf] %v4557
        %4594 = vst [vmem:[#allocation3 + $0x178] sm:$0xf] %v4558
        %4595 = vst [vmem:[#allocation3 + $0x184] sm:$0xf] %v4559
        %4596 = vst [vmem:[#allocation3 + $0x190] sm:$0xf] %v4560
        %4597 = vst [vmem:[#allocation3 + $0x19c] sm:$0xf] %v4561
        %4598 = vst [vmem:[#allocation3 + $0x1a8] sm:$0xf] %v4562
        %v4599 = vpack.c.bf16 %v4419, %v4419
        %v4600 = vpack.c.bf16 %v4420, %v4420
        %v4601 = vpack.c.bf16 %v4421, %v4421
        %v4602 = vpack.c.bf16 %v4422, %v4422
        %v4603 = vpack.c.bf16 %v4423, %v4423
        %v4604 = vpack.c.bf16 %v4424, %v4424
        %v4605 = vpack.c.bf16 %v4425, %v4425
        %v4606 = vpack.c.bf16 %v4426, %v4426
        %v4607 = vpack.c.bf16 %v4427, %v4427
        %v4608 = vpack.c.bf16 %v4428, %v4428
        %v4609 = vpack.c.bf16 %v4429, %v4429
        %v4610 = vpack.c.bf16 %v4430, %v4430
        %v4611 = vpack.c.bf16 %v4431, %v4431
        %v4612 = vpack.c.bf16 %v4432, %v4432
        %v4613 = vpack.c.bf16 %v4433, %v4433
        %v4614 = vpack.c.bf16 %v4434, %v4434
        %v4615 = vpack.c.bf16 %v4435, %v4435
        %v4616 = vpack.c.bf16 %v4436, %v4436
        %v4617 = vpack.c.bf16 %v4437, %v4437
        %v4618 = vpack.c.bf16 %v4438, %v4438
        %v4619 = vpack.c.bf16 %v4439, %v4439
        %v4620 = vpack.c.bf16 %v4440, %v4440
        %v4621 = vpack.c.bf16 %v4441, %v4441
        %v4622 = vpack.c.bf16 %v4442, %v4442
        %v4623 = vpack.c.bf16 %v4443, %v4443
        %v4624 = vpack.c.bf16 %v4444, %v4444
        %v4625 = vpack.c.bf16 %v4445, %v4445
        %v4626 = vpack.c.bf16 %v4446, %v4446
        %v4627 = vpack.c.bf16 %v4447, %v4447
        %v4628 = vpack.c.bf16 %v4448, %v4448
        %v4629 = vpack.c.bf16 %v4449, %v4449
        %v4630 = vpack.c.bf16 %v4450, %v4450
        %v4631 = vpack.c.bf16 %v4451, %v4451
        %v4632 = vpack.c.bf16 %v4452, %v4452
        %v4633 = vpack.c.bf16 %v4453, %v4453
        %v4634 = vpack.c.bf16 %v4454, %v4454
        %4635 = vst [vmem:[#allocation3 + $0x8] sm:$0xf] %v4599
        %4636 = vst [vmem:[#allocation3 + $0x14] sm:$0xf] %v4600
        %4637 = vst [vmem:[#allocation3 + $0x20] sm:$0xf] %v4601
        %4638 = vst [vmem:[#allocation3 + $0x2c] sm:$0xf] %v4602
        %4639 = vst [vmem:[#allocation3 + $0x38] sm:$0xf] %v4603
        %4640 = vst [vmem:[#allocation3 + $0x44] sm:$0xf] %v4604
        %4641 = vst [vmem:[#allocation3 + $0x50] sm:$0xf] %v4605
        %4642 = vst [vmem:[#allocation3 + $0x5c] sm:$0xf] %v4606
        %4643 = vst [vmem:[#allocation3 + $0x68] sm:$0xf] %v4607
        %4644 = vst [vmem:[#allocation3 + $0x74] sm:$0xf] %v4608
        %4645 = vst [vmem:[#allocation3 + $0x80] sm:$0xf] %v4609
        %4646 = vst [vmem:[#allocation3 + $0x8c] sm:$0xf] %v4610
        %4647 = vst [vmem:[#allocation3 + $0x98] sm:$0xf] %v4611
        %4648 = vst [vmem:[#allocation3 + $0xa4] sm:$0xf] %v4612
        %4649 = vst [vmem:[#allocation3 + $0xb0] sm:$0xf] %v4613
        %4650 = vst [vmem:[#allocation3 + $0xbc] sm:$0xf] %v4614
        %4651 = vst [vmem:[#allocation3 + $0xc8] sm:$0xf] %v4615
        %4652 = vst [vmem:[#allocation3 + $0xd4] sm:$0xf] %v4616
        %4653 = vst [vmem:[#allocation3 + $0xe0] sm:$0xf] %v4617
        %4654 = vst [vmem:[#allocation3 + $0xec] sm:$0xf] %v4618
        %4655 = vst [vmem:[#allocation3 + $0xf8] sm:$0xf] %v4619
        %4656 = vst [vmem:[#allocation3 + $0x104] sm:$0xf] %v4620
        %4657 = vst [vmem:[#allocation3 + $0x110] sm:$0xf] %v4621
        %4658 = vst [vmem:[#allocation3 + $0x11c] sm:$0xf] %v4622
        %4659 = vst [vmem:[#allocation3 + $0x128] sm:$0xf] %v4623
        %4660 = vst [vmem:[#allocation3 + $0x134] sm:$0xf] %v4624
        %4661 = vst [vmem:[#allocation3 + $0x140] sm:$0xf] %v4625
        %4662 = vst [vmem:[#allocation3 + $0x14c] sm:$0xf] %v4626
        %4663 = vst [vmem:[#allocation3 + $0x158] sm:$0xf] %v4627
        %4664 = vst [vmem:[#allocation3 + $0x164] sm:$0xf] %v4628
        %4665 = vst [vmem:[#allocation3 + $0x170] sm:$0xf] %v4629
        %4666 = vst [vmem:[#allocation3 + $0x17c] sm:$0xf] %v4630
        %4667 = vst [vmem:[#allocation3 + $0x188] sm:$0xf] %v4631
        %4668 = vst [vmem:[#allocation3 + $0x194] sm:$0xf] %v4632
        %4669 = vst [vmem:[#allocation3 + $0x1a0] sm:$0xf] %v4633
        %4670 = vst [vmem:[#allocation3 + $0x1ac] sm:$0xf] %v4634
        %v4671 = vld [vmem:[#allocation3] sm:$0xff]
        %v4672 = vld [vmem:[#allocation3 + $0x8] sm:$0xf]
        %v4673 = vld [vmem:[#allocation3 + $0xc] sm:$0xff]
        %v4674 = vld [vmem:[#allocation3 + $0x14] sm:$0xf]
        %v4675 = vld [vmem:[#allocation3 + $0x18] sm:$0xff]
        %v4676 = vld [vmem:[#allocation3 + $0x20] sm:$0xf]
        %v4677 = vld [vmem:[#allocation3 + $0x24] sm:$0xff]
        %v4678 = vld [vmem:[#allocation3 + $0x2c] sm:$0xf]
        %v4679 = vld [vmem:[#allocation3 + $0x30] sm:$0xff]
        %v4680 = vld [vmem:[#allocation3 + $0x38] sm:$0xf]
        %v4681 = vld [vmem:[#allocation3 + $0x3c] sm:$0xff]
        %v4682 = vld [vmem:[#allocation3 + $0x44] sm:$0xf]
        %v4683 = vld [vmem:[#allocation3 + $0x48] sm:$0xff]
        %v4684 = vld [vmem:[#allocation3 + $0x50] sm:$0xf]
        %v4685 = vld [vmem:[#allocation3 + $0x54] sm:$0xff]
        %v4686 = vld [vmem:[#allocation3 + $0x5c] sm:$0xf]
        %v4687 = vld [vmem:[#allocation3 + $0x60] sm:$0xff]
        %v4688 = vld [vmem:[#allocation3 + $0x68] sm:$0xf]
        %v4689 = vld [vmem:[#allocation3 + $0x6c] sm:$0xff]
        %v4690 = vld [vmem:[#allocation3 + $0x74] sm:$0xf]
        %v4691 = vld [vmem:[#allocation3 + $0x78] sm:$0xff]
        %v4692 = vld [vmem:[#allocation3 + $0x80] sm:$0xf]
        %v4693 = vld [vmem:[#allocation3 + $0x84] sm:$0xff]
        %v4694 = vld [vmem:[#allocation3 + $0x8c] sm:$0xf]
        %v4695 = vld [vmem:[#allocation3 + $0x90] sm:$0xff]
        %v4696 = vld [vmem:[#allocation3 + $0x98] sm:$0xf]
        %v4697 = vld [vmem:[#allocation3 + $0x9c] sm:$0xff]
        %v4698 = vld [vmem:[#allocation3 + $0xa4] sm:$0xf]
        %v4699 = vld [vmem:[#allocation3 + $0xa8] sm:$0xff]
        %v4700 = vld [vmem:[#allocation3 + $0xb0] sm:$0xf]
        %v4701 = vld [vmem:[#allocation3 + $0xb4] sm:$0xff]
        %v4702 = vld [vmem:[#allocation3 + $0xbc] sm:$0xf]
        %v4703 = vld [vmem:[#allocation3 + $0xc0] sm:$0xff]
        %v4704 = vld [vmem:[#allocation3 + $0xc8] sm:$0xf]
        %v4705 = vld [vmem:[#allocation3 + $0xcc] sm:$0xff]
        %v4706 = vld [vmem:[#allocation3 + $0xd4] sm:$0xf]
        %v4707 = vld [vmem:[#allocation3 + $0xd8] sm:$0xff]
        %v4708 = vld [vmem:[#allocation3 + $0xe0] sm:$0xf]
        %v4709 = vld [vmem:[#allocation3 + $0xe4] sm:$0xff]
        %v4710 = vld [vmem:[#allocation3 + $0xec] sm:$0xf]
        %v4711 = vld [vmem:[#allocation3 + $0xf0] sm:$0xff]
        %v4712 = vld [vmem:[#allocation3 + $0xf8] sm:$0xf]
        %v4713 = vld [vmem:[#allocation3 + $0xfc] sm:$0xff]
        %v4714 = vld [vmem:[#allocation3 + $0x104] sm:$0xf]
        %v4715 = vld [vmem:[#allocation3 + $0x108] sm:$0xff]
        %v4716 = vld [vmem:[#allocation3 + $0x110] sm:$0xf]
        %v4717 = vld [vmem:[#allocation3 + $0x114] sm:$0xff]
        %v4718 = vld [vmem:[#allocation3 + $0x11c] sm:$0xf]
        %v4719 = vld [vmem:[#allocation3 + $0x120] sm:$0xff]
        %v4720 = vld [vmem:[#allocation3 + $0x128] sm:$0xf]
        %v4721 = vld [vmem:[#allocation3 + $0x12c] sm:$0xff]
        %v4722 = vld [vmem:[#allocation3 + $0x134] sm:$0xf]
        %v4723 = vld [vmem:[#allocation3 + $0x138] sm:$0xff]
        %v4724 = vld [vmem:[#allocation3 + $0x140] sm:$0xf]
        %v4725 = vld [vmem:[#allocation3 + $0x144] sm:$0xff]
        %v4726 = vld [vmem:[#allocation3 + $0x14c] sm:$0xf]
        %v4727 = vld [vmem:[#allocation3 + $0x150] sm:$0xff]
        %v4728 = vld [vmem:[#allocation3 + $0x158] sm:$0xf]
        %v4729 = vld [vmem:[#allocation3 + $0x15c] sm:$0xff]
        %v4730 = vld [vmem:[#allocation3 + $0x164] sm:$0xf]
        %v4731 = vld [vmem:[#allocation3 + $0x168] sm:$0xff]
        %v4732 = vld [vmem:[#allocation3 + $0x170] sm:$0xf]
        %v4733 = vld [vmem:[#allocation3 + $0x174] sm:$0xff]
        %v4734 = vld [vmem:[#allocation3 + $0x17c] sm:$0xf]
        %s4735 = scalar_lea.vmem [#allocation4], 576
        %v4736 = vld [vmem:[%s4735] sm:$0xf]
        %v4737 = vld [vmem:[%s4735 + $0x4] sm:$0xf]
        %v4738 = vld [vmem:[%s4735 + $0x8] sm:$0xf]
        %v4739 = vld [vmem:[%s4735 + $0xc] sm:$0xf]
        %v4740 = vld [vmem:[%s4735 + $0x10] sm:$0xf]
        %v4741 = vld [vmem:[%s4735 + $0x14] sm:$0xf]
        %v4742 = vld [vmem:[%s4735 + $0x18] sm:$0xf]
        %v4743 = vld [vmem:[%s4735 + $0x1c] sm:$0xf]
        %v4744 = vld [vmem:[%s4735 + $0x20] sm:$0xf]
        %v4745 = vld [vmem:[%s4735 + $0x24] sm:$0xf]
        %v4746 = vld [vmem:[%s4735 + $0x28] sm:$0xf]
        %v4747 = vld [vmem:[%s4735 + $0x2c] sm:$0xf]
        %v4748 = vld [vmem:[%s4735 + $0x30] sm:$0xf]
        %v4749 = vld [vmem:[%s4735 + $0x34] sm:$0xf]
        %v4750 = vld [vmem:[%s4735 + $0x38] sm:$0xf]
        %v4751 = vld [vmem:[%s4735 + $0x3c] sm:$0xf]
        %v4752 = vld [vmem:[%s4735 + $0x40] sm:$0xf]
        %v4753 = vld [vmem:[%s4735 + $0x44] sm:$0xf]
        %v4754 = vld [vmem:[%s4735 + $0x48] sm:$0xf]
        %v4755 = vld [vmem:[%s4735 + $0x4c] sm:$0xf]
        %v4756 = vld [vmem:[%s4735 + $0x50] sm:$0xf]
        %v4757 = vld [vmem:[%s4735 + $0x54] sm:$0xf]
        %v4758 = vld [vmem:[%s4735 + $0x58] sm:$0xf]
        %v4759 = vld [vmem:[%s4735 + $0x5c] sm:$0xf]
        %v4760 = vld [vmem:[%s4735 + $0x60] sm:$0xf]
        %v4761 = vld [vmem:[%s4735 + $0x64] sm:$0xf]
        %v4762 = vld [vmem:[%s4735 + $0x68] sm:$0xf]
        %v4763 = vld [vmem:[%s4735 + $0x6c] sm:$0xf]
        %v4764 = vld [vmem:[%s4735 + $0x70] sm:$0xf]
        %v4765 = vld [vmem:[%s4735 + $0x74] sm:$0xf]
        %v4766 = vld [vmem:[%s4735 + $0x78] sm:$0xf]
        %v4767 = vld [vmem:[%s4735 + $0x7c] sm:$0xf]
        %v4768 = vld [vmem:[%s4735 + $0x80] sm:$0xf]
        %v4769 = vld [vmem:[%s4735 + $0x84] sm:$0xf]
        %v4770 = vld [vmem:[%s4735 + $0x88] sm:$0xf]
        %v4771 = vld [vmem:[%s4735 + $0x8c] sm:$0xf]
        %v4772 = vld [vmem:[%s4735 + $0x90] sm:$0xf]
        %v4773 = vld [vmem:[%s4735 + $0x94] sm:$0xf]
        %v4774 = vld [vmem:[%s4735 + $0x98] sm:$0xf]
        %v4775 = vld [vmem:[%s4735 + $0x9c] sm:$0xf]
        %v4776 = vld [vmem:[%s4735 + $0xa0] sm:$0xf]
        %v4777 = vld [vmem:[%s4735 + $0xa4] sm:$0xf]
        %v4778 = vld [vmem:[%s4735 + $0xa8] sm:$0xf]
        %v4779 = vld [vmem:[%s4735 + $0xac] sm:$0xf]
        %v4780 = vld [vmem:[%s4735 + $0xb0] sm:$0xf]
        %v4781 = vld [vmem:[%s4735 + $0xb4] sm:$0xf]
        %v4782 = vld [vmem:[%s4735 + $0xb8] sm:$0xf]
        %v4783 = vld [vmem:[%s4735 + $0xbc] sm:$0xf]
        %v4784 = vld [vmem:[#allocation3 + $0x180] sm:$0xff]
        %v4785 = vld [vmem:[#allocation3 + $0x188] sm:$0xf]
        %v4786 = vld [vmem:[#allocation3 + $0x18c] sm:$0xff]
        %v4787 = vld [vmem:[#allocation3 + $0x194] sm:$0xf]
        %s4788 = scalar_lea.vmem [#allocation4], 768
        %v4789 = vld [vmem:[%s4788] sm:$0xf]
        %v4790 = vld [vmem:[%s4788 + $0x4] sm:$0xf]
        %v4791 = vld [vmem:[%s4788 + $0x8] sm:$0xf]
        %v4792 = vld [vmem:[%s4788 + $0xc] sm:$0xf]
        %v4793 = vld [vmem:[%s4788 + $0x10] sm:$0xf]
        %v4794 = vld [vmem:[%s4788 + $0x14] sm:$0xf]
        %v4795 = vld [vmem:[%s4788 + $0x18] sm:$0xf]
        %v4796 = vld [vmem:[%s4788 + $0x1c] sm:$0xf]
        %v4797 = vld [vmem:[%s4788 + $0x20] sm:$0xf]
        %v4798 = vld [vmem:[%s4788 + $0x24] sm:$0xf]
        %v4799 = vld [vmem:[%s4788 + $0x28] sm:$0xf]
        %v4800 = vld [vmem:[%s4788 + $0x2c] sm:$0xf]
        %v4801 = vld [vmem:[%s4788 + $0x30] sm:$0xf]
        %v4802 = vld [vmem:[%s4788 + $0x34] sm:$0xf]
        %v4803 = vld [vmem:[%s4788 + $0x38] sm:$0xf]
        %v4804 = vld [vmem:[%s4788 + $0x3c] sm:$0xf]
        %v4805 = vld [vmem:[%s4788 + $0x40] sm:$0xf]
        %v4806 = vld [vmem:[%s4788 + $0x44] sm:$0xf]
        %v4807 = vld [vmem:[%s4788 + $0x48] sm:$0xf]
        %v4808 = vld [vmem:[%s4788 + $0x4c] sm:$0xf]
        %v4809 = vld [vmem:[%s4788 + $0x50] sm:$0xf]
        %v4810 = vld [vmem:[%s4788 + $0x54] sm:$0xf]
        %v4811 = vld [vmem:[%s4788 + $0x58] sm:$0xf]
        %v4812 = vld [vmem:[%s4788 + $0x5c] sm:$0xf]
        %v4813 = vld [vmem:[%s4788 + $0x60] sm:$0xf]
        %v4814 = vld [vmem:[%s4788 + $0x64] sm:$0xf]
        %v4815 = vld [vmem:[%s4788 + $0x68] sm:$0xf]
        %v4816 = vld [vmem:[%s4788 + $0x6c] sm:$0xf]
        %v4817 = vld [vmem:[%s4788 + $0x70] sm:$0xf]
        %v4818 = vld [vmem:[%s4788 + $0x74] sm:$0xf]
        %v4819 = vld [vmem:[%s4788 + $0x78] sm:$0xf]
        %v4820 = vld [vmem:[%s4788 + $0x7c] sm:$0xf]
        %v4821 = vld [vmem:[%s4788 + $0x80] sm:$0xf]
        %v4822 = vld [vmem:[%s4788 + $0x84] sm:$0xf]
        %v4823 = vld [vmem:[%s4788 + $0x88] sm:$0xf]
        %v4824 = vld [vmem:[%s4788 + $0x8c] sm:$0xf]
        %v4825 = vld [vmem:[%s4788 + $0x90] sm:$0xf]
        %v4826 = vld [vmem:[%s4788 + $0x94] sm:$0xf]
        %v4827 = vld [vmem:[%s4788 + $0x98] sm:$0xf]
        %v4828 = vld [vmem:[%s4788 + $0x9c] sm:$0xf]
        %v4829 = vld [vmem:[%s4788 + $0xa0] sm:$0xf]
        %v4830 = vld [vmem:[%s4788 + $0xa4] sm:$0xf]
        %v4831 = vld [vmem:[%s4788 + $0xa8] sm:$0xf]
        %v4832 = vld [vmem:[%s4788 + $0xac] sm:$0xf]
        %v4833 = vld [vmem:[%s4788 + $0xb0] sm:$0xf]
        %v4834 = vld [vmem:[%s4788 + $0xb4] sm:$0xf]
        %v4835 = vld [vmem:[%s4788 + $0xb8] sm:$0xf]
        %v4836 = vld [vmem:[%s4788 + $0xbc] sm:$0xf]
        %v4901 = vunpack.c.l.b16 %v4675
        %v4902 = vunpack.c.h.b16 %v4675
        %v4903 = vunpack.c.l.b16 %v4676
        %v4904 = vunpack.c.l.b16 %v4677
        %v4905 = vunpack.c.h.b16 %v4677
        %v4906 = vunpack.c.l.b16 %v4678
        %v4907 = vunpack.c.l.b16 %v4679
        %v4908 = vunpack.c.h.b16 %v4679
        %v4909 = vunpack.c.l.b16 %v4680
        %v4910 = vunpack.c.l.b16 %v4681
        %v4911 = vunpack.c.h.b16 %v4681
        %v4912 = vunpack.c.l.b16 %v4682
        %v4913 = vunpack.c.l.b16 %v4683
        %v4914 = vunpack.c.h.b16 %v4683
        %v4915 = vunpack.c.l.b16 %v4684
        %v4916 = vunpack.c.l.b16 %v4685
        %v4917 = vunpack.c.h.b16 %v4685
        %v4918 = vunpack.c.l.b16 %v4686
        %v4919 = vunpack.c.l.b16 %v4687
        %v4920 = vunpack.c.h.b16 %v4687
        %v4921 = vunpack.c.l.b16 %v4688
        %v4922 = vunpack.c.l.b16 %v4689
        %v4923 = vunpack.c.h.b16 %v4689
        %v4924 = vunpack.c.l.b16 %v4690
        %v4925 = vunpack.c.l.b16 %v4691
        %v4926 = vunpack.c.h.b16 %v4691
        %v4927 = vunpack.c.l.b16 %v4692
        %v4928 = vunpack.c.l.b16 %v4693
        %v4929 = vunpack.c.h.b16 %v4693
        %v4930 = vunpack.c.l.b16 %v4694
        %v4931 = vunpack.c.l.b16 %v4695
        %v4932 = vunpack.c.h.b16 %v4695
        %v4933 = vunpack.c.l.b16 %v4696
        %v4934 = vunpack.c.l.b16 %v4697
        %v4935 = vunpack.c.h.b16 %v4697
        %v4936 = vunpack.c.l.b16 %v4698
        %v4937 = vunpack.c.l.b16 %v4699
        %v4938 = vunpack.c.h.b16 %v4699
        %v4939 = vunpack.c.l.b16 %v4700
        %v4940 = vunpack.c.l.b16 %v4701
        %v4941 = vunpack.c.h.b16 %v4701
        %v4942 = vunpack.c.l.b16 %v4702
        %v4943 = vunpack.c.l.b16 %v4703
        %v4944 = vunpack.c.h.b16 %v4703
        %v4945 = vunpack.c.l.b16 %v4704
        %v4946 = vunpack.c.l.b16 %v4705
        %v4947 = vunpack.c.h.b16 %v4705
        %v4948 = vunpack.c.l.b16 %v4706
        %v4949 = vunpack.c.l.b16 %v4707
        %v4950 = vunpack.c.h.b16 %v4707
        %v4951 = vunpack.c.l.b16 %v4708
        %v4952 = vunpack.c.l.b16 %v4709
        %v4953 = vunpack.c.h.b16 %v4709
        %v4954 = vunpack.c.l.b16 %v4710
        %v4955 = vunpack.c.l.b16 %v4711
        %v4956 = vunpack.c.h.b16 %v4711
        %v4957 = vunpack.c.l.b16 %v4712
        %v4958 = vunpack.c.l.b16 %v4713
        %v4959 = vunpack.c.h.b16 %v4713
        %v4960 = vunpack.c.l.b16 %v4714
        %v4961 = vunpack.c.l.b16 %v4715
        %v4962 = vunpack.c.h.b16 %v4715
        %v4963 = vunpack.c.l.b16 %v4716
        %v4964 = vunpack.c.l.b16 %v4717
        %v4965 = vunpack.c.h.b16 %v4717
        %v4966 = vunpack.c.l.b16 %v4718
        %v4967 = vunpack.c.l.b16 %v4719
        %v4968 = vunpack.c.h.b16 %v4719
        %v4969 = vunpack.c.l.b16 %v4720
        %v4970 = vunpack.c.l.b16 %v4721
        %v4971 = vunpack.c.h.b16 %v4721
        %v4972 = vunpack.c.l.b16 %v4722
        %v4973 = vunpack.c.l.b16 %v4723
        %v4974 = vunpack.c.h.b16 %v4723
        %v4975 = vunpack.c.l.b16 %v4724
        %v4976 = vunpack.c.l.b16 %v4725
        %v4977 = vunpack.c.h.b16 %v4725
        %v4978 = vunpack.c.l.b16 %v4726
        %v4979 = vunpack.c.l.b16 %v4727
        %v4980 = vunpack.c.h.b16 %v4727
        %v4981 = vunpack.c.l.b16 %v4728
        %v4982 = vunpack.c.l.b16 %v4729
        %v4983 = vunpack.c.h.b16 %v4729
        %v4984 = vunpack.c.l.b16 %v4730
        %v4985 = vunpack.c.l.b16 %v4731
        %v4986 = vunpack.c.h.b16 %v4731
        %v4987 = vunpack.c.l.b16 %v4732
        %v4988 = vunpack.c.l.b16 %v4733
        %v4989 = vunpack.c.h.b16 %v4733
        %v4990 = vunpack.c.l.b16 %v4734
        %v4991 = vunpack.c.l.b16 %v4784
        %v4992 = vunpack.c.h.b16 %v4784
        %v4993 = vunpack.c.l.b16 %v4785
        %v4994 = vunpack.c.l.b16 %v4786
        %v4995 = vunpack.c.h.b16 %v4786
        %v4996 = vunpack.c.l.b16 %v4787
        %v4997 = vpack.c.b16 %v4904, %v4901
        %v4998 = vpack.c.b16 %v4905, %v4902
        %v4999 = vpack.c.b16 %v4906, %v4903
        %v5000 = vpack.c.b16 %v4910, %v4907
        %v5001 = vpack.c.b16 %v4911, %v4908
        %v5002 = vpack.c.b16 %v4912, %v4909
        %v5003 = vpack.c.b16 %v4916, %v4913
        %v5004 = vpack.c.b16 %v4917, %v4914
        %v5005 = vpack.c.b16 %v4918, %v4915
        %v5006 = vpack.c.b16 %v4922, %v4919
        %v5007 = vpack.c.b16 %v4923, %v4920
        %v5008 = vpack.c.b16 %v4924, %v4921
        %v5009 = vpack.c.b16 %v4928, %v4925
        %v5010 = vpack.c.b16 %v4929, %v4926
        %v5011 = vpack.c.b16 %v4930, %v4927
        %v5012 = vpack.c.b16 %v4934, %v4931
        %v5013 = vpack.c.b16 %v4935, %v4932
        %v5014 = vpack.c.b16 %v4936, %v4933
        %v5015 = vpack.c.b16 %v4940, %v4937
        %v5016 = vpack.c.b16 %v4941, %v4938
        %v5017 = vpack.c.b16 %v4942, %v4939
        %v5018 = vpack.c.b16 %v4946, %v4943
        %v5019 = vpack.c.b16 %v4947, %v4944
        %v5020 = vpack.c.b16 %v4948, %v4945
        %v5021 = vpack.c.b16 %v4952, %v4949
        %v5022 = vpack.c.b16 %v4953, %v4950
        %v5023 = vpack.c.b16 %v4954, %v4951
        %v5024 = vpack.c.b16 %v4958, %v4955
        %v5025 = vpack.c.b16 %v4959, %v4956
        %v5026 = vpack.c.b16 %v4960, %v4957
        %v5027 = vpack.c.b16 %v4964, %v4961
        %v5028 = vpack.c.b16 %v4965, %v4962
        %v5029 = vpack.c.b16 %v4966, %v4963
        %v5030 = vpack.c.b16 %v4970, %v4967
        %v5031 = vpack.c.b16 %v4971, %v4968
        %v5032 = vpack.c.b16 %v4972, %v4969
        %v5033 = vpack.c.b16 %v4976, %v4973
        %v5034 = vpack.c.b16 %v4977, %v4974
        %v5035 = vpack.c.b16 %v4978, %v4975
        %v5036 = vpack.c.b16 %v4982, %v4979
        %v5037 = vpack.c.b16 %v4983, %v4980
        %v5038 = vpack.c.b16 %v4984, %v4981
        %v5039 = vpack.c.b16 %v4988, %v4985
        %v5040 = vpack.c.b16 %v4989, %v4986
        %v5041 = vpack.c.b16 %v4990, %v4987
        %v5042 = vpack.c.b16 %v4994, %v4991
        %v5043 = vpack.c.b16 %v4995, %v4992
        %v5044 = vpack.c.b16 %v4996, %v4993
        %v5141 = vunpack.c.l.b16 %v4789
        %v5142 = vunpack.c.l.b16 %v4790
        %v5143 = vunpack.c.l.b16 %v4791
        %v5144 = vunpack.c.l.b16 %v4792
        %v5145 = vunpack.c.l.b16 %v4793
        %v5146 = vunpack.c.l.b16 %v4794
        %v5147 = vunpack.c.l.b16 %v4795
        %v5148 = vunpack.c.l.b16 %v4796
        %v5149 = vunpack.c.l.b16 %v4797
        %v5150 = vunpack.c.l.b16 %v4798
        %v5151 = vunpack.c.l.b16 %v4799
        %v5152 = vunpack.c.l.b16 %v4800
        %v5153 = vunpack.c.l.b16 %v4801
        %v5154 = vunpack.c.l.b16 %v4802
        %v5155 = vunpack.c.l.b16 %v4803
        %v5156 = vunpack.c.l.b16 %v4804
        %v5157 = vunpack.c.l.b16 %v4805
        %v5158 = vunpack.c.l.b16 %v4806
        %v5159 = vunpack.c.l.b16 %v4807
        %v5160 = vunpack.c.l.b16 %v4808
        %v5161 = vunpack.c.l.b16 %v4809
        %v5162 = vunpack.c.l.b16 %v4810
        %v5163 = vunpack.c.l.b16 %v4811
        %v5164 = vunpack.c.l.b16 %v4812
        %v5165 = vunpack.c.l.b16 %v4813
        %v5166 = vunpack.c.l.b16 %v4814
        %v5167 = vunpack.c.l.b16 %v4815
        %v5168 = vunpack.c.l.b16 %v4816
        %v5169 = vunpack.c.l.b16 %v4817
        %v5170 = vunpack.c.l.b16 %v4818
        %v5171 = vunpack.c.l.b16 %v4819
        %v5172 = vunpack.c.l.b16 %v4820
        %v5173 = vunpack.c.l.b16 %v4821
        %v5174 = vunpack.c.l.b16 %v4822
        %v5175 = vunpack.c.l.b16 %v4823
        %v5176 = vunpack.c.l.b16 %v4824
        %v5177 = vunpack.c.l.b16 %v4825
        %v5178 = vunpack.c.l.b16 %v4826
        %v5179 = vunpack.c.l.b16 %v4827
        %v5180 = vunpack.c.l.b16 %v4828
        %v5181 = vunpack.c.l.b16 %v4829
        %v5182 = vunpack.c.l.b16 %v4830
        %v5183 = vunpack.c.l.b16 %v4831
        %v5184 = vunpack.c.l.b16 %v4832
        %v5185 = vunpack.c.l.b16 %v4833
        %v5186 = vunpack.c.l.b16 %v4834
        %v5187 = vunpack.c.l.b16 %v4835
        %v5188 = vunpack.c.l.b16 %v4836
        %v5189 = vpack.c.b16 %v5142, %v5141
        %v5190 = vpack.c.b16 %v5144, %v5143
        %v5191 = vpack.c.b16 %v5146, %v5145
        %v5192 = vpack.c.b16 %v5148, %v5147
        %v5193 = vpack.c.b16 %v5150, %v5149
        %v5194 = vpack.c.b16 %v5152, %v5151
        %v5195 = vpack.c.b16 %v5154, %v5153
        %v5196 = vpack.c.b16 %v5156, %v5155
        %v5197 = vpack.c.b16 %v5158, %v5157
        %v5198 = vpack.c.b16 %v5160, %v5159
        %v5199 = vpack.c.b16 %v5162, %v5161
        %v5200 = vpack.c.b16 %v5164, %v5163
        %v5201 = vpack.c.b16 %v5166, %v5165
        %v5202 = vpack.c.b16 %v5168, %v5167
        %v5203 = vpack.c.b16 %v5170, %v5169
        %v5204 = vpack.c.b16 %v5172, %v5171
        %v5205 = vpack.c.b16 %v5174, %v5173
        %v5206 = vpack.c.b16 %v5176, %v5175
        %v5207 = vpack.c.b16 %v5178, %v5177
        %v5208 = vpack.c.b16 %v5180, %v5179
        %v5209 = vpack.c.b16 %v5182, %v5181
        %v5210 = vpack.c.b16 %v5184, %v5183
        %v5211 = vpack.c.b16 %v5186, %v5185
        %v5212 = vpack.c.b16 %v5188, %v5187
        %5237 = vmatpush.bf16.msra.mxu0 %v5196
        %5238 = vmatpush.bf16.msra.mxu0 %v5195
        %5239 = vmatpush.bf16.msra.mxu0 %v5194
        %5240 = vmatpush.bf16.msra.mxu0 %v5193
        %5241 = vmatpush.bf16.msra.mxu0 %v5192
        %5242 = vmatpush.bf16.msra.mxu0 %v5191
        %5243 = vmatpush.bf16.msra.mxu0 %v5190
        %5244 = vmatpush.bf16.msra.mxu0 %v5189
        %5245 = vmatmul.bf16.gmra.mxu0 %v4997
        %v5246 = vpop.f32.mrf.mxu0
        %v5247 = vadd.f32 0.0, %v5246
        %v5248 = vpop.f32.mrf.mxu0
        %v5249 = vadd.f32 0.0, %v5248
        %5250 = vmatmul.bf16.gmra.mxu0 %v5000
        %v5251 = vpop.f32.mrf.mxu0
        %v5252 = vadd.f32 0.0, %v5251
        %v5253 = vpop.f32.mrf.mxu0
        %v5254 = vadd.f32 0.0, %v5253
        %5255 = vmatmul.bf16.gmra.mxu0 %v5003
        %v5256 = vpop.f32.mrf.mxu0
        %v5257 = vadd.f32 0.0, %v5256
        %v5258 = vpop.f32.mrf.mxu0
        %v5259 = vadd.f32 0.0, %v5258
        %5260 = vmatmul.bf16.gmra.mxu0 %v5006
        %v5261 = vpop.f32.mrf.mxu0
        %v5262 = vadd.f32 0.0, %v5261
        %v5263 = vpop.f32.mrf.mxu0
        %v5264 = vadd.f32 0.0, %v5263
        %5265 = vmatmul.bf16.gmra.mxu0 %v5009
        %v5266 = vpop.f32.mrf.mxu0
        %v5267 = vadd.f32 0.0, %v5266
        %v5268 = vpop.f32.mrf.mxu0
        %v5269 = vadd.f32 0.0, %v5268
        %5270 = vmatmul.bf16.gmra.mxu0 %v5012
        %v5271 = vpop.f32.mrf.mxu0
        %v5272 = vadd.f32 0.0, %v5271
        %v5273 = vpop.f32.mrf.mxu0
        %v5274 = vadd.f32 0.0, %v5273
        %5275 = vmatmul.bf16.gmra.mxu0 %v5015
        %v5276 = vpop.f32.mrf.mxu0
        %v5277 = vadd.f32 0.0, %v5276
        %v5278 = vpop.f32.mrf.mxu0
        %v5279 = vadd.f32 0.0, %v5278
        %5280 = vmatmul.bf16.gmra.mxu0 %v5018
        %v5281 = vpop.f32.mrf.mxu0
        %v5282 = vadd.f32 0.0, %v5281
        %v5283 = vpop.f32.mrf.mxu0
        %v5284 = vadd.f32 0.0, %v5283
        %5285 = vmatmul.bf16.gmra.mxu0 %v5021
        %v5286 = vpop.f32.mrf.mxu0
        %v5287 = vadd.f32 0.0, %v5286
        %v5288 = vpop.f32.mrf.mxu0
        %v5289 = vadd.f32 0.0, %v5288
        %5290 = vmatmul.bf16.gmra.mxu0 %v5024
        %v5291 = vpop.f32.mrf.mxu0
        %v5292 = vadd.f32 0.0, %v5291
        %v5293 = vpop.f32.mrf.mxu0
        %v5294 = vadd.f32 0.0, %v5293
        %5295 = vmatmul.bf16.gmra.mxu0 %v5027
        %v5296 = vpop.f32.mrf.mxu0
        %v5297 = vadd.f32 0.0, %v5296
        %v5298 = vpop.f32.mrf.mxu0
        %v5299 = vadd.f32 0.0, %v5298
        %5300 = vmatmul.bf16.gmra.mxu0 %v5030
        %v5301 = vpop.f32.mrf.mxu0
        %v5302 = vadd.f32 0.0, %v5301
        %v5303 = vpop.f32.mrf.mxu0
        %v5304 = vadd.f32 0.0, %v5303
        %5305 = vmatmul.bf16.gmra.mxu0 %v5033
        %v5306 = vpop.f32.mrf.mxu0
        %v5307 = vadd.f32 0.0, %v5306
        %v5308 = vpop.f32.mrf.mxu0
        %v5309 = vadd.f32 0.0, %v5308
        %5310 = vmatmul.bf16.gmra.mxu0 %v5036
        %v5311 = vpop.f32.mrf.mxu0
        %v5312 = vadd.f32 0.0, %v5311
        %v5313 = vpop.f32.mrf.mxu0
        %v5314 = vadd.f32 0.0, %v5313
        %5315 = vmatmul.bf16.gmra.mxu0 %v5039
        %v5316 = vpop.f32.mrf.mxu0
        %v5317 = vadd.f32 0.0, %v5316
        %v5318 = vpop.f32.mrf.mxu0
        %v5319 = vadd.f32 0.0, %v5318
        %5320 = vmatmul.bf16.gmra.mxu0 %v5042
        %v5321 = vpop.f32.mrf.mxu0
        %v5322 = vadd.f32 0.0, %v5321
        %v5323 = vpop.f32.mrf.mxu0
        %v5324 = vadd.f32 0.0, %v5323
        %5325 = vdwg.mxu0
        %5326 = vmatpush.bf16.msra.mxu0 %v5204
        %5327 = vmatpush.bf16.msra.mxu0 %v5203
        %5328 = vmatpush.bf16.msra.mxu0 %v5202
        %5329 = vmatpush.bf16.msra.mxu0 %v5201
        %5330 = vmatpush.bf16.msra.mxu0 %v5200
        %5331 = vmatpush.bf16.msra.mxu0 %v5199
        %5332 = vmatpush.bf16.msra.mxu0 %v5198
        %5333 = vmatpush.bf16.msra.mxu0 %v5197
        %5334 = vmatmul.bf16.gmra.mxu0 %v4998
        %v5335 = vpop.f32.mrf.mxu0
        %v5336 = vadd.f32 %v5247, %v5335
        %v5337 = vpop.f32.mrf.mxu0
        %v5338 = vadd.f32 %v5249, %v5337
        %5339 = vmatmul.bf16.gmra.mxu0 %v5001
        %v5340 = vpop.f32.mrf.mxu0
        %v5341 = vadd.f32 %v5252, %v5340
        %v5342 = vpop.f32.mrf.mxu0
        %v5343 = vadd.f32 %v5254, %v5342
        %5344 = vmatmul.bf16.gmra.mxu0 %v5004
        %v5345 = vpop.f32.mrf.mxu0
        %v5346 = vadd.f32 %v5257, %v5345
        %v5347 = vpop.f32.mrf.mxu0
        %v5348 = vadd.f32 %v5259, %v5347
        %5349 = vmatmul.bf16.gmra.mxu0 %v5007
        %v5350 = vpop.f32.mrf.mxu0
        %v5351 = vadd.f32 %v5262, %v5350
        %v5352 = vpop.f32.mrf.mxu0
        %v5353 = vadd.f32 %v5264, %v5352
        %5354 = vmatmul.bf16.gmra.mxu0 %v5010
        %v5355 = vpop.f32.mrf.mxu0
        %v5356 = vadd.f32 %v5267, %v5355
        %v5357 = vpop.f32.mrf.mxu0
        %v5358 = vadd.f32 %v5269, %v5357
        %5359 = vmatmul.bf16.gmra.mxu0 %v5013
        %v5360 = vpop.f32.mrf.mxu0
        %v5361 = vadd.f32 %v5272, %v5360
        %v5362 = vpop.f32.mrf.mxu0
        %v5363 = vadd.f32 %v5274, %v5362
        %5364 = vmatmul.bf16.gmra.mxu0 %v5016
        %v5365 = vpop.f32.mrf.mxu0
        %v5366 = vadd.f32 %v5277, %v5365
        %v5367 = vpop.f32.mrf.mxu0
        %v5368 = vadd.f32 %v5279, %v5367
        %5369 = vmatmul.bf16.gmra.mxu0 %v5019
        %v5370 = vpop.f32.mrf.mxu0
        %v5371 = vadd.f32 %v5282, %v5370
        %v5372 = vpop.f32.mrf.mxu0
        %v5373 = vadd.f32 %v5284, %v5372
        %5374 = vmatmul.bf16.gmra.mxu0 %v5022
        %v5375 = vpop.f32.mrf.mxu0
        %v5376 = vadd.f32 %v5287, %v5375
        %v5377 = vpop.f32.mrf.mxu0
        %v5378 = vadd.f32 %v5289, %v5377
        %5379 = vmatmul.bf16.gmra.mxu0 %v5025
        %v5380 = vpop.f32.mrf.mxu0
        %v5381 = vadd.f32 %v5292, %v5380
        %v5382 = vpop.f32.mrf.mxu0
        %v5383 = vadd.f32 %v5294, %v5382
        %5384 = vmatmul.bf16.gmra.mxu0 %v5028
        %v5385 = vpop.f32.mrf.mxu0
        %v5386 = vadd.f32 %v5297, %v5385
        %v5387 = vpop.f32.mrf.mxu0
        %v5388 = vadd.f32 %v5299, %v5387
        %5389 = vmatmul.bf16.gmra.mxu0 %v5031
        %v5390 = vpop.f32.mrf.mxu0
        %v5391 = vadd.f32 %v5302, %v5390
        %v5392 = vpop.f32.mrf.mxu0
        %v5393 = vadd.f32 %v5304, %v5392
        %5394 = vmatmul.bf16.gmra.mxu0 %v5034
        %v5395 = vpop.f32.mrf.mxu0
        %v5396 = vadd.f32 %v5307, %v5395
        %v5397 = vpop.f32.mrf.mxu0
        %v5398 = vadd.f32 %v5309, %v5397
        %5399 = vmatmul.bf16.gmra.mxu0 %v5037
        %v5400 = vpop.f32.mrf.mxu0
        %v5401 = vadd.f32 %v5312, %v5400
        %v5402 = vpop.f32.mrf.mxu0
        %v5403 = vadd.f32 %v5314, %v5402
        %5404 = vmatmul.bf16.gmra.mxu0 %v5040
        %v5405 = vpop.f32.mrf.mxu0
        %v5406 = vadd.f32 %v5317, %v5405
        %v5407 = vpop.f32.mrf.mxu0
        %v5408 = vadd.f32 %v5319, %v5407
        %5409 = vmatmul.bf16.gmra.mxu0 %v5043
        %v5410 = vpop.f32.mrf.mxu0
        %v5411 = vadd.f32 %v5322, %v5410
        %v5412 = vpop.f32.mrf.mxu0
        %v5413 = vadd.f32 %v5324, %v5412
        %5414 = vdwg.mxu0
        %5415 = vmatpush.bf16.msra.mxu0 %v5212
        %5416 = vmatpush.bf16.msra.mxu0 %v5211
        %5417 = vmatpush.bf16.msra.mxu0 %v5210
        %5418 = vmatpush.bf16.msra.mxu0 %v5209
        %5419 = vmatpush.bf16.msra.mxu0 %v5208
        %5420 = vmatpush.bf16.msra.mxu0 %v5207
        %5421 = vmatpush.bf16.msra.mxu0 %v5206
        %5422 = vmatpush.bf16.msra.mxu0 %v5205
        %5423 = vmatmul.bf16.gmra.mxu0 %v4999
        %v5424 = vpop.f32.mrf.mxu0
        %v5425 = vadd.f32 %v5336, %v5424
        %v5426 = vpop.f32.mrf.mxu0
        %v5427 = vadd.f32 %v5338, %v5426
        %5428 = vmatmul.bf16.gmra.mxu0 %v5002
        %v5429 = vpop.f32.mrf.mxu0
        %v5430 = vadd.f32 %v5341, %v5429
        %v5431 = vpop.f32.mrf.mxu0
        %v5432 = vadd.f32 %v5343, %v5431
        %5433 = vmatmul.bf16.gmra.mxu0 %v5005
        %v5434 = vpop.f32.mrf.mxu0
        %v5435 = vadd.f32 %v5346, %v5434
        %v5436 = vpop.f32.mrf.mxu0
        %v5437 = vadd.f32 %v5348, %v5436
        %5438 = vmatmul.bf16.gmra.mxu0 %v5008
        %v5439 = vpop.f32.mrf.mxu0
        %v5440 = vadd.f32 %v5351, %v5439
        %v5441 = vpop.f32.mrf.mxu0
        %v5442 = vadd.f32 %v5353, %v5441
        %5443 = vmatmul.bf16.gmra.mxu0 %v5011
        %v5444 = vpop.f32.mrf.mxu0
        %v5445 = vadd.f32 %v5356, %v5444
        %v5446 = vpop.f32.mrf.mxu0
        %v5447 = vadd.f32 %v5358, %v5446
        %5448 = vmatmul.bf16.gmra.mxu0 %v5014
        %v5449 = vpop.f32.mrf.mxu0
        %v5450 = vadd.f32 %v5361, %v5449
        %v5451 = vpop.f32.mrf.mxu0
        %v5452 = vadd.f32 %v5363, %v5451
        %5453 = vmatmul.bf16.gmra.mxu0 %v5017
        %v5454 = vpop.f32.mrf.mxu0
        %v5455 = vadd.f32 %v5366, %v5454
        %v5456 = vpop.f32.mrf.mxu0
        %v5457 = vadd.f32 %v5368, %v5456
        %5458 = vmatmul.bf16.gmra.mxu0 %v5020
        %v5459 = vpop.f32.mrf.mxu0
        %v5460 = vadd.f32 %v5371, %v5459
        %v5461 = vpop.f32.mrf.mxu0
        %v5462 = vadd.f32 %v5373, %v5461
        %5463 = vmatmul.bf16.gmra.mxu0 %v5023
        %v5464 = vpop.f32.mrf.mxu0
        %v5465 = vadd.f32 %v5376, %v5464
        %v5466 = vpop.f32.mrf.mxu0
        %v5467 = vadd.f32 %v5378, %v5466
        %5468 = vmatmul.bf16.gmra.mxu0 %v5026
        %v5469 = vpop.f32.mrf.mxu0
        %v5470 = vadd.f32 %v5381, %v5469
        %v5471 = vpop.f32.mrf.mxu0
        %v5472 = vadd.f32 %v5383, %v5471
        %5473 = vmatmul.bf16.gmra.mxu0 %v5029
        %v5474 = vpop.f32.mrf.mxu0
        %v5475 = vadd.f32 %v5386, %v5474
        %v5476 = vpop.f32.mrf.mxu0
        %v5477 = vadd.f32 %v5388, %v5476
        %5478 = vmatmul.bf16.gmra.mxu0 %v5032
        %v5479 = vpop.f32.mrf.mxu0
        %v5480 = vadd.f32 %v5391, %v5479
        %v5481 = vpop.f32.mrf.mxu0
        %v5482 = vadd.f32 %v5393, %v5481
        %5483 = vmatmul.bf16.gmra.mxu0 %v5035
        %v5484 = vpop.f32.mrf.mxu0
        %v5485 = vadd.f32 %v5396, %v5484
        %v5486 = vpop.f32.mrf.mxu0
        %v5487 = vadd.f32 %v5398, %v5486
        %5488 = vmatmul.bf16.gmra.mxu0 %v5038
        %v5489 = vpop.f32.mrf.mxu0
        %v5490 = vadd.f32 %v5401, %v5489
        %v5491 = vpop.f32.mrf.mxu0
        %v5492 = vadd.f32 %v5403, %v5491
        %5493 = vmatmul.bf16.gmra.mxu0 %v5041
        %v5494 = vpop.f32.mrf.mxu0
        %v5495 = vadd.f32 %v5406, %v5494
        %v5496 = vpop.f32.mrf.mxu0
        %v5497 = vadd.f32 %v5408, %v5496
        %5498 = vmatmul.bf16.gmra.mxu0 %v5044
        %v5499 = vpop.f32.mrf.mxu0
        %v5500 = vadd.f32 %v5411, %v5499
        %v5501 = vpop.f32.mrf.mxu0
        %v5502 = vadd.f32 %v5413, %v5501
        %5503 = vdwg.mxu0
        %v5508 = vunpack.c.l.b16 %v4671
        %v5509 = vunpack.c.h.b16 %v4671
        %v5510 = vunpack.c.l.b16 %v4672
        %v5511 = vunpack.c.l.b16 %v4673
        %v5512 = vunpack.c.h.b16 %v4673
        %v5513 = vunpack.c.l.b16 %v4674
        %v5514 = vpack.c.b16 %v5511, %v5508
        %v5515 = vpack.c.b16 %v5512, %v5509
        %v5516 = vpack.c.b16 %v5513, %v5510
        %v5568 = vunpack.c.l.b16 %v4736
        %v5569 = vunpack.c.l.b16 %v4737
        %v5570 = vunpack.c.l.b16 %v4738
        %v5571 = vunpack.c.l.b16 %v4739
        %v5572 = vunpack.c.l.b16 %v4740
        %v5573 = vunpack.c.l.b16 %v4741
        %v5574 = vunpack.c.l.b16 %v4742
        %v5575 = vunpack.c.l.b16 %v4743
        %v5576 = vunpack.c.l.b16 %v4744
        %v5577 = vunpack.c.l.b16 %v4745
        %v5578 = vunpack.c.l.b16 %v4746
        %v5579 = vunpack.c.l.b16 %v4747
        %v5580 = vunpack.c.l.b16 %v4748
        %v5581 = vunpack.c.l.b16 %v4749
        %v5582 = vunpack.c.l.b16 %v4750
        %v5583 = vunpack.c.l.b16 %v4751
        %v5584 = vunpack.c.l.b16 %v4752
        %v5585 = vunpack.c.l.b16 %v4753
        %v5586 = vunpack.c.l.b16 %v4754
        %v5587 = vunpack.c.l.b16 %v4755
        %v5588 = vunpack.c.l.b16 %v4756
        %v5589 = vunpack.c.l.b16 %v4757
        %v5590 = vunpack.c.l.b16 %v4758
        %v5591 = vunpack.c.l.b16 %v4759
        %v5592 = vunpack.c.l.b16 %v4760
        %v5593 = vunpack.c.l.b16 %v4761
        %v5594 = vunpack.c.l.b16 %v4762
        %v5595 = vunpack.c.l.b16 %v4763
        %v5596 = vunpack.c.l.b16 %v4764
        %v5597 = vunpack.c.l.b16 %v4765
        %v5598 = vunpack.c.l.b16 %v4766
        %v5599 = vunpack.c.l.b16 %v4767
        %v5600 = vunpack.c.l.b16 %v4768
        %v5601 = vunpack.c.l.b16 %v4769
        %v5602 = vunpack.c.l.b16 %v4770
        %v5603 = vunpack.c.l.b16 %v4771
        %v5604 = vunpack.c.l.b16 %v4772
        %v5605 = vunpack.c.l.b16 %v4773
        %v5606 = vunpack.c.l.b16 %v4774
        %v5607 = vunpack.c.l.b16 %v4775
        %v5608 = vunpack.c.l.b16 %v4776
        %v5609 = vunpack.c.l.b16 %v4777
        %v5610 = vunpack.c.l.b16 %v4778
        %v5611 = vunpack.c.l.b16 %v4779
        %v5612 = vunpack.c.l.b16 %v4780
        %v5613 = vunpack.c.l.b16 %v4781
        %v5614 = vunpack.c.l.b16 %v4782
        %v5615 = vunpack.c.l.b16 %v4783
        %v5616 = vpack.c.b16 %v5569, %v5568
        %v5617 = vpack.c.b16 %v5571, %v5570
        %v5618 = vpack.c.b16 %v5573, %v5572
        %v5619 = vpack.c.b16 %v5575, %v5574
        %v5620 = vpack.c.b16 %v5577, %v5576
        %v5621 = vpack.c.b16 %v5579, %v5578
        %v5622 = vpack.c.b16 %v5581, %v5580
        %v5623 = vpack.c.b16 %v5583, %v5582
        %v5624 = vpack.c.b16 %v5585, %v5584
        %v5625 = vpack.c.b16 %v5587, %v5586
        %v5626 = vpack.c.b16 %v5589, %v5588
        %v5627 = vpack.c.b16 %v5591, %v5590
        %v5628 = vpack.c.b16 %v5593, %v5592
        %v5629 = vpack.c.b16 %v5595, %v5594
        %v5630 = vpack.c.b16 %v5597, %v5596
        %v5631 = vpack.c.b16 %v5599, %v5598
        %v5632 = vpack.c.b16 %v5601, %v5600
        %v5633 = vpack.c.b16 %v5603, %v5602
        %v5634 = vpack.c.b16 %v5605, %v5604
        %v5635 = vpack.c.b16 %v5607, %v5606
        %v5636 = vpack.c.b16 %v5609, %v5608
        %v5637 = vpack.c.b16 %v5611, %v5610
        %v5638 = vpack.c.b16 %v5613, %v5612
        %v5639 = vpack.c.b16 %v5615, %v5614
        %5664 = vmatpush.bf16.msra.mxu0 %v5623
        %5665 = vmatpush.bf16.msra.mxu0 %v5622
        %5666 = vmatpush.bf16.msra.mxu0 %v5621
        %5667 = vmatpush.bf16.msra.mxu0 %v5620
        %5668 = vmatpush.bf16.msra.mxu0 %v5619
        %5669 = vmatpush.bf16.msra.mxu0 %v5618
        %5670 = vmatpush.bf16.msra.mxu0 %v5617
        %5671 = vmatpush.bf16.msra.mxu0 %v5616
        %5672 = vmatmul.bf16.gmra.mxu0 %v5514
        %v5673 = vpop.f32.mrf.mxu0
        %v5674 = vadd.f32 %v5425, %v5673
        %v5675 = vpop.f32.mrf.mxu0
        %v5676 = vadd.f32 %v5427, %v5675
        %5677 = vmatmul.bf16.gmra.mxu0 %v4997
        %v5678 = vpop.f32.mrf.mxu0
        %v5679 = vadd.f32 %v5430, %v5678
        %v5680 = vpop.f32.mrf.mxu0
        %v5681 = vadd.f32 %v5432, %v5680
        %5682 = vmatmul.bf16.gmra.mxu0 %v5000
        %v5683 = vpop.f32.mrf.mxu0
        %v5684 = vadd.f32 %v5435, %v5683
        %v5685 = vpop.f32.mrf.mxu0
        %v5686 = vadd.f32 %v5437, %v5685
        %5687 = vmatmul.bf16.gmra.mxu0 %v5003
        %v5688 = vpop.f32.mrf.mxu0
        %v5689 = vadd.f32 %v5440, %v5688
        %v5690 = vpop.f32.mrf.mxu0
        %v5691 = vadd.f32 %v5442, %v5690
        %5692 = vmatmul.bf16.gmra.mxu0 %v5006
        %v5693 = vpop.f32.mrf.mxu0
        %v5694 = vadd.f32 %v5445, %v5693
        %v5695 = vpop.f32.mrf.mxu0
        %v5696 = vadd.f32 %v5447, %v5695
        %5697 = vmatmul.bf16.gmra.mxu0 %v5009
        %v5698 = vpop.f32.mrf.mxu0
        %v5699 = vadd.f32 %v5450, %v5698
        %v5700 = vpop.f32.mrf.mxu0
        %v5701 = vadd.f32 %v5452, %v5700
        %5702 = vmatmul.bf16.gmra.mxu0 %v5012
        %v5703 = vpop.f32.mrf.mxu0
        %v5704 = vadd.f32 %v5455, %v5703
        %v5705 = vpop.f32.mrf.mxu0
        %v5706 = vadd.f32 %v5457, %v5705
        %5707 = vmatmul.bf16.gmra.mxu0 %v5015
        %v5708 = vpop.f32.mrf.mxu0
        %v5709 = vadd.f32 %v5460, %v5708
        %v5710 = vpop.f32.mrf.mxu0
        %v5711 = vadd.f32 %v5462, %v5710
        %5712 = vmatmul.bf16.gmra.mxu0 %v5018
        %v5713 = vpop.f32.mrf.mxu0
        %v5714 = vadd.f32 %v5465, %v5713
        %v5715 = vpop.f32.mrf.mxu0
        %v5716 = vadd.f32 %v5467, %v5715
        %5717 = vmatmul.bf16.gmra.mxu0 %v5021
        %v5718 = vpop.f32.mrf.mxu0
        %v5719 = vadd.f32 %v5470, %v5718
        %v5720 = vpop.f32.mrf.mxu0
        %v5721 = vadd.f32 %v5472, %v5720
        %5722 = vmatmul.bf16.gmra.mxu0 %v5024
        %v5723 = vpop.f32.mrf.mxu0
        %v5724 = vadd.f32 %v5475, %v5723
        %v5725 = vpop.f32.mrf.mxu0
        %v5726 = vadd.f32 %v5477, %v5725
        %5727 = vmatmul.bf16.gmra.mxu0 %v5027
        %v5728 = vpop.f32.mrf.mxu0
        %v5729 = vadd.f32 %v5480, %v5728
        %v5730 = vpop.f32.mrf.mxu0
        %v5731 = vadd.f32 %v5482, %v5730
        %5732 = vmatmul.bf16.gmra.mxu0 %v5030
        %v5733 = vpop.f32.mrf.mxu0
        %v5734 = vadd.f32 %v5485, %v5733
        %v5735 = vpop.f32.mrf.mxu0
        %v5736 = vadd.f32 %v5487, %v5735
        %5737 = vmatmul.bf16.gmra.mxu0 %v5033
        %v5738 = vpop.f32.mrf.mxu0
        %v5739 = vadd.f32 %v5490, %v5738
        %v5740 = vpop.f32.mrf.mxu0
        %v5741 = vadd.f32 %v5492, %v5740
        %5742 = vmatmul.bf16.gmra.mxu0 %v5036
        %v5743 = vpop.f32.mrf.mxu0
        %v5744 = vadd.f32 %v5495, %v5743
        %v5745 = vpop.f32.mrf.mxu0
        %v5746 = vadd.f32 %v5497, %v5745
        %5747 = vmatmul.bf16.gmra.mxu0 %v5039
        %v5748 = vpop.f32.mrf.mxu0
        %v5749 = vadd.f32 %v5500, %v5748
        %v5750 = vpop.f32.mrf.mxu0
        %v5751 = vadd.f32 %v5502, %v5750
        %5752 = vdwg.mxu0
        %5753 = vmatpush.bf16.msra.mxu0 %v5631
        %5754 = vmatpush.bf16.msra.mxu0 %v5630
        %5755 = vmatpush.bf16.msra.mxu0 %v5629
        %5756 = vmatpush.bf16.msra.mxu0 %v5628
        %5757 = vmatpush.bf16.msra.mxu0 %v5627
        %5758 = vmatpush.bf16.msra.mxu0 %v5626
        %5759 = vmatpush.bf16.msra.mxu0 %v5625
        %5760 = vmatpush.bf16.msra.mxu0 %v5624
        %5761 = vmatmul.bf16.gmra.mxu0 %v5515
        %v5762 = vpop.f32.mrf.mxu0
        %v5763 = vadd.f32 %v5674, %v5762
        %v5764 = vpop.f32.mrf.mxu0
        %v5765 = vadd.f32 %v5676, %v5764
        %5766 = vmatmul.bf16.gmra.mxu0 %v4998
        %v5767 = vpop.f32.mrf.mxu0
        %v5768 = vadd.f32 %v5679, %v5767
        %v5769 = vpop.f32.mrf.mxu0
        %v5770 = vadd.f32 %v5681, %v5769
        %5771 = vmatmul.bf16.gmra.mxu0 %v5001
        %v5772 = vpop.f32.mrf.mxu0
        %v5773 = vadd.f32 %v5684, %v5772
        %v5774 = vpop.f32.mrf.mxu0
        %v5775 = vadd.f32 %v5686, %v5774
        %5776 = vmatmul.bf16.gmra.mxu0 %v5004
        %v5777 = vpop.f32.mrf.mxu0
        %v5778 = vadd.f32 %v5689, %v5777
        %v5779 = vpop.f32.mrf.mxu0
        %v5780 = vadd.f32 %v5691, %v5779
        %5781 = vmatmul.bf16.gmra.mxu0 %v5007
        %v5782 = vpop.f32.mrf.mxu0
        %v5783 = vadd.f32 %v5694, %v5782
        %v5784 = vpop.f32.mrf.mxu0
        %v5785 = vadd.f32 %v5696, %v5784
        %5786 = vmatmul.bf16.gmra.mxu0 %v5010
        %v5787 = vpop.f32.mrf.mxu0
        %v5788 = vadd.f32 %v5699, %v5787
        %v5789 = vpop.f32.mrf.mxu0
        %v5790 = vadd.f32 %v5701, %v5789
        %5791 = vmatmul.bf16.gmra.mxu0 %v5013
        %v5792 = vpop.f32.mrf.mxu0
        %v5793 = vadd.f32 %v5704, %v5792
        %v5794 = vpop.f32.mrf.mxu0
        %v5795 = vadd.f32 %v5706, %v5794
        %5796 = vmatmul.bf16.gmra.mxu0 %v5016
        %v5797 = vpop.f32.mrf.mxu0
        %v5798 = vadd.f32 %v5709, %v5797
        %v5799 = vpop.f32.mrf.mxu0
        %v5800 = vadd.f32 %v5711, %v5799
        %5801 = vmatmul.bf16.gmra.mxu0 %v5019
        %v5802 = vpop.f32.mrf.mxu0
        %v5803 = vadd.f32 %v5714, %v5802
        %v5804 = vpop.f32.mrf.mxu0
        %v5805 = vadd.f32 %v5716, %v5804
        %5806 = vmatmul.bf16.gmra.mxu0 %v5022
        %v5807 = vpop.f32.mrf.mxu0
        %v5808 = vadd.f32 %v5719, %v5807
        %v5809 = vpop.f32.mrf.mxu0
        %v5810 = vadd.f32 %v5721, %v5809
        %5811 = vmatmul.bf16.gmra.mxu0 %v5025
        %v5812 = vpop.f32.mrf.mxu0
        %v5813 = vadd.f32 %v5724, %v5812
        %v5814 = vpop.f32.mrf.mxu0
        %v5815 = vadd.f32 %v5726, %v5814
        %5816 = vmatmul.bf16.gmra.mxu0 %v5028
        %v5817 = vpop.f32.mrf.mxu0
        %v5818 = vadd.f32 %v5729, %v5817
        %v5819 = vpop.f32.mrf.mxu0
        %v5820 = vadd.f32 %v5731, %v5819
        %5821 = vmatmul.bf16.gmra.mxu0 %v5031
        %v5822 = vpop.f32.mrf.mxu0
        %v5823 = vadd.f32 %v5734, %v5822
        %v5824 = vpop.f32.mrf.mxu0
        %v5825 = vadd.f32 %v5736, %v5824
        %5826 = vmatmul.bf16.gmra.mxu0 %v5034
        %v5827 = vpop.f32.mrf.mxu0
        %v5828 = vadd.f32 %v5739, %v5827
        %v5829 = vpop.f32.mrf.mxu0
        %v5830 = vadd.f32 %v5741, %v5829
        %5831 = vmatmul.bf16.gmra.mxu0 %v5037
        %v5832 = vpop.f32.mrf.mxu0
        %v5833 = vadd.f32 %v5744, %v5832
        %v5834 = vpop.f32.mrf.mxu0
        %v5835 = vadd.f32 %v5746, %v5834
        %5836 = vmatmul.bf16.gmra.mxu0 %v5040
        %v5837 = vpop.f32.mrf.mxu0
        %v5838 = vadd.f32 %v5749, %v5837
        %v5839 = vpop.f32.mrf.mxu0
        %v5840 = vadd.f32 %v5751, %v5839
        %5841 = vdwg.mxu0
        %5842 = vmatpush.bf16.msra.mxu0 %v5639
        %5843 = vmatpush.bf16.msra.mxu0 %v5638
        %5844 = vmatpush.bf16.msra.mxu0 %v5637
        %5845 = vmatpush.bf16.msra.mxu0 %v5636
        %5846 = vmatpush.bf16.msra.mxu0 %v5635
        %5847 = vmatpush.bf16.msra.mxu0 %v5634
        %5848 = vmatpush.bf16.msra.mxu0 %v5633
        %5849 = vmatpush.bf16.msra.mxu0 %v5632
        %5850 = vmatmul.bf16.gmra.mxu0 %v5516
        %v5851 = vpop.f32.mrf.mxu0
        %v5852 = vadd.f32 %v5763, %v5851
        %v5853 = vpop.f32.mrf.mxu0
        %v5854 = vadd.f32 %v5765, %v5853
        %5855 = vmatmul.bf16.gmra.mxu0 %v4999
        %v5856 = vpop.f32.mrf.mxu0
        %v5857 = vadd.f32 %v5768, %v5856
        %v5858 = vpop.f32.mrf.mxu0
        %v5859 = vadd.f32 %v5770, %v5858
        %5860 = vmatmul.bf16.gmra.mxu0 %v5002
        %v5861 = vpop.f32.mrf.mxu0
        %v5862 = vadd.f32 %v5773, %v5861
        %v5863 = vpop.f32.mrf.mxu0
        %v5864 = vadd.f32 %v5775, %v5863
        %5865 = vmatmul.bf16.gmra.mxu0 %v5005
        %v5866 = vpop.f32.mrf.mxu0
        %v5867 = vadd.f32 %v5778, %v5866
        %v5868 = vpop.f32.mrf.mxu0
        %v5869 = vadd.f32 %v5780, %v5868
        %5870 = vmatmul.bf16.gmra.mxu0 %v5008
        %v5871 = vpop.f32.mrf.mxu0
        %v5872 = vadd.f32 %v5783, %v5871
        %v5873 = vpop.f32.mrf.mxu0
        %v5874 = vadd.f32 %v5785, %v5873
        %5875 = vmatmul.bf16.gmra.mxu0 %v5011
        %v5876 = vpop.f32.mrf.mxu0
        %v5877 = vadd.f32 %v5788, %v5876
        %v5878 = vpop.f32.mrf.mxu0
        %v5879 = vadd.f32 %v5790, %v5878
        %5880 = vmatmul.bf16.gmra.mxu0 %v5014
        %v5881 = vpop.f32.mrf.mxu0
        %v5882 = vadd.f32 %v5793, %v5881
        %v5883 = vpop.f32.mrf.mxu0
        %v5884 = vadd.f32 %v5795, %v5883
        %5885 = vmatmul.bf16.gmra.mxu0 %v5017
        %v5886 = vpop.f32.mrf.mxu0
        %v5887 = vadd.f32 %v5798, %v5886
        %v5888 = vpop.f32.mrf.mxu0
        %v5889 = vadd.f32 %v5800, %v5888
        %5890 = vmatmul.bf16.gmra.mxu0 %v5020
        %v5891 = vpop.f32.mrf.mxu0
        %v5892 = vadd.f32 %v5803, %v5891
        %v5893 = vpop.f32.mrf.mxu0
        %v5894 = vadd.f32 %v5805, %v5893
        %5895 = vmatmul.bf16.gmra.mxu0 %v5023
        %v5896 = vpop.f32.mrf.mxu0
        %v5897 = vadd.f32 %v5808, %v5896
        %v5898 = vpop.f32.mrf.mxu0
        %v5899 = vadd.f32 %v5810, %v5898
        %5900 = vmatmul.bf16.gmra.mxu0 %v5026
        %v5901 = vpop.f32.mrf.mxu0
        %v5902 = vadd.f32 %v5813, %v5901
        %v5903 = vpop.f32.mrf.mxu0
        %v5904 = vadd.f32 %v5815, %v5903
        %5905 = vmatmul.bf16.gmra.mxu0 %v5029
        %v5906 = vpop.f32.mrf.mxu0
        %v5907 = vadd.f32 %v5818, %v5906
        %v5908 = vpop.f32.mrf.mxu0
        %v5909 = vadd.f32 %v5820, %v5908
        %5910 = vmatmul.bf16.gmra.mxu0 %v5032
        %v5911 = vpop.f32.mrf.mxu0
        %v5912 = vadd.f32 %v5823, %v5911
        %v5913 = vpop.f32.mrf.mxu0
        %v5914 = vadd.f32 %v5825, %v5913
        %5915 = vmatmul.bf16.gmra.mxu0 %v5035
        %v5916 = vpop.f32.mrf.mxu0
        %v5917 = vadd.f32 %v5828, %v5916
        %v5918 = vpop.f32.mrf.mxu0
        %v5919 = vadd.f32 %v5830, %v5918
        %5920 = vmatmul.bf16.gmra.mxu0 %v5038
        %v5921 = vpop.f32.mrf.mxu0
        %v5922 = vadd.f32 %v5833, %v5921
        %v5923 = vpop.f32.mrf.mxu0
        %v5924 = vadd.f32 %v5835, %v5923
        %5925 = vmatmul.bf16.gmra.mxu0 %v5041
        %v5926 = vpop.f32.mrf.mxu0
        %v5927 = vadd.f32 %v5838, %v5926
        %v5928 = vpop.f32.mrf.mxu0
        %v5929 = vadd.f32 %v5840, %v5928
        %5930 = vdwg.mxu0
        %v5931 = vld [vmem:[#allocation3 + $0x30] sm:$0xff]
        %v5932 = vld [vmem:[#allocation3 + $0x38] sm:$0xf]
        %v5933 = vld [vmem:[#allocation3 + $0x3c] sm:$0xff]
        %v5934 = vld [vmem:[#allocation3 + $0x44] sm:$0xf]
        %v5935 = vld [vmem:[#allocation3 + $0x48] sm:$0xff]
        %v5936 = vld [vmem:[#allocation3 + $0x50] sm:$0xf]
        %v5937 = vld [vmem:[#allocation3 + $0x54] sm:$0xff]
        %v5938 = vld [vmem:[#allocation3 + $0x5c] sm:$0xf]
        %v5939 = vld [vmem:[#allocation3 + $0x60] sm:$0xff]
        %v5940 = vld [vmem:[#allocation3 + $0x68] sm:$0xf]
        %v5941 = vld [vmem:[#allocation3 + $0x6c] sm:$0xff]
        %v5942 = vld [vmem:[#allocation3 + $0x74] sm:$0xf]
        %v5943 = vld [vmem:[#allocation3 + $0x78] sm:$0xff]
        %v5944 = vld [vmem:[#allocation3 + $0x80] sm:$0xf]
        %v5945 = vld [vmem:[#allocation3 + $0x84] sm:$0xff]
        %v5946 = vld [vmem:[#allocation3 + $0x8c] sm:$0xf]
        %v5947 = vld [vmem:[#allocation3 + $0x90] sm:$0xff]
        %v5948 = vld [vmem:[#allocation3 + $0x98] sm:$0xf]
        %v5949 = vld [vmem:[#allocation3 + $0x9c] sm:$0xff]
        %v5950 = vld [vmem:[#allocation3 + $0xa4] sm:$0xf]
        %v5951 = vld [vmem:[#allocation3 + $0xa8] sm:$0xff]
        %v5952 = vld [vmem:[#allocation3 + $0xb0] sm:$0xf]
        %v5953 = vld [vmem:[#allocation3 + $0xb4] sm:$0xff]
        %v5954 = vld [vmem:[#allocation3 + $0xbc] sm:$0xf]
        %v5955 = vld [vmem:[#allocation3 + $0xc0] sm:$0xff]
        %v5956 = vld [vmem:[#allocation3 + $0xc8] sm:$0xf]
        %v5957 = vld [vmem:[#allocation3 + $0xcc] sm:$0xff]
        %v5958 = vld [vmem:[#allocation3 + $0xd4] sm:$0xf]
        %v5959 = vld [vmem:[#allocation3 + $0xd8] sm:$0xff]
        %v5960 = vld [vmem:[#allocation3 + $0xe0] sm:$0xf]
        %v5961 = vld [vmem:[#allocation3 + $0xe4] sm:$0xff]
        %v5962 = vld [vmem:[#allocation3 + $0xec] sm:$0xf]
        %v5963 = vld [vmem:[#allocation3 + $0xf0] sm:$0xff]
        %v5964 = vld [vmem:[#allocation3 + $0xf8] sm:$0xf]
        %v5965 = vld [vmem:[#allocation3 + $0xfc] sm:$0xff]
        %v5966 = vld [vmem:[#allocation3 + $0x104] sm:$0xf]
        %v5967 = vld [vmem:[#allocation3 + $0x108] sm:$0xff]
        %v5968 = vld [vmem:[#allocation3 + $0x110] sm:$0xf]
        %v5969 = vld [vmem:[#allocation3 + $0x114] sm:$0xff]
        %v5970 = vld [vmem:[#allocation3 + $0x11c] sm:$0xf]
        %v5971 = vld [vmem:[#allocation3 + $0x120] sm:$0xff]
        %v5972 = vld [vmem:[#allocation3 + $0x128] sm:$0xf]
        %v5973 = vld [vmem:[#allocation3 + $0x12c] sm:$0xff]
        %v5974 = vld [vmem:[#allocation3 + $0x134] sm:$0xf]
        %v5975 = vld [vmem:[#allocation3 + $0x138] sm:$0xff]
        %v5976 = vld [vmem:[#allocation3 + $0x140] sm:$0xf]
        %v5977 = vld [vmem:[#allocation3 + $0x144] sm:$0xff]
        %v5978 = vld [vmem:[#allocation3 + $0x14c] sm:$0xf]
        %v5979 = vld [vmem:[#allocation3 + $0x150] sm:$0xff]
        %v5980 = vld [vmem:[#allocation3 + $0x158] sm:$0xf]
        %v5981 = vld [vmem:[#allocation3 + $0x15c] sm:$0xff]
        %v5982 = vld [vmem:[#allocation3 + $0x164] sm:$0xf]
        %v5983 = vld [vmem:[#allocation3 + $0x168] sm:$0xff]
        %v5984 = vld [vmem:[#allocation3 + $0x170] sm:$0xf]
        %v5985 = vld [vmem:[#allocation3 + $0x174] sm:$0xff]
        %v5986 = vld [vmem:[#allocation3 + $0x17c] sm:$0xf]
        %v5987 = vld [vmem:[#allocation3 + $0x180] sm:$0xff]
        %v5988 = vld [vmem:[#allocation3 + $0x188] sm:$0xf]
        %v5989 = vld [vmem:[#allocation3 + $0x18c] sm:$0xff]
        %v5990 = vld [vmem:[#allocation3 + $0x194] sm:$0xf]
        %v5991 = vld [vmem:[#allocation3 + $0x198] sm:$0xff]
        %v5992 = vld [vmem:[#allocation3 + $0x1a0] sm:$0xf]
        %v5993 = vld [vmem:[#allocation3 + $0x1a4] sm:$0xff]
        %v5994 = vld [vmem:[#allocation3 + $0x1ac] sm:$0xf]
        %s5995 = scalar_lea.vmem [#allocation4], 960
        %v5996 = vld [vmem:[%s5995] sm:$0xf]
        %v5997 = vld [vmem:[%s5995 + $0x4] sm:$0xf]
        %v5998 = vld [vmem:[%s5995 + $0x8] sm:$0xf]
        %v5999 = vld [vmem:[%s5995 + $0xc] sm:$0xf]
        %v6000 = vld [vmem:[%s5995 + $0x10] sm:$0xf]
        %v6001 = vld [vmem:[%s5995 + $0x14] sm:$0xf]
        %v6002 = vld [vmem:[%s5995 + $0x18] sm:$0xf]
        %v6003 = vld [vmem:[%s5995 + $0x1c] sm:$0xf]
        %v6004 = vld [vmem:[%s5995 + $0x20] sm:$0xf]
        %v6005 = vld [vmem:[%s5995 + $0x24] sm:$0xf]
        %v6006 = vld [vmem:[%s5995 + $0x28] sm:$0xf]
        %v6007 = vld [vmem:[%s5995 + $0x2c] sm:$0xf]
        %v6008 = vld [vmem:[%s5995 + $0x30] sm:$0xf]
        %v6009 = vld [vmem:[%s5995 + $0x34] sm:$0xf]
        %v6010 = vld [vmem:[%s5995 + $0x38] sm:$0xf]
        %v6011 = vld [vmem:[%s5995 + $0x3c] sm:$0xf]
        %v6012 = vld [vmem:[%s5995 + $0x40] sm:$0xf]
        %v6013 = vld [vmem:[%s5995 + $0x44] sm:$0xf]
        %v6014 = vld [vmem:[%s5995 + $0x48] sm:$0xf]
        %v6015 = vld [vmem:[%s5995 + $0x4c] sm:$0xf]
        %v6016 = vld [vmem:[%s5995 + $0x50] sm:$0xf]
        %v6017 = vld [vmem:[%s5995 + $0x54] sm:$0xf]
        %v6018 = vld [vmem:[%s5995 + $0x58] sm:$0xf]
        %v6019 = vld [vmem:[%s5995 + $0x5c] sm:$0xf]
        %v6020 = vld [vmem:[%s5995 + $0x60] sm:$0xf]
        %v6021 = vld [vmem:[%s5995 + $0x64] sm:$0xf]
        %v6022 = vld [vmem:[%s5995 + $0x68] sm:$0xf]
        %v6023 = vld [vmem:[%s5995 + $0x6c] sm:$0xf]
        %v6024 = vld [vmem:[%s5995 + $0x70] sm:$0xf]
        %v6025 = vld [vmem:[%s5995 + $0x74] sm:$0xf]
        %v6026 = vld [vmem:[%s5995 + $0x78] sm:$0xf]
        %v6027 = vld [vmem:[%s5995 + $0x7c] sm:$0xf]
        %v6028 = vld [vmem:[%s5995 + $0x80] sm:$0xf]
        %v6029 = vld [vmem:[%s5995 + $0x84] sm:$0xf]
        %v6030 = vld [vmem:[%s5995 + $0x88] sm:$0xf]
        %v6031 = vld [vmem:[%s5995 + $0x8c] sm:$0xf]
        %v6032 = vld [vmem:[%s5995 + $0x90] sm:$0xf]
        %v6033 = vld [vmem:[%s5995 + $0x94] sm:$0xf]
        %v6034 = vld [vmem:[%s5995 + $0x98] sm:$0xf]
        %v6035 = vld [vmem:[%s5995 + $0x9c] sm:$0xf]
        %v6036 = vld [vmem:[%s5995 + $0xa0] sm:$0xf]
        %v6037 = vld [vmem:[%s5995 + $0xa4] sm:$0xf]
        %v6038 = vld [vmem:[%s5995 + $0xa8] sm:$0xf]
        %v6039 = vld [vmem:[%s5995 + $0xac] sm:$0xf]
        %v6040 = vld [vmem:[%s5995 + $0xb0] sm:$0xf]
        %v6041 = vld [vmem:[%s5995 + $0xb4] sm:$0xf]
        %v6042 = vld [vmem:[%s5995 + $0xb8] sm:$0xf]
        %v6043 = vld [vmem:[%s5995 + $0xbc] sm:$0xf]
        %v6108 = vunpack.c.l.b16 %v5931
        %v6109 = vunpack.c.h.b16 %v5931
        %v6110 = vunpack.c.l.b16 %v5932
        %v6111 = vunpack.c.l.b16 %v5933
        %v6112 = vunpack.c.h.b16 %v5933
        %v6113 = vunpack.c.l.b16 %v5934
        %v6114 = vunpack.c.l.b16 %v5935
        %v6115 = vunpack.c.h.b16 %v5935
        %v6116 = vunpack.c.l.b16 %v5936
        %v6117 = vunpack.c.l.b16 %v5937
        %v6118 = vunpack.c.h.b16 %v5937
        %v6119 = vunpack.c.l.b16 %v5938
        %v6120 = vunpack.c.l.b16 %v5939
        %v6121 = vunpack.c.h.b16 %v5939
        %v6122 = vunpack.c.l.b16 %v5940
        %v6123 = vunpack.c.l.b16 %v5941
        %v6124 = vunpack.c.h.b16 %v5941
        %v6125 = vunpack.c.l.b16 %v5942
        %v6126 = vunpack.c.l.b16 %v5943
        %v6127 = vunpack.c.h.b16 %v5943
        %v6128 = vunpack.c.l.b16 %v5944
        %v6129 = vunpack.c.l.b16 %v5945
        %v6130 = vunpack.c.h.b16 %v5945
        %v6131 = vunpack.c.l.b16 %v5946
        %v6132 = vunpack.c.l.b16 %v5947
        %v6133 = vunpack.c.h.b16 %v5947
        %v6134 = vunpack.c.l.b16 %v5948
        %v6135 = vunpack.c.l.b16 %v5949
        %v6136 = vunpack.c.h.b16 %v5949
        %v6137 = vunpack.c.l.b16 %v5950
        %v6138 = vunpack.c.l.b16 %v5951
        %v6139 = vunpack.c.h.b16 %v5951
        %v6140 = vunpack.c.l.b16 %v5952
        %v6141 = vunpack.c.l.b16 %v5953
        %v6142 = vunpack.c.h.b16 %v5953
        %v6143 = vunpack.c.l.b16 %v5954
        %v6144 = vunpack.c.l.b16 %v5955
        %v6145 = vunpack.c.h.b16 %v5955
        %v6146 = vunpack.c.l.b16 %v5956
        %v6147 = vunpack.c.l.b16 %v5957
        %v6148 = vunpack.c.h.b16 %v5957
        %v6149 = vunpack.c.l.b16 %v5958
        %v6150 = vunpack.c.l.b16 %v5959
        %v6151 = vunpack.c.h.b16 %v5959
        %v6152 = vunpack.c.l.b16 %v5960
        %v6153 = vunpack.c.l.b16 %v5961
        %v6154 = vunpack.c.h.b16 %v5961
        %v6155 = vunpack.c.l.b16 %v5962
        %v6156 = vunpack.c.l.b16 %v5963
        %v6157 = vunpack.c.h.b16 %v5963
        %v6158 = vunpack.c.l.b16 %v5964
        %v6159 = vunpack.c.l.b16 %v5965
        %v6160 = vunpack.c.h.b16 %v5965
        %v6161 = vunpack.c.l.b16 %v5966
        %v6162 = vunpack.c.l.b16 %v5967
        %v6163 = vunpack.c.h.b16 %v5967
        %v6164 = vunpack.c.l.b16 %v5968
        %v6165 = vunpack.c.l.b16 %v5969
        %v6166 = vunpack.c.h.b16 %v5969
        %v6167 = vunpack.c.l.b16 %v5970
        %v6168 = vunpack.c.l.b16 %v5971
        %v6169 = vunpack.c.h.b16 %v5971
        %v6170 = vunpack.c.l.b16 %v5972
        %v6171 = vunpack.c.l.b16 %v5973
        %v6172 = vunpack.c.h.b16 %v5973
        %v6173 = vunpack.c.l.b16 %v5974
        %v6174 = vunpack.c.l.b16 %v5975
        %v6175 = vunpack.c.h.b16 %v5975
        %v6176 = vunpack.c.l.b16 %v5976
        %v6177 = vunpack.c.l.b16 %v5977
        %v6178 = vunpack.c.h.b16 %v5977
        %v6179 = vunpack.c.l.b16 %v5978
        %v6180 = vunpack.c.l.b16 %v5979
        %v6181 = vunpack.c.h.b16 %v5979
        %v6182 = vunpack.c.l.b16 %v5980
        %v6183 = vunpack.c.l.b16 %v5981
        %v6184 = vunpack.c.h.b16 %v5981
        %v6185 = vunpack.c.l.b16 %v5982
        %v6186 = vunpack.c.l.b16 %v5983
        %v6187 = vunpack.c.h.b16 %v5983
        %v6188 = vunpack.c.l.b16 %v5984
        %v6189 = vunpack.c.l.b16 %v5985
        %v6190 = vunpack.c.h.b16 %v5985
        %v6191 = vunpack.c.l.b16 %v5986
        %v6192 = vunpack.c.l.b16 %v5987
        %v6193 = vunpack.c.h.b16 %v5987
        %v6194 = vunpack.c.l.b16 %v5988
        %v6195 = vunpack.c.l.b16 %v5989
        %v6196 = vunpack.c.h.b16 %v5989
        %v6197 = vunpack.c.l.b16 %v5990
        %v6198 = vunpack.c.l.b16 %v5991
        %v6199 = vunpack.c.h.b16 %v5991
        %v6200 = vunpack.c.l.b16 %v5992
        %v6201 = vunpack.c.l.b16 %v5993
        %v6202 = vunpack.c.h.b16 %v5993
        %v6203 = vunpack.c.l.b16 %v5994
        %v6204 = vpack.c.b16 %v6111, %v6108
        %v6205 = vpack.c.b16 %v6112, %v6109
        %v6206 = vpack.c.b16 %v6113, %v6110
        %v6207 = vpack.c.b16 %v6117, %v6114
        %v6208 = vpack.c.b16 %v6118, %v6115
        %v6209 = vpack.c.b16 %v6119, %v6116
        %v6210 = vpack.c.b16 %v6123, %v6120
        %v6211 = vpack.c.b16 %v6124, %v6121
        %v6212 = vpack.c.b16 %v6125, %v6122
        %v6213 = vpack.c.b16 %v6129, %v6126
        %v6214 = vpack.c.b16 %v6130, %v6127
        %v6215 = vpack.c.b16 %v6131, %v6128
        %v6216 = vpack.c.b16 %v6135, %v6132
        %v6217 = vpack.c.b16 %v6136, %v6133
        %v6218 = vpack.c.b16 %v6137, %v6134
        %v6219 = vpack.c.b16 %v6141, %v6138
        %v6220 = vpack.c.b16 %v6142, %v6139
        %v6221 = vpack.c.b16 %v6143, %v6140
        %v6222 = vpack.c.b16 %v6147, %v6144
        %v6223 = vpack.c.b16 %v6148, %v6145
        %v6224 = vpack.c.b16 %v6149, %v6146
        %v6225 = vpack.c.b16 %v6153, %v6150
        %v6226 = vpack.c.b16 %v6154, %v6151
        %v6227 = vpack.c.b16 %v6155, %v6152
        %v6228 = vpack.c.b16 %v6159, %v6156
        %v6229 = vpack.c.b16 %v6160, %v6157
        %v6230 = vpack.c.b16 %v6161, %v6158
        %v6231 = vpack.c.b16 %v6165, %v6162
        %v6232 = vpack.c.b16 %v6166, %v6163
        %v6233 = vpack.c.b16 %v6167, %v6164
        %v6234 = vpack.c.b16 %v6171, %v6168
        %v6235 = vpack.c.b16 %v6172, %v6169
        %v6236 = vpack.c.b16 %v6173, %v6170
        %v6237 = vpack.c.b16 %v6177, %v6174
        %v6238 = vpack.c.b16 %v6178, %v6175
        %v6239 = vpack.c.b16 %v6179, %v6176
        %v6240 = vpack.c.b16 %v6183, %v6180
        %v6241 = vpack.c.b16 %v6184, %v6181
        %v6242 = vpack.c.b16 %v6185, %v6182
        %v6243 = vpack.c.b16 %v6189, %v6186
        %v6244 = vpack.c.b16 %v6190, %v6187
        %v6245 = vpack.c.b16 %v6191, %v6188
        %v6246 = vpack.c.b16 %v6195, %v6192
        %v6247 = vpack.c.b16 %v6196, %v6193
        %v6248 = vpack.c.b16 %v6197, %v6194
        %v6249 = vpack.c.b16 %v6201, %v6198
        %v6250 = vpack.c.b16 %v6202, %v6199
        %v6251 = vpack.c.b16 %v6203, %v6200
        %v6348 = vunpack.c.l.b16 %v5996
        %v6349 = vunpack.c.l.b16 %v5997
        %v6350 = vunpack.c.l.b16 %v5998
        %v6351 = vunpack.c.l.b16 %v5999
        %v6352 = vunpack.c.l.b16 %v6000
        %v6353 = vunpack.c.l.b16 %v6001
        %v6354 = vunpack.c.l.b16 %v6002
        %v6355 = vunpack.c.l.b16 %v6003
        %v6356 = vunpack.c.l.b16 %v6004
        %v6357 = vunpack.c.l.b16 %v6005
        %v6358 = vunpack.c.l.b16 %v6006
        %v6359 = vunpack.c.l.b16 %v6007
        %v6360 = vunpack.c.l.b16 %v6008
        %v6361 = vunpack.c.l.b16 %v6009
        %v6362 = vunpack.c.l.b16 %v6010
        %v6363 = vunpack.c.l.b16 %v6011
        %v6364 = vunpack.c.l.b16 %v6012
        %v6365 = vunpack.c.l.b16 %v6013
        %v6366 = vunpack.c.l.b16 %v6014
        %v6367 = vunpack.c.l.b16 %v6015
        %v6368 = vunpack.c.l.b16 %v6016
        %v6369 = vunpack.c.l.b16 %v6017
        %v6370 = vunpack.c.l.b16 %v6018
        %v6371 = vunpack.c.l.b16 %v6019
        %v6372 = vunpack.c.l.b16 %v6020
        %v6373 = vunpack.c.l.b16 %v6021
        %v6374 = vunpack.c.l.b16 %v6022
        %v6375 = vunpack.c.l.b16 %v6023
        %v6376 = vunpack.c.l.b16 %v6024
        %v6377 = vunpack.c.l.b16 %v6025
        %v6378 = vunpack.c.l.b16 %v6026
        %v6379 = vunpack.c.l.b16 %v6027
        %v6380 = vunpack.c.l.b16 %v6028
        %v6381 = vunpack.c.l.b16 %v6029
        %v6382 = vunpack.c.l.b16 %v6030
        %v6383 = vunpack.c.l.b16 %v6031
        %v6384 = vunpack.c.l.b16 %v6032
        %v6385 = vunpack.c.l.b16 %v6033
        %v6386 = vunpack.c.l.b16 %v6034
        %v6387 = vunpack.c.l.b16 %v6035
        %v6388 = vunpack.c.l.b16 %v6036
        %v6389 = vunpack.c.l.b16 %v6037
        %v6390 = vunpack.c.l.b16 %v6038
        %v6391 = vunpack.c.l.b16 %v6039
        %v6392 = vunpack.c.l.b16 %v6040
        %v6393 = vunpack.c.l.b16 %v6041
        %v6394 = vunpack.c.l.b16 %v6042
        %v6395 = vunpack.c.l.b16 %v6043
        %v6396 = vpack.c.b16 %v6349, %v6348
        %v6397 = vpack.c.b16 %v6351, %v6350
        %v6398 = vpack.c.b16 %v6353, %v6352
        %v6399 = vpack.c.b16 %v6355, %v6354
        %v6400 = vpack.c.b16 %v6357, %v6356
        %v6401 = vpack.c.b16 %v6359, %v6358
        %v6402 = vpack.c.b16 %v6361, %v6360
        %v6403 = vpack.c.b16 %v6363, %v6362
        %v6404 = vpack.c.b16 %v6365, %v6364
        %v6405 = vpack.c.b16 %v6367, %v6366
        %v6406 = vpack.c.b16 %v6369, %v6368
        %v6407 = vpack.c.b16 %v6371, %v6370
        %v6408 = vpack.c.b16 %v6373, %v6372
        %v6409 = vpack.c.b16 %v6375, %v6374
        %v6410 = vpack.c.b16 %v6377, %v6376
        %v6411 = vpack.c.b16 %v6379, %v6378
        %v6412 = vpack.c.b16 %v6381, %v6380
        %v6413 = vpack.c.b16 %v6383, %v6382
        %v6414 = vpack.c.b16 %v6385, %v6384
        %v6415 = vpack.c.b16 %v6387, %v6386
        %v6416 = vpack.c.b16 %v6389, %v6388
        %v6417 = vpack.c.b16 %v6391, %v6390
        %v6418 = vpack.c.b16 %v6393, %v6392
        %v6419 = vpack.c.b16 %v6395, %v6394
        %6444 = vmatpush.bf16.msra.mxu0 %v6403
        %6445 = vmatpush.bf16.msra.mxu0 %v6402
        %6446 = vmatpush.bf16.msra.mxu0 %v6401
        %6447 = vmatpush.bf16.msra.mxu0 %v6400
        %6448 = vmatpush.bf16.msra.mxu0 %v6399
        %6449 = vmatpush.bf16.msra.mxu0 %v6398
        %6450 = vmatpush.bf16.msra.mxu0 %v6397
        %6451 = vmatpush.bf16.msra.mxu0 %v6396
        %6452 = vmatmul.bf16.gmra.mxu0 %v6204
        %v6453 = vpop.f32.mrf.mxu0
        %v6454 = vadd.f32 0.0, %v6453
        %v6455 = vpop.f32.mrf.mxu0
        %v6456 = vadd.f32 0.0, %v6455
        %6457 = vmatmul.bf16.gmra.mxu0 %v6207
        %v6458 = vpop.f32.mrf.mxu0
        %v6459 = vadd.f32 0.0, %v6458
        %v6460 = vpop.f32.mrf.mxu0
        %v6461 = vadd.f32 0.0, %v6460
        %6462 = vmatmul.bf16.gmra.mxu0 %v6210
        %v6463 = vpop.f32.mrf.mxu0
        %v6464 = vadd.f32 0.0, %v6463
        %v6465 = vpop.f32.mrf.mxu0
        %v6466 = vadd.f32 0.0, %v6465
        %6467 = vmatmul.bf16.gmra.mxu0 %v6213
        %v6468 = vpop.f32.mrf.mxu0
        %v6469 = vadd.f32 0.0, %v6468
        %v6470 = vpop.f32.mrf.mxu0
        %v6471 = vadd.f32 0.0, %v6470
        %6472 = vmatmul.bf16.gmra.mxu0 %v6216
        %v6473 = vpop.f32.mrf.mxu0
        %v6474 = vadd.f32 0.0, %v6473
        %v6475 = vpop.f32.mrf.mxu0
        %v6476 = vadd.f32 0.0, %v6475
        %6477 = vmatmul.bf16.gmra.mxu0 %v6219
        %v6478 = vpop.f32.mrf.mxu0
        %v6479 = vadd.f32 0.0, %v6478
        %v6480 = vpop.f32.mrf.mxu0
        %v6481 = vadd.f32 0.0, %v6480
        %6482 = vmatmul.bf16.gmra.mxu0 %v6222
        %v6483 = vpop.f32.mrf.mxu0
        %v6484 = vadd.f32 0.0, %v6483
        %v6485 = vpop.f32.mrf.mxu0
        %v6486 = vadd.f32 0.0, %v6485
        %6487 = vmatmul.bf16.gmra.mxu0 %v6225
        %v6488 = vpop.f32.mrf.mxu0
        %v6489 = vadd.f32 0.0, %v6488
        %v6490 = vpop.f32.mrf.mxu0
        %v6491 = vadd.f32 0.0, %v6490
        %6492 = vmatmul.bf16.gmra.mxu0 %v6228
        %v6493 = vpop.f32.mrf.mxu0
        %v6494 = vadd.f32 0.0, %v6493
        %v6495 = vpop.f32.mrf.mxu0
        %v6496 = vadd.f32 0.0, %v6495
        %6497 = vmatmul.bf16.gmra.mxu0 %v6231
        %v6498 = vpop.f32.mrf.mxu0
        %v6499 = vadd.f32 0.0, %v6498
        %v6500 = vpop.f32.mrf.mxu0
        %v6501 = vadd.f32 0.0, %v6500
        %6502 = vmatmul.bf16.gmra.mxu0 %v6234
        %v6503 = vpop.f32.mrf.mxu0
        %v6504 = vadd.f32 0.0, %v6503
        %v6505 = vpop.f32.mrf.mxu0
        %v6506 = vadd.f32 0.0, %v6505
        %6507 = vmatmul.bf16.gmra.mxu0 %v6237
        %v6508 = vpop.f32.mrf.mxu0
        %v6509 = vadd.f32 0.0, %v6508
        %v6510 = vpop.f32.mrf.mxu0
        %v6511 = vadd.f32 0.0, %v6510
        %6512 = vmatmul.bf16.gmra.mxu0 %v6240
        %v6513 = vpop.f32.mrf.mxu0
        %v6514 = vadd.f32 0.0, %v6513
        %v6515 = vpop.f32.mrf.mxu0
        %v6516 = vadd.f32 0.0, %v6515
        %6517 = vmatmul.bf16.gmra.mxu0 %v6243
        %v6518 = vpop.f32.mrf.mxu0
        %v6519 = vadd.f32 0.0, %v6518
        %v6520 = vpop.f32.mrf.mxu0
        %v6521 = vadd.f32 0.0, %v6520
        %6522 = vmatmul.bf16.gmra.mxu0 %v6246
        %v6523 = vpop.f32.mrf.mxu0
        %v6524 = vadd.f32 0.0, %v6523
        %v6525 = vpop.f32.mrf.mxu0
        %v6526 = vadd.f32 0.0, %v6525
        %6527 = vmatmul.bf16.gmra.mxu0 %v6249
        %v6528 = vpop.f32.mrf.mxu0
        %v6529 = vadd.f32 0.0, %v6528
        %v6530 = vpop.f32.mrf.mxu0
        %v6531 = vadd.f32 0.0, %v6530
        %6532 = vdwg.mxu0
        %6533 = vmatpush.bf16.msra.mxu0 %v6411
        %6534 = vmatpush.bf16.msra.mxu0 %v6410
        %6535 = vmatpush.bf16.msra.mxu0 %v6409
        %6536 = vmatpush.bf16.msra.mxu0 %v6408
        %6537 = vmatpush.bf16.msra.mxu0 %v6407
        %6538 = vmatpush.bf16.msra.mxu0 %v6406
        %6539 = vmatpush.bf16.msra.mxu0 %v6405
        %6540 = vmatpush.bf16.msra.mxu0 %v6404
        %6541 = vmatmul.bf16.gmra.mxu0 %v6205
        %v6542 = vpop.f32.mrf.mxu0
        %v6543 = vadd.f32 %v6454, %v6542
        %v6544 = vpop.f32.mrf.mxu0
        %v6545 = vadd.f32 %v6456, %v6544
        %6546 = vmatmul.bf16.gmra.mxu0 %v6208
        %v6547 = vpop.f32.mrf.mxu0
        %v6548 = vadd.f32 %v6459, %v6547
        %v6549 = vpop.f32.mrf.mxu0
        %v6550 = vadd.f32 %v6461, %v6549
        %6551 = vmatmul.bf16.gmra.mxu0 %v6211
        %v6552 = vpop.f32.mrf.mxu0
        %v6553 = vadd.f32 %v6464, %v6552
        %v6554 = vpop.f32.mrf.mxu0
        %v6555 = vadd.f32 %v6466, %v6554
        %6556 = vmatmul.bf16.gmra.mxu0 %v6214
        %v6557 = vpop.f32.mrf.mxu0
        %v6558 = vadd.f32 %v6469, %v6557
        %v6559 = vpop.f32.mrf.mxu0
        %v6560 = vadd.f32 %v6471, %v6559
        %6561 = vmatmul.bf16.gmra.mxu0 %v6217
        %v6562 = vpop.f32.mrf.mxu0
        %v6563 = vadd.f32 %v6474, %v6562
        %v6564 = vpop.f32.mrf.mxu0
        %v6565 = vadd.f32 %v6476, %v6564
        %6566 = vmatmul.bf16.gmra.mxu0 %v6220
        %v6567 = vpop.f32.mrf.mxu0
        %v6568 = vadd.f32 %v6479, %v6567
        %v6569 = vpop.f32.mrf.mxu0
        %v6570 = vadd.f32 %v6481, %v6569
        %6571 = vmatmul.bf16.gmra.mxu0 %v6223
        %v6572 = vpop.f32.mrf.mxu0
        %v6573 = vadd.f32 %v6484, %v6572
        %v6574 = vpop.f32.mrf.mxu0
        %v6575 = vadd.f32 %v6486, %v6574
        %6576 = vmatmul.bf16.gmra.mxu0 %v6226
        %v6577 = vpop.f32.mrf.mxu0
        %v6578 = vadd.f32 %v6489, %v6577
        %v6579 = vpop.f32.mrf.mxu0
        %v6580 = vadd.f32 %v6491, %v6579
        %6581 = vmatmul.bf16.gmra.mxu0 %v6229
        %v6582 = vpop.f32.mrf.mxu0
        %v6583 = vadd.f32 %v6494, %v6582
        %v6584 = vpop.f32.mrf.mxu0
        %v6585 = vadd.f32 %v6496, %v6584
        %6586 = vmatmul.bf16.gmra.mxu0 %v6232
        %v6587 = vpop.f32.mrf.mxu0
        %v6588 = vadd.f32 %v6499, %v6587
        %v6589 = vpop.f32.mrf.mxu0
        %v6590 = vadd.f32 %v6501, %v6589
        %6591 = vmatmul.bf16.gmra.mxu0 %v6235
        %v6592 = vpop.f32.mrf.mxu0
        %v6593 = vadd.f32 %v6504, %v6592
        %v6594 = vpop.f32.mrf.mxu0
        %v6595 = vadd.f32 %v6506, %v6594
        %6596 = vmatmul.bf16.gmra.mxu0 %v6238
        %v6597 = vpop.f32.mrf.mxu0
        %v6598 = vadd.f32 %v6509, %v6597
        %v6599 = vpop.f32.mrf.mxu0
        %v6600 = vadd.f32 %v6511, %v6599
        %6601 = vmatmul.bf16.gmra.mxu0 %v6241
        %v6602 = vpop.f32.mrf.mxu0
        %v6603 = vadd.f32 %v6514, %v6602
        %v6604 = vpop.f32.mrf.mxu0
        %v6605 = vadd.f32 %v6516, %v6604
        %6606 = vmatmul.bf16.gmra.mxu0 %v6244
        %v6607 = vpop.f32.mrf.mxu0
        %v6608 = vadd.f32 %v6519, %v6607
        %v6609 = vpop.f32.mrf.mxu0
        %v6610 = vadd.f32 %v6521, %v6609
        %6611 = vmatmul.bf16.gmra.mxu0 %v6247
        %v6612 = vpop.f32.mrf.mxu0
        %v6613 = vadd.f32 %v6524, %v6612
        %v6614 = vpop.f32.mrf.mxu0
        %v6615 = vadd.f32 %v6526, %v6614
        %6616 = vmatmul.bf16.gmra.mxu0 %v6250
        %v6617 = vpop.f32.mrf.mxu0
        %v6618 = vadd.f32 %v6529, %v6617
        %v6619 = vpop.f32.mrf.mxu0
        %v6620 = vadd.f32 %v6531, %v6619
        %6621 = vdwg.mxu0
        %6622 = vmatpush.bf16.msra.mxu0 %v6419
        %6623 = vmatpush.bf16.msra.mxu0 %v6418
        %6624 = vmatpush.bf16.msra.mxu0 %v6417
        %6625 = vmatpush.bf16.msra.mxu0 %v6416
        %6626 = vmatpush.bf16.msra.mxu0 %v6415
        %6627 = vmatpush.bf16.msra.mxu0 %v6414
        %6628 = vmatpush.bf16.msra.mxu0 %v6413
        %6629 = vmatpush.bf16.msra.mxu0 %v6412
        %6630 = vmatmul.bf16.gmra.mxu0 %v6206
        %v6631 = vpop.f32.mrf.mxu0
        %v6632 = vadd.f32 %v6543, %v6631
        %v6633 = vpop.f32.mrf.mxu0
        %v6634 = vadd.f32 %v6545, %v6633
        %6635 = vmatmul.bf16.gmra.mxu0 %v6209
        %v6636 = vpop.f32.mrf.mxu0
        %v6637 = vadd.f32 %v6548, %v6636
        %v6638 = vpop.f32.mrf.mxu0
        %v6639 = vadd.f32 %v6550, %v6638
        %6640 = vmatmul.bf16.gmra.mxu0 %v6212
        %v6641 = vpop.f32.mrf.mxu0
        %v6642 = vadd.f32 %v6553, %v6641
        %v6643 = vpop.f32.mrf.mxu0
        %v6644 = vadd.f32 %v6555, %v6643
        %6645 = vmatmul.bf16.gmra.mxu0 %v6215
        %v6646 = vpop.f32.mrf.mxu0
        %v6647 = vadd.f32 %v6558, %v6646
        %v6648 = vpop.f32.mrf.mxu0
        %v6649 = vadd.f32 %v6560, %v6648
        %6650 = vmatmul.bf16.gmra.mxu0 %v6218
        %v6651 = vpop.f32.mrf.mxu0
        %v6652 = vadd.f32 %v6563, %v6651
        %v6653 = vpop.f32.mrf.mxu0
        %v6654 = vadd.f32 %v6565, %v6653
        %6655 = vmatmul.bf16.gmra.mxu0 %v6221
        %v6656 = vpop.f32.mrf.mxu0
        %v6657 = vadd.f32 %v6568, %v6656
        %v6658 = vpop.f32.mrf.mxu0
        %v6659 = vadd.f32 %v6570, %v6658
        %6660 = vmatmul.bf16.gmra.mxu0 %v6224
        %v6661 = vpop.f32.mrf.mxu0
        %v6662 = vadd.f32 %v6573, %v6661
        %v6663 = vpop.f32.mrf.mxu0
        %v6664 = vadd.f32 %v6575, %v6663
        %6665 = vmatmul.bf16.gmra.mxu0 %v6227
        %v6666 = vpop.f32.mrf.mxu0
        %v6667 = vadd.f32 %v6578, %v6666
        %v6668 = vpop.f32.mrf.mxu0
        %v6669 = vadd.f32 %v6580, %v6668
        %6670 = vmatmul.bf16.gmra.mxu0 %v6230
        %v6671 = vpop.f32.mrf.mxu0
        %v6672 = vadd.f32 %v6583, %v6671
        %v6673 = vpop.f32.mrf.mxu0
        %v6674 = vadd.f32 %v6585, %v6673
        %6675 = vmatmul.bf16.gmra.mxu0 %v6233
        %v6676 = vpop.f32.mrf.mxu0
        %v6677 = vadd.f32 %v6588, %v6676
        %v6678 = vpop.f32.mrf.mxu0
        %v6679 = vadd.f32 %v6590, %v6678
        %6680 = vmatmul.bf16.gmra.mxu0 %v6236
        %v6681 = vpop.f32.mrf.mxu0
        %v6682 = vadd.f32 %v6593, %v6681
        %v6683 = vpop.f32.mrf.mxu0
        %v6684 = vadd.f32 %v6595, %v6683
        %6685 = vmatmul.bf16.gmra.mxu0 %v6239
        %v6686 = vpop.f32.mrf.mxu0
        %v6687 = vadd.f32 %v6598, %v6686
        %v6688 = vpop.f32.mrf.mxu0
        %v6689 = vadd.f32 %v6600, %v6688
        %6690 = vmatmul.bf16.gmra.mxu0 %v6242
        %v6691 = vpop.f32.mrf.mxu0
        %v6692 = vadd.f32 %v6603, %v6691
        %v6693 = vpop.f32.mrf.mxu0
        %v6694 = vadd.f32 %v6605, %v6693
        %6695 = vmatmul.bf16.gmra.mxu0 %v6245
        %v6696 = vpop.f32.mrf.mxu0
        %v6697 = vadd.f32 %v6608, %v6696
        %v6698 = vpop.f32.mrf.mxu0
        %v6699 = vadd.f32 %v6610, %v6698
        %6700 = vmatmul.bf16.gmra.mxu0 %v6248
        %v6701 = vpop.f32.mrf.mxu0
        %v6702 = vadd.f32 %v6613, %v6701
        %v6703 = vpop.f32.mrf.mxu0
        %v6704 = vadd.f32 %v6615, %v6703
        %6705 = vmatmul.bf16.gmra.mxu0 %v6251
        %v6706 = vpop.f32.mrf.mxu0
        %v6707 = vadd.f32 %v6618, %v6706
        %v6708 = vpop.f32.mrf.mxu0
        %v6709 = vadd.f32 %v6620, %v6708
        %6710 = vdwg.mxu0
        %v6711 = vadd.f32 %v5852, %v6632
        %v6712 = vadd.f32 %v5854, %v6634
        %v6713 = vadd.f32 %v5857, %v6637
        %v6714 = vadd.f32 %v5859, %v6639
        %v6715 = vadd.f32 %v5862, %v6642
        %v6716 = vadd.f32 %v5864, %v6644
        %v6717 = vadd.f32 %v5867, %v6647
        %v6718 = vadd.f32 %v5869, %v6649
        %v6719 = vadd.f32 %v5872, %v6652
        %v6720 = vadd.f32 %v5874, %v6654
        %v6721 = vadd.f32 %v5877, %v6657
        %v6722 = vadd.f32 %v5879, %v6659
        %v6723 = vadd.f32 %v5882, %v6662
        %v6724 = vadd.f32 %v5884, %v6664
        %v6725 = vadd.f32 %v5887, %v6667
        %v6726 = vadd.f32 %v5889, %v6669
        %v6727 = vadd.f32 %v5892, %v6672
        %v6728 = vadd.f32 %v5894, %v6674
        %v6729 = vadd.f32 %v5897, %v6677
        %v6730 = vadd.f32 %v5899, %v6679
        %v6731 = vadd.f32 %v5902, %v6682
        %v6732 = vadd.f32 %v5904, %v6684
        %v6733 = vadd.f32 %v5907, %v6687
        %v6734 = vadd.f32 %v5909, %v6689
        %v6735 = vadd.f32 %v5912, %v6692
        %v6736 = vadd.f32 %v5914, %v6694
        %v6737 = vadd.f32 %v5917, %v6697
        %v6738 = vadd.f32 %v5919, %v6699
        %v6739 = vadd.f32 %v5922, %v6702
        %v6740 = vadd.f32 %v5924, %v6704
        %v6741 = vadd.f32 %v5927, %v6707
        %v6742 = vadd.f32 %v5929, %v6709
        %s6743 = scalar_lea.vmem %s2, 1
        %v6744 = vld [vmem:[%s6743] sm:$0x1]
        %v6746 = vperm.slane %v6744, 0
        %v6748 = vadd.f32 %v6711, %v6746
        %v6749 = vadd.f32 %v6712, %v6746
        %v6750 = vadd.f32 %v6713, %v6746
        %v6751 = vadd.f32 %v6714, %v6746
        %v6752 = vadd.f32 %v6715, %v6746
        %v6753 = vadd.f32 %v6716, %v6746
        %v6754 = vadd.f32 %v6717, %v6746
        %v6755 = vadd.f32 %v6718, %v6746
        %v6756 = vadd.f32 %v6719, %v6746
        %v6757 = vadd.f32 %v6720, %v6746
        %v6758 = vadd.f32 %v6721, %v6746
        %v6759 = vadd.f32 %v6722, %v6746
        %v6760 = vadd.f32 %v6723, %v6746
        %v6761 = vadd.f32 %v6724, %v6746
        %v6762 = vadd.f32 %v6725, %v6746
        %v6763 = vadd.f32 %v6726, %v6746
        %v6764 = vadd.f32 %v6727, %v6746
        %v6765 = vadd.f32 %v6728, %v6746
        %v6766 = vadd.f32 %v6729, %v6746
        %v6767 = vadd.f32 %v6730, %v6746
        %v6768 = vadd.f32 %v6731, %v6746
        %v6769 = vadd.f32 %v6732, %v6746
        %v6770 = vadd.f32 %v6733, %v6746
        %v6771 = vadd.f32 %v6734, %v6746
        %v6772 = vadd.f32 %v6735, %v6746
        %v6773 = vadd.f32 %v6736, %v6746
        %v6774 = vadd.f32 %v6737, %v6746
        %v6775 = vadd.f32 %v6738, %v6746
        %v6776 = vadd.f32 %v6739, %v6746
        %v6777 = vadd.f32 %v6740, %v6746
        %v6778 = vadd.f32 %v6741, %v6746
        %v6779 = vadd.f32 %v6742, %v6746
        %v6780 = vadd.f32 %v6748, %v6749
        %v6781 = vadd.f32 %v6780, %v6750
        %v6782 = vadd.f32 %v6781, %v6751
        %v6783 = vadd.f32 %v6782, %v6752
        %v6784 = vadd.f32 %v6783, %v6753
        %v6785 = vadd.f32 %v6784, %v6754
        %v6786 = vadd.f32 %v6785, %v6755
        %v6787 = vadd.f32 %v6786, %v6756
        %v6788 = vadd.f32 %v6787, %v6757
        %v6789 = vadd.f32 %v6788, %v6758
        %v6790 = vadd.f32 %v6789, %v6759
        %v6791 = vadd.f32 %v6790, %v6760
        %v6792 = vadd.f32 %v6791, %v6761
        %v6793 = vadd.f32 %v6792, %v6762
        %v6794 = vadd.f32 %v6793, %v6763
        %v6795 = vadd.f32 %v6794, %v6764
        %v6796 = vadd.f32 %v6795, %v6765
        %v6797 = vadd.f32 %v6796, %v6766
        %v6798 = vadd.f32 %v6797, %v6767
        %v6799 = vadd.f32 %v6798, %v6768
        %v6800 = vadd.f32 %v6799, %v6769
        %v6801 = vadd.f32 %v6800, %v6770
        %v6802 = vadd.f32 %v6801, %v6771
        %v6803 = vadd.f32 %v6802, %v6772
        %v6804 = vadd.f32 %v6803, %v6773
        %v6805 = vadd.f32 %v6804, %v6774
        %v6806 = vadd.f32 %v6805, %v6775
        %v6807 = vadd.f32 %v6806, %v6776
        %v6808 = vadd.f32 %v6807, %v6777
        %v6809 = vadd.f32 %v6808, %v6778
        %v6810 = vadd.f32 %v6809, %v6779
        %v6811 = vrot.slane %v6810, 4
        %v6812 = vadd.f32 %v6810, %v6811
        %v6813 = vrot.slane %v6812, 2
        %v6814 = vadd.f32 %v6812, %v6813
        %v6815 = vrot.slane %v6814, 1
        %v6816 = vadd.f32 %v6814, %v6815
        %v6817 = vmul.f32 %v6748, %v6748
        %v6818 = vmul.f32 %v6749, %v6749
        %v6819 = vmul.f32 %v6750, %v6750
        %v6820 = vmul.f32 %v6751, %v6751
        %v6821 = vmul.f32 %v6752, %v6752
        %v6822 = vmul.f32 %v6753, %v6753
        %v6823 = vmul.f32 %v6754, %v6754
        %v6824 = vmul.f32 %v6755, %v6755
        %v6825 = vmul.f32 %v6756, %v6756
        %v6826 = vmul.f32 %v6757, %v6757
        %v6827 = vmul.f32 %v6758, %v6758
        %v6828 = vmul.f32 %v6759, %v6759
        %v6829 = vmul.f32 %v6760, %v6760
        %v6830 = vmul.f32 %v6761, %v6761
        %v6831 = vmul.f32 %v6762, %v6762
        %v6832 = vmul.f32 %v6763, %v6763
        %v6833 = vmul.f32 %v6764, %v6764
        %v6834 = vmul.f32 %v6765, %v6765
        %v6835 = vmul.f32 %v6766, %v6766
        %v6836 = vmul.f32 %v6767, %v6767
        %v6837 = vmul.f32 %v6768, %v6768
        %v6838 = vmul.f32 %v6769, %v6769
        %v6839 = vmul.f32 %v6770, %v6770
        %v6840 = vmul.f32 %v6771, %v6771
        %v6841 = vmul.f32 %v6772, %v6772
        %v6842 = vmul.f32 %v6773, %v6773
        %v6843 = vmul.f32 %v6774, %v6774
        %v6844 = vmul.f32 %v6775, %v6775
        %v6845 = vmul.f32 %v6776, %v6776
        %v6846 = vmul.f32 %v6777, %v6777
        %v6847 = vmul.f32 %v6778, %v6778
        %v6848 = vmul.f32 %v6779, %v6779
        %v6849 = vadd.f32 %v6817, %v6818
        %v6850 = vadd.f32 %v6849, %v6819
        %v6851 = vadd.f32 %v6850, %v6820
        %v6852 = vadd.f32 %v6851, %v6821
        %v6853 = vadd.f32 %v6852, %v6822
        %v6854 = vadd.f32 %v6853, %v6823
        %v6855 = vadd.f32 %v6854, %v6824
        %v6856 = vadd.f32 %v6855, %v6825
        %v6857 = vadd.f32 %v6856, %v6826
        %v6858 = vadd.f32 %v6857, %v6827
        %v6859 = vadd.f32 %v6858, %v6828
        %v6860 = vadd.f32 %v6859, %v6829
        %v6861 = vadd.f32 %v6860, %v6830
        %v6862 = vadd.f32 %v6861, %v6831
        %v6863 = vadd.f32 %v6862, %v6832
        %v6864 = vadd.f32 %v6863, %v6833
        %v6865 = vadd.f32 %v6864, %v6834
        %v6866 = vadd.f32 %v6865, %v6835
        %v6867 = vadd.f32 %v6866, %v6836
        %v6868 = vadd.f32 %v6867, %v6837
        %v6869 = vadd.f32 %v6868, %v6838
        %v6870 = vadd.f32 %v6869, %v6839
        %v6871 = vadd.f32 %v6870, %v6840
        %v6872 = vadd.f32 %v6871, %v6841
        %v6873 = vadd.f32 %v6872, %v6842
        %v6874 = vadd.f32 %v6873, %v6843
        %v6875 = vadd.f32 %v6874, %v6844
        %v6876 = vadd.f32 %v6875, %v6845
        %v6877 = vadd.f32 %v6876, %v6846
        %v6878 = vadd.f32 %v6877, %v6847
        %v6879 = vadd.f32 %v6878, %v6848
        %v6880 = vrot.slane %v6879, 4
        %v6881 = vadd.f32 %v6879, %v6880
        %v6882 = vrot.slane %v6881, 2
        %v6883 = vadd.f32 %v6881, %v6882
        %v6884 = vrot.slane %v6883, 1
        %v6885 = vadd.f32 %v6883, %v6884
        %v6886 = vsel %vm3946, %v6816, %v6885
        %v6887 = vld [vmem:[%s5] sm:$0xff]
        %v6888 = vld [vmem:[%s5 + $0x8] sm:$0xff]
        %v6889 = vld [vmem:[%s5 + $0x10] sm:$0xff]
        %v6890 = vld [vmem:[%s5 + $0x18] sm:$0xff]
        %v6891 = vld [vmem:[%s5 + $0x20] sm:$0xff]
        %v6892 = vld [vmem:[%s5 + $0x28] sm:$0xff]
        %v6893 = vld [vmem:[%s5 + $0x30] sm:$0xff]
        %v6894 = vld [vmem:[%s5 + $0x38] sm:$0xff]
        %v6895 = vld [vmem:[%s5 + $0x40] sm:$0xff]
        %v6896 = vld [vmem:[%s5 + $0x48] sm:$0xff]
        %v6897 = vld [vmem:[%s5 + $0x50] sm:$0xff]
        %v6898 = vld [vmem:[%s5 + $0x58] sm:$0xff]
        %v6899 = vld [vmem:[%s5 + $0x60] sm:$0xff]
        %v6900 = vld [vmem:[%s5 + $0x68] sm:$0xff]
        %v6901 = vld [vmem:[%s5 + $0x70] sm:$0xff]
        %v6902 = vld [vmem:[%s5 + $0x78] sm:$0xff]
        %6903 = vmatpush.msra.mxu0 %v6902
        %6904 = vmatpush.msra.mxu0 %v6901
        %6905 = vmatpush.msra.mxu0 %v6900
        %6906 = vmatpush.msra.mxu0 %v6899
        %6907 = vmatpush.msra.mxu0 %v6898
        %6908 = vmatpush.msra.mxu0 %v6897
        %6909 = vmatpush.msra.mxu0 %v6896
        %6910 = vmatpush.msra.mxu0 %v6895
        %6911 = vmatpush.msra.mxu0 %v6894
        %6912 = vmatpush.msra.mxu0 %v6893
        %6913 = vmatpush.msra.mxu0 %v6892
        %6914 = vmatpush.msra.mxu0 %v6891
        %6915 = vmatpush.msra.mxu0 %v6890
        %6916 = vmatpush.msra.mxu0 %v6889
        %6917 = vmatpush.msra.mxu0 %v6888
        %6918 = vmatpush.msra.mxu0 %v6887
        %6919 = vmatmul.f32.gmra.mxu0 %v6886
        %v6920 = vpop.f32.mrf.mxu0
        %v6921 = vadd.f32 0.0, %v6920
        %6922 = vdwg.mxu0
        %v6923 = vmul.f32 %v6921, 0.001953125
        %v6924 = vmul.f32 %v6923, %v6923
        %v6926 = vrot.slane %v6924, 7
        %v6928 = vsub.f32 %v6923, %v6926
        %v6929 = vperm.slane %v6923, 0
        %v6930 = vsub.f32 %v6748, %v6929
        %v6931 = vsub.f32 %v6749, %v6929
        %v6932 = vsub.f32 %v6750, %v6929
        %v6933 = vsub.f32 %v6751, %v6929
        %v6934 = vsub.f32 %v6752, %v6929
        %v6935 = vsub.f32 %v6753, %v6929
        %v6936 = vsub.f32 %v6754, %v6929
        %v6937 = vsub.f32 %v6755, %v6929
        %v6938 = vsub.f32 %v6756, %v6929
        %v6939 = vsub.f32 %v6757, %v6929
        %v6940 = vsub.f32 %v6758, %v6929
        %v6941 = vsub.f32 %v6759, %v6929
        %v6942 = vsub.f32 %v6760, %v6929
        %v6943 = vsub.f32 %v6761, %v6929
        %v6944 = vsub.f32 %v6762, %v6929
        %v6945 = vsub.f32 %v6763, %v6929
        %v6946 = vsub.f32 %v6764, %v6929
        %v6947 = vsub.f32 %v6765, %v6929
        %v6948 = vsub.f32 %v6766, %v6929
        %v6949 = vsub.f32 %v6767, %v6929
        %v6950 = vsub.f32 %v6768, %v6929
        %v6951 = vsub.f32 %v6769, %v6929
        %v6952 = vsub.f32 %v6770, %v6929
        %v6953 = vsub.f32 %v6771, %v6929
        %v6954 = vsub.f32 %v6772, %v6929
        %v6955 = vsub.f32 %v6773, %v6929
        %v6956 = vsub.f32 %v6774, %v6929
        %v6957 = vsub.f32 %v6775, %v6929
        %v6958 = vsub.f32 %v6776, %v6929
        %v6959 = vsub.f32 %v6777, %v6929
        %v6960 = vsub.f32 %v6778, %v6929
        %v6961 = vsub.f32 %v6779, %v6929
        %v6962 = vadd.f32 %v6928, 1e-05
        %v6963 = vrsqrt.pop %v6962
        %v6964 = vmul.f32 %v6963, %v6962
        %v6965 = vmul.f32 %v6964, %v6963
        %v6966 = vmul.f32 0.5, %v6965
        %v6967 = vsub.f32 1.5, %v6966
        %v6968 = vmul.f32 %v6963, %v6967
        %vm6969 = vweird.f32 %v6962
        %vm6970 = vweird.f32 %v6963
        %vm6971 = vmor %vm6969, %vm6970
        %v6972 = vsel %vm6971, %v6963, %v6968
        %v6973 = vperm.slane %v6972, 1
        %v6974 = vmul.f32 %v6930, %v6973
        %v6975 = vmul.f32 %v6931, %v6973
        %v6976 = vmul.f32 %v6932, %v6973
        %v6977 = vmul.f32 %v6933, %v6973
        %v6978 = vmul.f32 %v6934, %v6973
        %v6979 = vmul.f32 %v6935, %v6973
        %v6980 = vmul.f32 %v6936, %v6973
        %v6981 = vmul.f32 %v6937, %v6973
        %v6982 = vmul.f32 %v6938, %v6973
        %v6983 = vmul.f32 %v6939, %v6973
        %v6984 = vmul.f32 %v6940, %v6973
        %v6985 = vmul.f32 %v6941, %v6973
        %v6986 = vmul.f32 %v6942, %v6973
        %v6987 = vmul.f32 %v6943, %v6973
        %v6988 = vmul.f32 %v6944, %v6973
        %v6989 = vmul.f32 %v6945, %v6973
        %v6990 = vmul.f32 %v6946, %v6973
        %v6991 = vmul.f32 %v6947, %v6973
        %v6992 = vmul.f32 %v6948, %v6973
        %v6993 = vmul.f32 %v6949, %v6973
        %v6994 = vmul.f32 %v6950, %v6973
        %v6995 = vmul.f32 %v6951, %v6973
        %v6996 = vmul.f32 %v6952, %v6973
        %v6997 = vmul.f32 %v6953, %v6973
        %v6998 = vmul.f32 %v6954, %v6973
        %v6999 = vmul.f32 %v6955, %v6973
        %v7000 = vmul.f32 %v6956, %v6973
        %v7001 = vmul.f32 %v6957, %v6973
        %v7002 = vmul.f32 %v6958, %v6973
        %v7003 = vmul.f32 %v6959, %v6973
        %v7004 = vmul.f32 %v6960, %v6973
        %v7005 = vmul.f32 %v6961, %v6973
        %s7006 = scalar_lea.vmem %s3, 1
        %v7007 = vld [vmem:[%s7006] sm:$0x1]
        %v7009 = vperm.slane %v7007, 0
        %v7011 = vmul.f32 %v6974, %v7009
        %v7012 = vmul.f32 %v6975, %v7009
        %v7013 = vmul.f32 %v6976, %v7009
        %v7014 = vmul.f32 %v6977, %v7009
        %v7015 = vmul.f32 %v6978, %v7009
        %v7016 = vmul.f32 %v6979, %v7009
        %v7017 = vmul.f32 %v6980, %v7009
        %v7018 = vmul.f32 %v6981, %v7009
        %v7019 = vmul.f32 %v6982, %v7009
        %v7020 = vmul.f32 %v6983, %v7009
        %v7021 = vmul.f32 %v6984, %v7009
        %v7022 = vmul.f32 %v6985, %v7009
        %v7023 = vmul.f32 %v6986, %v7009
        %v7024 = vmul.f32 %v6987, %v7009
        %v7025 = vmul.f32 %v6988, %v7009
        %v7026 = vmul.f32 %v6989, %v7009
        %v7027 = vmul.f32 %v6990, %v7009
        %v7028 = vmul.f32 %v6991, %v7009
        %v7029 = vmul.f32 %v6992, %v7009
        %v7030 = vmul.f32 %v6993, %v7009
        %v7031 = vmul.f32 %v6994, %v7009
        %v7032 = vmul.f32 %v6995, %v7009
        %v7033 = vmul.f32 %v6996, %v7009
        %v7034 = vmul.f32 %v6997, %v7009
        %v7035 = vmul.f32 %v6998, %v7009
        %v7036 = vmul.f32 %v6999, %v7009
        %v7037 = vmul.f32 %v7000, %v7009
        %v7038 = vmul.f32 %v7001, %v7009
        %v7039 = vmul.f32 %v7002, %v7009
        %v7040 = vmul.f32 %v7003, %v7009
        %v7041 = vmul.f32 %v7004, %v7009
        %v7042 = vmul.f32 %v7005, %v7009
        %s7043 = scalar_lea.vmem %s4, 1
        %v7044 = vld [vmem:[%s7043] sm:$0x1]
        %v7046 = vperm.slane %v7044, 0
        %v7048 = vadd.f32 %v7011, %v7046
        %v7049 = vadd.f32 %v7012, %v7046
        %v7050 = vadd.f32 %v7013, %v7046
        %v7051 = vadd.f32 %v7014, %v7046
        %v7052 = vadd.f32 %v7015, %v7046
        %v7053 = vadd.f32 %v7016, %v7046
        %v7054 = vadd.f32 %v7017, %v7046
        %v7055 = vadd.f32 %v7018, %v7046
        %v7056 = vadd.f32 %v7019, %v7046
        %v7057 = vadd.f32 %v7020, %v7046
        %v7058 = vadd.f32 %v7021, %v7046
        %v7059 = vadd.f32 %v7022, %v7046
        %v7060 = vadd.f32 %v7023, %v7046
        %v7061 = vadd.f32 %v7024, %v7046
        %v7062 = vadd.f32 %v7025, %v7046
        %v7063 = vadd.f32 %v7026, %v7046
        %v7064 = vadd.f32 %v7027, %v7046
        %v7065 = vadd.f32 %v7028, %v7046
        %v7066 = vadd.f32 %v7029, %v7046
        %v7067 = vadd.f32 %v7030, %v7046
        %v7068 = vadd.f32 %v7031, %v7046
        %v7069 = vadd.f32 %v7032, %v7046
        %v7070 = vadd.f32 %v7033, %v7046
        %v7071 = vadd.f32 %v7034, %v7046
        %v7072 = vadd.f32 %v7035, %v7046
        %v7073 = vadd.f32 %v7036, %v7046
        %v7074 = vadd.f32 %v7037, %v7046
        %v7075 = vadd.f32 %v7038, %v7046
        %v7076 = vadd.f32 %v7039, %v7046
        %v7077 = vadd.f32 %v7040, %v7046
        %v7078 = vadd.f32 %v7041, %v7046
        %v7079 = vadd.f32 %v7042, %v7046
        %v7080 = vmax.f32 %v7048, 0.0
        %v7081 = vmax.f32 %v7049, 0.0
        %v7082 = vmax.f32 %v7050, 0.0
        %v7083 = vmax.f32 %v7051, 0.0
        %v7084 = vmax.f32 %v7052, 0.0
        %v7085 = vmax.f32 %v7053, 0.0
        %v7086 = vmax.f32 %v7054, 0.0
        %v7087 = vmax.f32 %v7055, 0.0
        %v7088 = vmax.f32 %v7056, 0.0
        %v7089 = vmax.f32 %v7057, 0.0
        %v7090 = vmax.f32 %v7058, 0.0
        %v7091 = vmax.f32 %v7059, 0.0
        %v7092 = vmax.f32 %v7060, 0.0
        %v7093 = vmax.f32 %v7061, 0.0
        %v7094 = vmax.f32 %v7062, 0.0
        %v7095 = vmax.f32 %v7063, 0.0
        %v7096 = vmax.f32 %v7064, 0.0
        %v7097 = vmax.f32 %v7065, 0.0
        %v7098 = vmax.f32 %v7066, 0.0
        %v7099 = vmax.f32 %v7067, 0.0
        %v7100 = vmax.f32 %v7068, 0.0
        %v7101 = vmax.f32 %v7069, 0.0
        %v7102 = vmax.f32 %v7070, 0.0
        %v7103 = vmax.f32 %v7071, 0.0
        %v7104 = vmax.f32 %v7072, 0.0
        %v7105 = vmax.f32 %v7073, 0.0
        %v7106 = vmax.f32 %v7074, 0.0
        %v7107 = vmax.f32 %v7075, 0.0
        %v7108 = vmax.f32 %v7076, 0.0
        %v7109 = vmax.f32 %v7077, 0.0
        %v7110 = vmax.f32 %v7078, 0.0
        %v7111 = vmax.f32 %v7079, 0.0
        %7112 = vst [vmem:[#allocation2 + $0x10] sm:$0xff] %v7080
        %7113 = vst [vmem:[#allocation2 + $0x18] sm:$0xff] %v7081
        %7114 = vst [vmem:[#allocation2 + $0x20] sm:$0xff] %v7082
        %7115 = vst [vmem:[#allocation2 + $0x28] sm:$0xff] %v7083
        %7116 = vst [vmem:[#allocation2 + $0x30] sm:$0xff] %v7084
        %7117 = vst [vmem:[#allocation2 + $0x38] sm:$0xff] %v7085
        %7118 = vst [vmem:[#allocation2 + $0x40] sm:$0xff] %v7086
        %7119 = vst [vmem:[#allocation2 + $0x48] sm:$0xff] %v7087
        %7120 = vst [vmem:[#allocation2 + $0x50] sm:$0xff] %v7088
        %7121 = vst [vmem:[#allocation2 + $0x58] sm:$0xff] %v7089
        %7122 = vst [vmem:[#allocation2 + $0x60] sm:$0xff] %v7090
        %7123 = vst [vmem:[#allocation2 + $0x68] sm:$0xff] %v7091
        %7124 = vst [vmem:[#allocation2 + $0x70] sm:$0xff] %v7092
        %7125 = vst [vmem:[#allocation2 + $0x78] sm:$0xff] %v7093
        %7126 = vst [vmem:[#allocation2 + $0x80] sm:$0xff] %v7094
        %7127 = vst [vmem:[#allocation2 + $0x88] sm:$0xff] %v7095
        %7128 = vst [vmem:[#allocation2 + $0x90] sm:$0xff] %v7096
        %7129 = vst [vmem:[#allocation2 + $0x98] sm:$0xff] %v7097
        %7130 = vst [vmem:[#allocation2 + $0xa0] sm:$0xff] %v7098
        %7131 = vst [vmem:[#allocation2 + $0xa8] sm:$0xff] %v7099
        %7132 = vst [vmem:[#allocation2 + $0xb0] sm:$0xff] %v7100
        %7133 = vst [vmem:[#allocation2 + $0xb8] sm:$0xff] %v7101
        %7134 = vst [vmem:[#allocation2 + $0xc0] sm:$0xff] %v7102
        %7135 = vst [vmem:[#allocation2 + $0xc8] sm:$0xff] %v7103
        %7136 = vst [vmem:[#allocation2 + $0xd0] sm:$0xff] %v7104
        %7137 = vst [vmem:[#allocation2 + $0xd8] sm:$0xff] %v7105
        %7138 = vst [vmem:[#allocation2 + $0xe0] sm:$0xff] %v7106
        %7139 = vst [vmem:[#allocation2 + $0xe8] sm:$0xff] %v7107
        %7140 = vst [vmem:[#allocation2 + $0xf0] sm:$0xff] %v7108
        %7141 = vst [vmem:[#allocation2 + $0xf8] sm:$0xff] %v7109
        %7142 = vst [vmem:[#allocation2 + $0x100] sm:$0xff] %v7110
        %7143 = vst [vmem:[#allocation2 + $0x108] sm:$0xff] %v7111
        %v7144 = vld [vmem:[#allocation2] sm:$0xff]
        %v7145 = vld [vmem:[#allocation2 + $0x8] sm:$0xff]
        %v7146 = vld [vmem:[#allocation2 + $0x10] sm:$0xff]
        %v7147 = vld [vmem:[#allocation2 + $0x18] sm:$0xff]
        %v7148 = vld [vmem:[#allocation2 + $0x20] sm:$0xff]
        %v7149 = vld [vmem:[#allocation2 + $0x28] sm:$0xff]
        %v7150 = vld [vmem:[#allocation2 + $0x30] sm:$0xff]
        %v7151 = vld [vmem:[#allocation2 + $0x38] sm:$0xff]
        %v7152 = vld [vmem:[#allocation2 + $0x40] sm:$0xff]
        %v7153 = vld [vmem:[#allocation2 + $0x48] sm:$0xff]
        %v7154 = vld [vmem:[#allocation2 + $0x50] sm:$0xff]
        %v7155 = vld [vmem:[#allocation2 + $0x58] sm:$0xff]
        %v7156 = vld [vmem:[#allocation2 + $0x60] sm:$0xff]
        %v7157 = vld [vmem:[#allocation2 + $0x68] sm:$0xff]
        %v7158 = vld [vmem:[#allocation2 + $0x70] sm:$0xff]
        %v7159 = vld [vmem:[#allocation2 + $0x78] sm:$0xff]
        %v7160 = vld [vmem:[#allocation2 + $0x80] sm:$0xff]
        %v7161 = vld [vmem:[#allocation2 + $0x88] sm:$0xff]
        %v7162 = vld [vmem:[#allocation2 + $0x90] sm:$0xff]
        %v7163 = vld [vmem:[#allocation2 + $0x98] sm:$0xff]
        %v7164 = vld [vmem:[#allocation2 + $0xa0] sm:$0xff]
        %v7165 = vld [vmem:[#allocation2 + $0xa8] sm:$0xff]
        %v7166 = vld [vmem:[#allocation2 + $0xb0] sm:$0xff]
        %v7167 = vld [vmem:[#allocation2 + $0xb8] sm:$0xff]
        %v7168 = vld [vmem:[#allocation2 + $0xc0] sm:$0xff]
        %v7169 = vld [vmem:[#allocation2 + $0xc8] sm:$0xff]
        %v7170 = vld [vmem:[#allocation2 + $0xd0] sm:$0xff]
        %v7171 = vld [vmem:[#allocation2 + $0xd8] sm:$0xff]
        %v7172 = vld [vmem:[#allocation2 + $0xe0] sm:$0xff]
        %v7173 = vld [vmem:[#allocation2 + $0xe8] sm:$0xff]
        %v7174 = vld [vmem:[#allocation2 + $0xf0] sm:$0xff]
        %v7175 = vld [vmem:[#allocation2 + $0xf8] sm:$0xff]
        %v7176 = vld [vmem:[#allocation2 + $0x100] sm:$0xff]
        %v7177 = vld [vmem:[#allocation2 + $0x108] sm:$0xff]
        %v7178 = vld [vmem:[#allocation2 + $0x110] sm:$0xff]
        %v7179 = vld [vmem:[#allocation2 + $0x118] sm:$0xff]
        %v7180 = vrot.slane %v7144, 7
        %v7181 = vrot.slane %v7145, 7
        %v7182 = vrot.slane %v7146, 7
        %v7183 = vrot.slane %v7147, 7
        %v7184 = vrot.slane %v7148, 7
        %v7185 = vrot.slane %v7149, 7
        %v7186 = vrot.slane %v7150, 7
        %v7187 = vrot.slane %v7151, 7
        %v7188 = vrot.slane %v7152, 7
        %v7189 = vrot.slane %v7153, 7
        %v7190 = vrot.slane %v7154, 7
        %v7191 = vrot.slane %v7155, 7
        %v7192 = vrot.slane %v7156, 7
        %v7193 = vrot.slane %v7157, 7
        %v7194 = vrot.slane %v7158, 7
        %v7195 = vrot.slane %v7159, 7
        %v7196 = vrot.slane %v7160, 7
        %v7197 = vrot.slane %v7161, 7
        %v7198 = vrot.slane %v7162, 7
        %v7199 = vrot.slane %v7163, 7
        %v7200 = vrot.slane %v7164, 7
        %v7201 = vrot.slane %v7165, 7
        %v7202 = vrot.slane %v7166, 7
        %v7203 = vrot.slane %v7167, 7
        %v7204 = vrot.slane %v7168, 7
        %v7205 = vrot.slane %v7169, 7
        %v7206 = vrot.slane %v7170, 7
        %v7207 = vrot.slane %v7171, 7
        %v7208 = vrot.slane %v7172, 7
        %v7209 = vrot.slane %v7173, 7
        %v7210 = vrot.slane %v7174, 7
        %v7211 = vrot.slane %v7175, 7
        %v7212 = vrot.slane %v7176, 7
        %v7213 = vrot.slane %v7177, 7
        %v7214 = vrot.slane %v7178, 7
        %v7215 = vrot.slane %v7179, 7
        %v7216 = vsel %vm1191, %v7214, %v7215
        %v7217 = vsel %vm1191, %v7213, %v7214
        %v7218 = vsel %vm1191, %v7212, %v7213
        %v7219 = vsel %vm1191, %v7211, %v7212
        %v7220 = vsel %vm1191, %v7210, %v7211
        %v7221 = vsel %vm1191, %v7209, %v7210
        %v7222 = vsel %vm1191, %v7208, %v7209
        %v7223 = vsel %vm1191, %v7207, %v7208
        %v7224 = vsel %vm1191, %v7206, %v7207
        %v7225 = vsel %vm1191, %v7205, %v7206
        %v7226 = vsel %vm1191, %v7204, %v7205
        %v7227 = vsel %vm1191, %v7203, %v7204
        %v7228 = vsel %vm1191, %v7202, %v7203
        %v7229 = vsel %vm1191, %v7201, %v7202
        %v7230 = vsel %vm1191, %v7200, %v7201
        %v7231 = vsel %vm1191, %v7199, %v7200
        %v7232 = vsel %vm1191, %v7198, %v7199
        %v7233 = vsel %vm1191, %v7197, %v7198
        %v7234 = vsel %vm1191, %v7196, %v7197
        %v7235 = vsel %vm1191, %v7195, %v7196
        %v7236 = vsel %vm1191, %v7194, %v7195
        %v7237 = vsel %vm1191, %v7193, %v7194
        %v7238 = vsel %vm1191, %v7192, %v7193
        %v7239 = vsel %vm1191, %v7191, %v7192
        %v7240 = vsel %vm1191, %v7190, %v7191
        %v7241 = vsel %vm1191, %v7189, %v7190
        %v7242 = vsel %vm1191, %v7188, %v7189
        %v7243 = vsel %vm1191, %v7187, %v7188
        %v7244 = vsel %vm1191, %v7186, %v7187
        %v7245 = vsel %vm1191, %v7185, %v7186
        %v7246 = vsel %vm1191, %v7184, %v7185
        %v7247 = vsel %vm1191, %v7183, %v7184
        %v7248 = vsel %vm1191, %v7182, %v7183
        %v7249 = vsel %vm1191, %v7181, %v7182
        %v7250 = vsel %vm1191, %v7180, %v7181
        %v7251 = vsel %vm1191, %v7215, %v7180
        %v7252 = vsel %vm1264, %v7251, 0.0
        %v7253 = vsel %vm1265, %v7250, 0.0
        %v7254 = vsel %vm1266, %v7249, 0.0
        %v7255 = vsel %vm1267, %v7248, 0.0
        %v7256 = vsel %vm1268, %v7247, 0.0
        %v7257 = vsel %vm1269, %v7246, 0.0
        %v7258 = vsel %vm1270, %v7245, 0.0
        %v7259 = vsel %vm1271, %v7244, 0.0
        %v7260 = vsel %vm1272, %v7243, 0.0
        %v7261 = vsel %vm1273, %v7242, 0.0
        %v7262 = vsel %vm1274, %v7241, 0.0
        %v7263 = vsel %vm1275, %v7240, 0.0
        %v7264 = vsel %vm1276, %v7239, 0.0
        %v7265 = vsel %vm1277, %v7238, 0.0
        %v7266 = vsel %vm1278, %v7237, 0.0
        %v7267 = vsel %vm1279, %v7236, 0.0
        %v7268 = vsel %vm1280, %v7235, 0.0
        %v7269 = vsel %vm1281, %v7234, 0.0
        %v7270 = vsel %vm1282, %v7233, 0.0
        %v7271 = vsel %vm1283, %v7232, 0.0
        %v7272 = vsel %vm1284, %v7231, 0.0
        %v7273 = vsel %vm1285, %v7230, 0.0
        %v7274 = vsel %vm1286, %v7229, 0.0
        %v7275 = vsel %vm1287, %v7228, 0.0
        %v7276 = vsel %vm1288, %v7227, 0.0
        %v7277 = vsel %vm1289, %v7226, 0.0
        %v7278 = vsel %vm1290, %v7225, 0.0
        %v7279 = vsel %vm1291, %v7224, 0.0
        %v7280 = vsel %vm1292, %v7223, 0.0
        %v7281 = vsel %vm1293, %v7222, 0.0
        %v7282 = vsel %vm1294, %v7221, 0.0
        %v7283 = vsel %vm1295, %v7220, 0.0
        %v7284 = vsel %vm1296, %v7219, 0.0
        %v7285 = vsel %vm1297, %v7218, 0.0
        %v7286 = vsel %vm1298, %v7217, 0.0
        %v7287 = vsel %vm1299, %v7216, 0.0
        %v7288 = vrot.slane %v7144, 1
        %v7289 = vrot.slane %v7145, 1
        %v7290 = vrot.slane %v7146, 1
        %v7291 = vrot.slane %v7147, 1
        %v7292 = vrot.slane %v7148, 1
        %v7293 = vrot.slane %v7149, 1
        %v7294 = vrot.slane %v7150, 1
        %v7295 = vrot.slane %v7151, 1
        %v7296 = vrot.slane %v7152, 1
        %v7297 = vrot.slane %v7153, 1
        %v7298 = vrot.slane %v7154, 1
        %v7299 = vrot.slane %v7155, 1
        %v7300 = vrot.slane %v7156, 1
        %v7301 = vrot.slane %v7157, 1
        %v7302 = vrot.slane %v7158, 1
        %v7303 = vrot.slane %v7159, 1
        %v7304 = vrot.slane %v7160, 1
        %v7305 = vrot.slane %v7161, 1
        %v7306 = vrot.slane %v7162, 1
        %v7307 = vrot.slane %v7163, 1
        %v7308 = vrot.slane %v7164, 1
        %v7309 = vrot.slane %v7165, 1
        %v7310 = vrot.slane %v7166, 1
        %v7311 = vrot.slane %v7167, 1
        %v7312 = vrot.slane %v7168, 1
        %v7313 = vrot.slane %v7169, 1
        %v7314 = vrot.slane %v7170, 1
        %v7315 = vrot.slane %v7171, 1
        %v7316 = vrot.slane %v7172, 1
        %v7317 = vrot.slane %v7173, 1
        %v7318 = vrot.slane %v7174, 1
        %v7319 = vrot.slane %v7175, 1
        %v7320 = vrot.slane %v7176, 1
        %v7321 = vrot.slane %v7177, 1
        %v7322 = vrot.slane %v7178, 1
        %v7323 = vrot.slane %v7179, 1
        %v7324 = vsel %vm1372, %v7322, %v7323
        %v7325 = vsel %vm1372, %v7321, %v7322
        %v7326 = vsel %vm1372, %v7320, %v7321
        %v7327 = vsel %vm1372, %v7319, %v7320
        %v7328 = vsel %vm1372, %v7318, %v7319
        %v7329 = vsel %vm1372, %v7317, %v7318
        %v7330 = vsel %vm1372, %v7316, %v7317
        %v7331 = vsel %vm1372, %v7315, %v7316
        %v7332 = vsel %vm1372, %v7314, %v7315
        %v7333 = vsel %vm1372, %v7313, %v7314
        %v7334 = vsel %vm1372, %v7312, %v7313
        %v7335 = vsel %vm1372, %v7311, %v7312
        %v7336 = vsel %vm1372, %v7310, %v7311
        %v7337 = vsel %vm1372, %v7309, %v7310
        %v7338 = vsel %vm1372, %v7308, %v7309
        %v7339 = vsel %vm1372, %v7307, %v7308
        %v7340 = vsel %vm1372, %v7306, %v7307
        %v7341 = vsel %vm1372, %v7305, %v7306
        %v7342 = vsel %vm1372, %v7304, %v7305
        %v7343 = vsel %vm1372, %v7303, %v7304
        %v7344 = vsel %vm1372, %v7302, %v7303
        %v7345 = vsel %vm1372, %v7301, %v7302
        %v7346 = vsel %vm1372, %v7300, %v7301
        %v7347 = vsel %vm1372, %v7299, %v7300
        %v7348 = vsel %vm1372, %v7298, %v7299
        %v7349 = vsel %vm1372, %v7297, %v7298
        %v7350 = vsel %vm1372, %v7296, %v7297
        %v7351 = vsel %vm1372, %v7295, %v7296
        %v7352 = vsel %vm1372, %v7294, %v7295
        %v7353 = vsel %vm1372, %v7293, %v7294
        %v7354 = vsel %vm1372, %v7292, %v7293
        %v7355 = vsel %vm1372, %v7291, %v7292
        %v7356 = vsel %vm1372, %v7290, %v7291
        %v7357 = vsel %vm1372, %v7289, %v7290
        %v7358 = vsel %vm1372, %v7288, %v7289
        %v7359 = vsel %vm1372, %v7323, %v7288
        %v7360 = vsel %vm1445, %v7358, 0.0
        %v7361 = vsel %vm1446, %v7357, 0.0
        %v7362 = vsel %vm1447, %v7356, 0.0
        %v7363 = vsel %vm1448, %v7355, 0.0
        %v7364 = vsel %vm1449, %v7354, 0.0
        %v7365 = vsel %vm1450, %v7353, 0.0
        %v7366 = vsel %vm1451, %v7352, 0.0
        %v7367 = vsel %vm1452, %v7351, 0.0
        %v7368 = vsel %vm1453, %v7350, 0.0
        %v7369 = vsel %vm1454, %v7349, 0.0
        %v7370 = vsel %vm1455, %v7348, 0.0
        %v7371 = vsel %vm1456, %v7347, 0.0
        %v7372 = vsel %vm1457, %v7346, 0.0
        %v7373 = vsel %vm1458, %v7345, 0.0
        %v7374 = vsel %vm1459, %v7344, 0.0
        %v7375 = vsel %vm1460, %v7343, 0.0
        %v7376 = vsel %vm1461, %v7342, 0.0
        %v7377 = vsel %vm1462, %v7341, 0.0
        %v7378 = vsel %vm1463, %v7340, 0.0
        %v7379 = vsel %vm1464, %v7339, 0.0
        %v7380 = vsel %vm1465, %v7338, 0.0
        %v7381 = vsel %vm1466, %v7337, 0.0
        %v7382 = vsel %vm1467, %v7336, 0.0
        %v7383 = vsel %vm1468, %v7335, 0.0
        %v7384 = vsel %vm1469, %v7334, 0.0
        %v7385 = vsel %vm1470, %v7333, 0.0
        %v7386 = vsel %vm1471, %v7332, 0.0
        %v7387 = vsel %vm1472, %v7331, 0.0
        %v7388 = vsel %vm1473, %v7330, 0.0
        %v7389 = vsel %vm1474, %v7329, 0.0
        %v7390 = vsel %vm1475, %v7328, 0.0
        %v7391 = vsel %vm1476, %v7327, 0.0
        %v7392 = vsel %vm1477, %v7326, 0.0
        %v7393 = vsel %vm1478, %v7325, 0.0
        %v7394 = vsel %vm1479, %v7324, 0.0
        %v7395 = vsel %vm1480, %v7359, 0.0
        %v7396 = vpack.c.bf16 %v7252, %v7252
        %v7397 = vpack.c.bf16 %v7253, %v7253
        %v7398 = vpack.c.bf16 %v7254, %v7254
        %v7399 = vpack.c.bf16 %v7255, %v7255
        %v7400 = vpack.c.bf16 %v7256, %v7256
        %v7401 = vpack.c.bf16 %v7257, %v7257
        %v7402 = vpack.c.bf16 %v7258, %v7258
        %v7403 = vpack.c.bf16 %v7259, %v7259
        %v7404 = vpack.c.bf16 %v7260, %v7260
        %v7405 = vpack.c.bf16 %v7261, %v7261
        %v7406 = vpack.c.bf16 %v7262, %v7262
        %v7407 = vpack.c.bf16 %v7263, %v7263
        %v7408 = vpack.c.bf16 %v7264, %v7264
        %v7409 = vpack.c.bf16 %v7265, %v7265
        %v7410 = vpack.c.bf16 %v7266, %v7266
        %v7411 = vpack.c.bf16 %v7267, %v7267
        %v7412 = vpack.c.bf16 %v7268, %v7268
        %v7413 = vpack.c.bf16 %v7269, %v7269
        %v7414 = vpack.c.bf16 %v7270, %v7270
        %v7415 = vpack.c.bf16 %v7271, %v7271
        %v7416 = vpack.c.bf16 %v7272, %v7272
        %v7417 = vpack.c.bf16 %v7273, %v7273
        %v7418 = vpack.c.bf16 %v7274, %v7274
        %v7419 = vpack.c.bf16 %v7275, %v7275
        %v7420 = vpack.c.bf16 %v7276, %v7276
        %v7421 = vpack.c.bf16 %v7277, %v7277
        %v7422 = vpack.c.bf16 %v7278, %v7278
        %v7423 = vpack.c.bf16 %v7279, %v7279
        %v7424 = vpack.c.bf16 %v7280, %v7280
        %v7425 = vpack.c.bf16 %v7281, %v7281
        %v7426 = vpack.c.bf16 %v7282, %v7282
        %v7427 = vpack.c.bf16 %v7283, %v7283
        %v7428 = vpack.c.bf16 %v7284, %v7284
        %v7429 = vpack.c.bf16 %v7285, %v7285
        %v7430 = vpack.c.bf16 %v7286, %v7286
        %v7431 = vpack.c.bf16 %v7287, %v7287
        %7432 = vst [vmem:[#allocation3] sm:$0xf] %v7396
        %7433 = vst [vmem:[#allocation3 + $0xc] sm:$0xf] %v7397
        %7434 = vst [vmem:[#allocation3 + $0x18] sm:$0xf] %v7398
        %7435 = vst [vmem:[#allocation3 + $0x24] sm:$0xf] %v7399
        %7436 = vst [vmem:[#allocation3 + $0x30] sm:$0xf] %v7400
        %7437 = vst [vmem:[#allocation3 + $0x3c] sm:$0xf] %v7401
        %7438 = vst [vmem:[#allocation3 + $0x48] sm:$0xf] %v7402
        %7439 = vst [vmem:[#allocation3 + $0x54] sm:$0xf] %v7403
        %7440 = vst [vmem:[#allocation3 + $0x60] sm:$0xf] %v7404
        %7441 = vst [vmem:[#allocation3 + $0x6c] sm:$0xf] %v7405
        %7442 = vst [vmem:[#allocation3 + $0x78] sm:$0xf] %v7406
        %7443 = vst [vmem:[#allocation3 + $0x84] sm:$0xf] %v7407
        %7444 = vst [vmem:[#allocation3 + $0x90] sm:$0xf] %v7408
        %7445 = vst [vmem:[#allocation3 + $0x9c] sm:$0xf] %v7409
        %7446 = vst [vmem:[#allocation3 + $0xa8] sm:$0xf] %v7410
        %7447 = vst [vmem:[#allocation3 + $0xb4] sm:$0xf] %v7411
        %7448 = vst [vmem:[#allocation3 + $0xc0] sm:$0xf] %v7412
        %7449 = vst [vmem:[#allocation3 + $0xcc] sm:$0xf] %v7413
        %7450 = vst [vmem:[#allocation3 + $0xd8] sm:$0xf] %v7414
        %7451 = vst [vmem:[#allocation3 + $0xe4] sm:$0xf] %v7415
        %7452 = vst [vmem:[#allocation3 + $0xf0] sm:$0xf] %v7416
        %7453 = vst [vmem:[#allocation3 + $0xfc] sm:$0xf] %v7417
        %7454 = vst [vmem:[#allocation3 + $0x108] sm:$0xf] %v7418
        %7455 = vst [vmem:[#allocation3 + $0x114] sm:$0xf] %v7419
        %7456 = vst [vmem:[#allocation3 + $0x120] sm:$0xf] %v7420
        %7457 = vst [vmem:[#allocation3 + $0x12c] sm:$0xf] %v7421
        %7458 = vst [vmem:[#allocation3 + $0x138] sm:$0xf] %v7422
        %7459 = vst [vmem:[#allocation3 + $0x144] sm:$0xf] %v7423
        %7460 = vst [vmem:[#allocation3 + $0x150] sm:$0xf] %v7424
        %7461 = vst [vmem:[#allocation3 + $0x15c] sm:$0xf] %v7425
        %7462 = vst [vmem:[#allocation3 + $0x168] sm:$0xf] %v7426
        %7463 = vst [vmem:[#allocation3 + $0x174] sm:$0xf] %v7427
        %7464 = vst [vmem:[#allocation3 + $0x180] sm:$0xf] %v7428
        %7465 = vst [vmem:[#allocation3 + $0x18c] sm:$0xf] %v7429
        %7466 = vst [vmem:[#allocation3 + $0x198] sm:$0xf] %v7430
        %7467 = vst [vmem:[#allocation3 + $0x1a4] sm:$0xf] %v7431
        %v7468 = vpack.c.bf16 %v7144, %v7144
        %v7469 = vpack.c.bf16 %v7145, %v7145
        %v7470 = vpack.c.bf16 %v7146, %v7146
        %v7471 = vpack.c.bf16 %v7147, %v7147
        %v7472 = vpack.c.bf16 %v7148, %v7148
        %v7473 = vpack.c.bf16 %v7149, %v7149
        %v7474 = vpack.c.bf16 %v7150, %v7150
        %v7475 = vpack.c.bf16 %v7151, %v7151
        %v7476 = vpack.c.bf16 %v7152, %v7152
        %v7477 = vpack.c.bf16 %v7153, %v7153
        %v7478 = vpack.c.bf16 %v7154, %v7154
        %v7479 = vpack.c.bf16 %v7155, %v7155
        %v7480 = vpack.c.bf16 %v7156, %v7156
        %v7481 = vpack.c.bf16 %v7157, %v7157
        %v7482 = vpack.c.bf16 %v7158, %v7158
        %v7483 = vpack.c.bf16 %v7159, %v7159
        %v7484 = vpack.c.bf16 %v7160, %v7160
        %v7485 = vpack.c.bf16 %v7161, %v7161
        %v7486 = vpack.c.bf16 %v7162, %v7162
        %v7487 = vpack.c.bf16 %v7163, %v7163
        %v7488 = vpack.c.bf16 %v7164, %v7164
        %v7489 = vpack.c.bf16 %v7165, %v7165
        %v7490 = vpack.c.bf16 %v7166, %v7166
        %v7491 = vpack.c.bf16 %v7167, %v7167
        %v7492 = vpack.c.bf16 %v7168, %v7168
        %v7493 = vpack.c.bf16 %v7169, %v7169
        %v7494 = vpack.c.bf16 %v7170, %v7170
        %v7495 = vpack.c.bf16 %v7171, %v7171
        %v7496 = vpack.c.bf16 %v7172, %v7172
        %v7497 = vpack.c.bf16 %v7173, %v7173
        %v7498 = vpack.c.bf16 %v7174, %v7174
        %v7499 = vpack.c.bf16 %v7175, %v7175
        %v7500 = vpack.c.bf16 %v7176, %v7176
        %v7501 = vpack.c.bf16 %v7177, %v7177
        %v7502 = vpack.c.bf16 %v7178, %v7178
        %v7503 = vpack.c.bf16 %v7179, %v7179
        %7504 = vst [vmem:[#allocation3 + $0x4] sm:$0xf] %v7468
        %7505 = vst [vmem:[#allocation3 + $0x10] sm:$0xf] %v7469
        %7506 = vst [vmem:[#allocation3 + $0x1c] sm:$0xf] %v7470
        %7507 = vst [vmem:[#allocation3 + $0x28] sm:$0xf] %v7471
        %7508 = vst [vmem:[#allocation3 + $0x34] sm:$0xf] %v7472
        %7509 = vst [vmem:[#allocation3 + $0x40] sm:$0xf] %v7473
        %7510 = vst [vmem:[#allocation3 + $0x4c] sm:$0xf] %v7474
        %7511 = vst [vmem:[#allocation3 + $0x58] sm:$0xf] %v7475
        %7512 = vst [vmem:[#allocation3 + $0x64] sm:$0xf] %v7476
        %7513 = vst [vmem:[#allocation3 + $0x70] sm:$0xf] %v7477
        %7514 = vst [vmem:[#allocation3 + $0x7c] sm:$0xf] %v7478
        %7515 = vst [vmem:[#allocation3 + $0x88] sm:$0xf] %v7479
        %7516 = vst [vmem:[#allocation3 + $0x94] sm:$0xf] %v7480
        %7517 = vst [vmem:[#allocation3 + $0xa0] sm:$0xf] %v7481
        %7518 = vst [vmem:[#allocation3 + $0xac] sm:$0xf] %v7482
        %7519 = vst [vmem:[#allocation3 + $0xb8] sm:$0xf] %v7483
        %7520 = vst [vmem:[#allocation3 + $0xc4] sm:$0xf] %v7484
        %7521 = vst [vmem:[#allocation3 + $0xd0] sm:$0xf] %v7485
        %7522 = vst [vmem:[#allocation3 + $0xdc] sm:$0xf] %v7486
        %7523 = vst [vmem:[#allocation3 + $0xe8] sm:$0xf] %v7487
        %7524 = vst [vmem:[#allocation3 + $0xf4] sm:$0xf] %v7488
        %7525 = vst [vmem:[#allocation3 + $0x100] sm:$0xf] %v7489
        %7526 = vst [vmem:[#allocation3 + $0x10c] sm:$0xf] %v7490
        %7527 = vst [vmem:[#allocation3 + $0x118] sm:$0xf] %v7491
        %7528 = vst [vmem:[#allocation3 + $0x124] sm:$0xf] %v7492
        %7529 = vst [vmem:[#allocation3 + $0x130] sm:$0xf] %v7493
        %7530 = vst [vmem:[#allocation3 + $0x13c] sm:$0xf] %v7494
        %7531 = vst [vmem:[#allocation3 + $0x148] sm:$0xf] %v7495
        %7532 = vst [vmem:[#allocation3 + $0x154] sm:$0xf] %v7496
        %7533 = vst [vmem:[#allocation3 + $0x160] sm:$0xf] %v7497
        %7534 = vst [vmem:[#allocation3 + $0x16c] sm:$0xf] %v7498
        %7535 = vst [vmem:[#allocation3 + $0x178] sm:$0xf] %v7499
        %7536 = vst [vmem:[#allocation3 + $0x184] sm:$0xf] %v7500
        %7537 = vst [vmem:[#allocation3 + $0x190] sm:$0xf] %v7501
        %7538 = vst [vmem:[#allocation3 + $0x19c] sm:$0xf] %v7502
        %7539 = vst [vmem:[#allocation3 + $0x1a8] sm:$0xf] %v7503
        %v7540 = vpack.c.bf16 %v7360, %v7360
        %v7541 = vpack.c.bf16 %v7361, %v7361
        %v7542 = vpack.c.bf16 %v7362, %v7362
        %v7543 = vpack.c.bf16 %v7363, %v7363
        %v7544 = vpack.c.bf16 %v7364, %v7364
        %v7545 = vpack.c.bf16 %v7365, %v7365
        %v7546 = vpack.c.bf16 %v7366, %v7366
        %v7547 = vpack.c.bf16 %v7367, %v7367
        %v7548 = vpack.c.bf16 %v7368, %v7368
        %v7549 = vpack.c.bf16 %v7369, %v7369
        %v7550 = vpack.c.bf16 %v7370, %v7370
        %v7551 = vpack.c.bf16 %v7371, %v7371
        %v7552 = vpack.c.bf16 %v7372, %v7372
        %v7553 = vpack.c.bf16 %v7373, %v7373
        %v7554 = vpack.c.bf16 %v7374, %v7374
        %v7555 = vpack.c.bf16 %v7375, %v7375
        %v7556 = vpack.c.bf16 %v7376, %v7376
        %v7557 = vpack.c.bf16 %v7377, %v7377
        %v7558 = vpack.c.bf16 %v7378, %v7378
        %v7559 = vpack.c.bf16 %v7379, %v7379
        %v7560 = vpack.c.bf16 %v7380, %v7380
        %v7561 = vpack.c.bf16 %v7381, %v7381
        %v7562 = vpack.c.bf16 %v7382, %v7382
        %v7563 = vpack.c.bf16 %v7383, %v7383
        %v7564 = vpack.c.bf16 %v7384, %v7384
        %v7565 = vpack.c.bf16 %v7385, %v7385
        %v7566 = vpack.c.bf16 %v7386, %v7386
        %v7567 = vpack.c.bf16 %v7387, %v7387
        %v7568 = vpack.c.bf16 %v7388, %v7388
        %v7569 = vpack.c.bf16 %v7389, %v7389
        %v7570 = vpack.c.bf16 %v7390, %v7390
        %v7571 = vpack.c.bf16 %v7391, %v7391
        %v7572 = vpack.c.bf16 %v7392, %v7392
        %v7573 = vpack.c.bf16 %v7393, %v7393
        %v7574 = vpack.c.bf16 %v7394, %v7394
        %v7575 = vpack.c.bf16 %v7395, %v7395
        %7576 = vst [vmem:[#allocation3 + $0x8] sm:$0xf] %v7540
        %7577 = vst [vmem:[#allocation3 + $0x14] sm:$0xf] %v7541
        %7578 = vst [vmem:[#allocation3 + $0x20] sm:$0xf] %v7542
        %7579 = vst [vmem:[#allocation3 + $0x2c] sm:$0xf] %v7543
        %7580 = vst [vmem:[#allocation3 + $0x38] sm:$0xf] %v7544
        %7581 = vst [vmem:[#allocation3 + $0x44] sm:$0xf] %v7545
        %7582 = vst [vmem:[#allocation3 + $0x50] sm:$0xf] %v7546
        %7583 = vst [vmem:[#allocation3 + $0x5c] sm:$0xf] %v7547
        %7584 = vst [vmem:[#allocation3 + $0x68] sm:$0xf] %v7548
        %7585 = vst [vmem:[#allocation3 + $0x74] sm:$0xf] %v7549
        %7586 = vst [vmem:[#allocation3 + $0x80] sm:$0xf] %v7550
        %7587 = vst [vmem:[#allocation3 + $0x8c] sm:$0xf] %v7551
        %7588 = vst [vmem:[#allocation3 + $0x98] sm:$0xf] %v7552
        %7589 = vst [vmem:[#allocation3 + $0xa4] sm:$0xf] %v7553
        %7590 = vst [vmem:[#allocation3 + $0xb0] sm:$0xf] %v7554
        %7591 = vst [vmem:[#allocation3 + $0xbc] sm:$0xf] %v7555
        %7592 = vst [vmem:[#allocation3 + $0xc8] sm:$0xf] %v7556
        %7593 = vst [vmem:[#allocation3 + $0xd4] sm:$0xf] %v7557
        %7594 = vst [vmem:[#allocation3 + $0xe0] sm:$0xf] %v7558
        %7595 = vst [vmem:[#allocation3 + $0xec] sm:$0xf] %v7559
        %7596 = vst [vmem:[#allocation3 + $0xf8] sm:$0xf] %v7560
        %7597 = vst [vmem:[#allocation3 + $0x104] sm:$0xf] %v7561
        %7598 = vst [vmem:[#allocation3 + $0x110] sm:$0xf] %v7562
        %7599 = vst [vmem:[#allocation3 + $0x11c] sm:$0xf] %v7563
        %7600 = vst [vmem:[#allocation3 + $0x128] sm:$0xf] %v7564
        %7601 = vst [vmem:[#allocation3 + $0x134] sm:$0xf] %v7565
        %7602 = vst [vmem:[#allocation3 + $0x140] sm:$0xf] %v7566
        %7603 = vst [vmem:[#allocation3 + $0x14c] sm:$0xf] %v7567
        %7604 = vst [vmem:[#allocation3 + $0x158] sm:$0xf] %v7568
        %7605 = vst [vmem:[#allocation3 + $0x164] sm:$0xf] %v7569
        %7606 = vst [vmem:[#allocation3 + $0x170] sm:$0xf] %v7570
        %7607 = vst [vmem:[#allocation3 + $0x17c] sm:$0xf] %v7571
        %7608 = vst [vmem:[#allocation3 + $0x188] sm:$0xf] %v7572
        %7609 = vst [vmem:[#allocation3 + $0x194] sm:$0xf] %v7573
        %7610 = vst [vmem:[#allocation3 + $0x1a0] sm:$0xf] %v7574
        %7611 = vst [vmem:[#allocation3 + $0x1ac] sm:$0xf] %v7575
        %v7612 = vld [vmem:[#allocation3] sm:$0xff]
        %v7613 = vld [vmem:[#allocation3 + $0x8] sm:$0xf]
        %v7614 = vld [vmem:[#allocation3 + $0xc] sm:$0xff]
        %v7615 = vld [vmem:[#allocation3 + $0x14] sm:$0xf]
        %v7616 = vld [vmem:[#allocation3 + $0x18] sm:$0xff]
        %v7617 = vld [vmem:[#allocation3 + $0x20] sm:$0xf]
        %v7618 = vld [vmem:[#allocation3 + $0x24] sm:$0xff]
        %v7619 = vld [vmem:[#allocation3 + $0x2c] sm:$0xf]
        %v7620 = vld [vmem:[#allocation3 + $0x30] sm:$0xff]
        %v7621 = vld [vmem:[#allocation3 + $0x38] sm:$0xf]
        %v7622 = vld [vmem:[#allocation3 + $0x3c] sm:$0xff]
        %v7623 = vld [vmem:[#allocation3 + $0x44] sm:$0xf]
        %v7624 = vld [vmem:[#allocation3 + $0x48] sm:$0xff]
        %v7625 = vld [vmem:[#allocation3 + $0x50] sm:$0xf]
        %v7626 = vld [vmem:[#allocation3 + $0x54] sm:$0xff]
        %v7627 = vld [vmem:[#allocation3 + $0x5c] sm:$0xf]
        %v7628 = vld [vmem:[#allocation3 + $0x60] sm:$0xff]
        %v7629 = vld [vmem:[#allocation3 + $0x68] sm:$0xf]
        %v7630 = vld [vmem:[#allocation3 + $0x6c] sm:$0xff]
        %v7631 = vld [vmem:[#allocation3 + $0x74] sm:$0xf]
        %v7632 = vld [vmem:[#allocation3 + $0x78] sm:$0xff]
        %v7633 = vld [vmem:[#allocation3 + $0x80] sm:$0xf]
        %v7634 = vld [vmem:[#allocation3 + $0x84] sm:$0xff]
        %v7635 = vld [vmem:[#allocation3 + $0x8c] sm:$0xf]
        %v7636 = vld [vmem:[#allocation3 + $0x90] sm:$0xff]
        %v7637 = vld [vmem:[#allocation3 + $0x98] sm:$0xf]
        %v7638 = vld [vmem:[#allocation3 + $0x9c] sm:$0xff]
        %v7639 = vld [vmem:[#allocation3 + $0xa4] sm:$0xf]
        %v7640 = vld [vmem:[#allocation3 + $0xa8] sm:$0xff]
        %v7641 = vld [vmem:[#allocation3 + $0xb0] sm:$0xf]
        %v7642 = vld [vmem:[#allocation3 + $0xb4] sm:$0xff]
        %v7643 = vld [vmem:[#allocation3 + $0xbc] sm:$0xf]
        %v7644 = vld [vmem:[#allocation3 + $0xc0] sm:$0xff]
        %v7645 = vld [vmem:[#allocation3 + $0xc8] sm:$0xf]
        %v7646 = vld [vmem:[#allocation3 + $0xcc] sm:$0xff]
        %v7647 = vld [vmem:[#allocation3 + $0xd4] sm:$0xf]
        %v7648 = vld [vmem:[#allocation3 + $0xd8] sm:$0xff]
        %v7649 = vld [vmem:[#allocation3 + $0xe0] sm:$0xf]
        %v7650 = vld [vmem:[#allocation3 + $0xe4] sm:$0xff]
        %v7651 = vld [vmem:[#allocation3 + $0xec] sm:$0xf]
        %v7652 = vld [vmem:[#allocation3 + $0xf0] sm:$0xff]
        %v7653 = vld [vmem:[#allocation3 + $0xf8] sm:$0xf]
        %v7654 = vld [vmem:[#allocation3 + $0xfc] sm:$0xff]
        %v7655 = vld [vmem:[#allocation3 + $0x104] sm:$0xf]
        %v7656 = vld [vmem:[#allocation3 + $0x108] sm:$0xff]
        %v7657 = vld [vmem:[#allocation3 + $0x110] sm:$0xf]
        %v7658 = vld [vmem:[#allocation3 + $0x114] sm:$0xff]
        %v7659 = vld [vmem:[#allocation3 + $0x11c] sm:$0xf]
        %v7660 = vld [vmem:[#allocation3 + $0x120] sm:$0xff]
        %v7661 = vld [vmem:[#allocation3 + $0x128] sm:$0xf]
        %v7662 = vld [vmem:[#allocation3 + $0x12c] sm:$0xff]
        %v7663 = vld [vmem:[#allocation3 + $0x134] sm:$0xf]
        %v7664 = vld [vmem:[#allocation3 + $0x138] sm:$0xff]
        %v7665 = vld [vmem:[#allocation3 + $0x140] sm:$0xf]
        %v7666 = vld [vmem:[#allocation3 + $0x144] sm:$0xff]
        %v7667 = vld [vmem:[#allocation3 + $0x14c] sm:$0xf]
        %v7668 = vld [vmem:[#allocation3 + $0x150] sm:$0xff]
        %v7669 = vld [vmem:[#allocation3 + $0x158] sm:$0xf]
        %v7670 = vld [vmem:[#allocation3 + $0x15c] sm:$0xff]
        %v7671 = vld [vmem:[#allocation3 + $0x164] sm:$0xf]
        %v7672 = vld [vmem:[#allocation3 + $0x168] sm:$0xff]
        %v7673 = vld [vmem:[#allocation3 + $0x170] sm:$0xf]
        %v7674 = vld [vmem:[#allocation3 + $0x174] sm:$0xff]
        %v7675 = vld [vmem:[#allocation3 + $0x17c] sm:$0xf]
        %v7676 = vld [vmem:[%s6] sm:$0xf]
        %v7677 = vld [vmem:[%s6 + $0x4] sm:$0xf]
        %v7678 = vld [vmem:[%s6 + $0x8] sm:$0xf]
        %v7679 = vld [vmem:[%s6 + $0xc] sm:$0xf]
        %v7680 = vld [vmem:[%s6 + $0x10] sm:$0xf]
        %v7681 = vld [vmem:[%s6 + $0x14] sm:$0xf]
        %v7682 = vld [vmem:[%s6 + $0x18] sm:$0xf]
        %v7683 = vld [vmem:[%s6 + $0x1c] sm:$0xf]
        %v7684 = vld [vmem:[%s6 + $0x20] sm:$0xf]
        %v7685 = vld [vmem:[%s6 + $0x24] sm:$0xf]
        %v7686 = vld [vmem:[%s6 + $0x28] sm:$0xf]
        %v7687 = vld [vmem:[%s6 + $0x2c] sm:$0xf]
        %v7688 = vld [vmem:[%s6 + $0x30] sm:$0xf]
        %v7689 = vld [vmem:[%s6 + $0x34] sm:$0xf]
        %v7690 = vld [vmem:[%s6 + $0x38] sm:$0xf]
        %v7691 = vld [vmem:[%s6 + $0x3c] sm:$0xf]
        %v7692 = vld [vmem:[%s6 + $0x40] sm:$0xf]
        %v7693 = vld [vmem:[%s6 + $0x44] sm:$0xf]
        %v7694 = vld [vmem:[%s6 + $0x48] sm:$0xf]
        %v7695 = vld [vmem:[%s6 + $0x4c] sm:$0xf]
        %v7696 = vld [vmem:[%s6 + $0x50] sm:$0xf]
        %v7697 = vld [vmem:[%s6 + $0x54] sm:$0xf]
        %v7698 = vld [vmem:[%s6 + $0x58] sm:$0xf]
        %v7699 = vld [vmem:[%s6 + $0x5c] sm:$0xf]
        %v7700 = vld [vmem:[%s6 + $0x60] sm:$0xf]
        %v7701 = vld [vmem:[%s6 + $0x64] sm:$0xf]
        %v7702 = vld [vmem:[%s6 + $0x68] sm:$0xf]
        %v7703 = vld [vmem:[%s6 + $0x6c] sm:$0xf]
        %v7704 = vld [vmem:[%s6 + $0x70] sm:$0xf]
        %v7705 = vld [vmem:[%s6 + $0x74] sm:$0xf]
        %v7706 = vld [vmem:[%s6 + $0x78] sm:$0xf]
        %v7707 = vld [vmem:[%s6 + $0x7c] sm:$0xf]
        %v7708 = vld [vmem:[%s6 + $0x80] sm:$0xf]
        %v7709 = vld [vmem:[%s6 + $0x84] sm:$0xf]
        %v7710 = vld [vmem:[%s6 + $0x88] sm:$0xf]
        %v7711 = vld [vmem:[%s6 + $0x8c] sm:$0xf]
        %v7712 = vld [vmem:[%s6 + $0x90] sm:$0xf]
        %v7713 = vld [vmem:[%s6 + $0x94] sm:$0xf]
        %v7714 = vld [vmem:[%s6 + $0x98] sm:$0xf]
        %v7715 = vld [vmem:[%s6 + $0x9c] sm:$0xf]
        %v7716 = vld [vmem:[%s6 + $0xa0] sm:$0xf]
        %v7717 = vld [vmem:[%s6 + $0xa4] sm:$0xf]
        %v7718 = vld [vmem:[%s6 + $0xa8] sm:$0xf]
        %v7719 = vld [vmem:[%s6 + $0xac] sm:$0xf]
        %v7720 = vld [vmem:[%s6 + $0xb0] sm:$0xf]
        %v7721 = vld [vmem:[%s6 + $0xb4] sm:$0xf]
        %v7722 = vld [vmem:[%s6 + $0xb8] sm:$0xf]
        %v7723 = vld [vmem:[%s6 + $0xbc] sm:$0xf]
        %v7724 = vld [vmem:[#allocation3 + $0x180] sm:$0xff]
        %v7725 = vld [vmem:[#allocation3 + $0x188] sm:$0xf]
        %v7726 = vld [vmem:[#allocation3 + $0x18c] sm:$0xff]
        %v7727 = vld [vmem:[#allocation3 + $0x194] sm:$0xf]
        %s7728 = scalar_lea.vmem %s6, 192
        %v7729 = vld [vmem:[%s7728] sm:$0xf]
        %v7730 = vld [vmem:[%s7728 + $0x4] sm:$0xf]
        %v7731 = vld [vmem:[%s7728 + $0x8] sm:$0xf]
        %v7732 = vld [vmem:[%s7728 + $0xc] sm:$0xf]
        %v7733 = vld [vmem:[%s7728 + $0x10] sm:$0xf]
        %v7734 = vld [vmem:[%s7728 + $0x14] sm:$0xf]
        %v7735 = vld [vmem:[%s7728 + $0x18] sm:$0xf]
        %v7736 = vld [vmem:[%s7728 + $0x1c] sm:$0xf]
        %v7737 = vld [vmem:[%s7728 + $0x20] sm:$0xf]
        %v7738 = vld [vmem:[%s7728 + $0x24] sm:$0xf]
        %v7739 = vld [vmem:[%s7728 + $0x28] sm:$0xf]
        %v7740 = vld [vmem:[%s7728 + $0x2c] sm:$0xf]
        %v7741 = vld [vmem:[%s7728 + $0x30] sm:$0xf]
        %v7742 = vld [vmem:[%s7728 + $0x34] sm:$0xf]
        %v7743 = vld [vmem:[%s7728 + $0x38] sm:$0xf]
        %v7744 = vld [vmem:[%s7728 + $0x3c] sm:$0xf]
        %v7745 = vld [vmem:[%s7728 + $0x40] sm:$0xf]
        %v7746 = vld [vmem:[%s7728 + $0x44] sm:$0xf]
        %v7747 = vld [vmem:[%s7728 + $0x48] sm:$0xf]
        %v7748 = vld [vmem:[%s7728 + $0x4c] sm:$0xf]
        %v7749 = vld [vmem:[%s7728 + $0x50] sm:$0xf]
        %v7750 = vld [vmem:[%s7728 + $0x54] sm:$0xf]
        %v7751 = vld [vmem:[%s7728 + $0x58] sm:$0xf]
        %v7752 = vld [vmem:[%s7728 + $0x5c] sm:$0xf]
        %v7753 = vld [vmem:[%s7728 + $0x60] sm:$0xf]
        %v7754 = vld [vmem:[%s7728 + $0x64] sm:$0xf]
        %v7755 = vld [vmem:[%s7728 + $0x68] sm:$0xf]
        %v7756 = vld [vmem:[%s7728 + $0x6c] sm:$0xf]
        %v7757 = vld [vmem:[%s7728 + $0x70] sm:$0xf]
        %v7758 = vld [vmem:[%s7728 + $0x74] sm:$0xf]
        %v7759 = vld [vmem:[%s7728 + $0x78] sm:$0xf]
        %v7760 = vld [vmem:[%s7728 + $0x7c] sm:$0xf]
        %v7761 = vld [vmem:[%s7728 + $0x80] sm:$0xf]
        %v7762 = vld [vmem:[%s7728 + $0x84] sm:$0xf]
        %v7763 = vld [vmem:[%s7728 + $0x88] sm:$0xf]
        %v7764 = vld [vmem:[%s7728 + $0x8c] sm:$0xf]
        %v7765 = vld [vmem:[%s7728 + $0x90] sm:$0xf]
        %v7766 = vld [vmem:[%s7728 + $0x94] sm:$0xf]
        %v7767 = vld [vmem:[%s7728 + $0x98] sm:$0xf]
        %v7768 = vld [vmem:[%s7728 + $0x9c] sm:$0xf]
        %v7769 = vld [vmem:[%s7728 + $0xa0] sm:$0xf]
        %v7770 = vld [vmem:[%s7728 + $0xa4] sm:$0xf]
        %v7771 = vld [vmem:[%s7728 + $0xa8] sm:$0xf]
        %v7772 = vld [vmem:[%s7728 + $0xac] sm:$0xf]
        %v7773 = vld [vmem:[%s7728 + $0xb0] sm:$0xf]
        %v7774 = vld [vmem:[%s7728 + $0xb4] sm:$0xf]
        %v7775 = vld [vmem:[%s7728 + $0xb8] sm:$0xf]
        %v7776 = vld [vmem:[%s7728 + $0xbc] sm:$0xf]
        %v7841 = vunpack.c.l.b16 %v7616
        %v7842 = vunpack.c.h.b16 %v7616
        %v7843 = vunpack.c.l.b16 %v7617
        %v7844 = vunpack.c.l.b16 %v7618
        %v7845 = vunpack.c.h.b16 %v7618
        %v7846 = vunpack.c.l.b16 %v7619
        %v7847 = vunpack.c.l.b16 %v7620
        %v7848 = vunpack.c.h.b16 %v7620
        %v7849 = vunpack.c.l.b16 %v7621
        %v7850 = vunpack.c.l.b16 %v7622
        %v7851 = vunpack.c.h.b16 %v7622
        %v7852 = vunpack.c.l.b16 %v7623
        %v7853 = vunpack.c.l.b16 %v7624
        %v7854 = vunpack.c.h.b16 %v7624
        %v7855 = vunpack.c.l.b16 %v7625
        %v7856 = vunpack.c.l.b16 %v7626
        %v7857 = vunpack.c.h.b16 %v7626
        %v7858 = vunpack.c.l.b16 %v7627
        %v7859 = vunpack.c.l.b16 %v7628
        %v7860 = vunpack.c.h.b16 %v7628
        %v7861 = vunpack.c.l.b16 %v7629
        %v7862 = vunpack.c.l.b16 %v7630
        %v7863 = vunpack.c.h.b16 %v7630
        %v7864 = vunpack.c.l.b16 %v7631
        %v7865 = vunpack.c.l.b16 %v7632
        %v7866 = vunpack.c.h.b16 %v7632
        %v7867 = vunpack.c.l.b16 %v7633
        %v7868 = vunpack.c.l.b16 %v7634
        %v7869 = vunpack.c.h.b16 %v7634
        %v7870 = vunpack.c.l.b16 %v7635
        %v7871 = vunpack.c.l.b16 %v7636
        %v7872 = vunpack.c.h.b16 %v7636
        %v7873 = vunpack.c.l.b16 %v7637
        %v7874 = vunpack.c.l.b16 %v7638
        %v7875 = vunpack.c.h.b16 %v7638
        %v7876 = vunpack.c.l.b16 %v7639
        %v7877 = vunpack.c.l.b16 %v7640
        %v7878 = vunpack.c.h.b16 %v7640
        %v7879 = vunpack.c.l.b16 %v7641
        %v7880 = vunpack.c.l.b16 %v7642
        %v7881 = vunpack.c.h.b16 %v7642
        %v7882 = vunpack.c.l.b16 %v7643
        %v7883 = vunpack.c.l.b16 %v7644
        %v7884 = vunpack.c.h.b16 %v7644
        %v7885 = vunpack.c.l.b16 %v7645
        %v7886 = vunpack.c.l.b16 %v7646
        %v7887 = vunpack.c.h.b16 %v7646
        %v7888 = vunpack.c.l.b16 %v7647
        %v7889 = vunpack.c.l.b16 %v7648
        %v7890 = vunpack.c.h.b16 %v7648
        %v7891 = vunpack.c.l.b16 %v7649
        %v7892 = vunpack.c.l.b16 %v7650
        %v7893 = vunpack.c.h.b16 %v7650
        %v7894 = vunpack.c.l.b16 %v7651
        %v7895 = vunpack.c.l.b16 %v7652
        %v7896 = vunpack.c.h.b16 %v7652
        %v7897 = vunpack.c.l.b16 %v7653
        %v7898 = vunpack.c.l.b16 %v7654
        %v7899 = vunpack.c.h.b16 %v7654
        %v7900 = vunpack.c.l.b16 %v7655
        %v7901 = vunpack.c.l.b16 %v7656
        %v7902 = vunpack.c.h.b16 %v7656
        %v7903 = vunpack.c.l.b16 %v7657
        %v7904 = vunpack.c.l.b16 %v7658
        %v7905 = vunpack.c.h.b16 %v7658
        %v7906 = vunpack.c.l.b16 %v7659
        %v7907 = vunpack.c.l.b16 %v7660
        %v7908 = vunpack.c.h.b16 %v7660
        %v7909 = vunpack.c.l.b16 %v7661
        %v7910 = vunpack.c.l.b16 %v7662
        %v7911 = vunpack.c.h.b16 %v7662
        %v7912 = vunpack.c.l.b16 %v7663
        %v7913 = vunpack.c.l.b16 %v7664
        %v7914 = vunpack.c.h.b16 %v7664
        %v7915 = vunpack.c.l.b16 %v7665
        %v7916 = vunpack.c.l.b16 %v7666
        %v7917 = vunpack.c.h.b16 %v7666
        %v7918 = vunpack.c.l.b16 %v7667
        %v7919 = vunpack.c.l.b16 %v7668
        %v7920 = vunpack.c.h.b16 %v7668
        %v7921 = vunpack.c.l.b16 %v7669
        %v7922 = vunpack.c.l.b16 %v7670
        %v7923 = vunpack.c.h.b16 %v7670
        %v7924 = vunpack.c.l.b16 %v7671
        %v7925 = vunpack.c.l.b16 %v7672
        %v7926 = vunpack.c.h.b16 %v7672
        %v7927 = vunpack.c.l.b16 %v7673
        %v7928 = vunpack.c.l.b16 %v7674
        %v7929 = vunpack.c.h.b16 %v7674
        %v7930 = vunpack.c.l.b16 %v7675
        %v7931 = vunpack.c.l.b16 %v7724
        %v7932 = vunpack.c.h.b16 %v7724
        %v7933 = vunpack.c.l.b16 %v7725
        %v7934 = vunpack.c.l.b16 %v7726
        %v7935 = vunpack.c.h.b16 %v7726
        %v7936 = vunpack.c.l.b16 %v7727
        %v7937 = vpack.c.b16 %v7844, %v7841
        %v7938 = vpack.c.b16 %v7845, %v7842
        %v7939 = vpack.c.b16 %v7846, %v7843
        %v7940 = vpack.c.b16 %v7850, %v7847
        %v7941 = vpack.c.b16 %v7851, %v7848
        %v7942 = vpack.c.b16 %v7852, %v7849
        %v7943 = vpack.c.b16 %v7856, %v7853
        %v7944 = vpack.c.b16 %v7857, %v7854
        %v7945 = vpack.c.b16 %v7858, %v7855
        %v7946 = vpack.c.b16 %v7862, %v7859
        %v7947 = vpack.c.b16 %v7863, %v7860
        %v7948 = vpack.c.b16 %v7864, %v7861
        %v7949 = vpack.c.b16 %v7868, %v7865
        %v7950 = vpack.c.b16 %v7869, %v7866
        %v7951 = vpack.c.b16 %v7870, %v7867
        %v7952 = vpack.c.b16 %v7874, %v7871
        %v7953 = vpack.c.b16 %v7875, %v7872
        %v7954 = vpack.c.b16 %v7876, %v7873
        %v7955 = vpack.c.b16 %v7880, %v7877
        %v7956 = vpack.c.b16 %v7881, %v7878
        %v7957 = vpack.c.b16 %v7882, %v7879
        %v7958 = vpack.c.b16 %v7886, %v7883
        %v7959 = vpack.c.b16 %v7887, %v7884
        %v7960 = vpack.c.b16 %v7888, %v7885
        %v7961 = vpack.c.b16 %v7892, %v7889
        %v7962 = vpack.c.b16 %v7893, %v7890
        %v7963 = vpack.c.b16 %v7894, %v7891
        %v7964 = vpack.c.b16 %v7898, %v7895
        %v7965 = vpack.c.b16 %v7899, %v7896
        %v7966 = vpack.c.b16 %v7900, %v7897
        %v7967 = vpack.c.b16 %v7904, %v7901
        %v7968 = vpack.c.b16 %v7905, %v7902
        %v7969 = vpack.c.b16 %v7906, %v7903
        %v7970 = vpack.c.b16 %v7910, %v7907
        %v7971 = vpack.c.b16 %v7911, %v7908
        %v7972 = vpack.c.b16 %v7912, %v7909
        %v7973 = vpack.c.b16 %v7916, %v7913
        %v7974 = vpack.c.b16 %v7917, %v7914
        %v7975 = vpack.c.b16 %v7918, %v7915
        %v7976 = vpack.c.b16 %v7922, %v7919
        %v7977 = vpack.c.b16 %v7923, %v7920
        %v7978 = vpack.c.b16 %v7924, %v7921
        %v7979 = vpack.c.b16 %v7928, %v7925
        %v7980 = vpack.c.b16 %v7929, %v7926
        %v7981 = vpack.c.b16 %v7930, %v7927
        %v7982 = vpack.c.b16 %v7934, %v7931
        %v7983 = vpack.c.b16 %v7935, %v7932
        %v7984 = vpack.c.b16 %v7936, %v7933
        %v8081 = vunpack.c.l.b16 %v7729
        %v8082 = vunpack.c.l.b16 %v7730
        %v8083 = vunpack.c.l.b16 %v7731
        %v8084 = vunpack.c.l.b16 %v7732
        %v8085 = vunpack.c.l.b16 %v7733
        %v8086 = vunpack.c.l.b16 %v7734
        %v8087 = vunpack.c.l.b16 %v7735
        %v8088 = vunpack.c.l.b16 %v7736
        %v8089 = vunpack.c.l.b16 %v7737
        %v8090 = vunpack.c.l.b16 %v7738
        %v8091 = vunpack.c.l.b16 %v7739
        %v8092 = vunpack.c.l.b16 %v7740
        %v8093 = vunpack.c.l.b16 %v7741
        %v8094 = vunpack.c.l.b16 %v7742
        %v8095 = vunpack.c.l.b16 %v7743
        %v8096 = vunpack.c.l.b16 %v7744
        %v8097 = vunpack.c.l.b16 %v7745
        %v8098 = vunpack.c.l.b16 %v7746
        %v8099 = vunpack.c.l.b16 %v7747
        %v8100 = vunpack.c.l.b16 %v7748
        %v8101 = vunpack.c.l.b16 %v7749
        %v8102 = vunpack.c.l.b16 %v7750
        %v8103 = vunpack.c.l.b16 %v7751
        %v8104 = vunpack.c.l.b16 %v7752
        %v8105 = vunpack.c.l.b16 %v7753
        %v8106 = vunpack.c.l.b16 %v7754
        %v8107 = vunpack.c.l.b16 %v7755
        %v8108 = vunpack.c.l.b16 %v7756
        %v8109 = vunpack.c.l.b16 %v7757
        %v8110 = vunpack.c.l.b16 %v7758
        %v8111 = vunpack.c.l.b16 %v7759
        %v8112 = vunpack.c.l.b16 %v7760
        %v8113 = vunpack.c.l.b16 %v7761
        %v8114 = vunpack.c.l.b16 %v7762
        %v8115 = vunpack.c.l.b16 %v7763
        %v8116 = vunpack.c.l.b16 %v7764
        %v8117 = vunpack.c.l.b16 %v7765
        %v8118 = vunpack.c.l.b16 %v7766
        %v8119 = vunpack.c.l.b16 %v7767
        %v8120 = vunpack.c.l.b16 %v7768
        %v8121 = vunpack.c.l.b16 %v7769
        %v8122 = vunpack.c.l.b16 %v7770
        %v8123 = vunpack.c.l.b16 %v7771
        %v8124 = vunpack.c.l.b16 %v7772
        %v8125 = vunpack.c.l.b16 %v7773
        %v8126 = vunpack.c.l.b16 %v7774
        %v8127 = vunpack.c.l.b16 %v7775
        %v8128 = vunpack.c.l.b16 %v7776
        %v8129 = vpack.c.b16 %v8082, %v8081
        %v8130 = vpack.c.b16 %v8084, %v8083
        %v8131 = vpack.c.b16 %v8086, %v8085
        %v8132 = vpack.c.b16 %v8088, %v8087
        %v8133 = vpack.c.b16 %v8090, %v8089
        %v8134 = vpack.c.b16 %v8092, %v8091
        %v8135 = vpack.c.b16 %v8094, %v8093
        %v8136 = vpack.c.b16 %v8096, %v8095
        %v8137 = vpack.c.b16 %v8098, %v8097
        %v8138 = vpack.c.b16 %v8100, %v8099
        %v8139 = vpack.c.b16 %v8102, %v8101
        %v8140 = vpack.c.b16 %v8104, %v8103
        %v8141 = vpack.c.b16 %v8106, %v8105
        %v8142 = vpack.c.b16 %v8108, %v8107
        %v8143 = vpack.c.b16 %v8110, %v8109
        %v8144 = vpack.c.b16 %v8112, %v8111
        %v8145 = vpack.c.b16 %v8114, %v8113
        %v8146 = vpack.c.b16 %v8116, %v8115
        %v8147 = vpack.c.b16 %v8118, %v8117
        %v8148 = vpack.c.b16 %v8120, %v8119
        %v8149 = vpack.c.b16 %v8122, %v8121
        %v8150 = vpack.c.b16 %v8124, %v8123
        %v8151 = vpack.c.b16 %v8126, %v8125
        %v8152 = vpack.c.b16 %v8128, %v8127
        %8177 = vmatpush.bf16.msra.mxu0 %v8136
        %8178 = vmatpush.bf16.msra.mxu0 %v8135
        %8179 = vmatpush.bf16.msra.mxu0 %v8134
        %8180 = vmatpush.bf16.msra.mxu0 %v8133
        %8181 = vmatpush.bf16.msra.mxu0 %v8132
        %8182 = vmatpush.bf16.msra.mxu0 %v8131
        %8183 = vmatpush.bf16.msra.mxu0 %v8130
        %8184 = vmatpush.bf16.msra.mxu0 %v8129
        %8185 = vmatmul.bf16.gmra.mxu0 %v7937
        %v8186 = vpop.f32.mrf.mxu0
        %v8187 = vadd.f32 0.0, %v8186
        %v8188 = vpop.f32.mrf.mxu0
        %v8189 = vadd.f32 0.0, %v8188
        %8190 = vmatmul.bf16.gmra.mxu0 %v7940
        %v8191 = vpop.f32.mrf.mxu0
        %v8192 = vadd.f32 0.0, %v8191
        %v8193 = vpop.f32.mrf.mxu0
        %v8194 = vadd.f32 0.0, %v8193
        %8195 = vmatmul.bf16.gmra.mxu0 %v7943
        %v8196 = vpop.f32.mrf.mxu0
        %v8197 = vadd.f32 0.0, %v8196
        %v8198 = vpop.f32.mrf.mxu0
        %v8199 = vadd.f32 0.0, %v8198
        %8200 = vmatmul.bf16.gmra.mxu0 %v7946
        %v8201 = vpop.f32.mrf.mxu0
        %v8202 = vadd.f32 0.0, %v8201
        %v8203 = vpop.f32.mrf.mxu0
        %v8204 = vadd.f32 0.0, %v8203
        %8205 = vmatmul.bf16.gmra.mxu0 %v7949
        %v8206 = vpop.f32.mrf.mxu0
        %v8207 = vadd.f32 0.0, %v8206
        %v8208 = vpop.f32.mrf.mxu0
        %v8209 = vadd.f32 0.0, %v8208
        %8210 = vmatmul.bf16.gmra.mxu0 %v7952
        %v8211 = vpop.f32.mrf.mxu0
        %v8212 = vadd.f32 0.0, %v8211
        %v8213 = vpop.f32.mrf.mxu0
        %v8214 = vadd.f32 0.0, %v8213
        %8215 = vmatmul.bf16.gmra.mxu0 %v7955
        %v8216 = vpop.f32.mrf.mxu0
        %v8217 = vadd.f32 0.0, %v8216
        %v8218 = vpop.f32.mrf.mxu0
        %v8219 = vadd.f32 0.0, %v8218
        %8220 = vmatmul.bf16.gmra.mxu0 %v7958
        %v8221 = vpop.f32.mrf.mxu0
        %v8222 = vadd.f32 0.0, %v8221
        %v8223 = vpop.f32.mrf.mxu0
        %v8224 = vadd.f32 0.0, %v8223
        %8225 = vmatmul.bf16.gmra.mxu0 %v7961
        %v8226 = vpop.f32.mrf.mxu0
        %v8227 = vadd.f32 0.0, %v8226
        %v8228 = vpop.f32.mrf.mxu0
        %v8229 = vadd.f32 0.0, %v8228
        %8230 = vmatmul.bf16.gmra.mxu0 %v7964
        %v8231 = vpop.f32.mrf.mxu0
        %v8232 = vadd.f32 0.0, %v8231
        %v8233 = vpop.f32.mrf.mxu0
        %v8234 = vadd.f32 0.0, %v8233
        %8235 = vmatmul.bf16.gmra.mxu0 %v7967
        %v8236 = vpop.f32.mrf.mxu0
        %v8237 = vadd.f32 0.0, %v8236
        %v8238 = vpop.f32.mrf.mxu0
        %v8239 = vadd.f32 0.0, %v8238
        %8240 = vmatmul.bf16.gmra.mxu0 %v7970
        %v8241 = vpop.f32.mrf.mxu0
        %v8242 = vadd.f32 0.0, %v8241
        %v8243 = vpop.f32.mrf.mxu0
        %v8244 = vadd.f32 0.0, %v8243
        %8245 = vmatmul.bf16.gmra.mxu0 %v7973
        %v8246 = vpop.f32.mrf.mxu0
        %v8247 = vadd.f32 0.0, %v8246
        %v8248 = vpop.f32.mrf.mxu0
        %v8249 = vadd.f32 0.0, %v8248
        %8250 = vmatmul.bf16.gmra.mxu0 %v7976
        %v8251 = vpop.f32.mrf.mxu0
        %v8252 = vadd.f32 0.0, %v8251
        %v8253 = vpop.f32.mrf.mxu0
        %v8254 = vadd.f32 0.0, %v8253
        %8255 = vmatmul.bf16.gmra.mxu0 %v7979
        %v8256 = vpop.f32.mrf.mxu0
        %v8257 = vadd.f32 0.0, %v8256
        %v8258 = vpop.f32.mrf.mxu0
        %v8259 = vadd.f32 0.0, %v8258
        %8260 = vmatmul.bf16.gmra.mxu0 %v7982
        %v8261 = vpop.f32.mrf.mxu0
        %v8262 = vadd.f32 0.0, %v8261
        %v8263 = vpop.f32.mrf.mxu0
        %v8264 = vadd.f32 0.0, %v8263
        %8265 = vdwg.mxu0
        %8266 = vmatpush.bf16.msra.mxu0 %v8144
        %8267 = vmatpush.bf16.msra.mxu0 %v8143
        %8268 = vmatpush.bf16.msra.mxu0 %v8142
        %8269 = vmatpush.bf16.msra.mxu0 %v8141
        %8270 = vmatpush.bf16.msra.mxu0 %v8140
        %8271 = vmatpush.bf16.msra.mxu0 %v8139
        %8272 = vmatpush.bf16.msra.mxu0 %v8138
        %8273 = vmatpush.bf16.msra.mxu0 %v8137
        %8274 = vmatmul.bf16.gmra.mxu0 %v7938
        %v8275 = vpop.f32.mrf.mxu0
        %v8276 = vadd.f32 %v8187, %v8275
        %v8277 = vpop.f32.mrf.mxu0
        %v8278 = vadd.f32 %v8189, %v8277
        %8279 = vmatmul.bf16.gmra.mxu0 %v7941
        %v8280 = vpop.f32.mrf.mxu0
        %v8281 = vadd.f32 %v8192, %v8280
        %v8282 = vpop.f32.mrf.mxu0
        %v8283 = vadd.f32 %v8194, %v8282
        %8284 = vmatmul.bf16.gmra.mxu0 %v7944
        %v8285 = vpop.f32.mrf.mxu0
        %v8286 = vadd.f32 %v8197, %v8285
        %v8287 = vpop.f32.mrf.mxu0
        %v8288 = vadd.f32 %v8199, %v8287
        %8289 = vmatmul.bf16.gmra.mxu0 %v7947
        %v8290 = vpop.f32.mrf.mxu0
        %v8291 = vadd.f32 %v8202, %v8290
        %v8292 = vpop.f32.mrf.mxu0
        %v8293 = vadd.f32 %v8204, %v8292
        %8294 = vmatmul.bf16.gmra.mxu0 %v7950
        %v8295 = vpop.f32.mrf.mxu0
        %v8296 = vadd.f32 %v8207, %v8295
        %v8297 = vpop.f32.mrf.mxu0
        %v8298 = vadd.f32 %v8209, %v8297
        %8299 = vmatmul.bf16.gmra.mxu0 %v7953
        %v8300 = vpop.f32.mrf.mxu0
        %v8301 = vadd.f32 %v8212, %v8300
        %v8302 = vpop.f32.mrf.mxu0
        %v8303 = vadd.f32 %v8214, %v8302
        %8304 = vmatmul.bf16.gmra.mxu0 %v7956
        %v8305 = vpop.f32.mrf.mxu0
        %v8306 = vadd.f32 %v8217, %v8305
        %v8307 = vpop.f32.mrf.mxu0
        %v8308 = vadd.f32 %v8219, %v8307
        %8309 = vmatmul.bf16.gmra.mxu0 %v7959
        %v8310 = vpop.f32.mrf.mxu0
        %v8311 = vadd.f32 %v8222, %v8310
        %v8312 = vpop.f32.mrf.mxu0
        %v8313 = vadd.f32 %v8224, %v8312
        %8314 = vmatmul.bf16.gmra.mxu0 %v7962
        %v8315 = vpop.f32.mrf.mxu0
        %v8316 = vadd.f32 %v8227, %v8315
        %v8317 = vpop.f32.mrf.mxu0
        %v8318 = vadd.f32 %v8229, %v8317
        %8319 = vmatmul.bf16.gmra.mxu0 %v7965
        %v8320 = vpop.f32.mrf.mxu0
        %v8321 = vadd.f32 %v8232, %v8320
        %v8322 = vpop.f32.mrf.mxu0
        %v8323 = vadd.f32 %v8234, %v8322
        %8324 = vmatmul.bf16.gmra.mxu0 %v7968
        %v8325 = vpop.f32.mrf.mxu0
        %v8326 = vadd.f32 %v8237, %v8325
        %v8327 = vpop.f32.mrf.mxu0
        %v8328 = vadd.f32 %v8239, %v8327
        %8329 = vmatmul.bf16.gmra.mxu0 %v7971
        %v8330 = vpop.f32.mrf.mxu0
        %v8331 = vadd.f32 %v8242, %v8330
        %v8332 = vpop.f32.mrf.mxu0
        %v8333 = vadd.f32 %v8244, %v8332
        %8334 = vmatmul.bf16.gmra.mxu0 %v7974
        %v8335 = vpop.f32.mrf.mxu0
        %v8336 = vadd.f32 %v8247, %v8335
        %v8337 = vpop.f32.mrf.mxu0
        %v8338 = vadd.f32 %v8249, %v8337
        %8339 = vmatmul.bf16.gmra.mxu0 %v7977
        %v8340 = vpop.f32.mrf.mxu0
        %v8341 = vadd.f32 %v8252, %v8340
        %v8342 = vpop.f32.mrf.mxu0
        %v8343 = vadd.f32 %v8254, %v8342
        %8344 = vmatmul.bf16.gmra.mxu0 %v7980
        %v8345 = vpop.f32.mrf.mxu0
        %v8346 = vadd.f32 %v8257, %v8345
        %v8347 = vpop.f32.mrf.mxu0
        %v8348 = vadd.f32 %v8259, %v8347
        %8349 = vmatmul.bf16.gmra.mxu0 %v7983
        %v8350 = vpop.f32.mrf.mxu0
        %v8351 = vadd.f32 %v8262, %v8350
        %v8352 = vpop.f32.mrf.mxu0
        %v8353 = vadd.f32 %v8264, %v8352
        %8354 = vdwg.mxu0
        %8355 = vmatpush.bf16.msra.mxu0 %v8152
        %8356 = vmatpush.bf16.msra.mxu0 %v8151
        %8357 = vmatpush.bf16.msra.mxu0 %v8150
        %8358 = vmatpush.bf16.msra.mxu0 %v8149
        %8359 = vmatpush.bf16.msra.mxu0 %v8148
        %8360 = vmatpush.bf16.msra.mxu0 %v8147
        %8361 = vmatpush.bf16.msra.mxu0 %v8146
        %8362 = vmatpush.bf16.msra.mxu0 %v8145
        %8363 = vmatmul.bf16.gmra.mxu0 %v7939
        %v8364 = vpop.f32.mrf.mxu0
        %v8365 = vadd.f32 %v8276, %v8364
        %v8366 = vpop.f32.mrf.mxu0
        %v8367 = vadd.f32 %v8278, %v8366
        %8368 = vmatmul.bf16.gmra.mxu0 %v7942
        %v8369 = vpop.f32.mrf.mxu0
        %v8370 = vadd.f32 %v8281, %v8369
        %v8371 = vpop.f32.mrf.mxu0
        %v8372 = vadd.f32 %v8283, %v8371
        %8373 = vmatmul.bf16.gmra.mxu0 %v7945
        %v8374 = vpop.f32.mrf.mxu0
        %v8375 = vadd.f32 %v8286, %v8374
        %v8376 = vpop.f32.mrf.mxu0
        %v8377 = vadd.f32 %v8288, %v8376
        %8378 = vmatmul.bf16.gmra.mxu0 %v7948
        %v8379 = vpop.f32.mrf.mxu0
        %v8380 = vadd.f32 %v8291, %v8379
        %v8381 = vpop.f32.mrf.mxu0
        %v8382 = vadd.f32 %v8293, %v8381
        %8383 = vmatmul.bf16.gmra.mxu0 %v7951
        %v8384 = vpop.f32.mrf.mxu0
        %v8385 = vadd.f32 %v8296, %v8384
        %v8386 = vpop.f32.mrf.mxu0
        %v8387 = vadd.f32 %v8298, %v8386
        %8388 = vmatmul.bf16.gmra.mxu0 %v7954
        %v8389 = vpop.f32.mrf.mxu0
        %v8390 = vadd.f32 %v8301, %v8389
        %v8391 = vpop.f32.mrf.mxu0
        %v8392 = vadd.f32 %v8303, %v8391
        %8393 = vmatmul.bf16.gmra.mxu0 %v7957
        %v8394 = vpop.f32.mrf.mxu0
        %v8395 = vadd.f32 %v8306, %v8394
        %v8396 = vpop.f32.mrf.mxu0
        %v8397 = vadd.f32 %v8308, %v8396
        %8398 = vmatmul.bf16.gmra.mxu0 %v7960
        %v8399 = vpop.f32.mrf.mxu0
        %v8400 = vadd.f32 %v8311, %v8399
        %v8401 = vpop.f32.mrf.mxu0
        %v8402 = vadd.f32 %v8313, %v8401
        %8403 = vmatmul.bf16.gmra.mxu0 %v7963
        %v8404 = vpop.f32.mrf.mxu0
        %v8405 = vadd.f32 %v8316, %v8404
        %v8406 = vpop.f32.mrf.mxu0
        %v8407 = vadd.f32 %v8318, %v8406
        %8408 = vmatmul.bf16.gmra.mxu0 %v7966
        %v8409 = vpop.f32.mrf.mxu0
        %v8410 = vadd.f32 %v8321, %v8409
        %v8411 = vpop.f32.mrf.mxu0
        %v8412 = vadd.f32 %v8323, %v8411
        %8413 = vmatmul.bf16.gmra.mxu0 %v7969
        %v8414 = vpop.f32.mrf.mxu0
        %v8415 = vadd.f32 %v8326, %v8414
        %v8416 = vpop.f32.mrf.mxu0
        %v8417 = vadd.f32 %v8328, %v8416
        %8418 = vmatmul.bf16.gmra.mxu0 %v7972
        %v8419 = vpop.f32.mrf.mxu0
        %v8420 = vadd.f32 %v8331, %v8419
        %v8421 = vpop.f32.mrf.mxu0
        %v8422 = vadd.f32 %v8333, %v8421
        %8423 = vmatmul.bf16.gmra.mxu0 %v7975
        %v8424 = vpop.f32.mrf.mxu0
        %v8425 = vadd.f32 %v8336, %v8424
        %v8426 = vpop.f32.mrf.mxu0
        %v8427 = vadd.f32 %v8338, %v8426
        %8428 = vmatmul.bf16.gmra.mxu0 %v7978
        %v8429 = vpop.f32.mrf.mxu0
        %v8430 = vadd.f32 %v8341, %v8429
        %v8431 = vpop.f32.mrf.mxu0
        %v8432 = vadd.f32 %v8343, %v8431
        %8433 = vmatmul.bf16.gmra.mxu0 %v7981
        %v8434 = vpop.f32.mrf.mxu0
        %v8435 = vadd.f32 %v8346, %v8434
        %v8436 = vpop.f32.mrf.mxu0
        %v8437 = vadd.f32 %v8348, %v8436
        %8438 = vmatmul.bf16.gmra.mxu0 %v7984
        %v8439 = vpop.f32.mrf.mxu0
        %v8440 = vadd.f32 %v8351, %v8439
        %v8441 = vpop.f32.mrf.mxu0
        %v8442 = vadd.f32 %v8353, %v8441
        %8443 = vdwg.mxu0
        %v8448 = vunpack.c.l.b16 %v7612
        %v8449 = vunpack.c.h.b16 %v7612
        %v8450 = vunpack.c.l.b16 %v7613
        %v8451 = vunpack.c.l.b16 %v7614
        %v8452 = vunpack.c.h.b16 %v7614
        %v8453 = vunpack.c.l.b16 %v7615
        %v8454 = vpack.c.b16 %v8451, %v8448
        %v8455 = vpack.c.b16 %v8452, %v8449
        %v8456 = vpack.c.b16 %v8453, %v8450
        %v8508 = vunpack.c.l.b16 %v7676
        %v8509 = vunpack.c.l.b16 %v7677
        %v8510 = vunpack.c.l.b16 %v7678
        %v8511 = vunpack.c.l.b16 %v7679
        %v8512 = vunpack.c.l.b16 %v7680
        %v8513 = vunpack.c.l.b16 %v7681
        %v8514 = vunpack.c.l.b16 %v7682
        %v8515 = vunpack.c.l.b16 %v7683
        %v8516 = vunpack.c.l.b16 %v7684
        %v8517 = vunpack.c.l.b16 %v7685
        %v8518 = vunpack.c.l.b16 %v7686
        %v8519 = vunpack.c.l.b16 %v7687
        %v8520 = vunpack.c.l.b16 %v7688
        %v8521 = vunpack.c.l.b16 %v7689
        %v8522 = vunpack.c.l.b16 %v7690
        %v8523 = vunpack.c.l.b16 %v7691
        %v8524 = vunpack.c.l.b16 %v7692
        %v8525 = vunpack.c.l.b16 %v7693
        %v8526 = vunpack.c.l.b16 %v7694
        %v8527 = vunpack.c.l.b16 %v7695
        %v8528 = vunpack.c.l.b16 %v7696
        %v8529 = vunpack.c.l.b16 %v7697
        %v8530 = vunpack.c.l.b16 %v7698
        %v8531 = vunpack.c.l.b16 %v7699
        %v8532 = vunpack.c.l.b16 %v7700
        %v8533 = vunpack.c.l.b16 %v7701
        %v8534 = vunpack.c.l.b16 %v7702
        %v8535 = vunpack.c.l.b16 %v7703
        %v8536 = vunpack.c.l.b16 %v7704
        %v8537 = vunpack.c.l.b16 %v7705
        %v8538 = vunpack.c.l.b16 %v7706
        %v8539 = vunpack.c.l.b16 %v7707
        %v8540 = vunpack.c.l.b16 %v7708
        %v8541 = vunpack.c.l.b16 %v7709
        %v8542 = vunpack.c.l.b16 %v7710
        %v8543 = vunpack.c.l.b16 %v7711
        %v8544 = vunpack.c.l.b16 %v7712
        %v8545 = vunpack.c.l.b16 %v7713
        %v8546 = vunpack.c.l.b16 %v7714
        %v8547 = vunpack.c.l.b16 %v7715
        %v8548 = vunpack.c.l.b16 %v7716
        %v8549 = vunpack.c.l.b16 %v7717
        %v8550 = vunpack.c.l.b16 %v7718
        %v8551 = vunpack.c.l.b16 %v7719
        %v8552 = vunpack.c.l.b16 %v7720
        %v8553 = vunpack.c.l.b16 %v7721
        %v8554 = vunpack.c.l.b16 %v7722
        %v8555 = vunpack.c.l.b16 %v7723
        %v8556 = vpack.c.b16 %v8509, %v8508
        %v8557 = vpack.c.b16 %v8511, %v8510
        %v8558 = vpack.c.b16 %v8513, %v8512
        %v8559 = vpack.c.b16 %v8515, %v8514
        %v8560 = vpack.c.b16 %v8517, %v8516
        %v8561 = vpack.c.b16 %v8519, %v8518
        %v8562 = vpack.c.b16 %v8521, %v8520
        %v8563 = vpack.c.b16 %v8523, %v8522
        %v8564 = vpack.c.b16 %v8525, %v8524
        %v8565 = vpack.c.b16 %v8527, %v8526
        %v8566 = vpack.c.b16 %v8529, %v8528
        %v8567 = vpack.c.b16 %v8531, %v8530
        %v8568 = vpack.c.b16 %v8533, %v8532
        %v8569 = vpack.c.b16 %v8535, %v8534
        %v8570 = vpack.c.b16 %v8537, %v8536
        %v8571 = vpack.c.b16 %v8539, %v8538
        %v8572 = vpack.c.b16 %v8541, %v8540
        %v8573 = vpack.c.b16 %v8543, %v8542
        %v8574 = vpack.c.b16 %v8545, %v8544
        %v8575 = vpack.c.b16 %v8547, %v8546
        %v8576 = vpack.c.b16 %v8549, %v8548
        %v8577 = vpack.c.b16 %v8551, %v8550
        %v8578 = vpack.c.b16 %v8553, %v8552
        %v8579 = vpack.c.b16 %v8555, %v8554
        %8604 = vmatpush.bf16.msra.mxu0 %v8563
        %8605 = vmatpush.bf16.msra.mxu0 %v8562
        %8606 = vmatpush.bf16.msra.mxu0 %v8561
        %8607 = vmatpush.bf16.msra.mxu0 %v8560
        %8608 = vmatpush.bf16.msra.mxu0 %v8559
        %8609 = vmatpush.bf16.msra.mxu0 %v8558
        %8610 = vmatpush.bf16.msra.mxu0 %v8557
        %8611 = vmatpush.bf16.msra.mxu0 %v8556
        %8612 = vmatmul.bf16.gmra.mxu0 %v8454
        %v8613 = vpop.f32.mrf.mxu0
        %v8614 = vadd.f32 %v8365, %v8613
        %v8615 = vpop.f32.mrf.mxu0
        %v8616 = vadd.f32 %v8367, %v8615
        %8617 = vmatmul.bf16.gmra.mxu0 %v7937
        %v8618 = vpop.f32.mrf.mxu0
        %v8619 = vadd.f32 %v8370, %v8618
        %v8620 = vpop.f32.mrf.mxu0
        %v8621 = vadd.f32 %v8372, %v8620
        %8622 = vmatmul.bf16.gmra.mxu0 %v7940
        %v8623 = vpop.f32.mrf.mxu0
        %v8624 = vadd.f32 %v8375, %v8623
        %v8625 = vpop.f32.mrf.mxu0
        %v8626 = vadd.f32 %v8377, %v8625
        %8627 = vmatmul.bf16.gmra.mxu0 %v7943
        %v8628 = vpop.f32.mrf.mxu0
        %v8629 = vadd.f32 %v8380, %v8628
        %v8630 = vpop.f32.mrf.mxu0
        %v8631 = vadd.f32 %v8382, %v8630
        %8632 = vmatmul.bf16.gmra.mxu0 %v7946
        %v8633 = vpop.f32.mrf.mxu0
        %v8634 = vadd.f32 %v8385, %v8633
        %v8635 = vpop.f32.mrf.mxu0
        %v8636 = vadd.f32 %v8387, %v8635
        %8637 = vmatmul.bf16.gmra.mxu0 %v7949
        %v8638 = vpop.f32.mrf.mxu0
        %v8639 = vadd.f32 %v8390, %v8638
        %v8640 = vpop.f32.mrf.mxu0
        %v8641 = vadd.f32 %v8392, %v8640
        %8642 = vmatmul.bf16.gmra.mxu0 %v7952
        %v8643 = vpop.f32.mrf.mxu0
        %v8644 = vadd.f32 %v8395, %v8643
        %v8645 = vpop.f32.mrf.mxu0
        %v8646 = vadd.f32 %v8397, %v8645
        %8647 = vmatmul.bf16.gmra.mxu0 %v7955
        %v8648 = vpop.f32.mrf.mxu0
        %v8649 = vadd.f32 %v8400, %v8648
        %v8650 = vpop.f32.mrf.mxu0
        %v8651 = vadd.f32 %v8402, %v8650
        %8652 = vmatmul.bf16.gmra.mxu0 %v7958
        %v8653 = vpop.f32.mrf.mxu0
        %v8654 = vadd.f32 %v8405, %v8653
        %v8655 = vpop.f32.mrf.mxu0
        %v8656 = vadd.f32 %v8407, %v8655
        %8657 = vmatmul.bf16.gmra.mxu0 %v7961
        %v8658 = vpop.f32.mrf.mxu0
        %v8659 = vadd.f32 %v8410, %v8658
        %v8660 = vpop.f32.mrf.mxu0
        %v8661 = vadd.f32 %v8412, %v8660
        %8662 = vmatmul.bf16.gmra.mxu0 %v7964
        %v8663 = vpop.f32.mrf.mxu0
        %v8664 = vadd.f32 %v8415, %v8663
        %v8665 = vpop.f32.mrf.mxu0
        %v8666 = vadd.f32 %v8417, %v8665
        %8667 = vmatmul.bf16.gmra.mxu0 %v7967
        %v8668 = vpop.f32.mrf.mxu0
        %v8669 = vadd.f32 %v8420, %v8668
        %v8670 = vpop.f32.mrf.mxu0
        %v8671 = vadd.f32 %v8422, %v8670
        %8672 = vmatmul.bf16.gmra.mxu0 %v7970
        %v8673 = vpop.f32.mrf.mxu0
        %v8674 = vadd.f32 %v8425, %v8673
        %v8675 = vpop.f32.mrf.mxu0
        %v8676 = vadd.f32 %v8427, %v8675
        %8677 = vmatmul.bf16.gmra.mxu0 %v7973
        %v8678 = vpop.f32.mrf.mxu0
        %v8679 = vadd.f32 %v8430, %v8678
        %v8680 = vpop.f32.mrf.mxu0
        %v8681 = vadd.f32 %v8432, %v8680
        %8682 = vmatmul.bf16.gmra.mxu0 %v7976
        %v8683 = vpop.f32.mrf.mxu0
        %v8684 = vadd.f32 %v8435, %v8683
        %v8685 = vpop.f32.mrf.mxu0
        %v8686 = vadd.f32 %v8437, %v8685
        %8687 = vmatmul.bf16.gmra.mxu0 %v7979
        %v8688 = vpop.f32.mrf.mxu0
        %v8689 = vadd.f32 %v8440, %v8688
        %v8690 = vpop.f32.mrf.mxu0
        %v8691 = vadd.f32 %v8442, %v8690
        %8692 = vdwg.mxu0
        %8693 = vmatpush.bf16.msra.mxu0 %v8571
        %8694 = vmatpush.bf16.msra.mxu0 %v8570
        %8695 = vmatpush.bf16.msra.mxu0 %v8569
        %8696 = vmatpush.bf16.msra.mxu0 %v8568
        %8697 = vmatpush.bf16.msra.mxu0 %v8567
        %8698 = vmatpush.bf16.msra.mxu0 %v8566
        %8699 = vmatpush.bf16.msra.mxu0 %v8565
        %8700 = vmatpush.bf16.msra.mxu0 %v8564
        %8701 = vmatmul.bf16.gmra.mxu0 %v8455
        %v8702 = vpop.f32.mrf.mxu0
        %v8703 = vadd.f32 %v8614, %v8702
        %v8704 = vpop.f32.mrf.mxu0
        %v8705 = vadd.f32 %v8616, %v8704
        %8706 = vmatmul.bf16.gmra.mxu0 %v7938
        %v8707 = vpop.f32.mrf.mxu0
        %v8708 = vadd.f32 %v8619, %v8707
        %v8709 = vpop.f32.mrf.mxu0
        %v8710 = vadd.f32 %v8621, %v8709
        %8711 = vmatmul.bf16.gmra.mxu0 %v7941
        %v8712 = vpop.f32.mrf.mxu0
        %v8713 = vadd.f32 %v8624, %v8712
        %v8714 = vpop.f32.mrf.mxu0
        %v8715 = vadd.f32 %v8626, %v8714
        %8716 = vmatmul.bf16.gmra.mxu0 %v7944
        %v8717 = vpop.f32.mrf.mxu0
        %v8718 = vadd.f32 %v8629, %v8717
        %v8719 = vpop.f32.mrf.mxu0
        %v8720 = vadd.f32 %v8631, %v8719
        %8721 = vmatmul.bf16.gmra.mxu0 %v7947
        %v8722 = vpop.f32.mrf.mxu0
        %v8723 = vadd.f32 %v8634, %v8722
        %v8724 = vpop.f32.mrf.mxu0
        %v8725 = vadd.f32 %v8636, %v8724
        %8726 = vmatmul.bf16.gmra.mxu0 %v7950
        %v8727 = vpop.f32.mrf.mxu0
        %v8728 = vadd.f32 %v8639, %v8727
        %v8729 = vpop.f32.mrf.mxu0
        %v8730 = vadd.f32 %v8641, %v8729
        %8731 = vmatmul.bf16.gmra.mxu0 %v7953
        %v8732 = vpop.f32.mrf.mxu0
        %v8733 = vadd.f32 %v8644, %v8732
        %v8734 = vpop.f32.mrf.mxu0
        %v8735 = vadd.f32 %v8646, %v8734
        %8736 = vmatmul.bf16.gmra.mxu0 %v7956
        %v8737 = vpop.f32.mrf.mxu0
        %v8738 = vadd.f32 %v8649, %v8737
        %v8739 = vpop.f32.mrf.mxu0
        %v8740 = vadd.f32 %v8651, %v8739
        %8741 = vmatmul.bf16.gmra.mxu0 %v7959
        %v8742 = vpop.f32.mrf.mxu0
        %v8743 = vadd.f32 %v8654, %v8742
        %v8744 = vpop.f32.mrf.mxu0
        %v8745 = vadd.f32 %v8656, %v8744
        %8746 = vmatmul.bf16.gmra.mxu0 %v7962
        %v8747 = vpop.f32.mrf.mxu0
        %v8748 = vadd.f32 %v8659, %v8747
        %v8749 = vpop.f32.mrf.mxu0
        %v8750 = vadd.f32 %v8661, %v8749
        %8751 = vmatmul.bf16.gmra.mxu0 %v7965
        %v8752 = vpop.f32.mrf.mxu0
        %v8753 = vadd.f32 %v8664, %v8752
        %v8754 = vpop.f32.mrf.mxu0
        %v8755 = vadd.f32 %v8666, %v8754
        %8756 = vmatmul.bf16.gmra.mxu0 %v7968
        %v8757 = vpop.f32.mrf.mxu0
        %v8758 = vadd.f32 %v8669, %v8757
        %v8759 = vpop.f32.mrf.mxu0
        %v8760 = vadd.f32 %v8671, %v8759
        %8761 = vmatmul.bf16.gmra.mxu0 %v7971
        %v8762 = vpop.f32.mrf.mxu0
        %v8763 = vadd.f32 %v8674, %v8762
        %v8764 = vpop.f32.mrf.mxu0
        %v8765 = vadd.f32 %v8676, %v8764
        %8766 = vmatmul.bf16.gmra.mxu0 %v7974
        %v8767 = vpop.f32.mrf.mxu0
        %v8768 = vadd.f32 %v8679, %v8767
        %v8769 = vpop.f32.mrf.mxu0
        %v8770 = vadd.f32 %v8681, %v8769
        %8771 = vmatmul.bf16.gmra.mxu0 %v7977
        %v8772 = vpop.f32.mrf.mxu0
        %v8773 = vadd.f32 %v8684, %v8772
        %v8774 = vpop.f32.mrf.mxu0
        %v8775 = vadd.f32 %v8686, %v8774
        %8776 = vmatmul.bf16.gmra.mxu0 %v7980
        %v8777 = vpop.f32.mrf.mxu0
        %v8778 = vadd.f32 %v8689, %v8777
        %v8779 = vpop.f32.mrf.mxu0
        %v8780 = vadd.f32 %v8691, %v8779
        %8781 = vdwg.mxu0
        %8782 = vmatpush.bf16.msra.mxu0 %v8579
        %8783 = vmatpush.bf16.msra.mxu0 %v8578
        %8784 = vmatpush.bf16.msra.mxu0 %v8577
        %8785 = vmatpush.bf16.msra.mxu0 %v8576
        %8786 = vmatpush.bf16.msra.mxu0 %v8575
        %8787 = vmatpush.bf16.msra.mxu0 %v8574
        %8788 = vmatpush.bf16.msra.mxu0 %v8573
        %8789 = vmatpush.bf16.msra.mxu0 %v8572
        %8790 = vmatmul.bf16.gmra.mxu0 %v8456
        %v8791 = vpop.f32.mrf.mxu0
        %v8792 = vadd.f32 %v8703, %v8791
        %v8793 = vpop.f32.mrf.mxu0
        %v8794 = vadd.f32 %v8705, %v8793
        %8795 = vmatmul.bf16.gmra.mxu0 %v7939
        %v8796 = vpop.f32.mrf.mxu0
        %v8797 = vadd.f32 %v8708, %v8796
        %v8798 = vpop.f32.mrf.mxu0
        %v8799 = vadd.f32 %v8710, %v8798
        %8800 = vmatmul.bf16.gmra.mxu0 %v7942
        %v8801 = vpop.f32.mrf.mxu0
        %v8802 = vadd.f32 %v8713, %v8801
        %v8803 = vpop.f32.mrf.mxu0
        %v8804 = vadd.f32 %v8715, %v8803
        %8805 = vmatmul.bf16.gmra.mxu0 %v7945
        %v8806 = vpop.f32.mrf.mxu0
        %v8807 = vadd.f32 %v8718, %v8806
        %v8808 = vpop.f32.mrf.mxu0
        %v8809 = vadd.f32 %v8720, %v8808
        %8810 = vmatmul.bf16.gmra.mxu0 %v7948
        %v8811 = vpop.f32.mrf.mxu0
        %v8812 = vadd.f32 %v8723, %v8811
        %v8813 = vpop.f32.mrf.mxu0
        %v8814 = vadd.f32 %v8725, %v8813
        %8815 = vmatmul.bf16.gmra.mxu0 %v7951
        %v8816 = vpop.f32.mrf.mxu0
        %v8817 = vadd.f32 %v8728, %v8816
        %v8818 = vpop.f32.mrf.mxu0
        %v8819 = vadd.f32 %v8730, %v8818
        %8820 = vmatmul.bf16.gmra.mxu0 %v7954
        %v8821 = vpop.f32.mrf.mxu0
        %v8822 = vadd.f32 %v8733, %v8821
        %v8823 = vpop.f32.mrf.mxu0
        %v8824 = vadd.f32 %v8735, %v8823
        %8825 = vmatmul.bf16.gmra.mxu0 %v7957
        %v8826 = vpop.f32.mrf.mxu0
        %v8827 = vadd.f32 %v8738, %v8826
        %v8828 = vpop.f32.mrf.mxu0
        %v8829 = vadd.f32 %v8740, %v8828
        %8830 = vmatmul.bf16.gmra.mxu0 %v7960
        %v8831 = vpop.f32.mrf.mxu0
        %v8832 = vadd.f32 %v8743, %v8831
        %v8833 = vpop.f32.mrf.mxu0
        %v8834 = vadd.f32 %v8745, %v8833
        %8835 = vmatmul.bf16.gmra.mxu0 %v7963
        %v8836 = vpop.f32.mrf.mxu0
        %v8837 = vadd.f32 %v8748, %v8836
        %v8838 = vpop.f32.mrf.mxu0
        %v8839 = vadd.f32 %v8750, %v8838
        %8840 = vmatmul.bf16.gmra.mxu0 %v7966
        %v8841 = vpop.f32.mrf.mxu0
        %v8842 = vadd.f32 %v8753, %v8841
        %v8843 = vpop.f32.mrf.mxu0
        %v8844 = vadd.f32 %v8755, %v8843
        %8845 = vmatmul.bf16.gmra.mxu0 %v7969
        %v8846 = vpop.f32.mrf.mxu0
        %v8847 = vadd.f32 %v8758, %v8846
        %v8848 = vpop.f32.mrf.mxu0
        %v8849 = vadd.f32 %v8760, %v8848
        %8850 = vmatmul.bf16.gmra.mxu0 %v7972
        %v8851 = vpop.f32.mrf.mxu0
        %v8852 = vadd.f32 %v8763, %v8851
        %v8853 = vpop.f32.mrf.mxu0
        %v8854 = vadd.f32 %v8765, %v8853
        %8855 = vmatmul.bf16.gmra.mxu0 %v7975
        %v8856 = vpop.f32.mrf.mxu0
        %v8857 = vadd.f32 %v8768, %v8856
        %v8858 = vpop.f32.mrf.mxu0
        %v8859 = vadd.f32 %v8770, %v8858
        %8860 = vmatmul.bf16.gmra.mxu0 %v7978
        %v8861 = vpop.f32.mrf.mxu0
        %v8862 = vadd.f32 %v8773, %v8861
        %v8863 = vpop.f32.mrf.mxu0
        %v8864 = vadd.f32 %v8775, %v8863
        %8865 = vmatmul.bf16.gmra.mxu0 %v7981
        %v8866 = vpop.f32.mrf.mxu0
        %v8867 = vadd.f32 %v8778, %v8866
        %v8868 = vpop.f32.mrf.mxu0
        %v8869 = vadd.f32 %v8780, %v8868
        %8870 = vdwg.mxu0
        %v8871 = vld [vmem:[#allocation3 + $0x30] sm:$0xff]
        %v8872 = vld [vmem:[#allocation3 + $0x38] sm:$0xf]
        %v8873 = vld [vmem:[#allocation3 + $0x3c] sm:$0xff]
        %v8874 = vld [vmem:[#allocation3 + $0x44] sm:$0xf]
        %v8875 = vld [vmem:[#allocation3 + $0x48] sm:$0xff]
        %v8876 = vld [vmem:[#allocation3 + $0x50] sm:$0xf]
        %v8877 = vld [vmem:[#allocation3 + $0x54] sm:$0xff]
        %v8878 = vld [vmem:[#allocation3 + $0x5c] sm:$0xf]
        %v8879 = vld [vmem:[#allocation3 + $0x60] sm:$0xff]
        %v8880 = vld [vmem:[#allocation3 + $0x68] sm:$0xf]
        %v8881 = vld [vmem:[#allocation3 + $0x6c] sm:$0xff]
        %v8882 = vld [vmem:[#allocation3 + $0x74] sm:$0xf]
        %v8883 = vld [vmem:[#allocation3 + $0x78] sm:$0xff]
        %v8884 = vld [vmem:[#allocation3 + $0x80] sm:$0xf]
        %v8885 = vld [vmem:[#allocation3 + $0x84] sm:$0xff]
        %v8886 = vld [vmem:[#allocation3 + $0x8c] sm:$0xf]
        %v8887 = vld [vmem:[#allocation3 + $0x90] sm:$0xff]
        %v8888 = vld [vmem:[#allocation3 + $0x98] sm:$0xf]
        %v8889 = vld [vmem:[#allocation3 + $0x9c] sm:$0xff]
        %v8890 = vld [vmem:[#allocation3 + $0xa4] sm:$0xf]
        %v8891 = vld [vmem:[#allocation3 + $0xa8] sm:$0xff]
        %v8892 = vld [vmem:[#allocation3 + $0xb0] sm:$0xf]
        %v8893 = vld [vmem:[#allocation3 + $0xb4] sm:$0xff]
        %v8894 = vld [vmem:[#allocation3 + $0xbc] sm:$0xf]
        %v8895 = vld [vmem:[#allocation3 + $0xc0] sm:$0xff]
        %v8896 = vld [vmem:[#allocation3 + $0xc8] sm:$0xf]
        %v8897 = vld [vmem:[#allocation3 + $0xcc] sm:$0xff]
        %v8898 = vld [vmem:[#allocation3 + $0xd4] sm:$0xf]
        %v8899 = vld [vmem:[#allocation3 + $0xd8] sm:$0xff]
        %v8900 = vld [vmem:[#allocation3 + $0xe0] sm:$0xf]
        %v8901 = vld [vmem:[#allocation3 + $0xe4] sm:$0xff]
        %v8902 = vld [vmem:[#allocation3 + $0xec] sm:$0xf]
        %v8903 = vld [vmem:[#allocation3 + $0xf0] sm:$0xff]
        %v8904 = vld [vmem:[#allocation3 + $0xf8] sm:$0xf]
        %v8905 = vld [vmem:[#allocation3 + $0xfc] sm:$0xff]
        %v8906 = vld [vmem:[#allocation3 + $0x104] sm:$0xf]
        %v8907 = vld [vmem:[#allocation3 + $0x108] sm:$0xff]
        %v8908 = vld [vmem:[#allocation3 + $0x110] sm:$0xf]
        %v8909 = vld [vmem:[#allocation3 + $0x114] sm:$0xff]
        %v8910 = vld [vmem:[#allocation3 + $0x11c] sm:$0xf]
        %v8911 = vld [vmem:[#allocation3 + $0x120] sm:$0xff]
        %v8912 = vld [vmem:[#allocation3 + $0x128] sm:$0xf]
        %v8913 = vld [vmem:[#allocation3 + $0x12c] sm:$0xff]
        %v8914 = vld [vmem:[#allocation3 + $0x134] sm:$0xf]
        %v8915 = vld [vmem:[#allocation3 + $0x138] sm:$0xff]
        %v8916 = vld [vmem:[#allocation3 + $0x140] sm:$0xf]
        %v8917 = vld [vmem:[#allocation3 + $0x144] sm:$0xff]
        %v8918 = vld [vmem:[#allocation3 + $0x14c] sm:$0xf]
        %v8919 = vld [vmem:[#allocation3 + $0x150] sm:$0xff]
        %v8920 = vld [vmem:[#allocation3 + $0x158] sm:$0xf]
        %v8921 = vld [vmem:[#allocation3 + $0x15c] sm:$0xff]
        %v8922 = vld [vmem:[#allocation3 + $0x164] sm:$0xf]
        %v8923 = vld [vmem:[#allocation3 + $0x168] sm:$0xff]
        %v8924 = vld [vmem:[#allocation3 + $0x170] sm:$0xf]
        %v8925 = vld [vmem:[#allocation3 + $0x174] sm:$0xff]
        %v8926 = vld [vmem:[#allocation3 + $0x17c] sm:$0xf]
        %v8927 = vld [vmem:[#allocation3 + $0x180] sm:$0xff]
        %v8928 = vld [vmem:[#allocation3 + $0x188] sm:$0xf]
        %v8929 = vld [vmem:[#allocation3 + $0x18c] sm:$0xff]
        %v8930 = vld [vmem:[#allocation3 + $0x194] sm:$0xf]
        %v8931 = vld [vmem:[#allocation3 + $0x198] sm:$0xff]
        %v8932 = vld [vmem:[#allocation3 + $0x1a0] sm:$0xf]
        %v8933 = vld [vmem:[#allocation3 + $0x1a4] sm:$0xff]
        %v8934 = vld [vmem:[#allocation3 + $0x1ac] sm:$0xf]
        %s8935 = scalar_lea.vmem %s6, 384
        %v8936 = vld [vmem:[%s8935] sm:$0xf]
        %v8937 = vld [vmem:[%s8935 + $0x4] sm:$0xf]
        %v8938 = vld [vmem:[%s8935 + $0x8] sm:$0xf]
        %v8939 = vld [vmem:[%s8935 + $0xc] sm:$0xf]
        %v8940 = vld [vmem:[%s8935 + $0x10] sm:$0xf]
        %v8941 = vld [vmem:[%s8935 + $0x14] sm:$0xf]
        %v8942 = vld [vmem:[%s8935 + $0x18] sm:$0xf]
        %v8943 = vld [vmem:[%s8935 + $0x1c] sm:$0xf]
        %v8944 = vld [vmem:[%s8935 + $0x20] sm:$0xf]
        %v8945 = vld [vmem:[%s8935 + $0x24] sm:$0xf]
        %v8946 = vld [vmem:[%s8935 + $0x28] sm:$0xf]
        %v8947 = vld [vmem:[%s8935 + $0x2c] sm:$0xf]
        %v8948 = vld [vmem:[%s8935 + $0x30] sm:$0xf]
        %v8949 = vld [vmem:[%s8935 + $0x34] sm:$0xf]
        %v8950 = vld [vmem:[%s8935 + $0x38] sm:$0xf]
        %v8951 = vld [vmem:[%s8935 + $0x3c] sm:$0xf]
        %v8952 = vld [vmem:[%s8935 + $0x40] sm:$0xf]
        %v8953 = vld [vmem:[%s8935 + $0x44] sm:$0xf]
        %v8954 = vld [vmem:[%s8935 + $0x48] sm:$0xf]
        %v8955 = vld [vmem:[%s8935 + $0x4c] sm:$0xf]
        %v8956 = vld [vmem:[%s8935 + $0x50] sm:$0xf]
        %v8957 = vld [vmem:[%s8935 + $0x54] sm:$0xf]
        %v8958 = vld [vmem:[%s8935 + $0x58] sm:$0xf]
        %v8959 = vld [vmem:[%s8935 + $0x5c] sm:$0xf]
        %v8960 = vld [vmem:[%s8935 + $0x60] sm:$0xf]
        %v8961 = vld [vmem:[%s8935 + $0x64] sm:$0xf]
        %v8962 = vld [vmem:[%s8935 + $0x68] sm:$0xf]
        %v8963 = vld [vmem:[%s8935 + $0x6c] sm:$0xf]
        %v8964 = vld [vmem:[%s8935 + $0x70] sm:$0xf]
        %v8965 = vld [vmem:[%s8935 + $0x74] sm:$0xf]
        %v8966 = vld [vmem:[%s8935 + $0x78] sm:$0xf]
        %v8967 = vld [vmem:[%s8935 + $0x7c] sm:$0xf]
        %v8968 = vld [vmem:[%s8935 + $0x80] sm:$0xf]
        %v8969 = vld [vmem:[%s8935 + $0x84] sm:$0xf]
        %v8970 = vld [vmem:[%s8935 + $0x88] sm:$0xf]
        %v8971 = vld [vmem:[%s8935 + $0x8c] sm:$0xf]
        %v8972 = vld [vmem:[%s8935 + $0x90] sm:$0xf]
        %v8973 = vld [vmem:[%s8935 + $0x94] sm:$0xf]
        %v8974 = vld [vmem:[%s8935 + $0x98] sm:$0xf]
        %v8975 = vld [vmem:[%s8935 + $0x9c] sm:$0xf]
        %v8976 = vld [vmem:[%s8935 + $0xa0] sm:$0xf]
        %v8977 = vld [vmem:[%s8935 + $0xa4] sm:$0xf]
        %v8978 = vld [vmem:[%s8935 + $0xa8] sm:$0xf]
        %v8979 = vld [vmem:[%s8935 + $0xac] sm:$0xf]
        %v8980 = vld [vmem:[%s8935 + $0xb0] sm:$0xf]
        %v8981 = vld [vmem:[%s8935 + $0xb4] sm:$0xf]
        %v8982 = vld [vmem:[%s8935 + $0xb8] sm:$0xf]
        %v8983 = vld [vmem:[%s8935 + $0xbc] sm:$0xf]
        %v9048 = vunpack.c.l.b16 %v8871
        %v9049 = vunpack.c.h.b16 %v8871
        %v9050 = vunpack.c.l.b16 %v8872
        %v9051 = vunpack.c.l.b16 %v8873
        %v9052 = vunpack.c.h.b16 %v8873
        %v9053 = vunpack.c.l.b16 %v8874
        %v9054 = vunpack.c.l.b16 %v8875
        %v9055 = vunpack.c.h.b16 %v8875
        %v9056 = vunpack.c.l.b16 %v8876
        %v9057 = vunpack.c.l.b16 %v8877
        %v9058 = vunpack.c.h.b16 %v8877
        %v9059 = vunpack.c.l.b16 %v8878
        %v9060 = vunpack.c.l.b16 %v8879
        %v9061 = vunpack.c.h.b16 %v8879
        %v9062 = vunpack.c.l.b16 %v8880
        %v9063 = vunpack.c.l.b16 %v8881
        %v9064 = vunpack.c.h.b16 %v8881
        %v9065 = vunpack.c.l.b16 %v8882
        %v9066 = vunpack.c.l.b16 %v8883
        %v9067 = vunpack.c.h.b16 %v8883
        %v9068 = vunpack.c.l.b16 %v8884
        %v9069 = vunpack.c.l.b16 %v8885
        %v9070 = vunpack.c.h.b16 %v8885
        %v9071 = vunpack.c.l.b16 %v8886
        %v9072 = vunpack.c.l.b16 %v8887
        %v9073 = vunpack.c.h.b16 %v8887
        %v9074 = vunpack.c.l.b16 %v8888
        %v9075 = vunpack.c.l.b16 %v8889
        %v9076 = vunpack.c.h.b16 %v8889
        %v9077 = vunpack.c.l.b16 %v8890
        %v9078 = vunpack.c.l.b16 %v8891
        %v9079 = vunpack.c.h.b16 %v8891
        %v9080 = vunpack.c.l.b16 %v8892
        %v9081 = vunpack.c.l.b16 %v8893
        %v9082 = vunpack.c.h.b16 %v8893
        %v9083 = vunpack.c.l.b16 %v8894
        %v9084 = vunpack.c.l.b16 %v8895
        %v9085 = vunpack.c.h.b16 %v8895
        %v9086 = vunpack.c.l.b16 %v8896
        %v9087 = vunpack.c.l.b16 %v8897
        %v9088 = vunpack.c.h.b16 %v8897
        %v9089 = vunpack.c.l.b16 %v8898
        %v9090 = vunpack.c.l.b16 %v8899
        %v9091 = vunpack.c.h.b16 %v8899
        %v9092 = vunpack.c.l.b16 %v8900
        %v9093 = vunpack.c.l.b16 %v8901
        %v9094 = vunpack.c.h.b16 %v8901
        %v9095 = vunpack.c.l.b16 %v8902
        %v9096 = vunpack.c.l.b16 %v8903
        %v9097 = vunpack.c.h.b16 %v8903
        %v9098 = vunpack.c.l.b16 %v8904
        %v9099 = vunpack.c.l.b16 %v8905
        %v9100 = vunpack.c.h.b16 %v8905
        %v9101 = vunpack.c.l.b16 %v8906
        %v9102 = vunpack.c.l.b16 %v8907
        %v9103 = vunpack.c.h.b16 %v8907
        %v9104 = vunpack.c.l.b16 %v8908
        %v9105 = vunpack.c.l.b16 %v8909
        %v9106 = vunpack.c.h.b16 %v8909
        %v9107 = vunpack.c.l.b16 %v8910
        %v9108 = vunpack.c.l.b16 %v8911
        %v9109 = vunpack.c.h.b16 %v8911
        %v9110 = vunpack.c.l.b16 %v8912
        %v9111 = vunpack.c.l.b16 %v8913
        %v9112 = vunpack.c.h.b16 %v8913
        %v9113 = vunpack.c.l.b16 %v8914
        %v9114 = vunpack.c.l.b16 %v8915
        %v9115 = vunpack.c.h.b16 %v8915
        %v9116 = vunpack.c.l.b16 %v8916
        %v9117 = vunpack.c.l.b16 %v8917
        %v9118 = vunpack.c.h.b16 %v8917
        %v9119 = vunpack.c.l.b16 %v8918
        %v9120 = vunpack.c.l.b16 %v8919
        %v9121 = vunpack.c.h.b16 %v8919
        %v9122 = vunpack.c.l.b16 %v8920
        %v9123 = vunpack.c.l.b16 %v8921
        %v9124 = vunpack.c.h.b16 %v8921
        %v9125 = vunpack.c.l.b16 %v8922
        %v9126 = vunpack.c.l.b16 %v8923
        %v9127 = vunpack.c.h.b16 %v8923
        %v9128 = vunpack.c.l.b16 %v8924
        %v9129 = vunpack.c.l.b16 %v8925
        %v9130 = vunpack.c.h.b16 %v8925
        %v9131 = vunpack.c.l.b16 %v8926
        %v9132 = vunpack.c.l.b16 %v8927
        %v9133 = vunpack.c.h.b16 %v8927
        %v9134 = vunpack.c.l.b16 %v8928
        %v9135 = vunpack.c.l.b16 %v8929
        %v9136 = vunpack.c.h.b16 %v8929
        %v9137 = vunpack.c.l.b16 %v8930
        %v9138 = vunpack.c.l.b16 %v8931
        %v9139 = vunpack.c.h.b16 %v8931
        %v9140 = vunpack.c.l.b16 %v8932
        %v9141 = vunpack.c.l.b16 %v8933
        %v9142 = vunpack.c.h.b16 %v8933
        %v9143 = vunpack.c.l.b16 %v8934
        %v9144 = vpack.c.b16 %v9051, %v9048
        %v9145 = vpack.c.b16 %v9052, %v9049
        %v9146 = vpack.c.b16 %v9053, %v9050
        %v9147 = vpack.c.b16 %v9057, %v9054
        %v9148 = vpack.c.b16 %v9058, %v9055
        %v9149 = vpack.c.b16 %v9059, %v9056
        %v9150 = vpack.c.b16 %v9063, %v9060
        %v9151 = vpack.c.b16 %v9064, %v9061
        %v9152 = vpack.c.b16 %v9065, %v9062
        %v9153 = vpack.c.b16 %v9069, %v9066
        %v9154 = vpack.c.b16 %v9070, %v9067
        %v9155 = vpack.c.b16 %v9071, %v9068
        %v9156 = vpack.c.b16 %v9075, %v9072
        %v9157 = vpack.c.b16 %v9076, %v9073
        %v9158 = vpack.c.b16 %v9077, %v9074
        %v9159 = vpack.c.b16 %v9081, %v9078
        %v9160 = vpack.c.b16 %v9082, %v9079
        %v9161 = vpack.c.b16 %v9083, %v9080
        %v9162 = vpack.c.b16 %v9087, %v9084
        %v9163 = vpack.c.b16 %v9088, %v9085
        %v9164 = vpack.c.b16 %v9089, %v9086
        %v9165 = vpack.c.b16 %v9093, %v9090
        %v9166 = vpack.c.b16 %v9094, %v9091
        %v9167 = vpack.c.b16 %v9095, %v9092
        %v9168 = vpack.c.b16 %v9099, %v9096
        %v9169 = vpack.c.b16 %v9100, %v9097
        %v9170 = vpack.c.b16 %v9101, %v9098
        %v9171 = vpack.c.b16 %v9105, %v9102
        %v9172 = vpack.c.b16 %v9106, %v9103
        %v9173 = vpack.c.b16 %v9107, %v9104
        %v9174 = vpack.c.b16 %v9111, %v9108
        %v9175 = vpack.c.b16 %v9112, %v9109
        %v9176 = vpack.c.b16 %v9113, %v9110
        %v9177 = vpack.c.b16 %v9117, %v9114
        %v9178 = vpack.c.b16 %v9118, %v9115
        %v9179 = vpack.c.b16 %v9119, %v9116
        %v9180 = vpack.c.b16 %v9123, %v9120
        %v9181 = vpack.c.b16 %v9124, %v9121
        %v9182 = vpack.c.b16 %v9125, %v9122
        %v9183 = vpack.c.b16 %v9129, %v9126
        %v9184 = vpack.c.b16 %v9130, %v9127
        %v9185 = vpack.c.b16 %v9131, %v9128
        %v9186 = vpack.c.b16 %v9135, %v9132
        %v9187 = vpack.c.b16 %v9136, %v9133
        %v9188 = vpack.c.b16 %v9137, %v9134
        %v9189 = vpack.c.b16 %v9141, %v9138
        %v9190 = vpack.c.b16 %v9142, %v9139
        %v9191 = vpack.c.b16 %v9143, %v9140
        %v9288 = vunpack.c.l.b16 %v8936
        %v9289 = vunpack.c.l.b16 %v8937
        %v9290 = vunpack.c.l.b16 %v8938
        %v9291 = vunpack.c.l.b16 %v8939
        %v9292 = vunpack.c.l.b16 %v8940
        %v9293 = vunpack.c.l.b16 %v8941
        %v9294 = vunpack.c.l.b16 %v8942
        %v9295 = vunpack.c.l.b16 %v8943
        %v9296 = vunpack.c.l.b16 %v8944
        %v9297 = vunpack.c.l.b16 %v8945
        %v9298 = vunpack.c.l.b16 %v8946
        %v9299 = vunpack.c.l.b16 %v8947
        %v9300 = vunpack.c.l.b16 %v8948
        %v9301 = vunpack.c.l.b16 %v8949
        %v9302 = vunpack.c.l.b16 %v8950
        %v9303 = vunpack.c.l.b16 %v8951
        %v9304 = vunpack.c.l.b16 %v8952
        %v9305 = vunpack.c.l.b16 %v8953
        %v9306 = vunpack.c.l.b16 %v8954
        %v9307 = vunpack.c.l.b16 %v8955
        %v9308 = vunpack.c.l.b16 %v8956
        %v9309 = vunpack.c.l.b16 %v8957
        %v9310 = vunpack.c.l.b16 %v8958
        %v9311 = vunpack.c.l.b16 %v8959
        %v9312 = vunpack.c.l.b16 %v8960
        %v9313 = vunpack.c.l.b16 %v8961
        %v9314 = vunpack.c.l.b16 %v8962
        %v9315 = vunpack.c.l.b16 %v8963
        %v9316 = vunpack.c.l.b16 %v8964
        %v9317 = vunpack.c.l.b16 %v8965
        %v9318 = vunpack.c.l.b16 %v8966
        %v9319 = vunpack.c.l.b16 %v8967
        %v9320 = vunpack.c.l.b16 %v8968
        %v9321 = vunpack.c.l.b16 %v8969
        %v9322 = vunpack.c.l.b16 %v8970
        %v9323 = vunpack.c.l.b16 %v8971
        %v9324 = vunpack.c.l.b16 %v8972
        %v9325 = vunpack.c.l.b16 %v8973
        %v9326 = vunpack.c.l.b16 %v8974
        %v9327 = vunpack.c.l.b16 %v8975
        %v9328 = vunpack.c.l.b16 %v8976
        %v9329 = vunpack.c.l.b16 %v8977
        %v9330 = vunpack.c.l.b16 %v8978
        %v9331 = vunpack.c.l.b16 %v8979
        %v9332 = vunpack.c.l.b16 %v8980
        %v9333 = vunpack.c.l.b16 %v8981
        %v9334 = vunpack.c.l.b16 %v8982
        %v9335 = vunpack.c.l.b16 %v8983
        %v9336 = vpack.c.b16 %v9289, %v9288
        %v9337 = vpack.c.b16 %v9291, %v9290
        %v9338 = vpack.c.b16 %v9293, %v9292
        %v9339 = vpack.c.b16 %v9295, %v9294
        %v9340 = vpack.c.b16 %v9297, %v9296
        %v9341 = vpack.c.b16 %v9299, %v9298
        %v9342 = vpack.c.b16 %v9301, %v9300
        %v9343 = vpack.c.b16 %v9303, %v9302
        %v9344 = vpack.c.b16 %v9305, %v9304
        %v9345 = vpack.c.b16 %v9307, %v9306
        %v9346 = vpack.c.b16 %v9309, %v9308
        %v9347 = vpack.c.b16 %v9311, %v9310
        %v9348 = vpack.c.b16 %v9313, %v9312
        %v9349 = vpack.c.b16 %v9315, %v9314
        %v9350 = vpack.c.b16 %v9317, %v9316
        %v9351 = vpack.c.b16 %v9319, %v9318
        %v9352 = vpack.c.b16 %v9321, %v9320
        %v9353 = vpack.c.b16 %v9323, %v9322
        %v9354 = vpack.c.b16 %v9325, %v9324
        %v9355 = vpack.c.b16 %v9327, %v9326
        %v9356 = vpack.c.b16 %v9329, %v9328
        %v9357 = vpack.c.b16 %v9331, %v9330
        %v9358 = vpack.c.b16 %v9333, %v9332
        %v9359 = vpack.c.b16 %v9335, %v9334
        %9384 = vmatpush.bf16.msra.mxu0 %v9343
        %9385 = vmatpush.bf16.msra.mxu0 %v9342
        %9386 = vmatpush.bf16.msra.mxu0 %v9341
        %9387 = vmatpush.bf16.msra.mxu0 %v9340
        %9388 = vmatpush.bf16.msra.mxu0 %v9339
        %9389 = vmatpush.bf16.msra.mxu0 %v9338
        %9390 = vmatpush.bf16.msra.mxu0 %v9337
        %9391 = vmatpush.bf16.msra.mxu0 %v9336
        %9392 = vmatmul.bf16.gmra.mxu0 %v9144
        %v9393 = vpop.f32.mrf.mxu0
        %v9394 = vadd.f32 0.0, %v9393
        %v9395 = vpop.f32.mrf.mxu0
        %v9396 = vadd.f32 0.0, %v9395
        %9397 = vmatmul.bf16.gmra.mxu0 %v9147
        %v9398 = vpop.f32.mrf.mxu0
        %v9399 = vadd.f32 0.0, %v9398
        %v9400 = vpop.f32.mrf.mxu0
        %v9401 = vadd.f32 0.0, %v9400
        %9402 = vmatmul.bf16.gmra.mxu0 %v9150
        %v9403 = vpop.f32.mrf.mxu0
        %v9404 = vadd.f32 0.0, %v9403
        %v9405 = vpop.f32.mrf.mxu0
        %v9406 = vadd.f32 0.0, %v9405
        %9407 = vmatmul.bf16.gmra.mxu0 %v9153
        %v9408 = vpop.f32.mrf.mxu0
        %v9409 = vadd.f32 0.0, %v9408
        %v9410 = vpop.f32.mrf.mxu0
        %v9411 = vadd.f32 0.0, %v9410
        %9412 = vmatmul.bf16.gmra.mxu0 %v9156
        %v9413 = vpop.f32.mrf.mxu0
        %v9414 = vadd.f32 0.0, %v9413
        %v9415 = vpop.f32.mrf.mxu0
        %v9416 = vadd.f32 0.0, %v9415
        %9417 = vmatmul.bf16.gmra.mxu0 %v9159
        %v9418 = vpop.f32.mrf.mxu0
        %v9419 = vadd.f32 0.0, %v9418
        %v9420 = vpop.f32.mrf.mxu0
        %v9421 = vadd.f32 0.0, %v9420
        %9422 = vmatmul.bf16.gmra.mxu0 %v9162
        %v9423 = vpop.f32.mrf.mxu0
        %v9424 = vadd.f32 0.0, %v9423
        %v9425 = vpop.f32.mrf.mxu0
        %v9426 = vadd.f32 0.0, %v9425
        %9427 = vmatmul.bf16.gmra.mxu0 %v9165
        %v9428 = vpop.f32.mrf.mxu0
        %v9429 = vadd.f32 0.0, %v9428
        %v9430 = vpop.f32.mrf.mxu0
        %v9431 = vadd.f32 0.0, %v9430
        %9432 = vmatmul.bf16.gmra.mxu0 %v9168
        %v9433 = vpop.f32.mrf.mxu0
        %v9434 = vadd.f32 0.0, %v9433
        %v9435 = vpop.f32.mrf.mxu0
        %v9436 = vadd.f32 0.0, %v9435
        %9437 = vmatmul.bf16.gmra.mxu0 %v9171
        %v9438 = vpop.f32.mrf.mxu0
        %v9439 = vadd.f32 0.0, %v9438
        %v9440 = vpop.f32.mrf.mxu0
        %v9441 = vadd.f32 0.0, %v9440
        %9442 = vmatmul.bf16.gmra.mxu0 %v9174
        %v9443 = vpop.f32.mrf.mxu0
        %v9444 = vadd.f32 0.0, %v9443
        %v9445 = vpop.f32.mrf.mxu0
        %v9446 = vadd.f32 0.0, %v9445
        %9447 = vmatmul.bf16.gmra.mxu0 %v9177
        %v9448 = vpop.f32.mrf.mxu0
        %v9449 = vadd.f32 0.0, %v9448
        %v9450 = vpop.f32.mrf.mxu0
        %v9451 = vadd.f32 0.0, %v9450
        %9452 = vmatmul.bf16.gmra.mxu0 %v9180
        %v9453 = vpop.f32.mrf.mxu0
        %v9454 = vadd.f32 0.0, %v9453
        %v9455 = vpop.f32.mrf.mxu0
        %v9456 = vadd.f32 0.0, %v9455
        %9457 = vmatmul.bf16.gmra.mxu0 %v9183
        %v9458 = vpop.f32.mrf.mxu0
        %v9459 = vadd.f32 0.0, %v9458
        %v9460 = vpop.f32.mrf.mxu0
        %v9461 = vadd.f32 0.0, %v9460
        %9462 = vmatmul.bf16.gmra.mxu0 %v9186
        %v9463 = vpop.f32.mrf.mxu0
        %v9464 = vadd.f32 0.0, %v9463
        %v9465 = vpop.f32.mrf.mxu0
        %v9466 = vadd.f32 0.0, %v9465
        %9467 = vmatmul.bf16.gmra.mxu0 %v9189
        %v9468 = vpop.f32.mrf.mxu0
        %v9469 = vadd.f32 0.0, %v9468
        %v9470 = vpop.f32.mrf.mxu0
        %v9471 = vadd.f32 0.0, %v9470
        %9472 = vdwg.mxu0
        %9473 = vmatpush.bf16.msra.mxu0 %v9351
        %9474 = vmatpush.bf16.msra.mxu0 %v9350
        %9475 = vmatpush.bf16.msra.mxu0 %v9349
        %9476 = vmatpush.bf16.msra.mxu0 %v9348
        %9477 = vmatpush.bf16.msra.mxu0 %v9347
        %9478 = vmatpush.bf16.msra.mxu0 %v9346
        %9479 = vmatpush.bf16.msra.mxu0 %v9345
        %9480 = vmatpush.bf16.msra.mxu0 %v9344
        %9481 = vmatmul.bf16.gmra.mxu0 %v9145
        %v9482 = vpop.f32.mrf.mxu0
        %v9483 = vadd.f32 %v9394, %v9482
        %v9484 = vpop.f32.mrf.mxu0
        %v9485 = vadd.f32 %v9396, %v9484
        %9486 = vmatmul.bf16.gmra.mxu0 %v9148
        %v9487 = vpop.f32.mrf.mxu0
        %v9488 = vadd.f32 %v9399, %v9487
        %v9489 = vpop.f32.mrf.mxu0
        %v9490 = vadd.f32 %v9401, %v9489
        %9491 = vmatmul.bf16.gmra.mxu0 %v9151
        %v9492 = vpop.f32.mrf.mxu0
        %v9493 = vadd.f32 %v9404, %v9492
        %v9494 = vpop.f32.mrf.mxu0
        %v9495 = vadd.f32 %v9406, %v9494
        %9496 = vmatmul.bf16.gmra.mxu0 %v9154
        %v9497 = vpop.f32.mrf.mxu0
        %v9498 = vadd.f32 %v9409, %v9497
        %v9499 = vpop.f32.mrf.mxu0
        %v9500 = vadd.f32 %v9411, %v9499
        %9501 = vmatmul.bf16.gmra.mxu0 %v9157
        %v9502 = vpop.f32.mrf.mxu0
        %v9503 = vadd.f32 %v9414, %v9502
        %v9504 = vpop.f32.mrf.mxu0
        %v9505 = vadd.f32 %v9416, %v9504
        %9506 = vmatmul.bf16.gmra.mxu0 %v9160
        %v9507 = vpop.f32.mrf.mxu0
        %v9508 = vadd.f32 %v9419, %v9507
        %v9509 = vpop.f32.mrf.mxu0
        %v9510 = vadd.f32 %v9421, %v9509
        %9511 = vmatmul.bf16.gmra.mxu0 %v9163
        %v9512 = vpop.f32.mrf.mxu0
        %v9513 = vadd.f32 %v9424, %v9512
        %v9514 = vpop.f32.mrf.mxu0
        %v9515 = vadd.f32 %v9426, %v9514
        %9516 = vmatmul.bf16.gmra.mxu0 %v9166
        %v9517 = vpop.f32.mrf.mxu0
        %v9518 = vadd.f32 %v9429, %v9517
        %v9519 = vpop.f32.mrf.mxu0
        %v9520 = vadd.f32 %v9431, %v9519
        %9521 = vmatmul.bf16.gmra.mxu0 %v9169
        %v9522 = vpop.f32.mrf.mxu0
        %v9523 = vadd.f32 %v9434, %v9522
        %v9524 = vpop.f32.mrf.mxu0
        %v9525 = vadd.f32 %v9436, %v9524
        %9526 = vmatmul.bf16.gmra.mxu0 %v9172
        %v9527 = vpop.f32.mrf.mxu0
        %v9528 = vadd.f32 %v9439, %v9527
        %v9529 = vpop.f32.mrf.mxu0
        %v9530 = vadd.f32 %v9441, %v9529
        %9531 = vmatmul.bf16.gmra.mxu0 %v9175
        %v9532 = vpop.f32.mrf.mxu0
        %v9533 = vadd.f32 %v9444, %v9532
        %v9534 = vpop.f32.mrf.mxu0
        %v9535 = vadd.f32 %v9446, %v9534
        %9536 = vmatmul.bf16.gmra.mxu0 %v9178
        %v9537 = vpop.f32.mrf.mxu0
        %v9538 = vadd.f32 %v9449, %v9537
        %v9539 = vpop.f32.mrf.mxu0
        %v9540 = vadd.f32 %v9451, %v9539
        %9541 = vmatmul.bf16.gmra.mxu0 %v9181
        %v9542 = vpop.f32.mrf.mxu0
        %v9543 = vadd.f32 %v9454, %v9542
        %v9544 = vpop.f32.mrf.mxu0
        %v9545 = vadd.f32 %v9456, %v9544
        %9546 = vmatmul.bf16.gmra.mxu0 %v9184
        %v9547 = vpop.f32.mrf.mxu0
        %v9548 = vadd.f32 %v9459, %v9547
        %v9549 = vpop.f32.mrf.mxu0
        %v9550 = vadd.f32 %v9461, %v9549
        %9551 = vmatmul.bf16.gmra.mxu0 %v9187
        %v9552 = vpop.f32.mrf.mxu0
        %v9553 = vadd.f32 %v9464, %v9552
        %v9554 = vpop.f32.mrf.mxu0
        %v9555 = vadd.f32 %v9466, %v9554
        %9556 = vmatmul.bf16.gmra.mxu0 %v9190
        %v9557 = vpop.f32.mrf.mxu0
        %v9558 = vadd.f32 %v9469, %v9557
        %v9559 = vpop.f32.mrf.mxu0
        %v9560 = vadd.f32 %v9471, %v9559
        %9561 = vdwg.mxu0
        %9562 = vmatpush.bf16.msra.mxu0 %v9359
        %9563 = vmatpush.bf16.msra.mxu0 %v9358
        %9564 = vmatpush.bf16.msra.mxu0 %v9357
        %9565 = vmatpush.bf16.msra.mxu0 %v9356
        %9566 = vmatpush.bf16.msra.mxu0 %v9355
        %9567 = vmatpush.bf16.msra.mxu0 %v9354
        %9568 = vmatpush.bf16.msra.mxu0 %v9353
        %9569 = vmatpush.bf16.msra.mxu0 %v9352
        %9570 = vmatmul.bf16.gmra.mxu0 %v9146
        %v9571 = vpop.f32.mrf.mxu0
        %v9572 = vadd.f32 %v9483, %v9571
        %v9573 = vpop.f32.mrf.mxu0
        %v9574 = vadd.f32 %v9485, %v9573
        %9575 = vmatmul.bf16.gmra.mxu0 %v9149
        %v9576 = vpop.f32.mrf.mxu0
        %v9577 = vadd.f32 %v9488, %v9576
        %v9578 = vpop.f32.mrf.mxu0
        %v9579 = vadd.f32 %v9490, %v9578
        %9580 = vmatmul.bf16.gmra.mxu0 %v9152
        %v9581 = vpop.f32.mrf.mxu0
        %v9582 = vadd.f32 %v9493, %v9581
        %v9583 = vpop.f32.mrf.mxu0
        %v9584 = vadd.f32 %v9495, %v9583
        %9585 = vmatmul.bf16.gmra.mxu0 %v9155
        %v9586 = vpop.f32.mrf.mxu0
        %v9587 = vadd.f32 %v9498, %v9586
        %v9588 = vpop.f32.mrf.mxu0
        %v9589 = vadd.f32 %v9500, %v9588
        %9590 = vmatmul.bf16.gmra.mxu0 %v9158
        %v9591 = vpop.f32.mrf.mxu0
        %v9592 = vadd.f32 %v9503, %v9591
        %v9593 = vpop.f32.mrf.mxu0
        %v9594 = vadd.f32 %v9505, %v9593
        %9595 = vmatmul.bf16.gmra.mxu0 %v9161
        %v9596 = vpop.f32.mrf.mxu0
        %v9597 = vadd.f32 %v9508, %v9596
        %v9598 = vpop.f32.mrf.mxu0
        %v9599 = vadd.f32 %v9510, %v9598
        %9600 = vmatmul.bf16.gmra.mxu0 %v9164
        %v9601 = vpop.f32.mrf.mxu0
        %v9602 = vadd.f32 %v9513, %v9601
        %v9603 = vpop.f32.mrf.mxu0
        %v9604 = vadd.f32 %v9515, %v9603
        %9605 = vmatmul.bf16.gmra.mxu0 %v9167
        %v9606 = vpop.f32.mrf.mxu0
        %v9607 = vadd.f32 %v9518, %v9606
        %v9608 = vpop.f32.mrf.mxu0
        %v9609 = vadd.f32 %v9520, %v9608
        %9610 = vmatmul.bf16.gmra.mxu0 %v9170
        %v9611 = vpop.f32.mrf.mxu0
        %v9612 = vadd.f32 %v9523, %v9611
        %v9613 = vpop.f32.mrf.mxu0
        %v9614 = vadd.f32 %v9525, %v9613
        %9615 = vmatmul.bf16.gmra.mxu0 %v9173
        %v9616 = vpop.f32.mrf.mxu0
        %v9617 = vadd.f32 %v9528, %v9616
        %v9618 = vpop.f32.mrf.mxu0
        %v9619 = vadd.f32 %v9530, %v9618
        %9620 = vmatmul.bf16.gmra.mxu0 %v9176
        %v9621 = vpop.f32.mrf.mxu0
        %v9622 = vadd.f32 %v9533, %v9621
        %v9623 = vpop.f32.mrf.mxu0
        %v9624 = vadd.f32 %v9535, %v9623
        %9625 = vmatmul.bf16.gmra.mxu0 %v9179
        %v9626 = vpop.f32.mrf.mxu0
        %v9627 = vadd.f32 %v9538, %v9626
        %v9628 = vpop.f32.mrf.mxu0
        %v9629 = vadd.f32 %v9540, %v9628
        %9630 = vmatmul.bf16.gmra.mxu0 %v9182
        %v9631 = vpop.f32.mrf.mxu0
        %v9632 = vadd.f32 %v9543, %v9631
        %v9633 = vpop.f32.mrf.mxu0
        %v9634 = vadd.f32 %v9545, %v9633
        %9635 = vmatmul.bf16.gmra.mxu0 %v9185
        %v9636 = vpop.f32.mrf.mxu0
        %v9637 = vadd.f32 %v9548, %v9636
        %v9638 = vpop.f32.mrf.mxu0
        %v9639 = vadd.f32 %v9550, %v9638
        %9640 = vmatmul.bf16.gmra.mxu0 %v9188
        %v9641 = vpop.f32.mrf.mxu0
        %v9642 = vadd.f32 %v9553, %v9641
        %v9643 = vpop.f32.mrf.mxu0
        %v9644 = vadd.f32 %v9555, %v9643
        %9645 = vmatmul.bf16.gmra.mxu0 %v9191
        %v9646 = vpop.f32.mrf.mxu0
        %v9647 = vadd.f32 %v9558, %v9646
        %v9648 = vpop.f32.mrf.mxu0
        %v9649 = vadd.f32 %v9560, %v9648
        %9650 = vdwg.mxu0
        %v9651 = vadd.f32 %v8792, %v9572
        %v9652 = vadd.f32 %v8794, %v9574
        %v9653 = vadd.f32 %v8797, %v9577
        %v9654 = vadd.f32 %v8799, %v9579
        %v9655 = vadd.f32 %v8802, %v9582
        %v9656 = vadd.f32 %v8804, %v9584
        %v9657 = vadd.f32 %v8807, %v9587
        %v9658 = vadd.f32 %v8809, %v9589
        %v9659 = vadd.f32 %v8812, %v9592
        %v9660 = vadd.f32 %v8814, %v9594
        %v9661 = vadd.f32 %v8817, %v9597
        %v9662 = vadd.f32 %v8819, %v9599
        %v9663 = vadd.f32 %v8822, %v9602
        %v9664 = vadd.f32 %v8824, %v9604
        %v9665 = vadd.f32 %v8827, %v9607
        %v9666 = vadd.f32 %v8829, %v9609
        %v9667 = vadd.f32 %v8832, %v9612
        %v9668 = vadd.f32 %v8834, %v9614
        %v9669 = vadd.f32 %v8837, %v9617
        %v9670 = vadd.f32 %v8839, %v9619
        %v9671 = vadd.f32 %v8842, %v9622
        %v9672 = vadd.f32 %v8844, %v9624
        %v9673 = vadd.f32 %v8847, %v9627
        %v9674 = vadd.f32 %v8849, %v9629
        %v9675 = vadd.f32 %v8852, %v9632
        %v9676 = vadd.f32 %v8854, %v9634
        %v9677 = vadd.f32 %v8857, %v9637
        %v9678 = vadd.f32 %v8859, %v9639
        %v9679 = vadd.f32 %v8862, %v9642
        %v9680 = vadd.f32 %v8864, %v9644
        %v9681 = vadd.f32 %v8867, %v9647
        %v9682 = vadd.f32 %v8869, %v9649
        %v9683 = vld [vmem:[%s7] sm:$0x1]
        %v9685 = vperm.slane %v9683, 0
        %v9687 = vadd.f32 %v9651, %v9685
        %v9688 = vadd.f32 %v9652, %v9685
        %v9689 = vadd.f32 %v9653, %v9685
        %v9690 = vadd.f32 %v9654, %v9685
        %v9691 = vadd.f32 %v9655, %v9685
        %v9692 = vadd.f32 %v9656, %v9685
        %v9693 = vadd.f32 %v9657, %v9685
        %v9694 = vadd.f32 %v9658, %v9685
        %v9695 = vadd.f32 %v9659, %v9685
        %v9696 = vadd.f32 %v9660, %v9685
        %v9697 = vadd.f32 %v9661, %v9685
        %v9698 = vadd.f32 %v9662, %v9685
        %v9699 = vadd.f32 %v9663, %v9685
        %v9700 = vadd.f32 %v9664, %v9685
        %v9701 = vadd.f32 %v9665, %v9685
        %v9702 = vadd.f32 %v9666, %v9685
        %v9703 = vadd.f32 %v9667, %v9685
        %v9704 = vadd.f32 %v9668, %v9685
        %v9705 = vadd.f32 %v9669, %v9685
        %v9706 = vadd.f32 %v9670, %v9685
        %v9707 = vadd.f32 %v9671, %v9685
        %v9708 = vadd.f32 %v9672, %v9685
        %v9709 = vadd.f32 %v9673, %v9685
        %v9710 = vadd.f32 %v9674, %v9685
        %v9711 = vadd.f32 %v9675, %v9685
        %v9712 = vadd.f32 %v9676, %v9685
        %v9713 = vadd.f32 %v9677, %v9685
        %v9714 = vadd.f32 %v9678, %v9685
        %v9715 = vadd.f32 %v9679, %v9685
        %v9716 = vadd.f32 %v9680, %v9685
        %v9717 = vadd.f32 %v9681, %v9685
        %v9718 = vadd.f32 %v9682, %v9685
        %v9719 = vld [vmem:[%s8] sm:$0x1]
        %v9721 = vperm.slane %v9719, 0
        %v9723 = vmul.f32 %v9687, %v9721
        %v9724 = vmul.f32 %v9688, %v9721
        %v9725 = vmul.f32 %v9689, %v9721
        %v9726 = vmul.f32 %v9690, %v9721
        %v9727 = vmul.f32 %v9691, %v9721
        %v9728 = vmul.f32 %v9692, %v9721
        %v9729 = vmul.f32 %v9693, %v9721
        %v9730 = vmul.f32 %v9694, %v9721
        %v9731 = vmul.f32 %v9695, %v9721
        %v9732 = vmul.f32 %v9696, %v9721
        %v9733 = vmul.f32 %v9697, %v9721
        %v9734 = vmul.f32 %v9698, %v9721
        %v9735 = vmul.f32 %v9699, %v9721
        %v9736 = vmul.f32 %v9700, %v9721
        %v9737 = vmul.f32 %v9701, %v9721
        %v9738 = vmul.f32 %v9702, %v9721
        %v9739 = vmul.f32 %v9703, %v9721
        %v9740 = vmul.f32 %v9704, %v9721
        %v9741 = vmul.f32 %v9705, %v9721
        %v9742 = vmul.f32 %v9706, %v9721
        %v9743 = vmul.f32 %v9707, %v9721
        %v9744 = vmul.f32 %v9708, %v9721
        %v9745 = vmul.f32 %v9709, %v9721
        %v9746 = vmul.f32 %v9710, %v9721
        %v9747 = vmul.f32 %v9711, %v9721
        %v9748 = vmul.f32 %v9712, %v9721
        %v9749 = vmul.f32 %v9713, %v9721
        %v9750 = vmul.f32 %v9714, %v9721
        %v9751 = vmul.f32 %v9715, %v9721
        %v9752 = vmul.f32 %v9716, %v9721
        %v9753 = vmul.f32 %v9717, %v9721
        %v9754 = vmul.f32 %v9718, %v9721
        %9755 = vst [vmem:[%s342] sm:$0xff] %v9723
        %9756 = vst [vmem:[%s342 + $0x8] sm:$0xff] %v9724
        %9757 = vst [vmem:[%s342 + $0x10] sm:$0xff] %v9725
        %9758 = vst [vmem:[%s342 + $0x18] sm:$0xff] %v9726
        %9759 = vst [vmem:[%s342 + $0x20] sm:$0xff] %v9727
        %9760 = vst [vmem:[%s342 + $0x28] sm:$0xff] %v9728
        %9761 = vst [vmem:[%s342 + $0x30] sm:$0xff] %v9729
        %9762 = vst [vmem:[%s342 + $0x38] sm:$0xff] %v9730
        %9763 = vst [vmem:[%s342 + $0x40] sm:$0xff] %v9731
        %9764 = vst [vmem:[%s342 + $0x48] sm:$0xff] %v9732
        %9765 = vst [vmem:[%s342 + $0x50] sm:$0xff] %v9733
        %9766 = vst [vmem:[%s342 + $0x58] sm:$0xff] %v9734
        %9767 = vst [vmem:[%s342 + $0x60] sm:$0xff] %v9735
        %9768 = vst [vmem:[%s342 + $0x68] sm:$0xff] %v9736
        %9769 = vst [vmem:[%s342 + $0x70] sm:$0xff] %v9737
        %9770 = vst [vmem:[%s342 + $0x78] sm:$0xff] %v9738
        %9771 = vst [vmem:[%s342 + $0x80] sm:$0xff] %v9739
        %9772 = vst [vmem:[%s342 + $0x88] sm:$0xff] %v9740
        %9773 = vst [vmem:[%s342 + $0x90] sm:$0xff] %v9741
        %9774 = vst [vmem:[%s342 + $0x98] sm:$0xff] %v9742
        %9775 = vst [vmem:[%s342 + $0xa0] sm:$0xff] %v9743
        %9776 = vst [vmem:[%s342 + $0xa8] sm:$0xff] %v9744
        %9777 = vst [vmem:[%s342 + $0xb0] sm:$0xff] %v9745
        %9778 = vst [vmem:[%s342 + $0xb8] sm:$0xff] %v9746
        %9779 = vst [vmem:[%s342 + $0xc0] sm:$0xff] %v9747
        %9780 = vst [vmem:[%s342 + $0xc8] sm:$0xff] %v9748
        %9781 = vst [vmem:[%s342 + $0xd0] sm:$0xff] %v9749
        %9782 = vst [vmem:[%s342 + $0xd8] sm:$0xff] %v9750
        %9783 = vst [vmem:[%s342 + $0xe0] sm:$0xff] %v9751
        %9784 = vst [vmem:[%s342 + $0xe8] sm:$0xff] %v9752
        %9785 = vst [vmem:[%s342 + $0xf0] sm:$0xff] %v9753
        %9786 = vst [vmem:[%s342 + $0xf8] sm:$0xff] %v9754
        %s9787 = sand.u32 %s226, 1
        %s9788 = scalar_lea.sflag [#allocation6], %s9787
        %s9789 = sand.u32 %s226, 1
        %s9790 = smul.addr %s9789, 256
        %s9791 = scalar_lea.vmem [#allocation7], %s9790
        // Predicated region
        $region61: #{tpu_custom_call.1} parent=55 // pred_check
          %p9792 = pneg %p236
        $region62: #{tpu_custom_call.1} parent=55 // pred_check_branch
          %9794 = sbr.rel (%p9792) target = $region64
        $region63: #{tpu_custom_call.1} parent=55 // pred_region
          %9796 = vsyncadd %s9788, 0
          %s9797 = smul.addr %s24, 32
          %s9798 = smul.addr %s9797, 8
          %s9799 = scalar_lea.hbm %s9, %s9798
          %s9800 = sshll.u32 %s9791, 4
          %s9801 = int_to_ptr.vmem [resolvable:$true] %s9800
          %s9802 = sshll.u32 %s9799, 4
          %s9803 = int_to_ptr.hbm [resolvable:$true] %s9802
          %9808 = dma.vmem_to_hbm [thread:$0]  %s9801, 4096, %s9803, %s9788, 128, 128, 8
        $region64: #{tpu_custom_call.1} parent=55 // pred_fallthru
          _
      $region56: #{tpu_custom_call.1} parent=5 // pred_fallthru
        _
      %p9809 = scmp.le.s32.totalorder 2, %s19
      // Predicated region
      $region65: #{tpu_custom_call.1} parent=5 // pred_check
        %p9810 = pneg %p9809
      $region66: #{tpu_custom_call.1} parent=5 // pred_check_branch
        %9812 = sbr.rel (%p9810) target = $region68
      $region67: #{tpu_custom_call.1} parent=5 // pred_region
        %s9813 = ssub.s32 %s19, 2
        // Predicated region
        $region69: #{tpu_custom_call.1} parent=67 // pred_check
          %p9814 = pneg %p242
        $region70: #{tpu_custom_call.1} parent=67 // pred_check_branch
          %9816 = sbr.rel (%p9814) target = $region72
        $region71: #{tpu_custom_call.1} parent=67 // pred_region
          %s9817 = sand.u32 %s227, 1
          %s9818 = scalar_lea.sflag [#allocation6], %s9817
          %s9819 = sand.u32 %s227, 1
          %s9820 = smul.addr %s9819, 256
          %s9821 = scalar_lea.vmem [#allocation7], %s9820
          %9823 = dma.done %s9818, 4096
        $region72: #{tpu_custom_call.1} parent=67 // pred_fallthru
          _
      $region68: #{tpu_custom_call.1} parent=5 // pred_fallthru
        _
    $region6: #{tpu_custom_call.1} parent=1 // loop_footer
      %s23 = sadd.s32 1, %s19
    $region7: #{tpu_custom_call.1} parent=1 // loop_footer_branch
      %18 = sbr.rel target = $region3
    $region8: #{tpu_custom_call.1} parent=1 // loop_exit
      _
    %9824 = vsyncpa [#allocation5], 1
    %s9825 = scalar_lea.sflag [#allocation5], 1
    %9826 = vsyncpa %s9825, 1
    %9827 = vsyncpa [#allocation6], 1
    %s9828 = scalar_lea.sflag [#allocation6], 1
    %9829 = vsyncpa %s9828, 1

</llo_original>
